<compile_context>
chip_gen: v7x
topology: tpu7x:2x2x1
jax: 0.10.0
libtpu: 0.0.40
codegen_flags: <defaults>
</compile_context>

<pallas_src>
import functools

import jax
import jax.numpy as jnp
from jax.experimental import pallas as pl
from jax.experimental.pallas import tpu as pltpu

# 256 matches the 2x256x256 MXU on v6e/v7x and keeps output stores lane-dense.
# v5e (4x128x128 MXU) would prefer 128.
_COUT_TILE = 256
# Explicit VMEM budget (v7x: 64 MiB physical per TensorCore; v5e/v6e: 128).
_VMEM_LIMIT = 64 * 1024 * 1024
_BN_EPS = 1e-5


# ---------------------------------------------------------------------------
# Pallas kernel: 1x1 conv (MXU matmul), optionally preceded by fused
# per-channel affine (BatchNorm) + ReLU; also emits BN batch-stat partials.
# ---------------------------------------------------------------------------
def _make_conv1x1_kernel(pre_act):
    """Grid = (batch n, Cout tile j).

    j is the innermost, sequentially executed ("arbitrary") axis: the bf16
    staged (and optionally BN-affine + ReLU'd) image in `xb_ref` is written on
    j == 0 and reused by every Cout tile, so the VPU work and the fp32->bf16
    cast are not redone per tile.  The batch axis is "parallel": megacore
    partitioning only splits whole images and each core still sees j == 0
    first for every image it owns, so the scratch reuse stays valid.
    """
    def kernel(*refs):
        if pre_act:
            x_ref, s_ref, t_ref, w_ref, o_ref, st_ref, xb_ref = refs
        else:
            x_ref, w_ref, o_ref, st_ref, xb_ref = refs
        _, H, W, Cin = x_ref.shape
        TJ = o_ref.shape[-1]

        @pl.when(pl.program_id(1) == 0)
        def _():
            x = x_ref[0]                                     # (H, W, Cin) f32
            if pre_act:
                x = jnp.maximum(x * s_ref[...] + t_ref[...], 0.0)
            # NOTE: merging (H, W) into the sublane dim is a layout no-op only
            # when W is a multiple of 8; otherwise a one-off VMEM copy.
            xb_ref[...] = x.reshape(H * W, Cin).astype(jnp.bfloat16)

        # bf16 x bf16 -> fp32 accumulation on the MXU.
        y = jnp.dot(xb_ref[...], w_ref[...],
                    preferred_element_type=jnp.float32)      # (H*W, TJ)

        # Fused BatchNorm batch statistics: per-(image, Cout-tile) partial
        # sum / sum-of-squares so BN never re-reads the activation from HBM.
        st_ref[0, 0:1, :] = jnp.sum(y, axis=0, keepdims=True)
        st_ref[0, 1:2, :] = jnp.sum(y * y, axis=0, keepdims=True)

        o_ref[0] = y.reshape(H, W, TJ).astype(o_ref.dtype)
    return kernel


def conv1x1_pl(x, w_bf16, *, pre_scale=None, pre_shift=None,
               cout_tile=_COUT_TILE):
    """x: (N, H, W, Cin) f32; w_bf16: (Cin, Cout) bf16.

    Returns (y, stats): y (N, H, W, Cout) f32; stats (N, 2, Cout) f32 holding
    per-image channel sums (row 0) and sums of squares (row 1).
    If pre_scale / pre_shift are given, relu(x * scale + shift) is applied to
    the input inside the kernel (the producer's BN-affine + ReLU, fused).
    """
    N, H, W, Cin = x.shape
    Cout = w_bf16.shape[-1]
    tj = min(cout_tile, Cout)
    assert Cout % tj == 0, (Cout, tj)
    pre_act = pre_scale is not None

    in_specs = [pl.BlockSpec((1, H, W, Cin), lambda n, j: (n, 0, 0, 0))]
    args = [x]
    if pre_act:
        in_specs += [pl.BlockSpec((1, Cin), lambda n, j: (0, 0)),
                     pl.BlockSpec((1, Cin), lambda n, j: (0, 0))]
        args += [pre_scale, pre_shift]
    in_specs.append(pl.BlockSpec((Cin, tj), lambda n, j: (0, j)))
    args.append(w_bf16)

    return pl.pallas_call(
        _make_conv1x1_kernel(pre_act),
        out_shape=(jax.ShapeDtypeStruct((N, H, W, Cout), jnp.float32),
                   jax.ShapeDtypeStruct((N, 2, Cout), jnp.float32)),
        grid=(N, Cout // tj),
        in_specs=in_specs,
        out_specs=(pl.BlockSpec((1, H, W, tj), lambda n, j: (n, 0, 0, j)),
                   pl.BlockSpec((1, 2, tj), lambda n, j: (n, 0, j))),
        scratch_shapes=[pltpu.VMEM((H * W, Cin), jnp.bfloat16)],
        compiler_params=pltpu.CompilerParams(
            # TODO(synk): on v7x verify megacore engagement; if plain
            # "parallel" does not shard the batch axis, switch it to
            # pltpu.CORE_PARALLEL (keep the Cout-tile axis sequential).
            dimension_semantics=("parallel", "arbitrary"),
            vmem_limit_bytes=_VMEM_LIMIT),
    )(*args)


# ---------------------------------------------------------------------------
# Pallas kernel: fused  (scale*x + shift) -> ReLU -> 3x3 conv (pad 1) + bias
# as 9 shifted MXU matmuls over a padded per-image VMEM staging buffer, plus
# fused BN batch-stat partials of the conv output.
# ---------------------------------------------------------------------------
def _make_conv3x3_kernel(H, W, Cin, TJ):
    Ho, Wo = H, W                     # stride 1, pad 1

    def kernel(x_ref, s_ref, t_ref, w_ref, b_ref, o_ref, st_ref, pad_ref):
        # Stage the activated image once per image (j == 0); only the 1-pixel
        # border is zeroed (the interior is fully overwritten).  The Cout-tile
        # axis is "arbitrary" (sequential, innermost) so later tiles reuse it.
        @pl.when(pl.program_id(1) == 0)
        def _():
            zrow = jnp.zeros((1, W + 2, Cin), jnp.float32)
            zcol = jnp.zeros((H + 2, 1, Cin), jnp.float32)
            pad_ref[0:1, :, :] = zrow
            pad_ref[H + 1:H + 2, :, :] = zrow
            pad_ref[:, 0:1, :] = zcol
            pad_ref[:, W + 1:W + 2, :] = zcol
            pad_ref[1:H + 1, 1:W + 1, :] = jnp.maximum(
                x_ref[0] * s_ref[...] + t_ref[...], 0.0)

        # 3x3 conv as 9 shifted matmuls; bf16 operands, fp32 accumulation.
        acc = jnp.zeros((Ho * Wo, TJ), jnp.float32)
        for dy in range(3):
            for dx in range(3):
                # TODO(synk): the dx in {1, 2} slices are not sublane-aligned
                # and materialize a small VMEM copy; merging taps into one
                # K = 9*Cin matmul (im2col) or an XLU roll would avoid it and
                # also fill the MXU contraction depth on v5e.
                patch = pad_ref[dy:dy + Ho, dx:dx + Wo, :]
                acc += jnp.dot(
                    patch.reshape(Ho * Wo, Cin).astype(jnp.bfloat16),
                    w_ref[dy * 3 + dx],
                    preferred_element_type=jnp.float32)
        # conv bias (batch-stat BN cancels it mathematically; kept for exact
        # PyTorch parity — it is cheap).
        y = acc + b_ref[...]

        st_ref[0, 0:1, :] = jnp.sum(y, axis=0, keepdims=True)
        st_ref[0, 1:2, :] = jnp.sum(y * y, axis=0, keepdims=True)

        o_ref[0] = y.reshape(Ho, Wo, TJ).astype(o_ref.dtype)

    return kernel, Ho, Wo


def conv3x3_bn_relu(x, scale, shift, w_bf16, b, *, stride=1,
                    cout_tile=_COUT_TILE):
    """x: (N, H, W, Cin) f32; w_bf16: (9, Cin, Cout) bf16; b: (1, Cout) f32."""
    if stride != 1:
        # TODO(synk): stride >= 2 (only needed with a downsample shortcut,
        # which this identity-shortcut block does not use) is not implemented.
        raise NotImplementedError("conv3x3_bn_relu supports stride == 1 only")
    N, H, W, Cin = x.shape
    Cout = w_bf16.shape[-1]
    tj = min(cout_tile, Cout)
    assert Cout % tj == 0, (Cout, tj)

    kernel, Ho, Wo = _make_conv3x3_kernel(H, W, Cin, tj)

    return pl.pallas_call(
        kernel,
        out_shape=(jax.ShapeDtypeStruct((N, Ho, Wo, Cout), jnp.float32),
                   jax.ShapeDtypeStruct((N, 2, Cout), jnp.float32)),
        grid=(N, Cout // tj),
        in_specs=[
            pl.BlockSpec((1, H, W, Cin), lambda n, j: (n, 0, 0, 0)),
            pl.BlockSpec((1, Cin), lambda n, j: (0, 0)),
            pl.BlockSpec((1, Cin), lambda n, j: (0, 0)),
            pl.BlockSpec((9, Cin, tj), lambda n, j: (0, 0, j)),
            pl.BlockSpec((1, tj), lambda n, j: (0, j)),
        ],
        out_specs=(pl.BlockSpec((1, Ho, Wo, tj), lambda n, j: (n, 0, 0, j)),
                   pl.BlockSpec((1, 2, tj), lambda n, j: (n, 0, j))),
        # TODO(synk): for very wide 56x56-class stages on v7x (64 MiB VMEM),
        # add a spatial row-tile grid axis with a 1-row halo; whole-image
        # blocks comfortably fit standard ResNet stage sizes.
        scratch_shapes=[pltpu.VMEM((H + 2, W + 2, Cin), jnp.float32)],
        compiler_params=pltpu.CompilerParams(
            dimension_semantics=("parallel", "arbitrary"),
            vmem_limit_bytes=_VMEM_LIMIT),
    )(x, scale, shift, w_bf16, b)


# ---------------------------------------------------------------------------
# Pallas kernel: final  relu(scale*x + shift + identity)
# ---------------------------------------------------------------------------
def _residual_relu_kernel(x_ref, s_ref, t_ref, r_ref, o_ref):
    y = x_ref[...] * s_ref[...] + t_ref[...] + r_ref[...]
    o_ref[...] = jnp.maximum(y, 0.0).astype(o_ref.dtype)


def bn_residual_relu(x, scale, shift, res):
    """relu(x*scale + shift + res).  Pure HBM-bandwidth kernel, so several
    images are blocked per grid step to stay out of the per-step-overhead
    regime (target <= 8 MiB per input block)."""
    N, H, W, C = x.shape
    per_img = H * W * C * 4
    nb = 1
    for d in range(N, 0, -1):
        if N % d == 0 and d * per_img <= (8 << 20):
            nb = d
            break
    return pl.pallas_call(
        _residual_relu_kernel,
        out_shape=jax.ShapeDtypeStruct((N, H, W, C), jnp.float32),
        grid=(N // nb,),
        in_specs=[
            pl.BlockSpec((nb, H, W, C), lambda n: (n, 0, 0, 0)),
            pl.BlockSpec((1, C), lambda n: (0, 0)),
            pl.BlockSpec((1, C), lambda n: (0, 0)),
            pl.BlockSpec((nb, H, W, C), lambda n: (n, 0, 0, 0)),
        ],
        out_specs=pl.BlockSpec((nb, H, W, C), lambda n: (n, 0, 0, 0)),
        compiler_params=pltpu.CompilerParams(
            dimension_semantics=("parallel",),
            vmem_limit_bytes=_VMEM_LIMIT),
    )(x, scale, shift, res)


# ---------------------------------------------------------------------------
# Tiny BN finish (plain JAX): (N, 2, C) fused partials -> per-channel affine.
# Training-mode semantics (batch statistics, biased variance).
# ---------------------------------------------------------------------------
def finish_batchnorm(stats, gamma, beta, count, eps=_BN_EPS):
    tot = jnp.sum(stats, axis=0)                # (2, C) — negligible work
    mean = tot[0] / count
    var = tot[1] / count - mean * mean
    scale = gamma * jax.lax.rsqrt(var + eps)
    shift = beta - mean * scale
    return scale[None, :], shift[None, :]


# ---------------------------------------------------------------------------
# Bottleneck forward (NCHW in / NCHW out, like the PyTorch module)
# ---------------------------------------------------------------------------
@functools.partial(jax.jit, static_argnames=("stride",))
def bottleneck_forward(x_nchw, params, stride=1):
    # TODO(synk): keep the surrounding model NHWC end-to-end to drop these
    # boundary transposes (each is a full extra HBM read+write done by XLA).
    x = jnp.transpose(x_nchw, (0, 2, 3, 1))            # NCHW -> NHWC
    N, H, W, Cin = x.shape
    cout = params["w3"].shape[-1]
    if stride != 1 or Cin != cout:
        # TODO(synk): downsample shortcut (1x1 conv + BN) not implemented;
        # identity shortcut only (stride == 1, inplanes == planes*expansion),
        # matching downsample=None in the PyTorch module.
        raise NotImplementedError("identity shortcut requires stride == 1 and "
                                  "inplanes == planes * expansion")
    count = N * H * W

    # Weights to bf16 once (MXU-native input dtype; accumulation stays fp32).
    w1 = params["w1"].astype(jnp.bfloat16)
    w2 = params["w2"].astype(jnp.bfloat16)
    w3 = params["w3"].astype(jnp.bfloat16)

    # conv1: 1x1, no bias; BN1 batch statistics come out of the same kernel.
    o1, st1 = conv1x1_pl(x, w1)
    s1, t1 = finish_batchnorm(st1, params["bn1_gamma"], params["bn1_beta"],
                              count)

    # relu(bn1) fused into conv2 (3x3, pad 1, bias); BN2 stats fused too.
    o2, st2 = conv3x3_bn_relu(o1, s1, t1, w2, params["b2"], stride=stride)
    s2, t2 = finish_batchnorm(st2, params["bn2_gamma"], params["bn2_beta"],
                              count)

    # relu(bn2) fused into conv3 (1x1, no bias); BN3 stats fused.
    o3, st3 = conv1x1_pl(o2, w3, pre_scale=s2, pre_shift=t2)
    s3, t3 = finish_batchnorm(st3, params["bn3_gamma"], params["bn3_beta"],
                              count)

    # bn3 + identity residual + relu
    # TODO(synk): o1/o2/o3 could be stored as bf16 in HBM to halve the
    # inter-kernel traffic once the accuracy budget allows it.
    out = bn_residual_relu(o3, s3, t3, x)
    return jnp.transpose(out, (0, 3, 1, 2))            # NHWC -> NCHW


# ---------------------------------------------------------------------------
# Pure-JAX reference (correctness check).  Matmul/conv operands are cast to
# bf16 with fp32 accumulation — mirroring what the MXU (and the Pallas
# kernels) do — so the comparison isolates structural/indexing errors.
# ---------------------------------------------------------------------------
def ref_forward(x_nchw, params, eps=_BN_EPS):
    f32, bf16 = jnp.float32, jnp.bfloat16
    x = jnp.transpose(x_nchw, (0, 2, 3, 1)).astype(f32)

    def bn(y, g, b):
        m = y.mean((0, 1, 2))
        v = jnp.square(y - m).mean((0, 1, 2))
        return (y - m) / jnp.sqrt(v + eps) * g + b

    o = jnp.einsum("nhwc,cd->nhwd", x.astype(bf16),
                   params["w1"].astype(bf16), preferred_element_type=f32)
    o = jnp.maximum(bn(o, params["bn1_gamma"], params["bn1_beta"]), 0.0)

    w2 = params["w2"].astype(bf16).reshape(3, 3, params["w2"].shape[1],
                                           params["w2"].shape[2])
    o = jax.lax.conv_general_dilated(
        o.astype(bf16), w2, (1, 1), ((1, 1), (1, 1)),
        dimension_numbers=("NHWC", "HWIO", "NHWC"),
        preferred_element_type=f32) + params["b2"]
    o = jnp.maximum(bn(o, params["bn2_gamma"], params["bn2_beta"]), 0.0)

    o = jnp.einsum("nhwc,cd->nhwd", o.astype(bf16),
                   params["w3"].astype(bf16), preferred_element_type=f32)
    o = bn(o, params["bn3_gamma"], params["bn3_beta"])

    out = jnp.maximum(o + x, 0.0)                      # identity shortcut
    return jnp.transpose(out, (0, 3, 1, 2))


# ---------------------------------------------------------------------------
if __name__ == "__main__":
    N, H, W = 2, 16, 16
    planes = 16                         # width = planes (base_width=64, groups=1)
    expansion = 4
    width = planes
    cout = planes * expansion           # 64
    inplanes = cout                     # identity shortcut (downsample=None)

    key = jax.random.PRNGKey(0)
    ks = jax.random.split(key, 12)

    x = jax.random.normal(ks[0], (N, inplanes, H, W), jnp.float32)   # NCHW

    params = {
        "w1": 0.1 * jax.random.normal(ks[1], (inplanes, width), jnp.float32),
        "bn1_gamma": 1.0 + 0.1 * jax.random.normal(ks[2], (width,), jnp.float32),
        "bn1_beta": 0.1 * jax.random.normal(ks[3], (width,), jnp.float32),
        "w2": 0.1 * jax.random.normal(ks[4], (9, width, width), jnp.float32),
        "b2": 0.1 * jax.random.normal(ks[5], (1, width), jnp.float32),
        "bn2_gamma": 1.0 + 0.1 * jax.random.normal(ks[6], (width,), jnp.float32),
        "bn2_beta": 0.1 * jax.random.normal(ks[7], (width,), jnp.float32),
        "w3": 0.1 * jax.random.normal(ks[8], (width, cout), jnp.float32),
        "bn3_gamma": 1.0 + 0.1 * jax.random.normal(ks[9], (cout,), jnp.float32),
        "bn3_beta": 0.1 * jax.random.normal(ks[10], (cout,), jnp.float32),
    }

    out = jax.block_until_ready(bottleneck_forward(x, params, stride=1))
    ref = ref_forward(x, params)
    assert out.shape == ref.shape == (N, cout, H, W), out.shape
    # Both sides use bf16 matmul operands with fp32 accumulation; residual
    # mismatch comes from accumulation order + rare bf16 rounding-boundary
    # flips on intermediate activations (typically ~1e-4).  Real bugs
    # (indexing / BN / residual) would show up as O(0.1 .. 1) errors.
    max_err = float(jnp.max(jnp.abs(out - ref)))
    assert max_err < 1e-2, f"max abs error {max_err}"
    print("KERNEL_OK")
</pallas_src>

<mosaic_0001>
module attributes {stable_mosaic.version = 11 : i64} {
  func.func @kernel(%arg0: i32, %arg1: i32, %arg2: memref<1x16x16x64xf32, #tpu.memory_space<vmem>>, %arg3: memref<64x16xbf16, #tpu.memory_space<vmem>>, %arg4: memref<1x16x16x16xf32, #tpu.memory_space<vmem>>, %arg5: memref<1x2x16xf32, #tpu.memory_space<vmem>>, %arg6: memref<256x64xbf16, #tpu.memory_space<vmem>>) attributes {dimension_semantics = [#tpu.dimension_semantics<parallel>, #tpu.dimension_semantics<arbitrary>], iteration_bounds = array<i64: 2, 1>, scalar_prefetch = 0 : i64, scratch_operands = 1 : i64, tpu.core_type = #tpu.core_type<tc>, window_params = [{transform_indices = @transform_0, window_bounds = array<i64: 1, 16, 16, 64>}, {transform_indices = @transform_1, window_bounds = array<i64: 64, 16>}, {transform_indices = @transform_2, window_bounds = array<i64: 1, 16, 16, 16>}, {transform_indices = @transform_3, window_bounds = array<i64: 1, 2, 16>}]} {
    %c0_i32 = arith.constant 0 : i32
    %0 = arith.cmpi eq, %arg1, %c0_i32 : i32
    %1 = arith.extui %0 : i1 to i32
    %c0_i32_0 = arith.constant 0 : i32
    %2 = arith.cmpi ne, %1, %c0_i32_0 : i32
    scf.if %2 {
      %c0_15 = arith.constant 0 : index
      %c0_16 = arith.constant 0 : index
      %c0_17 = arith.constant 0 : index
      %c0_18 = arith.constant 0 : index
      %21 = vector.load %arg2[%c0_15, %c0_16, %c0_17, %c0_18] : memref<1x16x16x64xf32, #tpu.memory_space<vmem>>, vector<1x16x16x64xf32>
      %22 = vector.shape_cast %21 : vector<1x16x16x64xf32> to vector<16x16x64xf32>
      %23 = vector.shape_cast %22 : vector<16x16x64xf32> to vector<256x64xf32>
      %24 = arith.truncf %23 : vector<256x64xf32> to vector<256x64xbf16>
      %c0_19 = arith.constant 0 : index
      %c0_20 = arith.constant 0 : index
      %25 = vector.load %arg6[%c0_19, %c0_20] : memref<256x64xbf16, #tpu.memory_space<vmem>>, vector<256x64xbf16>
      tpu.vector_store %arg6[%c0_19, %c0_20], %24 {strides = array<i32>} : memref<256x64xbf16, #tpu.memory_space<vmem>>, vector<256x64xbf16>,
    } else {
    }
    %c0 = arith.constant 0 : index
    %c0_1 = arith.constant 0 : index
    %3 = vector.load %arg6[%c0, %c0_1] : memref<256x64xbf16, #tpu.memory_space<vmem>>, vector<256x64xbf16>
    %c0_2 = arith.constant 0 : index
    %c0_3 = arith.constant 0 : index
    %4 = vector.load %arg3[%c0_2, %c0_3] : memref<64x16xbf16, #tpu.memory_space<vmem>>, vector<64x16xbf16>
    %cst = arith.constant dense<0.000000e+00> : vector<256x16xf32>
    %5 = tpu.matmul %3, %4, %cst {dimension_numbers = #tpu.dot_dimension_numbers<[1], [0], [0], [1], [0, 0, 1, 1], [], []>} : vector<256x64xbf16>, vector<64x16xbf16>, vector<256x16xf32> -> vector<256x16xf32>
    %cst_4 = arith.constant dense<0.000000e+00> : vector<16xf32>
    %6 = vector.multi_reduction <add>, %5, %cst_4 [0] : vector<256x16xf32> to vector<16xf32>
    %7 = vector.shape_cast %6 : vector<16xf32> to vector<1x16xf32>
    %c0_5 = arith.constant 0 : index
    %c0_6 = arith.constant 0 : index
    %c0_7 = arith.constant 0 : index
    %8 = vector.load %arg5[%c0_5, %c0_6, %c0_7] : memref<1x2x16xf32, #tpu.memory_space<vmem>>, vector<1x1x16xf32>
    %9 = vector.shape_cast %8 : vector<1x1x16xf32> to vector<1x16xf32>
    %10 = vector.shape_cast %7 : vector<1x16xf32> to vector<1x1x16xf32>
    tpu.vector_store %arg5[%c0_5, %c0_6, %c0_7], %10 {strides = array<i32>} : memref<1x2x16xf32, #tpu.memory_space<vmem>>, vector<1x1x16xf32>,
    %11 = arith.mulf %5, %5 : vector<256x16xf32>
    %cst_8 = arith.constant dense<0.000000e+00> : vector<16xf32>
    %12 = vector.multi_reduction <add>, %11, %cst_8 [0] : vector<256x16xf32> to vector<16xf32>
    %13 = vector.shape_cast %12 : vector<16xf32> to vector<1x16xf32>
    %c0_9 = arith.constant 0 : index
    %c1 = arith.constant 1 : index
    %c0_10 = arith.constant 0 : index
    %14 = vector.load %arg5[%c0_9, %c1, %c0_10] : memref<1x2x16xf32, #tpu.memory_space<vmem>>, vector<1x1x16xf32>
    %15 = vector.shape_cast %14 : vector<1x1x16xf32> to vector<1x16xf32>
    %16 = vector.shape_cast %13 : vector<1x16xf32> to vector<1x1x16xf32>
    tpu.vector_store %arg5[%c0_9, %c1, %c0_10], %16 {strides = array<i32>} : memref<1x2x16xf32, #tpu.memory_space<vmem>>, vector<1x1x16xf32>,
    %17 = vector.shape_cast %5 : vector<256x16xf32> to vector<16x16x16xf32>
    %c0_11 = arith.constant 0 : index
    %c0_12 = arith.constant 0 : index
    %c0_13 = arith.constant 0 : index
    %c0_14 = arith.constant 0 : index
    %18 = vector.load %arg4[%c0_11, %c0_12, %c0_13, %c0_14] : memref<1x16x16x16xf32, #tpu.memory_space<vmem>>, vector<1x16x16x16xf32>
    %19 = vector.shape_cast %18 : vector<1x16x16x16xf32> to vector<16x16x16xf32>
    %20 = vector.shape_cast %17 : vector<16x16x16xf32> to vector<1x16x16x16xf32>
    tpu.vector_store %arg4[%c0_11, %c0_12, %c0_13, %c0_14], %20 {strides = array<i32>} : memref<1x16x16x16xf32, #tpu.memory_space<vmem>>, vector<1x16x16x16xf32>,
    return
  }
  func.func @transform_0(%arg0: i32, %arg1: i32) -> (i32, i32, i32, i32) {
    %c0_i32 = arith.constant 0 : i32
    %c0_i32_0 = arith.constant 0 : i32
    %c0_i32_1 = arith.constant 0 : i32
    %c0_i32_2 = arith.constant 0 : i32
    return %arg0, %c0_i32, %c0_i32_0, %c0_i32_1 : i32, i32, i32, i32
  }
  func.func @transform_1(%arg0: i32, %arg1: i32) -> (i32, i32) {
    %c0_i32 = arith.constant 0 : i32
    %c0_i32_0 = arith.constant 0 : i32
    return %c0_i32, %arg1 : i32, i32
  }
  func.func @transform_2(%arg0: i32, %arg1: i32) -> (i32, i32, i32, i32) {
    %c0_i32 = arith.constant 0 : i32
    %c0_i32_0 = arith.constant 0 : i32
    %c0_i32_1 = arith.constant 0 : i32
    return %arg0, %c0_i32, %c0_i32_0, %arg1 : i32, i32, i32, i32
  }
  func.func @transform_3(%arg0: i32, %arg1: i32) -> (i32, i32, i32) {
    %c0_i32 = arith.constant 0 : i32
    %c0_i32_0 = arith.constant 0 : i32
    return %arg0, %c0_i32, %arg1 : i32, i32, i32
  }
}

module attributes {stable_mosaic.version = 11 : i64} {
  func.func @kernel(%arg0: i32, %arg1: i32, %arg2: memref<1x16x16x16xf32, #tpu.memory_space<vmem>>, %arg3: memref<1x16xf32, #tpu.memory_space<vmem>>, %arg4: memref<1x16xf32, #tpu.memory_space<vmem>>, %arg5: memref<9x16x16xbf16, #tpu.memory_space<vmem>>, %arg6: memref<1x16xf32, #tpu.memory_space<vmem>>, %arg7: memref<1x16x16x16xf32, #tpu.memory_space<vmem>>, %arg8: memref<1x2x16xf32, #tpu.memory_space<vmem>>, %arg9: memref<18x18x16xf32, #tpu.memory_space<vmem>>) attributes {dimension_semantics = [#tpu.dimension_semantics<parallel>, #tpu.dimension_semantics<arbitrary>], iteration_bounds = array<i64: 2, 1>, scalar_prefetch = 0 : i64, scratch_operands = 1 : i64, tpu.core_type = #tpu.core_type<tc>, window_params = [{transform_indices = @transform_0, window_bounds = array<i64: 1, 16, 16, 16>}, {pipeline_mode = #tpu.pipeline_mode<synchronous>, transform_indices = @transform_1, window_bounds = array<i64: 1, 16>}, {pipeline_mode = #tpu.pipeline_mode<synchronous>, transform_indices = @transform_2, window_bounds = array<i64: 1, 16>}, {transform_indices = @transform_3, window_bounds = array<i64: 9, 16, 16>}, {transform_indices = @transform_4, window_bounds = array<i64: 1, 16>}, {transform_indices = @transform_5, window_bounds = array<i64: 1, 16, 16, 16>}, {transform_indices = @transform_6, window_bounds = array<i64: 1, 2, 16>}]} {
    %c0_i32 = arith.constant 0 : i32
    %0 = arith.cmpi eq, %arg1, %c0_i32 : i32
    %1 = arith.extui %0 : i1 to i32
    %c0_i32_0 = arith.constant 0 : i32
    %2 = arith.cmpi ne, %1, %c0_i32_0 : i32
    scf.if %2 {
      %cst_69 = arith.constant 0.000000e+00 : f32
      %85 = vector.broadcast %cst_69 : f32 to vector<1x18x16xf32>
      %cst_70 = arith.constant 0.000000e+00 : f32
      %86 = vector.broadcast %cst_70 : f32 to vector<18x1x16xf32>
      %c0_71 = arith.constant 0 : index
      %c0_72 = arith.constant 0 : index
      %c0_73 = arith.constant 0 : index
      %87 = vector.load %arg9[%c0_71, %c0_72, %c0_73] : memref<18x18x16xf32, #tpu.memory_space<vmem>>, vector<1x18x16xf32>
      tpu.vector_store %arg9[%c0_71, %c0_72, %c0_73], %85 {strides = array<i32>} : memref<18x18x16xf32, #tpu.memory_space<vmem>>, vector<1x18x16xf32>,
      %c17 = arith.constant 17 : index
      %c0_74 = arith.constant 0 : index
      %c0_75 = arith.constant 0 : index
      %88 = vector.load %arg9[%c17, %c0_74, %c0_75] : memref<18x18x16xf32, #tpu.memory_space<vmem>>, vector<1x18x16xf32>
      tpu.vector_store %arg9[%c17, %c0_74, %c0_75], %85 {strides = array<i32>} : memref<18x18x16xf32, #tpu.memory_space<vmem>>, vector<1x18x16xf32>,
      %c0_76 = arith.constant 0 : index
      %c0_77 = arith.constant 0 : index
      %c0_78 = arith.constant 0 : index
      %89 = vector.load %arg9[%c0_76, %c0_77, %c0_78] : memref<18x18x16xf32, #tpu.memory_space<vmem>>, vector<18x1x16xf32>
      tpu.vector_store %arg9[%c0_76, %c0_77, %c0_78], %86 {strides = array<i32>} : memref<18x18x16xf32, #tpu.memory_space<vmem>>, vector<18x1x16xf32>,
      %c0_79 = arith.constant 0 : index
      %c17_80 = arith.constant 17 : index
      %c0_81 = arith.constant 0 : index
      %90 = vector.load %arg9[%c0_79, %c17_80, %c0_81] : memref<18x18x16xf32, #tpu.memory_space<vmem>>, vector<18x1x16xf32>
      tpu.vector_store %arg9[%c0_79, %c17_80, %c0_81], %86 {strides = array<i32>} : memref<18x18x16xf32, #tpu.memory_space<vmem>>, vector<18x1x16xf32>,
      %c0_82 = arith.constant 0 : index
      %c0_83 = arith.constant 0 : index
      %c0_84 = arith.constant 0 : index
      %c0_85 = arith.constant 0 : index
      %91 = vector.load %arg2[%c0_82, %c0_83, %c0_84, %c0_85] : memref<1x16x16x16xf32, #tpu.memory_space<vmem>>, vector<1x16x16x16xf32>
      %92 = vector.shape_cast %91 : vector<1x16x16x16xf32> to vector<16x16x16xf32>
      %c0_86 = arith.constant 0 : index
      %c0_87 = arith.constant 0 : index
      %93 = vector.load %arg3[%c0_86, %c0_87] : memref<1x16xf32, #tpu.memory_space<vmem>>, vector<1x16xf32>
      %94 = vector.shape_cast %93 : vector<1x16xf32> to vector<1x1x16xf32>
      %95 = vector.broadcast %94 : vector<1x1x16xf32> to vector<16x16x16xf32>
      %96 = arith.mulf %92, %95 : vector<16x16x16xf32>
      %c0_88 = arith.constant 0 : index
      %c0_89 = arith.constant 0 : index
      %97 = vector.load %arg4[%c0_88, %c0_89] : memref<1x16xf32, #tpu.memory_space<vmem>>, vector<1x16xf32>
      %98 = vector.shape_cast %97 : vector<1x16xf32> to vector<1x1x16xf32>
      %99 = vector.broadcast %98 : vector<1x1x16xf32> to vector<16x16x16xf32>
      %100 = arith.addf %96, %99 : vector<16x16x16xf32>
      %cst_90 = arith.constant 0.000000e+00 : f32
      %101 = vector.broadcast %cst_90 : f32 to vector<16x16x16xf32>
      %102 = arith.maximumf %100, %101 : vector<16x16x16xf32>
      %c1_91 = arith.constant 1 : index
      %c1_92 = arith.constant 1 : index
      %c0_93 = arith.constant 0 : index
      %103 = vector.load %arg9[%c1_91, %c1_92, %c0_93] : memref<18x18x16xf32, #tpu.memory_space<vmem>>, vector<16x16x16xf32>
      tpu.vector_store %arg9[%c1_91, %c1_92, %c0_93], %102 {strides = array<i32>} : memref<18x18x16xf32, #tpu.memory_space<vmem>>, vector<16x16x16xf32>,
    } else {
    }
    %cst = arith.constant 0.000000e+00 : f32
    %3 = vector.broadcast %cst : f32 to vector<256x16xf32>
    %c0 = arith.constant 0 : index
    %c0_1 = arith.constant 0 : index
    %c0_2 = arith.constant 0 : index
    %4 = vector.load %arg9[%c0, %c0_1, %c0_2] : memref<18x18x16xf32, #tpu.memory_space<vmem>>, vector<16x16x16xf32>
    %5 = vector.shape_cast %4 : vector<16x16x16xf32> to vector<256x16xf32>
    %6 = arith.truncf %5 : vector<256x16xf32> to vector<256x16xbf16>
    %c0_3 = arith.constant 0 : index
    %c0_4 = arith.constant 0 : index
    %c0_5 = arith.constant 0 : index
    %7 = vector.load %arg5[%c0_3, %c0_4, %c0_5] : memref<9x16x16xbf16, #tpu.memory_space<vmem>>, vector<1x16x16xbf16>
    %8 = vector.shape_cast %7 : vector<1x16x16xbf16> to vector<16x16xbf16>
    %cst_6 = arith.constant dense<0.000000e+00> : vector<256x16xf32>
    %9 = tpu.matmul %6, %8, %cst_6 {dimension_numbers = #tpu.dot_dimension_numbers<[1], [0], [0], [1], [0, 0, 1, 1], [], []>} : vector<256x16xbf16>, vector<16x16xbf16>, vector<256x16xf32> -> vector<256x16xf32>
    %10 = arith.addf %3, %9 : vector<256x16xf32>
    %c0_7 = arith.constant 0 : index
    %c1 = arith.constant 1 : index
    %c0_8 = arith.constant 0 : index
    %11 = vector.load %arg9[%c0_7, %c1, %c0_8] : memref<18x18x16xf32, #tpu.memory_space<vmem>>, vector<16x16x16xf32>
    %12 = vector.shape_cast %11 : vector<16x16x16xf32> to vector<256x16xf32>
    %13 = arith.truncf %12 : vector<256x16xf32> to vector<256x16xbf16>
    %c1_9 = arith.constant 1 : index
    %c0_10 = arith.constant 0 : index
    %c0_11 = arith.constant 0 : index
    %14 = vector.load %arg5[%c1_9, %c0_10, %c0_11] : memref<9x16x16xbf16, #tpu.memory_space<vmem>>, vector<1x16x16xbf16>
    %15 = vector.shape_cast %14 : vector<1x16x16xbf16> to vector<16x16xbf16>
    %cst_12 = arith.constant dense<0.000000e+00> : vector<256x16xf32>
    %16 = tpu.matmul %13, %15, %cst_12 {dimension_numbers = #tpu.dot_dimension_numbers<[1], [0], [0], [1], [0, 0, 1, 1], [], []>} : vector<256x16xbf16>, vector<16x16xbf16>, vector<256x16xf32> -> vector<256x16xf32>
    %17 = arith.addf %10, %16 : vector<256x16xf32>
    %c0_13 = arith.constant 0 : index
    %c2 = arith.constant 2 : index
    %c0_14 = arith.constant 0 : index
    %18 = vector.load %arg9[%c0_13, %c2, %c0_14] : memref<18x18x16xf32, #tpu.memory_space<vmem>>, vector<16x16x16xf32>
    %19 = vector.shape_cast %18 : vector<16x16x16xf32> to vector<256x16xf32>
    %20 = arith.truncf %19 : vector<256x16xf32> to vector<256x16xbf16>
    %c2_15 = arith.constant 2 : index
    %c0_16 = arith.constant 0 : index
    %c0_17 = arith.constant 0 : index
    %21 = vector.load %arg5[%c2_15, %c0_16, %c0_17] : memref<9x16x16xbf16, #tpu.memory_space<vmem>>, vector<1x16x16xbf16>
    %22 = vector.shape_cast %21 : vector<1x16x16xbf16> to vector<16x16xbf16>
    %cst_18 = arith.constant dense<0.000000e+00> : vector<256x16xf32>
    %23 = tpu.matmul %20, %22, %cst_18 {dimension_numbers = #tpu.dot_dimension_numbers<[1], [0], [0], [1], [0, 0, 1, 1], [], []>} : vector<256x16xbf16>, vector<16x16xbf16>, vector<256x16xf32> -> vector<256x16xf32>
    %24 = arith.addf %17, %23 : vector<256x16xf32>
    %c1_19 = arith.constant 1 : index
    %c0_20 = arith.constant 0 : index
    %c0_21 = arith.constant 0 : index
    %25 = vector.load %arg9[%c1_19, %c0_20, %c0_21] : memref<18x18x16xf32, #tpu.memory_space<vmem>>, vector<16x16x16xf32>
    %26 = vector.shape_cast %25 : vector<16x16x16xf32> to vector<256x16xf32>
    %27 = arith.truncf %26 : vector<256x16xf32> to vector<256x16xbf16>
    %c3 = arith.constant 3 : index
    %c0_22 = arith.constant 0 : index
    %c0_23 = arith.constant 0 : index
    %28 = vector.load %arg5[%c3, %c0_22, %c0_23] : memref<9x16x16xbf16, #tpu.memory_space<vmem>>, vector<1x16x16xbf16>
    %29 = vector.shape_cast %28 : vector<1x16x16xbf16> to vector<16x16xbf16>
    %cst_24 = arith.constant dense<0.000000e+00> : vector<256x16xf32>
    %30 = tpu.matmul %27, %29, %cst_24 {dimension_numbers = #tpu.dot_dimension_numbers<[1], [0], [0], [1], [0, 0, 1, 1], [], []>} : vector<256x16xbf16>, vector<16x16xbf16>, vector<256x16xf32> -> vector<256x16xf32>
    %31 = arith.addf %24, %30 : vector<256x16xf32>
    %c1_25 = arith.constant 1 : index
    %c1_26 = arith.constant 1 : index
    %c0_27 = arith.constant 0 : index
    %32 = vector.load %arg9[%c1_25, %c1_26, %c0_27] : memref<18x18x16xf32, #tpu.memory_space<vmem>>, vector<16x16x16xf32>
    %33 = vector.shape_cast %32 : vector<16x16x16xf32> to vector<256x16xf32>
    %34 = arith.truncf %33 : vector<256x16xf32> to vector<256x16xbf16>
    %c4 = arith.constant 4 : index
    %c0_28 = arith.constant 0 : index
    %c0_29 = arith.constant 0 : index
    %35 = vector.load %arg5[%c4, %c0_28, %c0_29] : memref<9x16x16xbf16, #tpu.memory_space<vmem>>, vector<1x16x16xbf16>
    %36 = vector.shape_cast %35 : vector<1x16x16xbf16> to vector<16x16xbf16>
    %cst_30 = arith.constant dense<0.000000e+00> : vector<256x16xf32>
    %37 = tpu.matmul %34, %36, %cst_30 {dimension_numbers = #tpu.dot_dimension_numbers<[1], [0], [0], [1], [0, 0, 1, 1], [], []>} : vector<256x16xbf16>, vector<16x16xbf16>, vector<256x16xf32> -> vector<256x16xf32>
    %38 = arith.addf %31, %37 : vector<256x16xf32>
    %c1_31 = arith.constant 1 : index
    %c2_32 = arith.constant 2 : index
    %c0_33 = arith.constant 0 : index
    %39 = vector.load %arg9[%c1_31, %c2_32, %c0_33] : memref<18x18x16xf32, #tpu.memory_space<vmem>>, vector<16x16x16xf32>
    %40 = vector.shape_cast %39 : vector<16x16x16xf32> to vector<256x16xf32>
    %41 = arith.truncf %40 : vector<256x16xf32> to vector<256x16xbf16>
    %c5 = arith.constant 5 : index
    %c0_34 = arith.constant 0 : index
    %c0_35 = arith.constant 0 : index
    %42 = vector.load %arg5[%c5, %c0_34, %c0_35] : memref<9x16x16xbf16, #tpu.memory_space<vmem>>, vector<1x16x16xbf16>
    %43 = vector.shape_cast %42 : vector<1x16x16xbf16> to vector<16x16xbf16>
    %cst_36 = arith.constant dense<0.000000e+00> : vector<256x16xf32>
    %44 = tpu.matmul %41, %43, %cst_36 {dimension_numbers = #tpu.dot_dimension_numbers<[1], [0], [0], [1], [0, 0, 1, 1], [], []>} : vector<256x16xbf16>, vector<16x16xbf16>, vector<256x16xf32> -> vector<256x16xf32>
    %45 = arith.addf %38, %44 : vector<256x16xf32>
    %c2_37 = arith.constant 2 : index
    %c0_38 = arith.constant 0 : index
    %c0_39 = arith.constant 0 : index
    %46 = vector.load %arg9[%c2_37, %c0_38, %c0_39] : memref<18x18x16xf32, #tpu.memory_space<vmem>>, vector<16x16x16xf32>
    %47 = vector.shape_cast %46 : vector<16x16x16xf32> to vector<256x16xf32>
    %48 = arith.truncf %47 : vector<256x16xf32> to vector<256x16xbf16>
    %c6 = arith.constant 6 : index
    %c0_40 = arith.constant 0 : index
    %c0_41 = arith.constant 0 : index
    %49 = vector.load %arg5[%c6, %c0_40, %c0_41] : memref<9x16x16xbf16, #tpu.memory_space<vmem>>, vector<1x16x16xbf16>
    %50 = vector.shape_cast %49 : vector<1x16x16xbf16> to vector<16x16xbf16>
    %cst_42 = arith.constant dense<0.000000e+00> : vector<256x16xf32>
    %51 = tpu.matmul %48, %50, %cst_42 {dimension_numbers = #tpu.dot_dimension_numbers<[1], [0], [0], [1], [0, 0, 1, 1], [], []>} : vector<256x16xbf16>, vector<16x16xbf16>, vector<256x16xf32> -> vector<256x16xf32>
    %52 = arith.addf %45, %51 : vector<256x16xf32>
    %c2_43 = arith.constant 2 : index
    %c1_44 = arith.constant 1 : index
    %c0_45 = arith.constant 0 : index
    %53 = vector.load %arg9[%c2_43, %c1_44, %c0_45] : memref<18x18x16xf32, #tpu.memory_space<vmem>>, vector<16x16x16xf32>
    %54 = vector.shape_cast %53 : vector<16x16x16xf32> to vector<256x16xf32>
    %55 = arith.truncf %54 : vector<256x16xf32> to vector<256x16xbf16>
    %c7 = arith.constant 7 : index
    %c0_46 = arith.constant 0 : index
    %c0_47 = arith.constant 0 : index
    %56 = vector.load %arg5[%c7, %c0_46, %c0_47] : memref<9x16x16xbf16, #tpu.memory_space<vmem>>, vector<1x16x16xbf16>
    %57 = vector.shape_cast %56 : vector<1x16x16xbf16> to vector<16x16xbf16>
    %cst_48 = arith.constant dense<0.000000e+00> : vector<256x16xf32>
    %58 = tpu.matmul %55, %57, %cst_48 {dimension_numbers = #tpu.dot_dimension_numbers<[1], [0], [0], [1], [0, 0, 1, 1], [], []>} : vector<256x16xbf16>, vector<16x16xbf16>, vector<256x16xf32> -> vector<256x16xf32>
    %59 = arith.addf %52, %58 : vector<256x16xf32>
    %c2_49 = arith.constant 2 : index
    %c2_50 = arith.constant 2 : index
    %c0_51 = arith.constant 0 : index
    %60 = vector.load %arg9[%c2_49, %c2_50, %c0_51] : memref<18x18x16xf32, #tpu.memory_space<vmem>>, vector<16x16x16xf32>
    %61 = vector.shape_cast %60 : vector<16x16x16xf32> to vector<256x16xf32>
    %62 = arith.truncf %61 : vector<256x16xf32> to vector<256x16xbf16>
    %c8 = arith.constant 8 : index
    %c0_52 = arith.constant 0 : index
    %c0_53 = arith.constant 0 : index
    %63 = vector.load %arg5[%c8, %c0_52, %c0_53] : memref<9x16x16xbf16, #tpu.memory_space<vmem>>, vector<1x16x16xbf16>
    %64 = vector.shape_cast %63 : vector<1x16x16xbf16> to vector<16x16xbf16>
    %cst_54 = arith.constant dense<0.000000e+00> : vector<256x16xf32>
    %65 = tpu.matmul %62, %64, %cst_54 {dimension_numbers = #tpu.dot_dimension_numbers<[1], [0], [0], [1], [0, 0, 1, 1], [], []>} : vector<256x16xbf16>, vector<16x16xbf16>, vector<256x16xf32> -> vector<256x16xf32>
    %66 = arith.addf %59, %65 : vector<256x16xf32>
    %c0_55 = arith.constant 0 : index
    %c0_56 = arith.constant 0 : index
    %67 = vector.load %arg6[%c0_55, %c0_56] : memref<1x16xf32, #tpu.memory_space<vmem>>, vector<1x16xf32>
    %68 = vector.broadcast %67 : vector<1x16xf32> to vector<256x16xf32>
    %69 = arith.addf %66, %68 : vector<256x16xf32>
    %cst_57 = arith.constant dense<0.000000e+00> : vector<16xf32>
    %70 = vector.multi_reduction <add>, %69, %cst_57 [0] : vector<256x16xf32> to vector<16xf32>
    %71 = vector.shape_cast %70 : vector<16xf32> to vector<1x16xf32>
    %c0_58 = arith.constant 0 : index
    %c0_59 = arith.constant 0 : index
    %c0_60 = arith.constant 0 : index
    %72 = vector.load %arg8[%c0_58, %c0_59, %c0_60] : memref<1x2x16xf32, #tpu.memory_space<vmem>>, vector<1x1x16xf32>
    %73 = vector.shape_cast %72 : vector<1x1x16xf32> to vector<1x16xf32>
    %74 = vector.shape_cast %71 : vector<1x16xf32> to vector<1x1x16xf32>
    tpu.vector_store %arg8[%c0_58, %c0_59, %c0_60], %74 {strides = array<i32>} : memref<1x2x16xf32, #tpu.memory_space<vmem>>, vector<1x1x16xf32>,
    %75 = arith.mulf %69, %69 : vector<256x16xf32>
    %cst_61 = arith.constant dense<0.000000e+00> : vector<16xf32>
    %76 = vector.multi_reduction <add>, %75, %cst_61 [0] : vector<256x16xf32> to vector<16xf32>
    %77 = vector.shape_cast %76 : vector<16xf32> to vector<1x16xf32>
    %c0_62 = arith.constant 0 : index
    %c1_63 = arith.constant 1 : index
    %c0_64 = arith.constant 0 : index
    %78 = vector.load %arg8[%c0_62, %c1_63, %c0_64] : memref<1x2x16xf32, #tpu.memory_space<vmem>>, vector<1x1x16xf32>
    %79 = vector.shape_cast %78 : vector<1x1x16xf32> to vector<1x16xf32>
    %80 = vector.shape_cast %77 : vector<1x16xf32> to vector<1x1x16xf32>
    tpu.vector_store %arg8[%c0_62, %c1_63, %c0_64], %80 {strides = array<i32>} : memref<1x2x16xf32, #tpu.memory_space<vmem>>, vector<1x1x16xf32>,
    %81 = vector.shape_cast %69 : vector<256x16xf32> to vector<16x16x16xf32>
    %c0_65 = arith.constant 0 : index
    %c0_66 = arith.constant 0 : index
    %c0_67 = arith.constant 0 : index
    %c0_68 = arith.constant 0 : index
    %82 = vector.load %arg7[%c0_65, %c0_66, %c0_67, %c0_68] : memref<1x16x16x16xf32, #tpu.memory_space<vmem>>, vector<1x16x16x16xf32>
    %83 = vector.shape_cast %82 : vector<1x16x16x16xf32> to vector<16x16x16xf32>
    %84 = vector.shape_cast %81 : vector<16x16x16xf32> to vector<1x16x16x16xf32>
    tpu.vector_store %arg7[%c0_65, %c0_66, %c0_67, %c0_68], %84 {strides = array<i32>} : memref<1x16x16x16xf32, #tpu.memory_space<vmem>>, vector<1x16x16x16xf32>,
    return
  }
  func.func @transform_0(%arg0: i32, %arg1: i32) -> (i32, i32, i32, i32) {
    %c0_i32 = arith.constant 0 : i32
    %c0_i32_0 = arith.constant 0 : i32
    %c0_i32_1 = arith.constant 0 : i32
    %c0_i32_2 = arith.constant 0 : i32
    return %arg0, %c0_i32, %c0_i32_0, %c0_i32_1 : i32, i32, i32, i32
  }
  func.func @transform_1(%arg0: i32, %arg1: i32) -> (i32, i32) {
    %c0_i32 = arith.constant 0 : i32
    %c0_i32_0 = arith.constant 0 : i32
    %c0_i32_1 = arith.constant 0 : i32
    return %c0_i32, %c0_i32_0 : i32, i32
  }
  func.func @transform_2(%arg0: i32, %arg1: i32) -> (i32, i32) {
    %c0_i32 = arith.constant 0 : i32
    %c0_i32_0 = arith.constant 0 : i32
    %c0_i32_1 = arith.constant 0 : i32
    return %c0_i32, %c0_i32_0 : i32, i32
  }
  func.func @transform_3(%arg0: i32, %arg1: i32) -> (i32, i32, i32) {
    %c0_i32 = arith.constant 0 : i32
    %c0_i32_0 = arith.constant 0 : i32
    %c0_i32_1 = arith.constant 0 : i32
    return %c0_i32, %c0_i32_0, %arg1 : i32, i32, i32
  }
  func.func @transform_4(%arg0: i32, %arg1: i32) -> (i32, i32) {
    %c0_i32 = arith.constant 0 : i32
    %c0_i32_0 = arith.constant 0 : i32
    return %c0_i32, %arg1 : i32, i32
  }
  func.func @transform_5(%arg0: i32, %arg1: i32) -> (i32, i32, i32, i32) {
    %c0_i32 = arith.constant 0 : i32
    %c0_i32_0 = arith.constant 0 : i32
    %c0_i32_1 = arith.constant 0 : i32
    return %arg0, %c0_i32, %c0_i32_0, %arg1 : i32, i32, i32, i32
  }
  func.func @transform_6(%arg0: i32, %arg1: i32) -> (i32, i32, i32) {
    %c0_i32 = arith.constant 0 : i32
    %c0_i32_0 = arith.constant 0 : i32
    return %arg0, %c0_i32, %arg1 : i32, i32, i32
  }
}

module attributes {stable_mosaic.version = 11 : i64} {
  func.func @kernel(%arg0: i32, %arg1: i32, %arg2: memref<1x16x16x16xf32, #tpu.memory_space<vmem>>, %arg3: memref<1x16xf32, #tpu.memory_space<vmem>>, %arg4: memref<1x16xf32, #tpu.memory_space<vmem>>, %arg5: memref<16x64xbf16, #tpu.memory_space<vmem>>, %arg6: memref<1x16x16x64xf32, #tpu.memory_space<vmem>>, %arg7: memref<1x2x64xf32, #tpu.memory_space<vmem>>, %arg8: memref<256x16xbf16, #tpu.memory_space<vmem>>) attributes {dimension_semantics = [#tpu.dimension_semantics<parallel>, #tpu.dimension_semantics<arbitrary>], iteration_bounds = array<i64: 2, 1>, scalar_prefetch = 0 : i64, scratch_operands = 1 : i64, tpu.core_type = #tpu.core_type<tc>, window_params = [{transform_indices = @transform_0, window_bounds = array<i64: 1, 16, 16, 16>}, {pipeline_mode = #tpu.pipeline_mode<synchronous>, transform_indices = @transform_1, window_bounds = array<i64: 1, 16>}, {pipeline_mode = #tpu.pipeline_mode<synchronous>, transform_indices = @transform_2, window_bounds = array<i64: 1, 16>}, {transform_indices = @transform_3, window_bounds = array<i64: 16, 64>}, {transform_indices = @transform_4, window_bounds = array<i64: 1, 16, 16, 64>}, {transform_indices = @transform_5, window_bounds = array<i64: 1, 2, 64>}]} {
    %c0_i32 = arith.constant 0 : i32
    %0 = arith.cmpi eq, %arg1, %c0_i32 : i32
    %1 = arith.extui %0 : i1 to i32
    %c0_i32_0 = arith.constant 0 : i32
    %2 = arith.cmpi ne, %1, %c0_i32_0 : i32
    scf.if %2 {
      %c0_15 = arith.constant 0 : index
      %c0_16 = arith.constant 0 : index
      %c0_17 = arith.constant 0 : index
      %c0_18 = arith.constant 0 : index
      %21 = vector.load %arg2[%c0_15, %c0_16, %c0_17, %c0_18] : memref<1x16x16x16xf32, #tpu.memory_space<vmem>>, vector<1x16x16x16xf32>
      %22 = vector.shape_cast %21 : vector<1x16x16x16xf32> to vector<16x16x16xf32>
      %c0_19 = arith.constant 0 : index
      %c0_20 = arith.constant 0 : index
      %23 = vector.load %arg3[%c0_19, %c0_20] : memref<1x16xf32, #tpu.memory_space<vmem>>, vector<1x16xf32>
      %24 = vector.shape_cast %23 : vector<1x16xf32> to vector<1x1x16xf32>
      %25 = vector.broadcast %24 : vector<1x1x16xf32> to vector<16x16x16xf32>
      %26 = arith.mulf %22, %25 : vector<16x16x16xf32>
      %c0_21 = arith.constant 0 : index
      %c0_22 = arith.constant 0 : index
      %27 = vector.load %arg4[%c0_21, %c0_22] : memref<1x16xf32, #tpu.memory_space<vmem>>, vector<1x16xf32>
      %28 = vector.shape_cast %27 : vector<1x16xf32> to vector<1x1x16xf32>
      %29 = vector.broadcast %28 : vector<1x1x16xf32> to vector<16x16x16xf32>
      %30 = arith.addf %26, %29 : vector<16x16x16xf32>
      %cst_23 = arith.constant 0.000000e+00 : f32
      %31 = vector.broadcast %cst_23 : f32 to vector<16x16x16xf32>
      %32 = arith.maximumf %30, %31 : vector<16x16x16xf32>
      %33 = vector.shape_cast %32 : vector<16x16x16xf32> to vector<256x16xf32>
      %34 = arith.truncf %33 : vector<256x16xf32> to vector<256x16xbf16>
      %c0_24 = arith.constant 0 : index
      %c0_25 = arith.constant 0 : index
      %35 = vector.load %arg8[%c0_24, %c0_25] : memref<256x16xbf16, #tpu.memory_space<vmem>>, vector<256x16xbf16>
      tpu.vector_store %arg8[%c0_24, %c0_25], %34 {strides = array<i32>} : memref<256x16xbf16, #tpu.memory_space<vmem>>, vector<256x16xbf16>,
    } else {
    }
    %c0 = arith.constant 0 : index
    %c0_1 = arith.constant 0 : index
    %3 = vector.load %arg8[%c0, %c0_1] : memref<256x16xbf16, #tpu.memory_space<vmem>>, vector<256x16xbf16>
    %c0_2 = arith.constant 0 : index
    %c0_3 = arith.constant 0 : index
    %4 = vector.load %arg5[%c0_2, %c0_3] : memref<16x64xbf16, #tpu.memory_space<vmem>>, vector<16x64xbf16>
    %cst = arith.constant dense<0.000000e+00> : vector<256x64xf32>
    %5 = tpu.matmul %3, %4, %cst {dimension_numbers = #tpu.dot_dimension_numbers<[1], [0], [0], [1], [0, 0, 1, 1], [], []>} : vector<256x16xbf16>, vector<16x64xbf16>, vector<256x64xf32> -> vector<256x64xf32>
    %cst_4 = arith.constant dense<0.000000e+00> : vector<64xf32>
    %6 = vector.multi_reduction <add>, %5, %cst_4 [0] : vector<256x64xf32> to vector<64xf32>
    %7 = vector.shape_cast %6 : vector<64xf32> to vector<1x64xf32>
    %c0_5 = arith.constant 0 : index
    %c0_6 = arith.constant 0 : index
    %c0_7 = arith.constant 0 : index
    %8 = vector.load %arg7[%c0_5, %c0_6, %c0_7] : memref<1x2x64xf32, #tpu.memory_space<vmem>>, vector<1x1x64xf32>
    %9 = vector.shape_cast %8 : vector<1x1x64xf32> to vector<1x64xf32>
    %10 = vector.shape_cast %7 : vector<1x64xf32> to vector<1x1x64xf32>
    tpu.vector_store %arg7[%c0_5, %c0_6, %c0_7], %10 {strides = array<i32>} : memref<1x2x64xf32, #tpu.memory_space<vmem>>, vector<1x1x64xf32>,
    %11 = arith.mulf %5, %5 : vector<256x64xf32>
    %cst_8 = arith.constant dense<0.000000e+00> : vector<64xf32>
    %12 = vector.multi_reduction <add>, %11, %cst_8 [0] : vector<256x64xf32> to vector<64xf32>
    %13 = vector.shape_cast %12 : vector<64xf32> to vector<1x64xf32>
    %c0_9 = arith.constant 0 : index
    %c1 = arith.constant 1 : index
    %c0_10 = arith.constant 0 : index
    %14 = vector.load %arg7[%c0_9, %c1, %c0_10] : memref<1x2x64xf32, #tpu.memory_space<vmem>>, vector<1x1x64xf32>
    %15 = vector.shape_cast %14 : vector<1x1x64xf32> to vector<1x64xf32>
    %16 = vector.shape_cast %13 : vector<1x64xf32> to vector<1x1x64xf32>
    tpu.vector_store %arg7[%c0_9, %c1, %c0_10], %16 {strides = array<i32>} : memref<1x2x64xf32, #tpu.memory_space<vmem>>, vector<1x1x64xf32>,
    %17 = vector.shape_cast %5 : vector<256x64xf32> to vector<16x16x64xf32>
    %c0_11 = arith.constant 0 : index
    %c0_12 = arith.constant 0 : index
    %c0_13 = arith.constant 0 : index
    %c0_14 = arith.constant 0 : index
    %18 = vector.load %arg6[%c0_11, %c0_12, %c0_13, %c0_14] : memref<1x16x16x64xf32, #tpu.memory_space<vmem>>, vector<1x16x16x64xf32>
    %19 = vector.shape_cast %18 : vector<1x16x16x64xf32> to vector<16x16x64xf32>
    %20 = vector.shape_cast %17 : vector<16x16x64xf32> to vector<1x16x16x64xf32>
    tpu.vector_store %arg6[%c0_11, %c0_12, %c0_13, %c0_14], %20 {strides = array<i32>} : memref<1x16x16x64xf32, #tpu.memory_space<vmem>>, vector<1x16x16x64xf32>,
    return
  }
  func.func @transform_0(%arg0: i32, %arg1: i32) -> (i32, i32, i32, i32) {
    %c0_i32 = arith.constant 0 : i32
    %c0_i32_0 = arith.constant 0 : i32
    %c0_i32_1 = arith.constant 0 : i32
    %c0_i32_2 = arith.constant 0 : i32
    return %arg0, %c0_i32, %c0_i32_0, %c0_i32_1 : i32, i32, i32, i32
  }
  func.func @transform_1(%arg0: i32, %arg1: i32) -> (i32, i32) {
    %c0_i32 = arith.constant 0 : i32
    %c0_i32_0 = arith.constant 0 : i32
    %c0_i32_1 = arith.constant 0 : i32
    return %c0_i32, %c0_i32_0 : i32, i32
  }
  func.func @transform_2(%arg0: i32, %arg1: i32) -> (i32, i32) {
    %c0_i32 = arith.constant 0 : i32
    %c0_i32_0 = arith.constant 0 : i32
    %c0_i32_1 = arith.constant 0 : i32
    return %c0_i32, %c0_i32_0 : i32, i32
  }
  func.func @transform_3(%arg0: i32, %arg1: i32) -> (i32, i32) {
    %c0_i32 = arith.constant 0 : i32
    %c0_i32_0 = arith.constant 0 : i32
    return %c0_i32, %arg1 : i32, i32
  }
  func.func @transform_4(%arg0: i32, %arg1: i32) -> (i32, i32, i32, i32) {
    %c0_i32 = arith.constant 0 : i32
    %c0_i32_0 = arith.constant 0 : i32
    %c0_i32_1 = arith.constant 0 : i32
    return %arg0, %c0_i32, %c0_i32_0, %arg1 : i32, i32, i32, i32
  }
  func.func @transform_5(%arg0: i32, %arg1: i32) -> (i32, i32, i32) {
    %c0_i32 = arith.constant 0 : i32
    %c0_i32_0 = arith.constant 0 : i32
    return %arg0, %c0_i32, %arg1 : i32, i32, i32
  }
}

module attributes {stable_mosaic.version = 11 : i64} {
  func.func @_residual_relu_kernel(%arg0: i32, %arg1: memref<2x16x16x64xf32, #tpu.memory_space<vmem>>, %arg2: memref<1x64xf32, #tpu.memory_space<vmem>>, %arg3: memref<1x64xf32, #tpu.memory_space<vmem>>, %arg4: memref<2x16x16x64xf32, #tpu.memory_space<vmem>>, %arg5: memref<2x16x16x64xf32, #tpu.memory_space<vmem>>) attributes {dimension_semantics = [#tpu.dimension_semantics<parallel>], iteration_bounds = array<i64: 1>, scalar_prefetch = 0 : i64, scratch_operands = 0 : i64, tpu.core_type = #tpu.core_type<tc>, window_params = [{transform_indices = @transform_0, window_bounds = array<i64: 2, 16, 16, 64>}, {pipeline_mode = #tpu.pipeline_mode<synchronous>, transform_indices = @transform_1, window_bounds = array<i64: 1, 64>}, {pipeline_mode = #tpu.pipeline_mode<synchronous>, transform_indices = @transform_2, window_bounds = array<i64: 1, 64>}, {transform_indices = @transform_3, window_bounds = array<i64: 2, 16, 16, 64>}, {transform_indices = @transform_4, window_bounds = array<i64: 2, 16, 16, 64>}]} {
    %c0 = arith.constant 0 : index
    %c0_0 = arith.constant 0 : index
    %c0_1 = arith.constant 0 : index
    %c0_2 = arith.constant 0 : index
    %0 = vector.load %arg1[%c0, %c0_0, %c0_1, %c0_2] : memref<2x16x16x64xf32, #tpu.memory_space<vmem>>, vector<2x16x16x64xf32>
    %c0_3 = arith.constant 0 : index
    %c0_4 = arith.constant 0 : index
    %1 = vector.load %arg2[%c0_3, %c0_4] : memref<1x64xf32, #tpu.memory_space<vmem>>, vector<1x64xf32>
    %2 = vector.shape_cast %1 : vector<1x64xf32> to vector<1x1x1x64xf32>
    %3 = vector.broadcast %2 : vector<1x1x1x64xf32> to vector<2x16x16x64xf32>
    %4 = arith.mulf %0, %3 : vector<2x16x16x64xf32>
    %c0_5 = arith.constant 0 : index
    %c0_6 = arith.constant 0 : index
    %5 = vector.load %arg3[%c0_5, %c0_6] : memref<1x64xf32, #tpu.memory_space<vmem>>, vector<1x64xf32>
    %6 = vector.shape_cast %5 : vector<1x64xf32> to vector<1x1x1x64xf32>
    %7 = vector.broadcast %6 : vector<1x1x1x64xf32> to vector<2x16x16x64xf32>
    %8 = arith.addf %4, %7 : vector<2x16x16x64xf32>
    %c0_7 = arith.constant 0 : index
    %c0_8 = arith.constant 0 : index
    %c0_9 = arith.constant 0 : index
    %c0_10 = arith.constant 0 : index
    %9 = vector.load %arg4[%c0_7, %c0_8, %c0_9, %c0_10] : memref<2x16x16x64xf32, #tpu.memory_space<vmem>>, vector<2x16x16x64xf32>
    %10 = arith.addf %8, %9 : vector<2x16x16x64xf32>
    %cst = arith.constant 0.000000e+00 : f32
    %11 = vector.broadcast %cst : f32 to vector<2x16x16x64xf32>
    %12 = arith.maximumf %10, %11 : vector<2x16x16x64xf32>
    %c0_11 = arith.constant 0 : index
    %c0_12 = arith.constant 0 : index
    %c0_13 = arith.constant 0 : index
    %c0_14 = arith.constant 0 : index
    %13 = vector.load %arg5[%c0_11, %c0_12, %c0_13, %c0_14] : memref<2x16x16x64xf32, #tpu.memory_space<vmem>>, vector<2x16x16x64xf32>
    tpu.vector_store %arg5[%c0_11, %c0_12, %c0_13, %c0_14], %12 {strides = array<i32>} : memref<2x16x16x64xf32, #tpu.memory_space<vmem>>, vector<2x16x16x64xf32>,
    return
  }
  func.func @transform_0(%arg0: i32) -> (i32, i32, i32, i32) {
    %c0_i32 = arith.constant 0 : i32
    %c0_i32_0 = arith.constant 0 : i32
    %c0_i32_1 = arith.constant 0 : i32
    %c0_i32_2 = arith.constant 0 : i32
    return %arg0, %c0_i32, %c0_i32_0, %c0_i32_1 : i32, i32, i32, i32
  }
  func.func @transform_1(%arg0: i32) -> (i32, i32) {
    %c0_i32 = arith.constant 0 : i32
    %c0_i32_0 = arith.constant 0 : i32
    %c0_i32_1 = arith.constant 0 : i32
    return %c0_i32, %c0_i32_0 : i32, i32
  }
  func.func @transform_2(%arg0: i32) -> (i32, i32) {
    %c0_i32 = arith.constant 0 : i32
    %c0_i32_0 = arith.constant 0 : i32
    %c0_i32_1 = arith.constant 0 : i32
    return %c0_i32, %c0_i32_0 : i32, i32
  }
  func.func @transform_3(%arg0: i32) -> (i32, i32, i32, i32) {
    %c0_i32 = arith.constant 0 : i32
    %c0_i32_0 = arith.constant 0 : i32
    %c0_i32_1 = arith.constant 0 : i32
    %c0_i32_2 = arith.constant 0 : i32
    return %arg0, %c0_i32, %c0_i32_0, %c0_i32_1 : i32, i32, i32, i32
  }
  func.func @transform_4(%arg0: i32) -> (i32, i32, i32, i32) {
    %c0_i32 = arith.constant 0 : i32
    %c0_i32_0 = arith.constant 0 : i32
    %c0_i32_1 = arith.constant 0 : i32
    %c0_i32_2 = arith.constant 0 : i32
    return %arg0, %c0_i32, %c0_i32_0, %c0_i32_1 : i32, i32, i32, i32
  }
}

</mosaic_0001>

<llo_original>
// kernel: bottleneck_forward.4
$region0: #{bottleneck_forward.4}
  #allocation0 [shape = 'u32[]', space=smem, size = 0x4, offset = 0x4, fixed_abs, tag = 'smem constant byte address 0x4 - core index']
  #allocation1 [shape = 'u32[144,128]{1,0:T(1,128)}', space=vmem, size = 0x12000, scoped, tag = 'internal scratch']
  #allocation2 [shape = 'bf16[256,64]{1,0:T(16,128)(2,1)}', space=vmem, size = 0x10000, scoped, tag = 'scratch operand']
  %s0 = inlined_call_operand.hbm [shape: f32[2,16,16,64], index: 0, kind: input, shape index: {}]
  %s1 = inlined_call_operand.hbm [shape: bf16[64,16], index: 1, kind: input, shape index: {}]
  %s2 = inlined_call_operand.hbm [shape: f32[2,16,16,16], index: 2, kind: output, shape index: {0}]
  %s3 = inlined_call_operand.hbm [shape: f32[2,2,16], index: 3, kind: output, shape index: {1}]
  %4 = xla_tuple %s2, %s3
  %s5 = sld [smem:[#allocation0]]
  $region61: #{bottleneck_forward.4} parent=0
    _
  %s7 = ssub.s32 1, %s5
  %s8 = scalar_select 0, %s7, %s5
  $region1: #{bottleneck_forward.4} parent=0
    #allocation3 [shape = 'u8[262144]{0}', space=vmem, size = 0x40000, scoped, tag = 'input window, operand 0']
    #allocation4 [shape = 's32[2]{0}', space=sflag, size = 0x8, scoped, tag = 'scoped memory for bottleneck_forward.4']
    #allocation5 [shape = 's32[2]{0}', space=sflag, size = 0x8, scoped, tag = 'scoped memory for bottleneck_forward.4']
    #allocation6 [shape = 'u8[16384]{0}', space=vmem, size = 0x4000, scoped, tag = 'input window, operand 1, single buffered']
    #allocation7 [shape = 's32[1]{0}', space=sflag, size = 0x4, scoped, tag = 'scoped memory for bottleneck_forward.4']
    #allocation8 [shape = 'u8[262144]{0}', space=vmem, size = 0x40000, scoped, tag = 'output window, operand 0']
    #allocation9 [shape = 'u8[2048]{0}', space=vmem, size = 0x800, scoped, tag = 'output window, operand 1']
    #allocation10 [shape = 's32[2]{0}', space=sflag, size = 0x8, scoped, tag = 'scoped memory for bottleneck_forward.4']
    %9 = vsyncpa [#allocation4], 0
    %s10 = scalar_lea.sflag [#allocation4], 1
    %11 = vsyncpa %s10, 0
    %12 = vsyncpa [#allocation7], 0
    %13 = vsyncpa [#allocation5], 0
    %s14 = scalar_lea.sflag [#allocation5], 1
    %15 = vsyncpa %s14, 0
    %16 = vsyncpa [#allocation10], 0
    %s17 = scalar_lea.sflag [#allocation10], 1
    %18 = vsyncpa %s17, 0
    loop: start=0, step=1, limit=4
    $region2: #{bottleneck_forward.4} parent=1 // loop_pre_header
      _
    $region3: #{bottleneck_forward.4} parent=1 // loop_header
      %s20 = sphi 0, %s24
      %p21 = scmp.ge.s32.totalorder %s20, 4
      %s27 = sphi 0, %s39
      %s28 = sphi 0, %s35
      %s29 = sphi 0, %s27
      %s30 = sphi 0, %s28
      %s31 = sphi 0, %s29
      %s32 = sphi 0, %s30
      %s42 = sphi 0, %s44
      %s45 = sphi 0, %s42
      %s46 = sphi 0, %s45
      %s62 = sphi 0, %s46
      %s68 = sphi 0, %s70
      %s71 = sphi 0, %s68
      %s72 = sphi 0, %s71
      %s88 = sphi 0, %s72
      %s96 = sphi 0, %s98
      %s99 = sphi 0, %s96
      %s100 = sphi 0, %s99
      %s116 = sphi 0, %s100
      %s124 = sphi 0, %s126
      %s127 = sphi 0, %s124
      %s128 = sphi 0, %s127
      %s144 = sphi 0, %s128
    $region4: #{bottleneck_forward.4} parent=1 // loop_header_branch
      %23 = sbr.rel (%p21) target = $region8
    $region5: #{bottleneck_forward.4} parent=1 // loop_body
      %s25 = ssub.s32 %s20, 1
      %s26 = ssub.s32 %s20, 2
      %s33 = sadd.s32 1, %s28
      %p34 = scmp.ge.s32.totalorder %s33, 1
      %s35 = scalar_select %p34, 0, %s33
      %s36 = sadd.s32 1, %s27
      %s37 = scalar_select %p34, %s36, %s27
      %p38 = scmp.ge.s32.totalorder %s37, 2
      %s39 = scalar_select %p38, 0, %s37
      %s40 = ssub.s32 %s27, %s39
      %p41 = scmp.eq.s32.totalorder %s40, 0
      %s43 = sadd.s32 %s42, 1
      %s44 = scalar_select %p41, %s42, %s43
      %p47 = pneg %p41
      %p48 = scmp.eq.s32.totalorder %s20, 1
      %p49 = por %p47, %p48
      %p50 = scmp.ne.s32.totalorder %s42, %s45
      %p51 = scmp.eq.s32.totalorder %s20, 0
      %p52 = por %p50, %p51
      %p53 = scmp.ne.s32.totalorder %s42, %s45
      %p54 = scmp.eq.s32.totalorder %s25, 1
      %p55 = por %p53, %p54
      %p56 = scmp.ne.s32.totalorder %s45, %s46
      %p57 = scmp.eq.s32.totalorder %s25, 0
      %p58 = por %p56, %p57
      %p59 = scmp.ne.s32.totalorder %s45, %s46
      %p60 = scmp.eq.s32.totalorder %s26, 1
      %p61 = por %p59, %p60
      %p63 = scmp.ne.s32.totalorder %s46, %s62
      %p64 = scmp.eq.s32.totalorder %s26, 0
      %p65 = por %p63, %p64
      %s66 = ssub.s32 %s28, %s35
      %p67 = scmp.eq.s32.totalorder %s66, 0
      %s69 = sadd.s32 %s68, 1
      %s70 = scalar_select %p67, %s68, %s69
      %p73 = pneg %p67
      %p74 = scmp.eq.s32.totalorder %s20, 1
      %p75 = por %p73, %p74
      %p76 = scmp.ne.s32.totalorder %s68, %s71
      %p77 = scmp.eq.s32.totalorder %s20, 0
      %p78 = por %p76, %p77
      %p79 = scmp.ne.s32.totalorder %s68, %s71
      %p80 = scmp.eq.s32.totalorder %s25, 1
      %p81 = por %p79, %p80
      %p82 = scmp.ne.s32.totalorder %s71, %s72
      %p83 = scmp.eq.s32.totalorder %s25, 0
      %p84 = por %p82, %p83
      %p85 = scmp.ne.s32.totalorder %s71, %s72
      %p86 = scmp.eq.s32.totalorder %s26, 1
      %p87 = por %p85, %p86
      %p89 = scmp.ne.s32.totalorder %s72, %s88
      %p90 = scmp.eq.s32.totalorder %s26, 0
      %p91 = por %p89, %p90
      %s92 = ssub.s32 %s27, %s39
      %s93 = ssub.s32 %s28, %s35
      %s94 = sor.u32 %s92, %s93
      %p95 = scmp.eq.s32.totalorder %s94, 0
      %s97 = sadd.s32 %s96, 1
      %s98 = scalar_select %p95, %s96, %s97
      %p101 = pneg %p95
      %p102 = scmp.eq.s32.totalorder %s20, 1
      %p103 = por %p101, %p102
      %p104 = scmp.ne.s32.totalorder %s96, %s99
      %p105 = scmp.eq.s32.totalorder %s20, 0
      %p106 = por %p104, %p105
      %p107 = scmp.ne.s32.totalorder %s96, %s99
      %p108 = scmp.eq.s32.totalorder %s25, 1
      %p109 = por %p107, %p108
      %p110 = scmp.ne.s32.totalorder %s99, %s100
      %p111 = scmp.eq.s32.totalorder %s25, 0
      %p112 = por %p110, %p111
      %p113 = scmp.ne.s32.totalorder %s99, %s100
      %p114 = scmp.eq.s32.totalorder %s26, 1
      %p115 = por %p113, %p114
      %p117 = scmp.ne.s32.totalorder %s100, %s116
      %p118 = scmp.eq.s32.totalorder %s26, 0
      %p119 = por %p117, %p118
      %s120 = ssub.s32 %s27, %s39
      %s121 = ssub.s32 %s28, %s35
      %s122 = sor.u32 %s120, %s121
      %p123 = scmp.eq.s32.totalorder %s122, 0
      %s125 = sadd.s32 %s124, 1
      %s126 = scalar_select %p123, %s124, %s125
      %p129 = pneg %p123
      %p130 = scmp.eq.s32.totalorder %s20, 1
      %p131 = por %p129, %p130
      %p132 = scmp.ne.s32.totalorder %s124, %s127
      %p133 = scmp.eq.s32.totalorder %s20, 0
      %p134 = por %p132, %p133
      %p135 = scmp.ne.s32.totalorder %s124, %s127
      %p136 = scmp.eq.s32.totalorder %s25, 1
      %p137 = por %p135, %p136
      %p138 = scmp.ne.s32.totalorder %s127, %s128
      %p139 = scmp.eq.s32.totalorder %s25, 0
      %p140 = por %p138, %p139
      %p141 = scmp.ne.s32.totalorder %s127, %s128
      %p142 = scmp.eq.s32.totalorder %s26, 1
      %p143 = por %p141, %p142
      %p145 = scmp.ne.s32.totalorder %s128, %s144
      %p146 = scmp.eq.s32.totalorder %s26, 0
      %p147 = por %p145, %p146
      %p148 = scmp.le.s32.totalorder 1, %s20
      %p149 = scmp.lt.s32.totalorder %s20, 3
      %p150 = pnand %p148, %p149
      %p151 = pneg %p150
      // Predicated region
      $region9: #{bottleneck_forward.4} parent=5 // pred_check
        _
      $region10: #{bottleneck_forward.4} parent=5 // pred_check_branch
        %153 = sbr.rel (%p150) target = $region12
      $region11: #{bottleneck_forward.4} parent=5 // pred_region
        %s154 = ssub.s32 %s20, 1
        // Predicated region
        $region13: #{bottleneck_forward.4} parent=11 // pred_check
          %p155 = pneg %p84
        $region14: #{bottleneck_forward.4} parent=11 // pred_check_branch
          %157 = sbr.rel (%p155) target = $region16
        $region15: #{bottleneck_forward.4} parent=11 // pred_region
          %s159 = ssub.s32 512, 512
          %160 = vsyncadd [#allocation7], %s159
          %s161 = smul.addr %s30, 64
          %s162 = scalar_lea.hbm %s1, %s161
          %s163 = sshll.u32 [#allocation6], 4
          %s164 = int_to_ptr.vmem [resolvable:$true] %s163
          %169 = dma.hbm_to_vmem [thread:$0]  %s162, 512, %s164, [#allocation7], 64, 64, 4
        $region16: #{bottleneck_forward.4} parent=11 // pred_fallthru
          _
      $region12: #{bottleneck_forward.4} parent=5 // pred_fallthru
        _
      %p170 = scmp.lt.s32.totalorder %s20, 2
      // Predicated region
      $region17: #{bottleneck_forward.4} parent=5 // pred_check
        %p171 = pneg %p170
      $region18: #{bottleneck_forward.4} parent=5 // pred_check_branch
        %173 = sbr.rel (%p171) target = $region20
      $region19: #{bottleneck_forward.4} parent=5 // pred_region
        // Predicated region
        $region21: #{bottleneck_forward.4} parent=19 // pred_check
          %p174 = pneg %p52
        $region22: #{bottleneck_forward.4} parent=19 // pred_check_branch
          %176 = sbr.rel (%p174) target = $region24
        $region23: #{bottleneck_forward.4} parent=19 // pred_region
          %s177 = sand.u32 %s42, 1
          %s178 = scalar_lea.sflag [#allocation4], %s177
          %s179 = sand.u32 %s42, 1
          %s180 = smul.addr %s179, 256
          %s181 = scalar_lea.vmem [#allocation3], %s180
          %s183 = ssub.s32 4096, 4096
          %184 = vsyncadd %s178, %s183
          %s185 = smul.addr %s27, 32
          %s186 = smul.addr %s185, 128
          %s187 = scalar_lea.hbm %s0, %s186
          %s188 = sshll.u32 %s181, 4
          %s189 = int_to_ptr.vmem [resolvable:$true] %s188
          %194 = dma.hbm_to_vmem [thread:$0]  %s187, 4096, %s189, %s178, 128, 128, 8
        $region24: #{bottleneck_forward.4} parent=19 // pred_fallthru
          _
      $region20: #{bottleneck_forward.4} parent=5 // pred_fallthru
        _
      %p195 = scmp.le.s32.totalorder 1, %s20
      %p196 = scmp.lt.s32.totalorder %s20, 3
      %p197 = pnand %p195, %p196
      %p198 = pneg %p197
      // Predicated region
      $region25: #{bottleneck_forward.4} parent=5 // pred_check
        _
      $region26: #{bottleneck_forward.4} parent=5 // pred_check_branch
        %200 = sbr.rel (%p197) target = $region28
      $region27: #{bottleneck_forward.4} parent=5 // pred_region
        %s201 = ssub.s32 %s20, 1
        %s202 = sand.u32 %s45, 1
        %s203 = scalar_lea.sflag [#allocation4], %s202
        %s204 = sand.u32 %s45, 1
        %s205 = smul.addr %s204, 256
        %s206 = scalar_lea.vmem [#allocation3], %s205
        // Predicated region
        $region29: #{bottleneck_forward.4} parent=27 // pred_check
          %p207 = pneg %p58
        $region30: #{bottleneck_forward.4} parent=27 // pred_check_branch
          %209 = sbr.rel (%p207) target = $region32
        $region31: #{bottleneck_forward.4} parent=27 // pred_region
          %210 = dma.done %s203, 4096
        $region32: #{bottleneck_forward.4} parent=27 // pred_fallthru
          _
        // Predicated region
        $region33: #{bottleneck_forward.4} parent=27 // pred_check
          %p211 = pneg %p84
        $region34: #{bottleneck_forward.4} parent=27 // pred_check_branch
          %213 = sbr.rel (%p211) target = $region36
        $region35: #{bottleneck_forward.4} parent=27 // pred_region
          %214 = dma.done [#allocation7], 512
        $region36: #{bottleneck_forward.4} parent=27 // pred_fallthru
          _
        %s215 = sand.u32 %s45, 1
        %s216 = scalar_lea.sflag [#allocation4], %s215
        %s217 = sand.u32 %s45, 1
        %s218 = smul.addr %s217, 256
        %s219 = scalar_lea.vmem [#allocation3], %s218
        %p220 = pneg %p58
        %p221 = pneg %p55
        %p222 = pneg %p84
        %p223 = pneg %p81
        %p224 = pneg %p112
        %p225 = pneg %p109
        %s226 = sand.u32 %s99, 1
        %s227 = scalar_lea.sflag [#allocation5], %s226
        %s228 = sand.u32 %s99, 1
        %s229 = smul.addr %s228, 256
        %s230 = scalar_lea.vmem [#allocation8], %s229
        %p231 = pneg %p140
        %p232 = pneg %p137
        %s233 = sand.u32 %s127, 1
        %s234 = scalar_lea.sflag [#allocation10], %s233
        %s235 = sand.u32 %s127, 1
        %s236 = smul.addr %s235, 2
        %s237 = scalar_lea.vmem [#allocation9], %s236
        %p239 = scmp.eq.s32.totalorder %s30, 0
        // Predicated region
        $region37: #{bottleneck_forward.4} parent=27 // pred_check
          %p240 = pneg %p239
        $region38: #{bottleneck_forward.4} parent=27 // pred_check_branch
          %242 = sbr.rel (%p240) target = $region40
        $region39: #{bottleneck_forward.4} parent=27 // pred_region
          %v243 = vld [vmem:[%s206] sm:$0xff]
          %v244 = vld [vmem:[%s206 + $0x8] sm:$0xff]
          %v245 = vld [vmem:[%s206 + $0x10] sm:$0xff]
          %v246 = vld [vmem:[%s206 + $0x18] sm:$0xff]
          %v247 = vld [vmem:[%s206 + $0x20] sm:$0xff]
          %v248 = vld [vmem:[%s206 + $0x28] sm:$0xff]
          %v249 = vld [vmem:[%s206 + $0x30] sm:$0xff]
          %v250 = vld [vmem:[%s206 + $0x38] sm:$0xff]
          %v251 = vld [vmem:[%s206 + $0x40] sm:$0xff]
          %v252 = vld [vmem:[%s206 + $0x48] sm:$0xff]
          %v253 = vld [vmem:[%s206 + $0x50] sm:$0xff]
          %v254 = vld [vmem:[%s206 + $0x58] sm:$0xff]
          %v255 = vld [vmem:[%s206 + $0x60] sm:$0xff]
          %v256 = vld [vmem:[%s206 + $0x68] sm:$0xff]
          %v257 = vld [vmem:[%s206 + $0x70] sm:$0xff]
          %v258 = vld [vmem:[%s206 + $0x78] sm:$0xff]
          %v259 = vld [vmem:[%s206 + $0x80] sm:$0xff]
          %v260 = vld [vmem:[%s206 + $0x88] sm:$0xff]
          %v261 = vld [vmem:[%s206 + $0x90] sm:$0xff]
          %v262 = vld [vmem:[%s206 + $0x98] sm:$0xff]
          %v263 = vld [vmem:[%s206 + $0xa0] sm:$0xff]
          %v264 = vld [vmem:[%s206 + $0xa8] sm:$0xff]
          %v265 = vld [vmem:[%s206 + $0xb0] sm:$0xff]
          %v266 = vld [vmem:[%s206 + $0xb8] sm:$0xff]
          %v267 = vld [vmem:[%s206 + $0xc0] sm:$0xff]
          %v268 = vld [vmem:[%s206 + $0xc8] sm:$0xff]
          %v269 = vld [vmem:[%s206 + $0xd0] sm:$0xff]
          %v270 = vld [vmem:[%s206 + $0xd8] sm:$0xff]
          %v271 = vld [vmem:[%s206 + $0xe0] sm:$0xff]
          %v272 = vld [vmem:[%s206 + $0xe8] sm:$0xff]
          %v273 = vld [vmem:[%s206 + $0xf0] sm:$0xff]
          %v274 = vld [vmem:[%s206 + $0xf8] sm:$0xff]
          %v275 = vpack.c.bf16 %v244, %v243
          %v276 = vpack.c.bf16 %v246, %v245
          %v277 = vpack.c.bf16 %v248, %v247
          %v278 = vpack.c.bf16 %v250, %v249
          %v279 = vpack.c.bf16 %v252, %v251
          %v280 = vpack.c.bf16 %v254, %v253
          %v281 = vpack.c.bf16 %v256, %v255
          %v282 = vpack.c.bf16 %v258, %v257
          %v283 = vpack.c.bf16 %v260, %v259
          %v284 = vpack.c.bf16 %v262, %v261
          %v285 = vpack.c.bf16 %v264, %v263
          %v286 = vpack.c.bf16 %v266, %v265
          %v287 = vpack.c.bf16 %v268, %v267
          %v288 = vpack.c.bf16 %v270, %v269
          %v289 = vpack.c.bf16 %v272, %v271
          %v290 = vpack.c.bf16 %v274, %v273
          %vm291 = vcmask 523264
          %292 = vst.msk [vmem:[#allocation2] sm:$0xff] %vm291, %v275
          %293 = vst.msk [vmem:[#allocation2 + $0x8] sm:$0xff] %vm291, %v276
          %294 = vst.msk [vmem:[#allocation2 + $0x10] sm:$0xff] %vm291, %v277
          %295 = vst.msk [vmem:[#allocation2 + $0x18] sm:$0xff] %vm291, %v278
          %296 = vst.msk [vmem:[#allocation2 + $0x20] sm:$0xff] %vm291, %v279
          %297 = vst.msk [vmem:[#allocation2 + $0x28] sm:$0xff] %vm291, %v280
          %298 = vst.msk [vmem:[#allocation2 + $0x30] sm:$0xff] %vm291, %v281
          %299 = vst.msk [vmem:[#allocation2 + $0x38] sm:$0xff] %vm291, %v282
          %300 = vst.msk [vmem:[#allocation2 + $0x40] sm:$0xff] %vm291, %v283
          %301 = vst.msk [vmem:[#allocation2 + $0x48] sm:$0xff] %vm291, %v284
          %302 = vst.msk [vmem:[#allocation2 + $0x50] sm:$0xff] %vm291, %v285
          %303 = vst.msk [vmem:[#allocation2 + $0x58] sm:$0xff] %vm291, %v286
          %304 = vst.msk [vmem:[#allocation2 + $0x60] sm:$0xff] %vm291, %v287
          %305 = vst.msk [vmem:[#allocation2 + $0x68] sm:$0xff] %vm291, %v288
          %306 = vst.msk [vmem:[#allocation2 + $0x70] sm:$0xff] %vm291, %v289
          %307 = vst.msk [vmem:[#allocation2 + $0x78] sm:$0xff] %vm291, %v290
        $region40: #{bottleneck_forward.4} parent=27 // pred_fallthru
          _
        %v308 = vld [vmem:[#allocation2] sm:$0xff]
        %v309 = vld [vmem:[#allocation2 + $0x8] sm:$0xff]
        %v310 = vld [vmem:[#allocation2 + $0x10] sm:$0xff]
        %v311 = vld [vmem:[#allocation2 + $0x18] sm:$0xff]
        %v312 = vld [vmem:[#allocation2 + $0x20] sm:$0xff]
        %v313 = vld [vmem:[#allocation2 + $0x28] sm:$0xff]
        %v314 = vld [vmem:[#allocation2 + $0x30] sm:$0xff]
        %v315 = vld [vmem:[#allocation2 + $0x38] sm:$0xff]
        %v316 = vld [vmem:[#allocation2 + $0x40] sm:$0xff]
        %v317 = vld [vmem:[#allocation2 + $0x48] sm:$0xff]
        %v318 = vld [vmem:[#allocation2 + $0x50] sm:$0xff]
        %v319 = vld [vmem:[#allocation2 + $0x58] sm:$0xff]
        %v320 = vld [vmem:[#allocation2 + $0x60] sm:$0xff]
        %v321 = vld [vmem:[#allocation2 + $0x68] sm:$0xff]
        %v322 = vld [vmem:[#allocation2 + $0x70] sm:$0xff]
        %v323 = vld [vmem:[#allocation2 + $0x78] sm:$0xff]
        %v324 = vld [vmem:[#allocation6] sm:$0xf]
        %v325 = vld [vmem:[#allocation6 + $0x4] sm:$0xf]
        %v326 = vld [vmem:[#allocation6 + $0x8] sm:$0xf]
        %v327 = vld [vmem:[#allocation6 + $0xc] sm:$0xf]
        %v328 = vld [vmem:[#allocation6 + $0x10] sm:$0xf]
        %v329 = vld [vmem:[#allocation6 + $0x14] sm:$0xf]
        %v330 = vld [vmem:[#allocation6 + $0x18] sm:$0xf]
        %v331 = vld [vmem:[#allocation6 + $0x1c] sm:$0xf]
        %v340 = vunpack.c.l.b16 %v324
        %v341 = vunpack.c.l.b16 %v325
        %v342 = vunpack.c.l.b16 %v326
        %v343 = vunpack.c.l.b16 %v327
        %v344 = vunpack.c.l.b16 %v328
        %v345 = vunpack.c.l.b16 %v329
        %v346 = vunpack.c.l.b16 %v330
        %v347 = vunpack.c.l.b16 %v331
        %v348 = vpack.c.b16 %v341, %v340
        %v349 = vpack.c.b16 %v343, %v342
        %v350 = vpack.c.b16 %v345, %v344
        %v351 = vpack.c.b16 %v347, %v346
        %vm356 = vcmask 523264
        %v358 = vsel %vm356, %v308, 0
        %v361 = vsel %vm356, %v309, 0
        %v364 = vsel %vm356, %v310, 0
        %v367 = vsel %vm356, %v311, 0
        %v370 = vsel %vm356, %v312, 0
        %v373 = vsel %vm356, %v313, 0
        %v376 = vsel %vm356, %v314, 0
        %v379 = vsel %vm356, %v315, 0
        %v382 = vsel %vm356, %v316, 0
        %v385 = vsel %vm356, %v317, 0
        %v388 = vsel %vm356, %v318, 0
        %v391 = vsel %vm356, %v319, 0
        %v394 = vsel %vm356, %v320, 0
        %v397 = vsel %vm356, %v321, 0
        %v400 = vsel %vm356, %v322, 0
        %v403 = vsel %vm356, %v323, 0
        %405 = vmatprep.subr.bf16.mxu0 0
        %406 = vmatpush1.bf16.msra.mxu0 %v348
        %407 = vmatprep.subr.bf16.mxu0 0
        %408 = vmatpush1.bf16.msra.mxu0 %v349
        %409 = vmatprep.subr.bf16.mxu0 0
        %410 = vmatpush1.bf16.msra.mxu0 %v350
        %411 = vmatprep.subr.bf16.mxu0 0
        %412 = vmatpush1.bf16.msra.mxu0 %v351
        %413 = vmatprep.subr.bf16.mxu0 0
        %414 = vmatpush1.bf16.msra.mxu0 0
        %415 = vmatprep.subr.bf16.mxu0 0
        %416 = vmatpush1.bf16.msra.mxu0 0
        %417 = vmatprep.subr.bf16.mxu0 0
        %418 = vmatpush1.bf16.msra.mxu0 0
        %419 = vmatprep.subr.bf16.mxu0 0
        %420 = vmatpush1.bf16.msra.mxu0 0
        %421 = vmatprep.subr.bf16.mxu0 0
        %422 = vmatpush1.bf16.msra.mxu0 0
        %423 = vmatprep.subr.bf16.mxu0 0
        %424 = vmatpush1.bf16.msra.mxu0 0
        %425 = vmatprep.subr.bf16.mxu0 0
        %426 = vmatpush1.bf16.msra.mxu0 0
        %427 = vmatprep.subr.bf16.mxu0 0
        %428 = vmatpush1.bf16.msra.mxu0 0
        %429 = vmatprep.subr.bf16.mxu0 0
        %430 = vmatpush1.bf16.msra.mxu0 0
        %431 = vmatprep.subr.bf16.mxu0 0
        %432 = vmatpush1.bf16.msra.mxu0 0
        %433 = vmatprep.subr.bf16.mxu0 0
        %434 = vmatpush1.bf16.msra.mxu0 0
        %435 = vmatprep.subr.bf16.mxu0 0
        %436 = vmatpush1.bf16.msra.mxu0 0
        %437 = vmatprep.mubr.bf16.mxu0 0
        %438 = vmatmul.mubr.bf16.gmra.mrb[0].mxu0 %v358
        %v439 = vpop.f32.mrb[0].mxu0
        %v440 = vadd.f32 0.0, %v439
        %v441 = vpop.f32.mrb[0].mxu0
        %v442 = vpop.f32.mrb[0].mxu0
        %v443 = vadd.f32 0.0, %v442
        %v444 = vpop.f32.mrb[0].mxu0
        %445 = vmatprep.mubr.bf16.mxu0 0
        %446 = vmatmul.mubr.bf16.gmra.mrb[0].mxu0 %v361
        %v447 = vpop.f32.mrb[0].mxu0
        %v448 = vadd.f32 0.0, %v447
        %v449 = vpop.f32.mrb[0].mxu0
        %v450 = vpop.f32.mrb[0].mxu0
        %v451 = vadd.f32 0.0, %v450
        %v452 = vpop.f32.mrb[0].mxu0
        %453 = vmatprep.mubr.bf16.mxu0 0
        %454 = vmatmul.mubr.bf16.gmra.mrb[0].mxu0 %v364
        %v455 = vpop.f32.mrb[0].mxu0
        %v456 = vadd.f32 0.0, %v455
        %v457 = vpop.f32.mrb[0].mxu0
        %v458 = vpop.f32.mrb[0].mxu0
        %v459 = vadd.f32 0.0, %v458
        %v460 = vpop.f32.mrb[0].mxu0
        %461 = vmatprep.mubr.bf16.mxu0 0
        %462 = vmatmul.mubr.bf16.gmra.mrb[0].mxu0 %v367
        %v463 = vpop.f32.mrb[0].mxu0
        %v464 = vadd.f32 0.0, %v463
        %v465 = vpop.f32.mrb[0].mxu0
        %v466 = vpop.f32.mrb[0].mxu0
        %v467 = vadd.f32 0.0, %v466
        %v468 = vpop.f32.mrb[0].mxu0
        %469 = vmatprep.mubr.bf16.mxu0 0
        %470 = vmatmul.mubr.bf16.gmra.mrb[0].mxu0 %v370
        %v471 = vpop.f32.mrb[0].mxu0
        %v472 = vadd.f32 0.0, %v471
        %v473 = vpop.f32.mrb[0].mxu0
        %v474 = vpop.f32.mrb[0].mxu0
        %v475 = vadd.f32 0.0, %v474
        %v476 = vpop.f32.mrb[0].mxu0
        %477 = vmatprep.mubr.bf16.mxu0 0
        %478 = vmatmul.mubr.bf16.gmra.mrb[0].mxu0 %v373
        %v479 = vpop.f32.mrb[0].mxu0
        %v480 = vadd.f32 0.0, %v479
        %v481 = vpop.f32.mrb[0].mxu0
        %v482 = vpop.f32.mrb[0].mxu0
        %v483 = vadd.f32 0.0, %v482
        %v484 = vpop.f32.mrb[0].mxu0
        %485 = vmatprep.mubr.bf16.mxu0 0
        %486 = vmatmul.mubr.bf16.gmra.mrb[0].mxu0 %v376
        %v487 = vpop.f32.mrb[0].mxu0
        %v488 = vadd.f32 0.0, %v487
        %v489 = vpop.f32.mrb[0].mxu0
        %v490 = vpop.f32.mrb[0].mxu0
        %v491 = vadd.f32 0.0, %v490
        %v492 = vpop.f32.mrb[0].mxu0
        %493 = vmatprep.mubr.bf16.mxu0 0
        %494 = vmatmul.mubr.bf16.gmra.mrb[0].mxu0 %v379
        %v495 = vpop.f32.mrb[0].mxu0
        %v496 = vadd.f32 0.0, %v495
        %v497 = vpop.f32.mrb[0].mxu0
        %v498 = vpop.f32.mrb[0].mxu0
        %v499 = vadd.f32 0.0, %v498
        %v500 = vpop.f32.mrb[0].mxu0
        %501 = vmatprep.mubr.bf16.mxu0 0
        %502 = vmatmul.mubr.bf16.gmra.mrb[0].mxu0 %v382
        %v503 = vpop.f32.mrb[0].mxu0
        %v504 = vadd.f32 0.0, %v503
        %v505 = vpop.f32.mrb[0].mxu0
        %v506 = vpop.f32.mrb[0].mxu0
        %v507 = vadd.f32 0.0, %v506
        %v508 = vpop.f32.mrb[0].mxu0
        %509 = vmatprep.mubr.bf16.mxu0 0
        %510 = vmatmul.mubr.bf16.gmra.mrb[0].mxu0 %v385
        %v511 = vpop.f32.mrb[0].mxu0
        %v512 = vadd.f32 0.0, %v511
        %v513 = vpop.f32.mrb[0].mxu0
        %v514 = vpop.f32.mrb[0].mxu0
        %v515 = vadd.f32 0.0, %v514
        %v516 = vpop.f32.mrb[0].mxu0
        %517 = vmatprep.mubr.bf16.mxu0 0
        %518 = vmatmul.mubr.bf16.gmra.mrb[0].mxu0 %v388
        %v519 = vpop.f32.mrb[0].mxu0
        %v520 = vadd.f32 0.0, %v519
        %v521 = vpop.f32.mrb[0].mxu0
        %v522 = vpop.f32.mrb[0].mxu0
        %v523 = vadd.f32 0.0, %v522
        %v524 = vpop.f32.mrb[0].mxu0
        %525 = vmatprep.mubr.bf16.mxu0 0
        %526 = vmatmul.mubr.bf16.gmra.mrb[0].mxu0 %v391
        %v527 = vpop.f32.mrb[0].mxu0
        %v528 = vadd.f32 0.0, %v527
        %v529 = vpop.f32.mrb[0].mxu0
        %v530 = vpop.f32.mrb[0].mxu0
        %v531 = vadd.f32 0.0, %v530
        %v532 = vpop.f32.mrb[0].mxu0
        %533 = vmatprep.mubr.bf16.mxu0 0
        %534 = vmatmul.mubr.bf16.gmra.mrb[0].mxu0 %v394
        %v535 = vpop.f32.mrb[0].mxu0
        %v536 = vadd.f32 0.0, %v535
        %v537 = vpop.f32.mrb[0].mxu0
        %v538 = vpop.f32.mrb[0].mxu0
        %v539 = vadd.f32 0.0, %v538
        %v540 = vpop.f32.mrb[0].mxu0
        %541 = vmatprep.mubr.bf16.mxu0 0
        %542 = vmatmul.mubr.bf16.gmra.mrb[0].mxu0 %v397
        %v543 = vpop.f32.mrb[0].mxu0
        %v544 = vadd.f32 0.0, %v543
        %v545 = vpop.f32.mrb[0].mxu0
        %v546 = vpop.f32.mrb[0].mxu0
        %v547 = vadd.f32 0.0, %v546
        %v548 = vpop.f32.mrb[0].mxu0
        %549 = vmatprep.mubr.bf16.mxu0 0
        %550 = vmatmul.mubr.bf16.gmra.mrb[0].mxu0 %v400
        %v551 = vpop.f32.mrb[0].mxu0
        %v552 = vadd.f32 0.0, %v551
        %v553 = vpop.f32.mrb[0].mxu0
        %v554 = vpop.f32.mrb[0].mxu0
        %v555 = vadd.f32 0.0, %v554
        %v556 = vpop.f32.mrb[0].mxu0
        %557 = vmatprep.mubr.bf16.mxu0 0
        %558 = vmatmul.mubr.bf16.gmra.mrb[0].mxu0 %v403
        %v559 = vpop.f32.mrb[0].mxu0
        %v560 = vadd.f32 0.0, %v559
        %v561 = vpop.f32.mrb[0].mxu0
        %v562 = vpop.f32.mrb[0].mxu0
        %v563 = vadd.f32 0.0, %v562
        %v564 = vpop.f32.mrb[0].mxu0
        %565 = vdwg.mxu0
        %vm566 = vcmask 130048
        %v567 = vsel %vm566, %v440, 0.0
        %v568 = vsel %vm566, %v443, 0.0
        %v569 = vadd.f32 %v567, %v568
        %v570 = vsel %vm566, %v448, 0.0
        %v571 = vadd.f32 %v569, %v570
        %v572 = vsel %vm566, %v451, 0.0
        %v573 = vadd.f32 %v571, %v572
        %v574 = vsel %vm566, %v456, 0.0
        %v575 = vadd.f32 %v573, %v574
        %v576 = vsel %vm566, %v459, 0.0
        %v577 = vadd.f32 %v575, %v576
        %v578 = vsel %vm566, %v464, 0.0
        %v579 = vadd.f32 %v577, %v578
        %v580 = vsel %vm566, %v467, 0.0
        %v581 = vadd.f32 %v579, %v580
        %v582 = vsel %vm566, %v472, 0.0
        %v583 = vadd.f32 %v581, %v582
        %v584 = vsel %vm566, %v475, 0.0
        %v585 = vadd.f32 %v583, %v584
        %v586 = vsel %vm566, %v480, 0.0
        %v587 = vadd.f32 %v585, %v586
        %v588 = vsel %vm566, %v483, 0.0
        %v589 = vadd.f32 %v587, %v588
        %v590 = vsel %vm566, %v488, 0.0
        %v591 = vadd.f32 %v589, %v590
        %v592 = vsel %vm566, %v491, 0.0
        %v593 = vadd.f32 %v591, %v592
        %v594 = vsel %vm566, %v496, 0.0
        %v595 = vadd.f32 %v593, %v594
        %v596 = vsel %vm566, %v499, 0.0
        %v597 = vadd.f32 %v595, %v596
        %v598 = vsel %vm566, %v504, 0.0
        %v599 = vadd.f32 %v597, %v598
        %v600 = vsel %vm566, %v507, 0.0
        %v601 = vadd.f32 %v599, %v600
        %v602 = vsel %vm566, %v512, 0.0
        %v603 = vadd.f32 %v601, %v602
        %v604 = vsel %vm566, %v515, 0.0
        %v605 = vadd.f32 %v603, %v604
        %v606 = vsel %vm566, %v520, 0.0
        %v607 = vadd.f32 %v605, %v606
        %v608 = vsel %vm566, %v523, 0.0
        %v609 = vadd.f32 %v607, %v608
        %v610 = vsel %vm566, %v528, 0.0
        %v611 = vadd.f32 %v609, %v610
        %v612 = vsel %vm566, %v531, 0.0
        %v613 = vadd.f32 %v611, %v612
        %v614 = vsel %vm566, %v536, 0.0
        %v615 = vadd.f32 %v613, %v614
        %v616 = vsel %vm566, %v539, 0.0
        %v617 = vadd.f32 %v615, %v616
        %v618 = vsel %vm566, %v544, 0.0
        %v619 = vadd.f32 %v617, %v618
        %v620 = vsel %vm566, %v547, 0.0
        %v621 = vadd.f32 %v619, %v620
        %v622 = vsel %vm566, %v552, 0.0
        %v623 = vadd.f32 %v621, %v622
        %v624 = vsel %vm566, %v555, 0.0
        %v625 = vadd.f32 %v623, %v624
        %v626 = vsel %vm566, %v560, 0.0
        %v627 = vadd.f32 %v625, %v626
        %v628 = vsel %vm566, %v563, 0.0
        %v629 = vadd.f32 %v627, %v628
        %v630 = vrot.slane %v629, 4
        %v631 = vadd.f32 %v629, %v630
        %v632 = vrot.slane %v631, 2
        %v633 = vadd.f32 %v631, %v632
        %v634 = vrot.slane %v633, 1
        %v635 = vadd.f32 %v633, %v634
        %vm636 = vcmask 122880
        %637 = vst.msk [vmem:[%s237] sm:$0x1] %vm636, %v635
        %v638 = vmul.f32 %v440, %v440
        %v639 = vmul.f32 %v443, %v443
        %v640 = vmul.f32 %v448, %v448
        %v641 = vmul.f32 %v451, %v451
        %v642 = vmul.f32 %v456, %v456
        %v643 = vmul.f32 %v459, %v459
        %v644 = vmul.f32 %v464, %v464
        %v645 = vmul.f32 %v467, %v467
        %v646 = vmul.f32 %v472, %v472
        %v647 = vmul.f32 %v475, %v475
        %v648 = vmul.f32 %v480, %v480
        %v649 = vmul.f32 %v483, %v483
        %v650 = vmul.f32 %v488, %v488
        %v651 = vmul.f32 %v491, %v491
        %v652 = vmul.f32 %v496, %v496
        %v653 = vmul.f32 %v499, %v499
        %v654 = vmul.f32 %v504, %v504
        %v655 = vmul.f32 %v507, %v507
        %v656 = vmul.f32 %v512, %v512
        %v657 = vmul.f32 %v515, %v515
        %v658 = vmul.f32 %v520, %v520
        %v659 = vmul.f32 %v523, %v523
        %v660 = vmul.f32 %v528, %v528
        %v661 = vmul.f32 %v531, %v531
        %v662 = vmul.f32 %v536, %v536
        %v663 = vmul.f32 %v539, %v539
        %v664 = vmul.f32 %v544, %v544
        %v665 = vmul.f32 %v547, %v547
        %v666 = vmul.f32 %v552, %v552
        %v667 = vmul.f32 %v555, %v555
        %v668 = vmul.f32 %v560, %v560
        %v669 = vmul.f32 %v563, %v563
        %v670 = vsel %vm566, %v638, 0.0
        %v671 = vsel %vm566, %v639, 0.0
        %v672 = vadd.f32 %v670, %v671
        %v673 = vsel %vm566, %v640, 0.0
        %v674 = vadd.f32 %v672, %v673
        %v675 = vsel %vm566, %v641, 0.0
        %v676 = vadd.f32 %v674, %v675
        %v677 = vsel %vm566, %v642, 0.0
        %v678 = vadd.f32 %v676, %v677
        %v679 = vsel %vm566, %v643, 0.0
        %v680 = vadd.f32 %v678, %v679
        %v681 = vsel %vm566, %v644, 0.0
        %v682 = vadd.f32 %v680, %v681
        %v683 = vsel %vm566, %v645, 0.0
        %v684 = vadd.f32 %v682, %v683
        %v685 = vsel %vm566, %v646, 0.0
        %v686 = vadd.f32 %v684, %v685
        %v687 = vsel %vm566, %v647, 0.0
        %v688 = vadd.f32 %v686, %v687
        %v689 = vsel %vm566, %v648, 0.0
        %v690 = vadd.f32 %v688, %v689
        %v691 = vsel %vm566, %v649, 0.0
        %v692 = vadd.f32 %v690, %v691
        %v693 = vsel %vm566, %v650, 0.0
        %v694 = vadd.f32 %v692, %v693
        %v695 = vsel %vm566, %v651, 0.0
        %v696 = vadd.f32 %v694, %v695
        %v697 = vsel %vm566, %v652, 0.0
        %v698 = vadd.f32 %v696, %v697
        %v699 = vsel %vm566, %v653, 0.0
        %v700 = vadd.f32 %v698, %v699
        %v701 = vsel %vm566, %v654, 0.0
        %v702 = vadd.f32 %v700, %v701
        %v703 = vsel %vm566, %v655, 0.0
        %v704 = vadd.f32 %v702, %v703
        %v705 = vsel %vm566, %v656, 0.0
        %v706 = vadd.f32 %v704, %v705
        %v707 = vsel %vm566, %v657, 0.0
        %v708 = vadd.f32 %v706, %v707
        %v709 = vsel %vm566, %v658, 0.0
        %v710 = vadd.f32 %v708, %v709
        %v711 = vsel %vm566, %v659, 0.0
        %v712 = vadd.f32 %v710, %v711
        %v713 = vsel %vm566, %v660, 0.0
        %v714 = vadd.f32 %v712, %v713
        %v715 = vsel %vm566, %v661, 0.0
        %v716 = vadd.f32 %v714, %v715
        %v717 = vsel %vm566, %v662, 0.0
        %v718 = vadd.f32 %v716, %v717
        %v719 = vsel %vm566, %v663, 0.0
        %v720 = vadd.f32 %v718, %v719
        %v721 = vsel %vm566, %v664, 0.0
        %v722 = vadd.f32 %v720, %v721
        %v723 = vsel %vm566, %v665, 0.0
        %v724 = vadd.f32 %v722, %v723
        %v725 = vsel %vm566, %v666, 0.0
        %v726 = vadd.f32 %v724, %v725
        %v727 = vsel %vm566, %v667, 0.0
        %v728 = vadd.f32 %v726, %v727
        %v729 = vsel %vm566, %v668, 0.0
        %v730 = vadd.f32 %v728, %v729
        %v731 = vsel %vm566, %v669, 0.0
        %v732 = vadd.f32 %v730, %v731
        %v733 = vrot.slane %v732, 4
        %v734 = vadd.f32 %v732, %v733
        %v735 = vrot.slane %v734, 2
        %v736 = vadd.f32 %v734, %v735
        %v737 = vrot.slane %v736, 1
        %v738 = vadd.f32 %v736, %v737
        %739 = vst.msk [vmem:[%s237 + $0x1] sm:$0x1] %vm636, %v738
        %740 = vst.msk [vmem:[%s230] sm:$0xff] %vm566, %v440
        %741 = vst.msk [vmem:[%s230 + $0x8] sm:$0xff] %vm566, %v443
        %742 = vst.msk [vmem:[%s230 + $0x10] sm:$0xff] %vm566, %v448
        %743 = vst.msk [vmem:[%s230 + $0x18] sm:$0xff] %vm566, %v451
        %744 = vst.msk [vmem:[%s230 + $0x20] sm:$0xff] %vm566, %v456
        %745 = vst.msk [vmem:[%s230 + $0x28] sm:$0xff] %vm566, %v459
        %746 = vst.msk [vmem:[%s230 + $0x30] sm:$0xff] %vm566, %v464
        %747 = vst.msk [vmem:[%s230 + $0x38] sm:$0xff] %vm566, %v467
        %748 = vst.msk [vmem:[%s230 + $0x40] sm:$0xff] %vm566, %v472
        %749 = vst.msk [vmem:[%s230 + $0x48] sm:$0xff] %vm566, %v475
        %750 = vst.msk [vmem:[%s230 + $0x50] sm:$0xff] %vm566, %v480
        %751 = vst.msk [vmem:[%s230 + $0x58] sm:$0xff] %vm566, %v483
        %752 = vst.msk [vmem:[%s230 + $0x60] sm:$0xff] %vm566, %v488
        %753 = vst.msk [vmem:[%s230 + $0x68] sm:$0xff] %vm566, %v491
        %754 = vst.msk [vmem:[%s230 + $0x70] sm:$0xff] %vm566, %v496
        %755 = vst.msk [vmem:[%s230 + $0x78] sm:$0xff] %vm566, %v499
        %756 = vst.msk [vmem:[%s230 + $0x80] sm:$0xff] %vm566, %v504
        %757 = vst.msk [vmem:[%s230 + $0x88] sm:$0xff] %vm566, %v507
        %758 = vst.msk [vmem:[%s230 + $0x90] sm:$0xff] %vm566, %v512
        %759 = vst.msk [vmem:[%s230 + $0x98] sm:$0xff] %vm566, %v515
        %760 = vst.msk [vmem:[%s230 + $0xa0] sm:$0xff] %vm566, %v520
        %761 = vst.msk [vmem:[%s230 + $0xa8] sm:$0xff] %vm566, %v523
        %762 = vst.msk [vmem:[%s230 + $0xb0] sm:$0xff] %vm566, %v528
        %763 = vst.msk [vmem:[%s230 + $0xb8] sm:$0xff] %vm566, %v531
        %764 = vst.msk [vmem:[%s230 + $0xc0] sm:$0xff] %vm566, %v536
        %765 = vst.msk [vmem:[%s230 + $0xc8] sm:$0xff] %vm566, %v539
        %766 = vst.msk [vmem:[%s230 + $0xd0] sm:$0xff] %vm566, %v544
        %767 = vst.msk [vmem:[%s230 + $0xd8] sm:$0xff] %vm566, %v547
        %768 = vst.msk [vmem:[%s230 + $0xe0] sm:$0xff] %vm566, %v552
        %769 = vst.msk [vmem:[%s230 + $0xe8] sm:$0xff] %vm566, %v555
        %770 = vst.msk [vmem:[%s230 + $0xf0] sm:$0xff] %vm566, %v560
        %771 = vst.msk [vmem:[%s230 + $0xf8] sm:$0xff] %vm566, %v563
        %s772 = sand.u32 %s99, 1
        %s773 = scalar_lea.sflag [#allocation5], %s772
        %s774 = sand.u32 %s99, 1
        %s775 = smul.addr %s774, 256
        %s776 = scalar_lea.vmem [#allocation8], %s775
        %s777 = sand.u32 %s127, 1
        %s778 = scalar_lea.sflag [#allocation10], %s777
        %s779 = sand.u32 %s127, 1
        %s780 = smul.addr %s779, 2
        %s781 = scalar_lea.vmem [#allocation9], %s780
        // Predicated region
        $region41: #{bottleneck_forward.4} parent=27 // pred_check
          %p782 = pneg %p109
        $region42: #{bottleneck_forward.4} parent=27 // pred_check_branch
          %784 = sbr.rel (%p782) target = $region44
        $region43: #{bottleneck_forward.4} parent=27 // pred_region
          %s786 = ssub.s32 4096, 4096
          %787 = vsyncadd %s773, %s786
          %s788 = smul.addr %s29, 32
          %s789 = sadd.s32 %s30, %s788
          %s790 = smul.addr %s789, 128
          %s791 = scalar_lea.hbm %s2, %s790
          %s792 = sshll.u32 %s776, 4
          %s793 = int_to_ptr.vmem [resolvable:$true] %s792
          %798 = dma.vmem_to_hbm [thread:$0]  %s793, 4096, %s791, %s773, 128, 128, 8
        $region44: #{bottleneck_forward.4} parent=27 // pred_fallthru
          _
        // Predicated region
        $region45: #{bottleneck_forward.4} parent=27 // pred_check
          %p799 = pneg %p137
        $region46: #{bottleneck_forward.4} parent=27 // pred_check_branch
          %801 = sbr.rel (%p799) target = $region48
        $region47: #{bottleneck_forward.4} parent=27 // pred_region
          %s803 = ssub.s32 32, 32
          %804 = vsyncadd %s778, %s803
          %s805 = sadd.s32 %s30, %s29
          %s806 = smul.addr %s805, 32
          %s807 = scalar_lea.hbm %s3, %s806
          %s809 = sshll.u32 %s781, 4
          %s810 = int_to_ptr.vmem [resolvable:$true] %s809
          %812 = dma.vmem_to_hbm [thread:$0]  %s810, 32, %s807, %s778
        $region48: #{bottleneck_forward.4} parent=27 // pred_fallthru
          _
      $region28: #{bottleneck_forward.4} parent=5 // pred_fallthru
        _
      %p813 = scmp.le.s32.totalorder 2, %s20
      // Predicated region
      $region49: #{bottleneck_forward.4} parent=5 // pred_check
        %p814 = pneg %p813
      $region50: #{bottleneck_forward.4} parent=5 // pred_check_branch
        %816 = sbr.rel (%p814) target = $region52
      $region51: #{bottleneck_forward.4} parent=5 // pred_region
        %s817 = ssub.s32 %s20, 2
        // Predicated region
        $region53: #{bottleneck_forward.4} parent=51 // pred_check
          %p818 = pneg %p115
        $region54: #{bottleneck_forward.4} parent=51 // pred_check_branch
          %820 = sbr.rel (%p818) target = $region56
        $region55: #{bottleneck_forward.4} parent=51 // pred_region
          %s821 = sand.u32 %s100, 1
          %s822 = scalar_lea.sflag [#allocation5], %s821
          %s823 = sand.u32 %s100, 1
          %s824 = smul.addr %s823, 256
          %s825 = scalar_lea.vmem [#allocation8], %s824
          %826 = dma.done %s822, 4096
        $region56: #{bottleneck_forward.4} parent=51 // pred_fallthru
          _
        // Predicated region
        $region57: #{bottleneck_forward.4} parent=51 // pred_check
          %p827 = pneg %p143
        $region58: #{bottleneck_forward.4} parent=51 // pred_check_branch
          %829 = sbr.rel (%p827) target = $region60
        $region59: #{bottleneck_forward.4} parent=51 // pred_region
          %s830 = sand.u32 %s128, 1
          %s831 = scalar_lea.sflag [#allocation10], %s830
          %s832 = sand.u32 %s128, 1
          %s833 = smul.addr %s832, 2
          %s834 = scalar_lea.vmem [#allocation9], %s833
          %835 = dma.done %s831, 32
        $region60: #{bottleneck_forward.4} parent=51 // pred_fallthru
          _
      $region52: #{bottleneck_forward.4} parent=5 // pred_fallthru
        _
    $region6: #{bottleneck_forward.4} parent=1 // loop_footer
      %s24 = sadd.s32 1, %s20
    $region7: #{bottleneck_forward.4} parent=1 // loop_footer_branch
      %19 = sbr.rel target = $region3
    $region8: #{bottleneck_forward.4} parent=1 // loop_exit
      _
    %836 = vsyncpa [#allocation4], 1
    %s837 = scalar_lea.sflag [#allocation4], 1
    %838 = vsyncpa %s837, 1
    %839 = vsyncpa [#allocation7], 1
    %840 = vsyncpa [#allocation5], 1
    %s841 = scalar_lea.sflag [#allocation5], 1
    %842 = vsyncpa %s841, 1
    %843 = vsyncpa [#allocation10], 1
    %s844 = scalar_lea.sflag [#allocation10], 1
    %845 = vsyncpa %s844, 1

// kernel: bottleneck_forward.6
$region0: #{bottleneck_forward.6}
  #allocation0 [shape = 'u32[]', space=smem, size = 0x4, offset = 0x4, fixed_abs, tag = 'smem constant byte address 0x4 - core index']
  #allocation1 [shape = 'u32[144,128]{1,0:T(1,128)}', space=vmem, size = 0x12000, scoped, tag = 'internal scratch']
  #allocation2 [shape = 'bf16[256,16]{1,0:T(16,128)(2,1)}', space=vmem, size = 0x10000, scoped, tag = 'scratch operand']
  %s0 = inlined_call_operand.hbm [shape: f32[2,16,16,16], index: 0, kind: input, shape index: {}]
  %s1 = inlined_call_operand.hbm [shape: f32[1,16], index: 1, kind: input, shape index: {}]
  %s2 = inlined_call_operand.hbm [shape: f32[1,16], index: 2, kind: input, shape index: {}]
  %s3 = inlined_call_operand.hbm [shape: bf16[16,64], index: 3, kind: input, shape index: {}]
  %s4 = inlined_call_operand.hbm [shape: f32[2,16,16,64], index: 4, kind: output, shape index: {0}]
  %s5 = inlined_call_operand.hbm [shape: f32[2,2,64], index: 5, kind: output, shape index: {1}]
  %6 = xla_tuple %s4, %s5
  %s7 = sld [smem:[#allocation0]]
  $region77: #{bottleneck_forward.6} parent=0
    _
  %s9 = ssub.s32 1, %s7
  %s10 = scalar_select 0, %s9, %s7
  $region1: #{bottleneck_forward.6} parent=0
    #allocation3 [shape = 'u8[262144]{0}', space=vmem, size = 0x40000, scoped, tag = 'input window, operand 0']
    #allocation4 [shape = 's32[2]{0}', space=sflag, size = 0x8, scoped, tag = 'scoped memory for bottleneck_forward.6']
    #allocation5 [shape = 's32[2]{0}', space=sflag, size = 0x8, scoped, tag = 'scoped memory for bottleneck_forward.6']
    #allocation6 [shape = 'u8[512]{0}', space=vmem, size = 0x400, scoped, tag = 'input window, operand 1, single buffered']
    #allocation7 [shape = 's32[1]{0}', space=sflag, size = 0x4, scoped, tag = 'scoped memory for bottleneck_forward.6']
    #allocation8 [shape = 'u8[512]{0}', space=vmem, size = 0x400, scoped, tag = 'input window, operand 2, single buffered']
    #allocation9 [shape = 'u8[4096]{0}', space=vmem, size = 0x1000, scoped, tag = 'input window, operand 3, single buffered']
    #allocation10 [shape = 's32[1]{0}', space=sflag, size = 0x4, scoped, tag = 'scoped memory for bottleneck_forward.6']
    #allocation11 [shape = 'u8[262144]{0}', space=vmem, size = 0x40000, scoped, tag = 'output window, operand 0']
    #allocation12 [shape = 'u8[2048]{0}', space=vmem, size = 0x800, scoped, tag = 'output window, operand 1']
    #allocation13 [shape = 's32[2]{0}', space=sflag, size = 0x8, scoped, tag = 'scoped memory for bottleneck_forward.6']
    %11 = vsyncpa [#allocation4], 0
    %s12 = scalar_lea.sflag [#allocation4], 1
    %13 = vsyncpa %s12, 0
    %14 = vsyncpa [#allocation7], 0
    %15 = vsyncpa [#allocation10], 0
    %16 = vsyncpa [#allocation5], 0
    %s17 = scalar_lea.sflag [#allocation5], 1
    %18 = vsyncpa %s17, 0
    %19 = vsyncpa [#allocation13], 0
    %s20 = scalar_lea.sflag [#allocation13], 1
    %21 = vsyncpa %s20, 0
    loop: start=0, step=1, limit=4
    $region2: #{bottleneck_forward.6} parent=1 // loop_pre_header
      _
    $region3: #{bottleneck_forward.6} parent=1 // loop_header
      %s23 = sphi 0, %s27
      %p24 = scmp.ge.s32.totalorder %s23, 4
      %s30 = sphi 0, %s42
      %s31 = sphi 0, %s38
      %s32 = sphi 0, %s30
      %s33 = sphi 0, %s31
      %s34 = sphi 0, %s32
      %s35 = sphi 0, %s33
      %s45 = sphi 0, %s47
      %s48 = sphi 0, %s45
      %s49 = sphi 0, %s48
      %s65 = sphi 0, %s49
      %s69 = sphi 0, %s69
      %s71 = sphi 0, %s69
      %s72 = sphi 0, %s71
      %s86 = sphi 0, %s72
      %s90 = sphi 0, %s90
      %s92 = sphi 0, %s90
      %s93 = sphi 0, %s92
      %s107 = sphi 0, %s93
      %s113 = sphi 0, %s115
      %s116 = sphi 0, %s113
      %s117 = sphi 0, %s116
      %s133 = sphi 0, %s117
      %s141 = sphi 0, %s143
      %s144 = sphi 0, %s141
      %s145 = sphi 0, %s144
      %s161 = sphi 0, %s145
      %s169 = sphi 0, %s171
      %s172 = sphi 0, %s169
      %s173 = sphi 0, %s172
      %s189 = sphi 0, %s173
    $region4: #{bottleneck_forward.6} parent=1 // loop_header_branch
      %26 = sbr.rel (%p24) target = $region8
    $region5: #{bottleneck_forward.6} parent=1 // loop_body
      %s28 = ssub.s32 %s23, 1
      %s29 = ssub.s32 %s23, 2
      %s36 = sadd.s32 1, %s31
      %p37 = scmp.ge.s32.totalorder %s36, 1
      %s38 = scalar_select %p37, 0, %s36
      %s39 = sadd.s32 1, %s30
      %s40 = scalar_select %p37, %s39, %s30
      %p41 = scmp.ge.s32.totalorder %s40, 2
      %s42 = scalar_select %p41, 0, %s40
      %s43 = ssub.s32 %s30, %s42
      %p44 = scmp.eq.s32.totalorder %s43, 0
      %s46 = sadd.s32 %s45, 1
      %s47 = scalar_select %p44, %s45, %s46
      %p50 = pneg %p44
      %p51 = scmp.eq.s32.totalorder %s23, 1
      %p52 = por %p50, %p51
      %p53 = scmp.ne.s32.totalorder %s45, %s48
      %p54 = scmp.eq.s32.totalorder %s23, 0
      %p55 = por %p53, %p54
      %p56 = scmp.ne.s32.totalorder %s45, %s48
      %p57 = scmp.eq.s32.totalorder %s28, 1
      %p58 = por %p56, %p57
      %p59 = scmp.ne.s32.totalorder %s48, %s49
      %p60 = scmp.eq.s32.totalorder %s28, 0
      %p61 = por %p59, %p60
      %p62 = scmp.ne.s32.totalorder %s48, %s49
      %p63 = scmp.eq.s32.totalorder %s29, 1
      %p64 = por %p62, %p63
      %p66 = scmp.ne.s32.totalorder %s49, %s65
      %p67 = scmp.eq.s32.totalorder %s29, 0
      %p68 = por %p66, %p67
      %s70 = sadd.s32 %s69, 1
      %p73 = scmp.eq.s32.totalorder %s23, 1
      %p74 = scmp.ne.s32.totalorder %s69, %s71
      %p75 = scmp.eq.s32.totalorder %s23, 0
      %p76 = por %p74, %p75
      %p77 = scmp.ne.s32.totalorder %s69, %s71
      %p78 = scmp.eq.s32.totalorder %s28, 1
      %p79 = por %p77, %p78
      %p80 = scmp.ne.s32.totalorder %s71, %s72
      %p81 = scmp.eq.s32.totalorder %s28, 0
      %p82 = por %p80, %p81
      %p83 = scmp.ne.s32.totalorder %s71, %s72
      %p84 = scmp.eq.s32.totalorder %s29, 1
      %p85 = por %p83, %p84
      %p87 = scmp.ne.s32.totalorder %s72, %s86
      %p88 = scmp.eq.s32.totalorder %s29, 0
      %p89 = por %p87, %p88
      %s91 = sadd.s32 %s90, 1
      %p94 = scmp.eq.s32.totalorder %s23, 1
      %p95 = scmp.ne.s32.totalorder %s90, %s92
      %p96 = scmp.eq.s32.totalorder %s23, 0
      %p97 = por %p95, %p96
      %p98 = scmp.ne.s32.totalorder %s90, %s92
      %p99 = scmp.eq.s32.totalorder %s28, 1
      %p100 = por %p98, %p99
      %p101 = scmp.ne.s32.totalorder %s92, %s93
      %p102 = scmp.eq.s32.totalorder %s28, 0
      %p103 = por %p101, %p102
      %p104 = scmp.ne.s32.totalorder %s92, %s93
      %p105 = scmp.eq.s32.totalorder %s29, 1
      %p106 = por %p104, %p105
      %p108 = scmp.ne.s32.totalorder %s93, %s107
      %p109 = scmp.eq.s32.totalorder %s29, 0
      %p110 = por %p108, %p109
      %s111 = ssub.s32 %s31, %s38
      %p112 = scmp.eq.s32.totalorder %s111, 0
      %s114 = sadd.s32 %s113, 1
      %s115 = scalar_select %p112, %s113, %s114
      %p118 = pneg %p112
      %p119 = scmp.eq.s32.totalorder %s23, 1
      %p120 = por %p118, %p119
      %p121 = scmp.ne.s32.totalorder %s113, %s116
      %p122 = scmp.eq.s32.totalorder %s23, 0
      %p123 = por %p121, %p122
      %p124 = scmp.ne.s32.totalorder %s113, %s116
      %p125 = scmp.eq.s32.totalorder %s28, 1
      %p126 = por %p124, %p125
      %p127 = scmp.ne.s32.totalorder %s116, %s117
      %p128 = scmp.eq.s32.totalorder %s28, 0
      %p129 = por %p127, %p128
      %p130 = scmp.ne.s32.totalorder %s116, %s117
      %p131 = scmp.eq.s32.totalorder %s29, 1
      %p132 = por %p130, %p131
      %p134 = scmp.ne.s32.totalorder %s117, %s133
      %p135 = scmp.eq.s32.totalorder %s29, 0
      %p136 = por %p134, %p135
      %s137 = ssub.s32 %s30, %s42
      %s138 = ssub.s32 %s31, %s38
      %s139 = sor.u32 %s137, %s138
      %p140 = scmp.eq.s32.totalorder %s139, 0
      %s142 = sadd.s32 %s141, 1
      %s143 = scalar_select %p140, %s141, %s142
      %p146 = pneg %p140
      %p147 = scmp.eq.s32.totalorder %s23, 1
      %p148 = por %p146, %p147
      %p149 = scmp.ne.s32.totalorder %s141, %s144
      %p150 = scmp.eq.s32.totalorder %s23, 0
      %p151 = por %p149, %p150
      %p152 = scmp.ne.s32.totalorder %s141, %s144
      %p153 = scmp.eq.s32.totalorder %s28, 1
      %p154 = por %p152, %p153
      %p155 = scmp.ne.s32.totalorder %s144, %s145
      %p156 = scmp.eq.s32.totalorder %s28, 0
      %p157 = por %p155, %p156
      %p158 = scmp.ne.s32.totalorder %s144, %s145
      %p159 = scmp.eq.s32.totalorder %s29, 1
      %p160 = por %p158, %p159
      %p162 = scmp.ne.s32.totalorder %s145, %s161
      %p163 = scmp.eq.s32.totalorder %s29, 0
      %p164 = por %p162, %p163
      %s165 = ssub.s32 %s30, %s42
      %s166 = ssub.s32 %s31, %s38
      %s167 = sor.u32 %s165, %s166
      %p168 = scmp.eq.s32.totalorder %s167, 0
      %s170 = sadd.s32 %s169, 1
      %s171 = scalar_select %p168, %s169, %s170
      %p174 = pneg %p168
      %p175 = scmp.eq.s32.totalorder %s23, 1
      %p176 = por %p174, %p175
      %p177 = scmp.ne.s32.totalorder %s169, %s172
      %p178 = scmp.eq.s32.totalorder %s23, 0
      %p179 = por %p177, %p178
      %p180 = scmp.ne.s32.totalorder %s169, %s172
      %p181 = scmp.eq.s32.totalorder %s28, 1
      %p182 = por %p180, %p181
      %p183 = scmp.ne.s32.totalorder %s172, %s173
      %p184 = scmp.eq.s32.totalorder %s28, 0
      %p185 = por %p183, %p184
      %p186 = scmp.ne.s32.totalorder %s172, %s173
      %p187 = scmp.eq.s32.totalorder %s29, 1
      %p188 = por %p186, %p187
      %p190 = scmp.ne.s32.totalorder %s173, %s189
      %p191 = scmp.eq.s32.totalorder %s29, 0
      %p192 = por %p190, %p191
      %p193 = scmp.le.s32.totalorder 1, %s23
      %p194 = scmp.lt.s32.totalorder %s23, 3
      %p195 = pnand %p193, %p194
      %p196 = pneg %p195
      // Predicated region
      $region9: #{bottleneck_forward.6} parent=5 // pred_check
        _
      $region10: #{bottleneck_forward.6} parent=5 // pred_check_branch
        %198 = sbr.rel (%p195) target = $region12
      $region11: #{bottleneck_forward.6} parent=5 // pred_region
        %s199 = ssub.s32 %s23, 1
        // Predicated region
        $region13: #{bottleneck_forward.6} parent=11 // pred_check
          %p200 = pneg %p82
        $region14: #{bottleneck_forward.6} parent=11 // pred_check_branch
          %202 = sbr.rel (%p200) target = $region16
        $region15: #{bottleneck_forward.6} parent=11 // pred_region
          %s204 = ssub.s32 16, 16
          %205 = vsyncadd [#allocation7], %s204
          %s207 = sshll.u32 [#allocation6], 4
          %s208 = int_to_ptr.vmem [resolvable:$true] %s207
          %210 = dma.hbm_to_vmem [thread:$0]  %s1, 16, %s208, [#allocation7]
        $region16: #{bottleneck_forward.6} parent=11 // pred_fallthru
          _
        // Predicated region
        $region17: #{bottleneck_forward.6} parent=11 // pred_check
          %p211 = pneg %p103
        $region18: #{bottleneck_forward.6} parent=11 // pred_check_branch
          %213 = sbr.rel (%p211) target = $region20
        $region19: #{bottleneck_forward.6} parent=11 // pred_region
          %s215 = ssub.s32 16, 16
          %216 = vsyncadd [#allocation7], %s215
          %s218 = sshll.u32 [#allocation8], 4
          %s219 = int_to_ptr.vmem [resolvable:$true] %s218
          %221 = dma.hbm_to_vmem [thread:$0]  %s2, 16, %s219, [#allocation7]
        $region20: #{bottleneck_forward.6} parent=11 // pred_fallthru
          _
        // Predicated region
        $region21: #{bottleneck_forward.6} parent=11 // pred_check
          %p222 = pneg %p129
        $region22: #{bottleneck_forward.6} parent=11 // pred_check_branch
          %224 = sbr.rel (%p222) target = $region24
        $region23: #{bottleneck_forward.6} parent=11 // pred_region
          %s226 = ssub.s32 128, 128
          %227 = vsyncadd [#allocation10], %s226
          %s228 = smul.addr %s33, 64
          %s229 = scalar_lea.hbm %s3, %s228
          %s230 = sshll.u32 [#allocation9], 4
          %s231 = int_to_ptr.vmem [resolvable:$true] %s230
          %236 = dma.hbm_to_vmem [thread:$0]  %s229, 128, %s231, [#allocation10], 64, 64, 4
        $region24: #{bottleneck_forward.6} parent=11 // pred_fallthru
          _
      $region12: #{bottleneck_forward.6} parent=5 // pred_fallthru
        _
      %p237 = scmp.lt.s32.totalorder %s23, 2
      // Predicated region
      $region25: #{bottleneck_forward.6} parent=5 // pred_check
        %p238 = pneg %p237
      $region26: #{bottleneck_forward.6} parent=5 // pred_check_branch
        %240 = sbr.rel (%p238) target = $region28
      $region27: #{bottleneck_forward.6} parent=5 // pred_region
        // Predicated region
        $region29: #{bottleneck_forward.6} parent=27 // pred_check
          %p241 = pneg %p55
        $region30: #{bottleneck_forward.6} parent=27 // pred_check_branch
          %243 = sbr.rel (%p241) target = $region32
        $region31: #{bottleneck_forward.6} parent=27 // pred_region
          %s244 = sand.u32 %s45, 1
          %s245 = scalar_lea.sflag [#allocation4], %s244
          %s246 = sand.u32 %s45, 1
          %s247 = smul.addr %s246, 256
          %s248 = scalar_lea.vmem [#allocation3], %s247
          %s250 = ssub.s32 4096, 4096
          %251 = vsyncadd %s245, %s250
          %s252 = smul.addr %s30, 32
          %s253 = smul.addr %s252, 128
          %s254 = scalar_lea.hbm %s0, %s253
          %s255 = sshll.u32 %s248, 4
          %s256 = int_to_ptr.vmem [resolvable:$true] %s255
          %261 = dma.hbm_to_vmem [thread:$0]  %s254, 4096, %s256, %s245, 128, 128, 8
        $region32: #{bottleneck_forward.6} parent=27 // pred_fallthru
          _
      $region28: #{bottleneck_forward.6} parent=5 // pred_fallthru
        _
      %p262 = scmp.le.s32.totalorder 1, %s23
      %p263 = scmp.lt.s32.totalorder %s23, 3
      %p264 = pnand %p262, %p263
      %p265 = pneg %p264
      // Predicated region
      $region33: #{bottleneck_forward.6} parent=5 // pred_check
        _
      $region34: #{bottleneck_forward.6} parent=5 // pred_check_branch
        %267 = sbr.rel (%p264) target = $region36
      $region35: #{bottleneck_forward.6} parent=5 // pred_region
        %s268 = ssub.s32 %s23, 1
        %s269 = sand.u32 %s48, 1
        %s270 = scalar_lea.sflag [#allocation4], %s269
        %s271 = sand.u32 %s48, 1
        %s272 = smul.addr %s271, 256
        %s273 = scalar_lea.vmem [#allocation3], %s272
        // Predicated region
        $region37: #{bottleneck_forward.6} parent=35 // pred_check
          %p274 = pneg %p61
        $region38: #{bottleneck_forward.6} parent=35 // pred_check_branch
          %276 = sbr.rel (%p274) target = $region40
        $region39: #{bottleneck_forward.6} parent=35 // pred_region
          %277 = dma.done %s270, 4096
        $region40: #{bottleneck_forward.6} parent=35 // pred_fallthru
          _
        // Predicated region
        $region41: #{bottleneck_forward.6} parent=35 // pred_check
          %p278 = pneg %p82
        $region42: #{bottleneck_forward.6} parent=35 // pred_check_branch
          %280 = sbr.rel (%p278) target = $region44
        $region43: #{bottleneck_forward.6} parent=35 // pred_region
          %281 = dma.done [#allocation7], 16
        $region44: #{bottleneck_forward.6} parent=35 // pred_fallthru
          _
        // Predicated region
        $region45: #{bottleneck_forward.6} parent=35 // pred_check
          %p282 = pneg %p103
        $region46: #{bottleneck_forward.6} parent=35 // pred_check_branch
          %284 = sbr.rel (%p282) target = $region48
        $region47: #{bottleneck_forward.6} parent=35 // pred_region
          %285 = dma.done [#allocation7], 16
        $region48: #{bottleneck_forward.6} parent=35 // pred_fallthru
          _
        // Predicated region
        $region49: #{bottleneck_forward.6} parent=35 // pred_check
          %p286 = pneg %p129
        $region50: #{bottleneck_forward.6} parent=35 // pred_check_branch
          %288 = sbr.rel (%p286) target = $region52
        $region51: #{bottleneck_forward.6} parent=35 // pred_region
          %289 = dma.done [#allocation10], 128
        $region52: #{bottleneck_forward.6} parent=35 // pred_fallthru
          _
        %s290 = sand.u32 %s48, 1
        %s291 = scalar_lea.sflag [#allocation4], %s290
        %s292 = sand.u32 %s48, 1
        %s293 = smul.addr %s292, 256
        %s294 = scalar_lea.vmem [#allocation3], %s293
        %p295 = pneg %p61
        %p296 = pneg %p58
        %p297 = pneg %p82
        %p298 = pneg %p79
        %p299 = pneg %p103
        %p300 = pneg %p100
        %p301 = pneg %p129
        %p302 = pneg %p126
        %p303 = pneg %p157
        %p304 = pneg %p154
        %s305 = sand.u32 %s144, 1
        %s306 = scalar_lea.sflag [#allocation5], %s305
        %s307 = sand.u32 %s144, 1
        %s308 = smul.addr %s307, 256
        %s309 = scalar_lea.vmem [#allocation11], %s308
        %p310 = pneg %p185
        %p311 = pneg %p182
        %s312 = sand.u32 %s172, 1
        %s313 = scalar_lea.sflag [#allocation13], %s312
        %s314 = sand.u32 %s172, 1
        %s315 = smul.addr %s314, 2
        %s316 = scalar_lea.vmem [#allocation12], %s315
        %p318 = scmp.eq.s32.totalorder %s33, 0
        // Predicated region
        $region53: #{bottleneck_forward.6} parent=35 // pred_check
          %p319 = pneg %p318
        $region54: #{bottleneck_forward.6} parent=35 // pred_check_branch
          %321 = sbr.rel (%p319) target = $region56
        $region55: #{bottleneck_forward.6} parent=35 // pred_region
          %v322 = vld [vmem:[%s273] sm:$0xff]
          %v323 = vld [vmem:[%s273 + $0x8] sm:$0xff]
          %v324 = vld [vmem:[%s273 + $0x10] sm:$0xff]
          %v325 = vld [vmem:[%s273 + $0x18] sm:$0xff]
          %v326 = vld [vmem:[%s273 + $0x20] sm:$0xff]
          %v327 = vld [vmem:[%s273 + $0x28] sm:$0xff]
          %v328 = vld [vmem:[%s273 + $0x30] sm:$0xff]
          %v329 = vld [vmem:[%s273 + $0x38] sm:$0xff]
          %v330 = vld [vmem:[%s273 + $0x40] sm:$0xff]
          %v331 = vld [vmem:[%s273 + $0x48] sm:$0xff]
          %v332 = vld [vmem:[%s273 + $0x50] sm:$0xff]
          %v333 = vld [vmem:[%s273 + $0x58] sm:$0xff]
          %v334 = vld [vmem:[%s273 + $0x60] sm:$0xff]
          %v335 = vld [vmem:[%s273 + $0x68] sm:$0xff]
          %v336 = vld [vmem:[%s273 + $0x70] sm:$0xff]
          %v337 = vld [vmem:[%s273 + $0x78] sm:$0xff]
          %v338 = vld [vmem:[%s273 + $0x80] sm:$0xff]
          %v339 = vld [vmem:[%s273 + $0x88] sm:$0xff]
          %v340 = vld [vmem:[%s273 + $0x90] sm:$0xff]
          %v341 = vld [vmem:[%s273 + $0x98] sm:$0xff]
          %v342 = vld [vmem:[%s273 + $0xa0] sm:$0xff]
          %v343 = vld [vmem:[%s273 + $0xa8] sm:$0xff]
          %v344 = vld [vmem:[%s273 + $0xb0] sm:$0xff]
          %v345 = vld [vmem:[%s273 + $0xb8] sm:$0xff]
          %v346 = vld [vmem:[%s273 + $0xc0] sm:$0xff]
          %v347 = vld [vmem:[%s273 + $0xc8] sm:$0xff]
          %v348 = vld [vmem:[%s273 + $0xd0] sm:$0xff]
          %v349 = vld [vmem:[%s273 + $0xd8] sm:$0xff]
          %v350 = vld [vmem:[%s273 + $0xe0] sm:$0xff]
          %v351 = vld [vmem:[%s273 + $0xe8] sm:$0xff]
          %v352 = vld [vmem:[%s273 + $0xf0] sm:$0xff]
          %v353 = vld [vmem:[%s273 + $0xf8] sm:$0xff]
          %v354 = vld [vmem:[#allocation6] sm:$0x1]
          %v356 = vlaneseq
          %v357 = vshrl.u32 %v356, 7
          %v358 = vsub.s32 0, %v357
          %v359 = vrot.slane %v354, %v358
          %v361 = vmul.f32 %v322, %v359
          %v362 = vmul.f32 %v323, %v359
          %v363 = vmul.f32 %v324, %v359
          %v364 = vmul.f32 %v325, %v359
          %v365 = vmul.f32 %v326, %v359
          %v366 = vmul.f32 %v327, %v359
          %v367 = vmul.f32 %v328, %v359
          %v368 = vmul.f32 %v329, %v359
          %v369 = vmul.f32 %v330, %v359
          %v370 = vmul.f32 %v331, %v359
          %v371 = vmul.f32 %v332, %v359
          %v372 = vmul.f32 %v333, %v359
          %v373 = vmul.f32 %v334, %v359
          %v374 = vmul.f32 %v335, %v359
          %v375 = vmul.f32 %v336, %v359
          %v376 = vmul.f32 %v337, %v359
          %v377 = vmul.f32 %v338, %v359
          %v378 = vmul.f32 %v339, %v359
          %v379 = vmul.f32 %v340, %v359
          %v380 = vmul.f32 %v341, %v359
          %v381 = vmul.f32 %v342, %v359
          %v382 = vmul.f32 %v343, %v359
          %v383 = vmul.f32 %v344, %v359
          %v384 = vmul.f32 %v345, %v359
          %v385 = vmul.f32 %v346, %v359
          %v386 = vmul.f32 %v347, %v359
          %v387 = vmul.f32 %v348, %v359
          %v388 = vmul.f32 %v349, %v359
          %v389 = vmul.f32 %v350, %v359
          %v390 = vmul.f32 %v351, %v359
          %v391 = vmul.f32 %v352, %v359
          %v392 = vmul.f32 %v353, %v359
          %v393 = vld [vmem:[#allocation8] sm:$0x1]
          %v395 = vlaneseq
          %v396 = vshrl.u32 %v395, 7
          %v397 = vsub.s32 0, %v396
          %v398 = vrot.slane %v393, %v397
          %v400 = vadd.f32 %v361, %v398
          %v401 = vadd.f32 %v362, %v398
          %v402 = vadd.f32 %v363, %v398
          %v403 = vadd.f32 %v364, %v398
          %v404 = vadd.f32 %v365, %v398
          %v405 = vadd.f32 %v366, %v398
          %v406 = vadd.f32 %v367, %v398
          %v407 = vadd.f32 %v368, %v398
          %v408 = vadd.f32 %v369, %v398
          %v409 = vadd.f32 %v370, %v398
          %v410 = vadd.f32 %v371, %v398
          %v411 = vadd.f32 %v372, %v398
          %v412 = vadd.f32 %v373, %v398
          %v413 = vadd.f32 %v374, %v398
          %v414 = vadd.f32 %v375, %v398
          %v415 = vadd.f32 %v376, %v398
          %v416 = vadd.f32 %v377, %v398
          %v417 = vadd.f32 %v378, %v398
          %v418 = vadd.f32 %v379, %v398
          %v419 = vadd.f32 %v380, %v398
          %v420 = vadd.f32 %v381, %v398
          %v421 = vadd.f32 %v382, %v398
          %v422 = vadd.f32 %v383, %v398
          %v423 = vadd.f32 %v384, %v398
          %v424 = vadd.f32 %v385, %v398
          %v425 = vadd.f32 %v386, %v398
          %v426 = vadd.f32 %v387, %v398
          %v427 = vadd.f32 %v388, %v398
          %v428 = vadd.f32 %v389, %v398
          %v429 = vadd.f32 %v390, %v398
          %v430 = vadd.f32 %v391, %v398
          %v431 = vadd.f32 %v392, %v398
          %v432 = vmax.f32 %v400, 0.0
          %v433 = vmax.f32 %v401, 0.0
          %v434 = vmax.f32 %v402, 0.0
          %v435 = vmax.f32 %v403, 0.0
          %v436 = vmax.f32 %v404, 0.0
          %v437 = vmax.f32 %v405, 0.0
          %v438 = vmax.f32 %v406, 0.0
          %v439 = vmax.f32 %v407, 0.0
          %v440 = vmax.f32 %v408, 0.0
          %v441 = vmax.f32 %v409, 0.0
          %v442 = vmax.f32 %v410, 0.0
          %v443 = vmax.f32 %v411, 0.0
          %v444 = vmax.f32 %v412, 0.0
          %v445 = vmax.f32 %v413, 0.0
          %v446 = vmax.f32 %v414, 0.0
          %v447 = vmax.f32 %v415, 0.0
          %v448 = vmax.f32 %v416, 0.0
          %v449 = vmax.f32 %v417, 0.0
          %v450 = vmax.f32 %v418, 0.0
          %v451 = vmax.f32 %v419, 0.0
          %v452 = vmax.f32 %v420, 0.0
          %v453 = vmax.f32 %v421, 0.0
          %v454 = vmax.f32 %v422, 0.0
          %v455 = vmax.f32 %v423, 0.0
          %v456 = vmax.f32 %v424, 0.0
          %v457 = vmax.f32 %v425, 0.0
          %v458 = vmax.f32 %v426, 0.0
          %v459 = vmax.f32 %v427, 0.0
          %v460 = vmax.f32 %v428, 0.0
          %v461 = vmax.f32 %v429, 0.0
          %v462 = vmax.f32 %v430, 0.0
          %v463 = vmax.f32 %v431, 0.0
          %v464 = vpack.c.bf16 %v433, %v432
          %v465 = vpack.c.bf16 %v435, %v434
          %v466 = vpack.c.bf16 %v437, %v436
          %v467 = vpack.c.bf16 %v439, %v438
          %v468 = vpack.c.bf16 %v441, %v440
          %v469 = vpack.c.bf16 %v443, %v442
          %v470 = vpack.c.bf16 %v445, %v444
          %v471 = vpack.c.bf16 %v447, %v446
          %v472 = vpack.c.bf16 %v449, %v448
          %v473 = vpack.c.bf16 %v451, %v450
          %v474 = vpack.c.bf16 %v453, %v452
          %v475 = vpack.c.bf16 %v455, %v454
          %v476 = vpack.c.bf16 %v457, %v456
          %v477 = vpack.c.bf16 %v459, %v458
          %v478 = vpack.c.bf16 %v461, %v460
          %v479 = vpack.c.bf16 %v463, %v462
          %vm480 = vcmask 130048
          %481 = vst.msk [vmem:[#allocation2] sm:$0xff] %vm480, %v464
          %482 = vst.msk [vmem:[#allocation2 + $0x8] sm:$0xff] %vm480, %v465
          %483 = vst.msk [vmem:[#allocation2 + $0x10] sm:$0xff] %vm480, %v466
          %484 = vst.msk [vmem:[#allocation2 + $0x18] sm:$0xff] %vm480, %v467
          %485 = vst.msk [vmem:[#allocation2 + $0x20] sm:$0xff] %vm480, %v468
          %486 = vst.msk [vmem:[#allocation2 + $0x28] sm:$0xff] %vm480, %v469
          %487 = vst.msk [vmem:[#allocation2 + $0x30] sm:$0xff] %vm480, %v470
          %488 = vst.msk [vmem:[#allocation2 + $0x38] sm:$0xff] %vm480, %v471
          %489 = vst.msk [vmem:[#allocation2 + $0x40] sm:$0xff] %vm480, %v472
          %490 = vst.msk [vmem:[#allocation2 + $0x48] sm:$0xff] %vm480, %v473
          %491 = vst.msk [vmem:[#allocation2 + $0x50] sm:$0xff] %vm480, %v474
          %492 = vst.msk [vmem:[#allocation2 + $0x58] sm:$0xff] %vm480, %v475
          %493 = vst.msk [vmem:[#allocation2 + $0x60] sm:$0xff] %vm480, %v476
          %494 = vst.msk [vmem:[#allocation2 + $0x68] sm:$0xff] %vm480, %v477
          %495 = vst.msk [vmem:[#allocation2 + $0x70] sm:$0xff] %vm480, %v478
          %496 = vst.msk [vmem:[#allocation2 + $0x78] sm:$0xff] %vm480, %v479
        $region56: #{bottleneck_forward.6} parent=35 // pred_fallthru
          _
        %v497 = vld [vmem:[#allocation2] sm:$0xff]
        %v498 = vld [vmem:[#allocation2 + $0x8] sm:$0xff]
        %v499 = vld [vmem:[#allocation2 + $0x10] sm:$0xff]
        %v500 = vld [vmem:[#allocation2 + $0x18] sm:$0xff]
        %v501 = vld [vmem:[#allocation2 + $0x20] sm:$0xff]
        %v502 = vld [vmem:[#allocation2 + $0x28] sm:$0xff]
        %v503 = vld [vmem:[#allocation2 + $0x30] sm:$0xff]
        %v504 = vld [vmem:[#allocation2 + $0x38] sm:$0xff]
        %v505 = vld [vmem:[#allocation2 + $0x40] sm:$0xff]
        %v506 = vld [vmem:[#allocation2 + $0x48] sm:$0xff]
        %v507 = vld [vmem:[#allocation2 + $0x50] sm:$0xff]
        %v508 = vld [vmem:[#allocation2 + $0x58] sm:$0xff]
        %v509 = vld [vmem:[#allocation2 + $0x60] sm:$0xff]
        %v510 = vld [vmem:[#allocation2 + $0x68] sm:$0xff]
        %v511 = vld [vmem:[#allocation2 + $0x70] sm:$0xff]
        %v512 = vld [vmem:[#allocation2 + $0x78] sm:$0xff]
        %v513 = vld [vmem:[#allocation9] sm:$0xf]
        %v514 = vld [vmem:[#allocation9 + $0x4] sm:$0xf]
        %v517 = vunpack.c.l.b16 %v513
        %v518 = vunpack.c.l.b16 %v514
        %v519 = vpack.c.b16 %v518, %v517
        %vm521 = vcmask 130048
        %v523 = vsel %vm521, %v497, 0
        %v526 = vsel %vm521, %v498, 0
        %v529 = vsel %vm521, %v499, 0
        %v532 = vsel %vm521, %v500, 0
        %v535 = vsel %vm521, %v501, 0
        %v538 = vsel %vm521, %v502, 0
        %v541 = vsel %vm521, %v503, 0
        %v544 = vsel %vm521, %v504, 0
        %v547 = vsel %vm521, %v505, 0
        %v550 = vsel %vm521, %v506, 0
        %v553 = vsel %vm521, %v507, 0
        %v556 = vsel %vm521, %v508, 0
        %v559 = vsel %vm521, %v509, 0
        %v562 = vsel %vm521, %v510, 0
        %v565 = vsel %vm521, %v511, 0
        %v568 = vsel %vm521, %v512, 0
        %570 = vmatprep.subr.bf16.mxu0 0
        %571 = vmatpush1.bf16.msra.mxu0 %v519
        %572 = vmatprep.subr.bf16.mxu0 0
        %573 = vmatpush1.bf16.msra.mxu0 0
        %574 = vmatprep.subr.bf16.mxu0 0
        %575 = vmatpush1.bf16.msra.mxu0 0
        %576 = vmatprep.subr.bf16.mxu0 0
        %577 = vmatpush1.bf16.msra.mxu0 0
        %578 = vmatprep.subr.bf16.mxu0 0
        %579 = vmatpush1.bf16.msra.mxu0 0
        %580 = vmatprep.subr.bf16.mxu0 0
        %581 = vmatpush1.bf16.msra.mxu0 0
        %582 = vmatprep.subr.bf16.mxu0 0
        %583 = vmatpush1.bf16.msra.mxu0 0
        %584 = vmatprep.subr.bf16.mxu0 0
        %585 = vmatpush1.bf16.msra.mxu0 0
        %586 = vmatprep.subr.bf16.mxu0 0
        %587 = vmatpush1.bf16.msra.mxu0 0
        %588 = vmatprep.subr.bf16.mxu0 0
        %589 = vmatpush1.bf16.msra.mxu0 0
        %590 = vmatprep.subr.bf16.mxu0 0
        %591 = vmatpush1.bf16.msra.mxu0 0
        %592 = vmatprep.subr.bf16.mxu0 0
        %593 = vmatpush1.bf16.msra.mxu0 0
        %594 = vmatprep.subr.bf16.mxu0 0
        %595 = vmatpush1.bf16.msra.mxu0 0
        %596 = vmatprep.subr.bf16.mxu0 0
        %597 = vmatpush1.bf16.msra.mxu0 0
        %598 = vmatprep.subr.bf16.mxu0 0
        %599 = vmatpush1.bf16.msra.mxu0 0
        %600 = vmatprep.subr.bf16.mxu0 0
        %601 = vmatpush1.bf16.msra.mxu0 0
        %602 = vmatprep.mubr.bf16.mxu0 0
        %603 = vmatmul.mubr.bf16.gmra.mrb[0].mxu0 %v523
        %v604 = vpop.f32.mrb[0].mxu0
        %v605 = vadd.f32 0.0, %v604
        %v606 = vpop.f32.mrb[0].mxu0
        %v607 = vpop.f32.mrb[0].mxu0
        %v608 = vadd.f32 0.0, %v607
        %v609 = vpop.f32.mrb[0].mxu0
        %610 = vmatprep.mubr.bf16.mxu0 0
        %611 = vmatmul.mubr.bf16.gmra.mrb[0].mxu0 %v526
        %v612 = vpop.f32.mrb[0].mxu0
        %v613 = vadd.f32 0.0, %v612
        %v614 = vpop.f32.mrb[0].mxu0
        %v615 = vpop.f32.mrb[0].mxu0
        %v616 = vadd.f32 0.0, %v615
        %v617 = vpop.f32.mrb[0].mxu0
        %618 = vmatprep.mubr.bf16.mxu0 0
        %619 = vmatmul.mubr.bf16.gmra.mrb[0].mxu0 %v529
        %v620 = vpop.f32.mrb[0].mxu0
        %v621 = vadd.f32 0.0, %v620
        %v622 = vpop.f32.mrb[0].mxu0
        %v623 = vpop.f32.mrb[0].mxu0
        %v624 = vadd.f32 0.0, %v623
        %v625 = vpop.f32.mrb[0].mxu0
        %626 = vmatprep.mubr.bf16.mxu0 0
        %627 = vmatmul.mubr.bf16.gmra.mrb[0].mxu0 %v532
        %v628 = vpop.f32.mrb[0].mxu0
        %v629 = vadd.f32 0.0, %v628
        %v630 = vpop.f32.mrb[0].mxu0
        %v631 = vpop.f32.mrb[0].mxu0
        %v632 = vadd.f32 0.0, %v631
        %v633 = vpop.f32.mrb[0].mxu0
        %634 = vmatprep.mubr.bf16.mxu0 0
        %635 = vmatmul.mubr.bf16.gmra.mrb[0].mxu0 %v535
        %v636 = vpop.f32.mrb[0].mxu0
        %v637 = vadd.f32 0.0, %v636
        %v638 = vpop.f32.mrb[0].mxu0
        %v639 = vpop.f32.mrb[0].mxu0
        %v640 = vadd.f32 0.0, %v639
        %v641 = vpop.f32.mrb[0].mxu0
        %642 = vmatprep.mubr.bf16.mxu0 0
        %643 = vmatmul.mubr.bf16.gmra.mrb[0].mxu0 %v538
        %v644 = vpop.f32.mrb[0].mxu0
        %v645 = vadd.f32 0.0, %v644
        %v646 = vpop.f32.mrb[0].mxu0
        %v647 = vpop.f32.mrb[0].mxu0
        %v648 = vadd.f32 0.0, %v647
        %v649 = vpop.f32.mrb[0].mxu0
        %650 = vmatprep.mubr.bf16.mxu0 0
        %651 = vmatmul.mubr.bf16.gmra.mrb[0].mxu0 %v541
        %v652 = vpop.f32.mrb[0].mxu0
        %v653 = vadd.f32 0.0, %v652
        %v654 = vpop.f32.mrb[0].mxu0
        %v655 = vpop.f32.mrb[0].mxu0
        %v656 = vadd.f32 0.0, %v655
        %v657 = vpop.f32.mrb[0].mxu0
        %658 = vmatprep.mubr.bf16.mxu0 0
        %659 = vmatmul.mubr.bf16.gmra.mrb[0].mxu0 %v544
        %v660 = vpop.f32.mrb[0].mxu0
        %v661 = vadd.f32 0.0, %v660
        %v662 = vpop.f32.mrb[0].mxu0
        %v663 = vpop.f32.mrb[0].mxu0
        %v664 = vadd.f32 0.0, %v663
        %v665 = vpop.f32.mrb[0].mxu0
        %666 = vmatprep.mubr.bf16.mxu0 0
        %667 = vmatmul.mubr.bf16.gmra.mrb[0].mxu0 %v547
        %v668 = vpop.f32.mrb[0].mxu0
        %v669 = vadd.f32 0.0, %v668
        %v670 = vpop.f32.mrb[0].mxu0
        %v671 = vpop.f32.mrb[0].mxu0
        %v672 = vadd.f32 0.0, %v671
        %v673 = vpop.f32.mrb[0].mxu0
        %674 = vmatprep.mubr.bf16.mxu0 0
        %675 = vmatmul.mubr.bf16.gmra.mrb[0].mxu0 %v550
        %v676 = vpop.f32.mrb[0].mxu0
        %v677 = vadd.f32 0.0, %v676
        %v678 = vpop.f32.mrb[0].mxu0
        %v679 = vpop.f32.mrb[0].mxu0
        %v680 = vadd.f32 0.0, %v679
        %v681 = vpop.f32.mrb[0].mxu0
        %682 = vmatprep.mubr.bf16.mxu0 0
        %683 = vmatmul.mubr.bf16.gmra.mrb[0].mxu0 %v553
        %v684 = vpop.f32.mrb[0].mxu0
        %v685 = vadd.f32 0.0, %v684
        %v686 = vpop.f32.mrb[0].mxu0
        %v687 = vpop.f32.mrb[0].mxu0
        %v688 = vadd.f32 0.0, %v687
        %v689 = vpop.f32.mrb[0].mxu0
        %690 = vmatprep.mubr.bf16.mxu0 0
        %691 = vmatmul.mubr.bf16.gmra.mrb[0].mxu0 %v556
        %v692 = vpop.f32.mrb[0].mxu0
        %v693 = vadd.f32 0.0, %v692
        %v694 = vpop.f32.mrb[0].mxu0
        %v695 = vpop.f32.mrb[0].mxu0
        %v696 = vadd.f32 0.0, %v695
        %v697 = vpop.f32.mrb[0].mxu0
        %698 = vmatprep.mubr.bf16.mxu0 0
        %699 = vmatmul.mubr.bf16.gmra.mrb[0].mxu0 %v559
        %v700 = vpop.f32.mrb[0].mxu0
        %v701 = vadd.f32 0.0, %v700
        %v702 = vpop.f32.mrb[0].mxu0
        %v703 = vpop.f32.mrb[0].mxu0
        %v704 = vadd.f32 0.0, %v703
        %v705 = vpop.f32.mrb[0].mxu0
        %706 = vmatprep.mubr.bf16.mxu0 0
        %707 = vmatmul.mubr.bf16.gmra.mrb[0].mxu0 %v562
        %v708 = vpop.f32.mrb[0].mxu0
        %v709 = vadd.f32 0.0, %v708
        %v710 = vpop.f32.mrb[0].mxu0
        %v711 = vpop.f32.mrb[0].mxu0
        %v712 = vadd.f32 0.0, %v711
        %v713 = vpop.f32.mrb[0].mxu0
        %714 = vmatprep.mubr.bf16.mxu0 0
        %715 = vmatmul.mubr.bf16.gmra.mrb[0].mxu0 %v565
        %v716 = vpop.f32.mrb[0].mxu0
        %v717 = vadd.f32 0.0, %v716
        %v718 = vpop.f32.mrb[0].mxu0
        %v719 = vpop.f32.mrb[0].mxu0
        %v720 = vadd.f32 0.0, %v719
        %v721 = vpop.f32.mrb[0].mxu0
        %722 = vmatprep.mubr.bf16.mxu0 0
        %723 = vmatmul.mubr.bf16.gmra.mrb[0].mxu0 %v568
        %v724 = vpop.f32.mrb[0].mxu0
        %v725 = vadd.f32 0.0, %v724
        %v726 = vpop.f32.mrb[0].mxu0
        %v727 = vpop.f32.mrb[0].mxu0
        %v728 = vadd.f32 0.0, %v727
        %v729 = vpop.f32.mrb[0].mxu0
        %730 = vdwg.mxu0
        %vm731 = vcmask 523264
        %v732 = vsel %vm731, %v605, 0.0
        %v733 = vsel %vm731, %v608, 0.0
        %v734 = vadd.f32 %v732, %v733
        %v735 = vsel %vm731, %v613, 0.0
        %v736 = vadd.f32 %v734, %v735
        %v737 = vsel %vm731, %v616, 0.0
        %v738 = vadd.f32 %v736, %v737
        %v739 = vsel %vm731, %v621, 0.0
        %v740 = vadd.f32 %v738, %v739
        %v741 = vsel %vm731, %v624, 0.0
        %v742 = vadd.f32 %v740, %v741
        %v743 = vsel %vm731, %v629, 0.0
        %v744 = vadd.f32 %v742, %v743
        %v745 = vsel %vm731, %v632, 0.0
        %v746 = vadd.f32 %v744, %v745
        %v747 = vsel %vm731, %v637, 0.0
        %v748 = vadd.f32 %v746, %v747
        %v749 = vsel %vm731, %v640, 0.0
        %v750 = vadd.f32 %v748, %v749
        %v751 = vsel %vm731, %v645, 0.0
        %v752 = vadd.f32 %v750, %v751
        %v753 = vsel %vm731, %v648, 0.0
        %v754 = vadd.f32 %v752, %v753
        %v755 = vsel %vm731, %v653, 0.0
        %v756 = vadd.f32 %v754, %v755
        %v757 = vsel %vm731, %v656, 0.0
        %v758 = vadd.f32 %v756, %v757
        %v759 = vsel %vm731, %v661, 0.0
        %v760 = vadd.f32 %v758, %v759
        %v761 = vsel %vm731, %v664, 0.0
        %v762 = vadd.f32 %v760, %v761
        %v763 = vsel %vm731, %v669, 0.0
        %v764 = vadd.f32 %v762, %v763
        %v765 = vsel %vm731, %v672, 0.0
        %v766 = vadd.f32 %v764, %v765
        %v767 = vsel %vm731, %v677, 0.0
        %v768 = vadd.f32 %v766, %v767
        %v769 = vsel %vm731, %v680, 0.0
        %v770 = vadd.f32 %v768, %v769
        %v771 = vsel %vm731, %v685, 0.0
        %v772 = vadd.f32 %v770, %v771
        %v773 = vsel %vm731, %v688, 0.0
        %v774 = vadd.f32 %v772, %v773
        %v775 = vsel %vm731, %v693, 0.0
        %v776 = vadd.f32 %v774, %v775
        %v777 = vsel %vm731, %v696, 0.0
        %v778 = vadd.f32 %v776, %v777
        %v779 = vsel %vm731, %v701, 0.0
        %v780 = vadd.f32 %v778, %v779
        %v781 = vsel %vm731, %v704, 0.0
        %v782 = vadd.f32 %v780, %v781
        %v783 = vsel %vm731, %v709, 0.0
        %v784 = vadd.f32 %v782, %v783
        %v785 = vsel %vm731, %v712, 0.0
        %v786 = vadd.f32 %v784, %v785
        %v787 = vsel %vm731, %v717, 0.0
        %v788 = vadd.f32 %v786, %v787
        %v789 = vsel %vm731, %v720, 0.0
        %v790 = vadd.f32 %v788, %v789
        %v791 = vsel %vm731, %v725, 0.0
        %v792 = vadd.f32 %v790, %v791
        %v793 = vsel %vm731, %v728, 0.0
        %v794 = vadd.f32 %v792, %v793
        %v795 = vrot.slane %v794, 4
        %v796 = vadd.f32 %v794, %v795
        %v797 = vrot.slane %v796, 2
        %v798 = vadd.f32 %v796, %v797
        %v799 = vrot.slane %v798, 1
        %v800 = vadd.f32 %v798, %v799
        %vm801 = vcmask 516096
        %802 = vst.msk [vmem:[%s316] sm:$0x1] %vm801, %v800
        %v803 = vmul.f32 %v605, %v605
        %v804 = vmul.f32 %v608, %v608
        %v805 = vmul.f32 %v613, %v613
        %v806 = vmul.f32 %v616, %v616
        %v807 = vmul.f32 %v621, %v621
        %v808 = vmul.f32 %v624, %v624
        %v809 = vmul.f32 %v629, %v629
        %v810 = vmul.f32 %v632, %v632
        %v811 = vmul.f32 %v637, %v637
        %v812 = vmul.f32 %v640, %v640
        %v813 = vmul.f32 %v645, %v645
        %v814 = vmul.f32 %v648, %v648
        %v815 = vmul.f32 %v653, %v653
        %v816 = vmul.f32 %v656, %v656
        %v817 = vmul.f32 %v661, %v661
        %v818 = vmul.f32 %v664, %v664
        %v819 = vmul.f32 %v669, %v669
        %v820 = vmul.f32 %v672, %v672
        %v821 = vmul.f32 %v677, %v677
        %v822 = vmul.f32 %v680, %v680
        %v823 = vmul.f32 %v685, %v685
        %v824 = vmul.f32 %v688, %v688
        %v825 = vmul.f32 %v693, %v693
        %v826 = vmul.f32 %v696, %v696
        %v827 = vmul.f32 %v701, %v701
        %v828 = vmul.f32 %v704, %v704
        %v829 = vmul.f32 %v709, %v709
        %v830 = vmul.f32 %v712, %v712
        %v831 = vmul.f32 %v717, %v717
        %v832 = vmul.f32 %v720, %v720
        %v833 = vmul.f32 %v725, %v725
        %v834 = vmul.f32 %v728, %v728
        %v835 = vsel %vm731, %v803, 0.0
        %v836 = vsel %vm731, %v804, 0.0
        %v837 = vadd.f32 %v835, %v836
        %v838 = vsel %vm731, %v805, 0.0
        %v839 = vadd.f32 %v837, %v838
        %v840 = vsel %vm731, %v806, 0.0
        %v841 = vadd.f32 %v839, %v840
        %v842 = vsel %vm731, %v807, 0.0
        %v843 = vadd.f32 %v841, %v842
        %v844 = vsel %vm731, %v808, 0.0
        %v845 = vadd.f32 %v843, %v844
        %v846 = vsel %vm731, %v809, 0.0
        %v847 = vadd.f32 %v845, %v846
        %v848 = vsel %vm731, %v810, 0.0
        %v849 = vadd.f32 %v847, %v848
        %v850 = vsel %vm731, %v811, 0.0
        %v851 = vadd.f32 %v849, %v850
        %v852 = vsel %vm731, %v812, 0.0
        %v853 = vadd.f32 %v851, %v852
        %v854 = vsel %vm731, %v813, 0.0
        %v855 = vadd.f32 %v853, %v854
        %v856 = vsel %vm731, %v814, 0.0
        %v857 = vadd.f32 %v855, %v856
        %v858 = vsel %vm731, %v815, 0.0
        %v859 = vadd.f32 %v857, %v858
        %v860 = vsel %vm731, %v816, 0.0
        %v861 = vadd.f32 %v859, %v860
        %v862 = vsel %vm731, %v817, 0.0
        %v863 = vadd.f32 %v861, %v862
        %v864 = vsel %vm731, %v818, 0.0
        %v865 = vadd.f32 %v863, %v864
        %v866 = vsel %vm731, %v819, 0.0
        %v867 = vadd.f32 %v865, %v866
        %v868 = vsel %vm731, %v820, 0.0
        %v869 = vadd.f32 %v867, %v868
        %v870 = vsel %vm731, %v821, 0.0
        %v871 = vadd.f32 %v869, %v870
        %v872 = vsel %vm731, %v822, 0.0
        %v873 = vadd.f32 %v871, %v872
        %v874 = vsel %vm731, %v823, 0.0
        %v875 = vadd.f32 %v873, %v874
        %v876 = vsel %vm731, %v824, 0.0
        %v877 = vadd.f32 %v875, %v876
        %v878 = vsel %vm731, %v825, 0.0
        %v879 = vadd.f32 %v877, %v878
        %v880 = vsel %vm731, %v826, 0.0
        %v881 = vadd.f32 %v879, %v880
        %v882 = vsel %vm731, %v827, 0.0
        %v883 = vadd.f32 %v881, %v882
        %v884 = vsel %vm731, %v828, 0.0
        %v885 = vadd.f32 %v883, %v884
        %v886 = vsel %vm731, %v829, 0.0
        %v887 = vadd.f32 %v885, %v886
        %v888 = vsel %vm731, %v830, 0.0
        %v889 = vadd.f32 %v887, %v888
        %v890 = vsel %vm731, %v831, 0.0
        %v891 = vadd.f32 %v889, %v890
        %v892 = vsel %vm731, %v832, 0.0
        %v893 = vadd.f32 %v891, %v892
        %v894 = vsel %vm731, %v833, 0.0
        %v895 = vadd.f32 %v893, %v894
        %v896 = vsel %vm731, %v834, 0.0
        %v897 = vadd.f32 %v895, %v896
        %v898 = vrot.slane %v897, 4
        %v899 = vadd.f32 %v897, %v898
        %v900 = vrot.slane %v899, 2
        %v901 = vadd.f32 %v899, %v900
        %v902 = vrot.slane %v901, 1
        %v903 = vadd.f32 %v901, %v902
        %904 = vst.msk [vmem:[%s316 + $0x1] sm:$0x1] %vm801, %v903
        %905 = vst.msk [vmem:[%s309] sm:$0xff] %vm731, %v605
        %906 = vst.msk [vmem:[%s309 + $0x8] sm:$0xff] %vm731, %v608
        %907 = vst.msk [vmem:[%s309 + $0x10] sm:$0xff] %vm731, %v613
        %908 = vst.msk [vmem:[%s309 + $0x18] sm:$0xff] %vm731, %v616
        %909 = vst.msk [vmem:[%s309 + $0x20] sm:$0xff] %vm731, %v621
        %910 = vst.msk [vmem:[%s309 + $0x28] sm:$0xff] %vm731, %v624
        %911 = vst.msk [vmem:[%s309 + $0x30] sm:$0xff] %vm731, %v629
        %912 = vst.msk [vmem:[%s309 + $0x38] sm:$0xff] %vm731, %v632
        %913 = vst.msk [vmem:[%s309 + $0x40] sm:$0xff] %vm731, %v637
        %914 = vst.msk [vmem:[%s309 + $0x48] sm:$0xff] %vm731, %v640
        %915 = vst.msk [vmem:[%s309 + $0x50] sm:$0xff] %vm731, %v645
        %916 = vst.msk [vmem:[%s309 + $0x58] sm:$0xff] %vm731, %v648
        %917 = vst.msk [vmem:[%s309 + $0x60] sm:$0xff] %vm731, %v653
        %918 = vst.msk [vmem:[%s309 + $0x68] sm:$0xff] %vm731, %v656
        %919 = vst.msk [vmem:[%s309 + $0x70] sm:$0xff] %vm731, %v661
        %920 = vst.msk [vmem:[%s309 + $0x78] sm:$0xff] %vm731, %v664
        %921 = vst.msk [vmem:[%s309 + $0x80] sm:$0xff] %vm731, %v669
        %922 = vst.msk [vmem:[%s309 + $0x88] sm:$0xff] %vm731, %v672
        %923 = vst.msk [vmem:[%s309 + $0x90] sm:$0xff] %vm731, %v677
        %924 = vst.msk [vmem:[%s309 + $0x98] sm:$0xff] %vm731, %v680
        %925 = vst.msk [vmem:[%s309 + $0xa0] sm:$0xff] %vm731, %v685
        %926 = vst.msk [vmem:[%s309 + $0xa8] sm:$0xff] %vm731, %v688
        %927 = vst.msk [vmem:[%s309 + $0xb0] sm:$0xff] %vm731, %v693
        %928 = vst.msk [vmem:[%s309 + $0xb8] sm:$0xff] %vm731, %v696
        %929 = vst.msk [vmem:[%s309 + $0xc0] sm:$0xff] %vm731, %v701
        %930 = vst.msk [vmem:[%s309 + $0xc8] sm:$0xff] %vm731, %v704
        %931 = vst.msk [vmem:[%s309 + $0xd0] sm:$0xff] %vm731, %v709
        %932 = vst.msk [vmem:[%s309 + $0xd8] sm:$0xff] %vm731, %v712
        %933 = vst.msk [vmem:[%s309 + $0xe0] sm:$0xff] %vm731, %v717
        %934 = vst.msk [vmem:[%s309 + $0xe8] sm:$0xff] %vm731, %v720
        %935 = vst.msk [vmem:[%s309 + $0xf0] sm:$0xff] %vm731, %v725
        %936 = vst.msk [vmem:[%s309 + $0xf8] sm:$0xff] %vm731, %v728
        %s937 = sand.u32 %s144, 1
        %s938 = scalar_lea.sflag [#allocation5], %s937
        %s939 = sand.u32 %s144, 1
        %s940 = smul.addr %s939, 256
        %s941 = scalar_lea.vmem [#allocation11], %s940
        %s942 = sand.u32 %s172, 1
        %s943 = scalar_lea.sflag [#allocation13], %s942
        %s944 = sand.u32 %s172, 1
        %s945 = smul.addr %s944, 2
        %s946 = scalar_lea.vmem [#allocation12], %s945
        // Predicated region
        $region57: #{bottleneck_forward.6} parent=35 // pred_check
          %p947 = pneg %p154
        $region58: #{bottleneck_forward.6} parent=35 // pred_check_branch
          %949 = sbr.rel (%p947) target = $region60
        $region59: #{bottleneck_forward.6} parent=35 // pred_region
          %s951 = ssub.s32 4096, 4096
          %952 = vsyncadd %s938, %s951
          %s953 = smul.addr %s32, 32
          %s954 = sadd.s32 %s33, %s953
          %s955 = smul.addr %s954, 128
          %s956 = scalar_lea.hbm %s4, %s955
          %s957 = sshll.u32 %s941, 4
          %s958 = int_to_ptr.vmem [resolvable:$true] %s957
          %963 = dma.vmem_to_hbm [thread:$0]  %s958, 4096, %s956, %s938, 128, 128, 8
        $region60: #{bottleneck_forward.6} parent=35 // pred_fallthru
          _
        // Predicated region
        $region61: #{bottleneck_forward.6} parent=35 // pred_check
          %p964 = pneg %p182
        $region62: #{bottleneck_forward.6} parent=35 // pred_check_branch
          %966 = sbr.rel (%p964) target = $region64
        $region63: #{bottleneck_forward.6} parent=35 // pred_region
          %s968 = ssub.s32 32, 32
          %969 = vsyncadd %s943, %s968
          %s970 = sadd.s32 %s33, %s32
          %s971 = smul.addr %s970, 32
          %s972 = scalar_lea.hbm %s5, %s971
          %s974 = sshll.u32 %s946, 4
          %s975 = int_to_ptr.vmem [resolvable:$true] %s974
          %977 = dma.vmem_to_hbm [thread:$0]  %s975, 32, %s972, %s943
        $region64: #{bottleneck_forward.6} parent=35 // pred_fallthru
          _
      $region36: #{bottleneck_forward.6} parent=5 // pred_fallthru
        _
      %p978 = scmp.le.s32.totalorder 2, %s23
      // Predicated region
      $region65: #{bottleneck_forward.6} parent=5 // pred_check
        %p979 = pneg %p978
      $region66: #{bottleneck_forward.6} parent=5 // pred_check_branch
        %981 = sbr.rel (%p979) target = $region68
      $region67: #{bottleneck_forward.6} parent=5 // pred_region
        %s982 = ssub.s32 %s23, 2
        // Predicated region
        $region69: #{bottleneck_forward.6} parent=67 // pred_check
          %p983 = pneg %p160
        $region70: #{bottleneck_forward.6} parent=67 // pred_check_branch
          %985 = sbr.rel (%p983) target = $region72
        $region71: #{bottleneck_forward.6} parent=67 // pred_region
          %s986 = sand.u32 %s145, 1
          %s987 = scalar_lea.sflag [#allocation5], %s986
          %s988 = sand.u32 %s145, 1
          %s989 = smul.addr %s988, 256
          %s990 = scalar_lea.vmem [#allocation11], %s989
          %991 = dma.done %s987, 4096
        $region72: #{bottleneck_forward.6} parent=67 // pred_fallthru
          _
        // Predicated region
        $region73: #{bottleneck_forward.6} parent=67 // pred_check
          %p992 = pneg %p188
        $region74: #{bottleneck_forward.6} parent=67 // pred_check_branch
          %994 = sbr.rel (%p992) target = $region76
        $region75: #{bottleneck_forward.6} parent=67 // pred_region
          %s995 = sand.u32 %s173, 1
          %s996 = scalar_lea.sflag [#allocation13], %s995
          %s997 = sand.u32 %s173, 1
          %s998 = smul.addr %s997, 2
          %s999 = scalar_lea.vmem [#allocation12], %s998
          %1000 = dma.done %s996, 32
        $region76: #{bottleneck_forward.6} parent=67 // pred_fallthru
          _
      $region68: #{bottleneck_forward.6} parent=5 // pred_fallthru
        _
    $region6: #{bottleneck_forward.6} parent=1 // loop_footer
      %s27 = sadd.s32 1, %s23
    $region7: #{bottleneck_forward.6} parent=1 // loop_footer_branch
      %22 = sbr.rel target = $region3
    $region8: #{bottleneck_forward.6} parent=1 // loop_exit
      _
    %1001 = vsyncpa [#allocation4], 1
    %s1002 = scalar_lea.sflag [#allocation4], 1
    %1003 = vsyncpa %s1002, 1
    %1004 = vsyncpa [#allocation7], 1
    %1005 = vsyncpa [#allocation10], 1
    %1006 = vsyncpa [#allocation5], 1
    %s1007 = scalar_lea.sflag [#allocation5], 1
    %1008 = vsyncpa %s1007, 1
    %1009 = vsyncpa [#allocation13], 1
    %s1010 = scalar_lea.sflag [#allocation13], 1
    %1011 = vsyncpa %s1010, 1

// kernel: bottleneck_forward.7
$region0: #{bottleneck_forward.7}
  #allocation0 [shape = 'u32[]', space=smem, size = 0x4, offset = 0x4, fixed_abs, tag = 'smem constant byte address 0x4 - core index']
  #allocation1 [shape = 'u32[144,128]{1,0:T(1,128)}', space=vmem, size = 0x12000, scoped, tag = 'internal scratch']
  %s0 = inlined_call_operand.hbm [shape: f32[2,16,16,64], index: 0, kind: input, shape index: {}]
  %s1 = inlined_call_operand.hbm [shape: f32[1,64], index: 1, kind: input, shape index: {}]
  %s2 = inlined_call_operand.hbm [shape: f32[1,64], index: 2, kind: input, shape index: {}]
  %s3 = inlined_call_operand.hbm [shape: f32[2,16,16,64], index: 3, kind: input, shape index: {}]
  %s4 = inlined_call_operand.hbm [shape: f32[2,16,16,64], index: 4, kind: output, shape index: {}]
  %s5 = sld [smem:[#allocation0]]
  $region42: #{bottleneck_forward.7} parent=0
    _
  %s7 = ssub.s32 1, %s5
  %s8 = scalar_select 0, %s7, %s5
  $region1: #{bottleneck_forward.7} parent=0
    #allocation2 [shape = 'u8[262144]{0}', space=vmem, size = 0x40000, scoped, tag = 'input window, operand 0, single buffered']
    #allocation3 [shape = 's32[1]{0}', space=sflag, size = 0x4, scoped, tag = 'scoped memory for bottleneck_forward.7']
    #allocation4 [shape = 's32[1]{0}', space=sflag, size = 0x4, scoped, tag = 'scoped memory for bottleneck_forward.7']
    #allocation5 [shape = 'u8[512]{0}', space=vmem, size = 0x400, scoped, tag = 'input window, operand 1, single buffered']
    #allocation6 [shape = 's32[1]{0}', space=sflag, size = 0x4, scoped, tag = 'scoped memory for bottleneck_forward.7']
    #allocation7 [shape = 'u8[512]{0}', space=vmem, size = 0x400, scoped, tag = 'input window, operand 2, single buffered']
    #allocation8 [shape = 'u8[262144]{0}', space=vmem, size = 0x40000, scoped, tag = 'input window, operand 3, single buffered']
    #allocation9 [shape = 's32[1]{0}', space=sflag, size = 0x4, scoped, tag = 'scoped memory for bottleneck_forward.7']
    #allocation10 [shape = 'u8[262144]{0}', space=vmem, size = 0x40000, scoped, tag = 'output window, operand 0, single buffered']
    %9 = vsyncpa [#allocation3], 0
    %10 = vsyncpa [#allocation6], 0
    %11 = vsyncpa [#allocation9], 0
    %12 = vsyncpa [#allocation4], 0
    // Predicated region
    $region2: #{bottleneck_forward.7} parent=1 // pred_check
      _
    $region3: #{bottleneck_forward.7} parent=1 // pred_check_branch
      %14 = sbr.rel (0) target = $region5
    $region4: #{bottleneck_forward.7} parent=1 // pred_region
      %s16 = ssub.s32 8192, 8192
      %17 = vsyncadd [#allocation3], %s16
      %s18 = sshll.u32 [#allocation2], 4
      %s19 = int_to_ptr.vmem [resolvable:$true] %s18
      %24 = dma.hbm_to_vmem [thread:$0]  %s0, 8192, %s19, [#allocation3], 128, 128, 8
    $region5: #{bottleneck_forward.7} parent=1 // pred_fallthru
      _
    // Predicated region
    $region6: #{bottleneck_forward.7} parent=1 // pred_check
      _
    $region7: #{bottleneck_forward.7} parent=1 // pred_check_branch
      %26 = sbr.rel (0) target = $region9
    $region8: #{bottleneck_forward.7} parent=1 // pred_region
      %s28 = ssub.s32 16, 16
      %29 = vsyncadd [#allocation6], %s28
      %s31 = sshll.u32 [#allocation5], 4
      %s32 = int_to_ptr.vmem [resolvable:$true] %s31
      %34 = dma.hbm_to_vmem [thread:$0]  %s1, 16, %s32, [#allocation6]
    $region9: #{bottleneck_forward.7} parent=1 // pred_fallthru
      _
    // Predicated region
    $region10: #{bottleneck_forward.7} parent=1 // pred_check
      _
    $region11: #{bottleneck_forward.7} parent=1 // pred_check_branch
      %36 = sbr.rel (0) target = $region13
    $region12: #{bottleneck_forward.7} parent=1 // pred_region
      %s38 = ssub.s32 16, 16
      %39 = vsyncadd [#allocation6], %s38
      %s41 = sshll.u32 [#allocation7], 4
      %s42 = int_to_ptr.vmem [resolvable:$true] %s41
      %44 = dma.hbm_to_vmem [thread:$0]  %s2, 16, %s42, [#allocation6]
    $region13: #{bottleneck_forward.7} parent=1 // pred_fallthru
      _
    // Predicated region
    $region14: #{bottleneck_forward.7} parent=1 // pred_check
      _
    $region15: #{bottleneck_forward.7} parent=1 // pred_check_branch
      %46 = sbr.rel (0) target = $region17
    $region16: #{bottleneck_forward.7} parent=1 // pred_region
      %s48 = ssub.s32 8192, 8192
      %49 = vsyncadd [#allocation9], %s48
      %s50 = sshll.u32 [#allocation8], 4
      %s51 = int_to_ptr.vmem [resolvable:$true] %s50
      %56 = dma.hbm_to_vmem [thread:$0]  %s3, 8192, %s51, [#allocation9], 128, 128, 8
    $region17: #{bottleneck_forward.7} parent=1 // pred_fallthru
      _
    // Predicated region
    $region18: #{bottleneck_forward.7} parent=1 // pred_check
      _
    $region19: #{bottleneck_forward.7} parent=1 // pred_check_branch
      %58 = sbr.rel (0) target = $region21
    $region20: #{bottleneck_forward.7} parent=1 // pred_region
      %59 = dma.done [#allocation3], 8192
    $region21: #{bottleneck_forward.7} parent=1 // pred_fallthru
      _
    // Predicated region
    $region22: #{bottleneck_forward.7} parent=1 // pred_check
      _
    $region23: #{bottleneck_forward.7} parent=1 // pred_check_branch
      %61 = sbr.rel (0) target = $region25
    $region24: #{bottleneck_forward.7} parent=1 // pred_region
      %62 = dma.done [#allocation6], 16
    $region25: #{bottleneck_forward.7} parent=1 // pred_fallthru
      _
    // Predicated region
    $region26: #{bottleneck_forward.7} parent=1 // pred_check
      _
    $region27: #{bottleneck_forward.7} parent=1 // pred_check_branch
      %64 = sbr.rel (0) target = $region29
    $region28: #{bottleneck_forward.7} parent=1 // pred_region
      %65 = dma.done [#allocation6], 16
    $region29: #{bottleneck_forward.7} parent=1 // pred_fallthru
      _
    // Predicated region
    $region30: #{bottleneck_forward.7} parent=1 // pred_check
      _
    $region31: #{bottleneck_forward.7} parent=1 // pred_check_branch
      %67 = sbr.rel (0) target = $region33
    $region32: #{bottleneck_forward.7} parent=1 // pred_region
      %68 = dma.done [#allocation9], 8192
    $region33: #{bottleneck_forward.7} parent=1 // pred_fallthru
      _
    %v69 = vld [vmem:[#allocation2] sm:$0xff]
    %v70 = vld [vmem:[#allocation2 + $0x8] sm:$0xff]
    %v71 = vld [vmem:[#allocation2 + $0x10] sm:$0xff]
    %v72 = vld [vmem:[#allocation2 + $0x18] sm:$0xff]
    %v73 = vld [vmem:[#allocation2 + $0x20] sm:$0xff]
    %v74 = vld [vmem:[#allocation2 + $0x28] sm:$0xff]
    %v75 = vld [vmem:[#allocation2 + $0x30] sm:$0xff]
    %v76 = vld [vmem:[#allocation2 + $0x38] sm:$0xff]
    %v77 = vld [vmem:[#allocation2 + $0x40] sm:$0xff]
    %v78 = vld [vmem:[#allocation2 + $0x48] sm:$0xff]
    %v79 = vld [vmem:[#allocation2 + $0x50] sm:$0xff]
    %v80 = vld [vmem:[#allocation2 + $0x58] sm:$0xff]
    %v81 = vld [vmem:[#allocation2 + $0x60] sm:$0xff]
    %v82 = vld [vmem:[#allocation2 + $0x68] sm:$0xff]
    %v83 = vld [vmem:[#allocation2 + $0x70] sm:$0xff]
    %v84 = vld [vmem:[#allocation2 + $0x78] sm:$0xff]
    %v85 = vld [vmem:[#allocation2 + $0x80] sm:$0xff]
    %v86 = vld [vmem:[#allocation2 + $0x88] sm:$0xff]
    %v87 = vld [vmem:[#allocation2 + $0x90] sm:$0xff]
    %v88 = vld [vmem:[#allocation2 + $0x98] sm:$0xff]
    %v89 = vld [vmem:[#allocation2 + $0xa0] sm:$0xff]
    %v90 = vld [vmem:[#allocation2 + $0xa8] sm:$0xff]
    %v91 = vld [vmem:[#allocation2 + $0xb0] sm:$0xff]
    %v92 = vld [vmem:[#allocation2 + $0xb8] sm:$0xff]
    %v93 = vld [vmem:[#allocation2 + $0xc0] sm:$0xff]
    %v94 = vld [vmem:[#allocation2 + $0xc8] sm:$0xff]
    %v95 = vld [vmem:[#allocation2 + $0xd0] sm:$0xff]
    %v96 = vld [vmem:[#allocation2 + $0xd8] sm:$0xff]
    %v97 = vld [vmem:[#allocation2 + $0xe0] sm:$0xff]
    %v98 = vld [vmem:[#allocation2 + $0xe8] sm:$0xff]
    %v99 = vld [vmem:[#allocation2 + $0xf0] sm:$0xff]
    %v100 = vld [vmem:[#allocation2 + $0xf8] sm:$0xff]
    %v101 = vld [vmem:[#allocation2 + $0x100] sm:$0xff]
    %v102 = vld [vmem:[#allocation2 + $0x108] sm:$0xff]
    %v103 = vld [vmem:[#allocation2 + $0x110] sm:$0xff]
    %v104 = vld [vmem:[#allocation2 + $0x118] sm:$0xff]
    %v105 = vld [vmem:[#allocation2 + $0x120] sm:$0xff]
    %v106 = vld [vmem:[#allocation2 + $0x128] sm:$0xff]
    %v107 = vld [vmem:[#allocation2 + $0x130] sm:$0xff]
    %v108 = vld [vmem:[#allocation2 + $0x138] sm:$0xff]
    %v109 = vld [vmem:[#allocation2 + $0x140] sm:$0xff]
    %v110 = vld [vmem:[#allocation2 + $0x148] sm:$0xff]
    %v111 = vld [vmem:[#allocation2 + $0x150] sm:$0xff]
    %v112 = vld [vmem:[#allocation2 + $0x158] sm:$0xff]
    %v113 = vld [vmem:[#allocation2 + $0x160] sm:$0xff]
    %v114 = vld [vmem:[#allocation2 + $0x168] sm:$0xff]
    %v115 = vld [vmem:[#allocation2 + $0x170] sm:$0xff]
    %v116 = vld [vmem:[#allocation2 + $0x178] sm:$0xff]
    %v117 = vld [vmem:[#allocation2 + $0x180] sm:$0xff]
    %v118 = vld [vmem:[#allocation2 + $0x188] sm:$0xff]
    %v119 = vld [vmem:[#allocation2 + $0x190] sm:$0xff]
    %v120 = vld [vmem:[#allocation2 + $0x198] sm:$0xff]
    %v121 = vld [vmem:[#allocation2 + $0x1a0] sm:$0xff]
    %v122 = vld [vmem:[#allocation2 + $0x1a8] sm:$0xff]
    %v123 = vld [vmem:[#allocation2 + $0x1b0] sm:$0xff]
    %v124 = vld [vmem:[#allocation2 + $0x1b8] sm:$0xff]
    %v125 = vld [vmem:[#allocation2 + $0x1c0] sm:$0xff]
    %v126 = vld [vmem:[#allocation2 + $0x1c8] sm:$0xff]
    %v127 = vld [vmem:[#allocation2 + $0x1d0] sm:$0xff]
    %v128 = vld [vmem:[#allocation2 + $0x1d8] sm:$0xff]
    %v129 = vld [vmem:[#allocation2 + $0x1e0] sm:$0xff]
    %v130 = vld [vmem:[#allocation2 + $0x1e8] sm:$0xff]
    %v131 = vld [vmem:[#allocation2 + $0x1f0] sm:$0xff]
    %v132 = vld [vmem:[#allocation2 + $0x1f8] sm:$0xff]
    %v133 = vld [vmem:[#allocation5] sm:$0x1]
    %v135 = vlaneseq
    %v136 = vshrl.u32 %v135, 7
    %v137 = vsub.s32 0, %v136
    %v138 = vrot.slane %v133, %v137
    %v140 = vmul.f32 %v69, %v138
    %v141 = vmul.f32 %v70, %v138
    %v142 = vmul.f32 %v71, %v138
    %v143 = vmul.f32 %v72, %v138
    %v144 = vmul.f32 %v73, %v138
    %v145 = vmul.f32 %v74, %v138
    %v146 = vmul.f32 %v75, %v138
    %v147 = vmul.f32 %v76, %v138
    %v148 = vmul.f32 %v77, %v138
    %v149 = vmul.f32 %v78, %v138
    %v150 = vmul.f32 %v79, %v138
    %v151 = vmul.f32 %v80, %v138
    %v152 = vmul.f32 %v81, %v138
    %v153 = vmul.f32 %v82, %v138
    %v154 = vmul.f32 %v83, %v138
    %v155 = vmul.f32 %v84, %v138
    %v156 = vmul.f32 %v85, %v138
    %v157 = vmul.f32 %v86, %v138
    %v158 = vmul.f32 %v87, %v138
    %v159 = vmul.f32 %v88, %v138
    %v160 = vmul.f32 %v89, %v138
    %v161 = vmul.f32 %v90, %v138
    %v162 = vmul.f32 %v91, %v138
    %v163 = vmul.f32 %v92, %v138
    %v164 = vmul.f32 %v93, %v138
    %v165 = vmul.f32 %v94, %v138
    %v166 = vmul.f32 %v95, %v138
    %v167 = vmul.f32 %v96, %v138
    %v168 = vmul.f32 %v97, %v138
    %v169 = vmul.f32 %v98, %v138
    %v170 = vmul.f32 %v99, %v138
    %v171 = vmul.f32 %v100, %v138
    %v172 = vmul.f32 %v101, %v138
    %v173 = vmul.f32 %v102, %v138
    %v174 = vmul.f32 %v103, %v138
    %v175 = vmul.f32 %v104, %v138
    %v176 = vmul.f32 %v105, %v138
    %v177 = vmul.f32 %v106, %v138
    %v178 = vmul.f32 %v107, %v138
    %v179 = vmul.f32 %v108, %v138
    %v180 = vmul.f32 %v109, %v138
    %v181 = vmul.f32 %v110, %v138
    %v182 = vmul.f32 %v111, %v138
    %v183 = vmul.f32 %v112, %v138
    %v184 = vmul.f32 %v113, %v138
    %v185 = vmul.f32 %v114, %v138
    %v186 = vmul.f32 %v115, %v138
    %v187 = vmul.f32 %v116, %v138
    %v188 = vmul.f32 %v117, %v138
    %v189 = vmul.f32 %v118, %v138
    %v190 = vmul.f32 %v119, %v138
    %v191 = vmul.f32 %v120, %v138
    %v192 = vmul.f32 %v121, %v138
    %v193 = vmul.f32 %v122, %v138
    %v194 = vmul.f32 %v123, %v138
    %v195 = vmul.f32 %v124, %v138
    %v196 = vmul.f32 %v125, %v138
    %v197 = vmul.f32 %v126, %v138
    %v198 = vmul.f32 %v127, %v138
    %v199 = vmul.f32 %v128, %v138
    %v200 = vmul.f32 %v129, %v138
    %v201 = vmul.f32 %v130, %v138
    %v202 = vmul.f32 %v131, %v138
    %v203 = vmul.f32 %v132, %v138
    %v204 = vld [vmem:[#allocation7] sm:$0x1]
    %v206 = vlaneseq
    %v207 = vshrl.u32 %v206, 7
    %v208 = vsub.s32 0, %v207
    %v209 = vrot.slane %v204, %v208
    %v211 = vadd.f32 %v140, %v209
    %v212 = vadd.f32 %v141, %v209
    %v213 = vadd.f32 %v142, %v209
    %v214 = vadd.f32 %v143, %v209
    %v215 = vadd.f32 %v144, %v209
    %v216 = vadd.f32 %v145, %v209
    %v217 = vadd.f32 %v146, %v209
    %v218 = vadd.f32 %v147, %v209
    %v219 = vadd.f32 %v148, %v209
    %v220 = vadd.f32 %v149, %v209
    %v221 = vadd.f32 %v150, %v209
    %v222 = vadd.f32 %v151, %v209
    %v223 = vadd.f32 %v152, %v209
    %v224 = vadd.f32 %v153, %v209
    %v225 = vadd.f32 %v154, %v209
    %v226 = vadd.f32 %v155, %v209
    %v227 = vadd.f32 %v156, %v209
    %v228 = vadd.f32 %v157, %v209
    %v229 = vadd.f32 %v158, %v209
    %v230 = vadd.f32 %v159, %v209
    %v231 = vadd.f32 %v160, %v209
    %v232 = vadd.f32 %v161, %v209
    %v233 = vadd.f32 %v162, %v209
    %v234 = vadd.f32 %v163, %v209
    %v235 = vadd.f32 %v164, %v209
    %v236 = vadd.f32 %v165, %v209
    %v237 = vadd.f32 %v166, %v209
    %v238 = vadd.f32 %v167, %v209
    %v239 = vadd.f32 %v168, %v209
    %v240 = vadd.f32 %v169, %v209
    %v241 = vadd.f32 %v170, %v209
    %v242 = vadd.f32 %v171, %v209
    %v243 = vadd.f32 %v172, %v209
    %v244 = vadd.f32 %v173, %v209
    %v245 = vadd.f32 %v174, %v209
    %v246 = vadd.f32 %v175, %v209
    %v247 = vadd.f32 %v176, %v209
    %v248 = vadd.f32 %v177, %v209
    %v249 = vadd.f32 %v178, %v209
    %v250 = vadd.f32 %v179, %v209
    %v251 = vadd.f32 %v180, %v209
    %v252 = vadd.f32 %v181, %v209
    %v253 = vadd.f32 %v182, %v209
    %v254 = vadd.f32 %v183, %v209
    %v255 = vadd.f32 %v184, %v209
    %v256 = vadd.f32 %v185, %v209
    %v257 = vadd.f32 %v186, %v209
    %v258 = vadd.f32 %v187, %v209
    %v259 = vadd.f32 %v188, %v209
    %v260 = vadd.f32 %v189, %v209
    %v261 = vadd.f32 %v190, %v209
    %v262 = vadd.f32 %v191, %v209
    %v263 = vadd.f32 %v192, %v209
    %v264 = vadd.f32 %v193, %v209
    %v265 = vadd.f32 %v194, %v209
    %v266 = vadd.f32 %v195, %v209
    %v267 = vadd.f32 %v196, %v209
    %v268 = vadd.f32 %v197, %v209
    %v269 = vadd.f32 %v198, %v209
    %v270 = vadd.f32 %v199, %v209
    %v271 = vadd.f32 %v200, %v209
    %v272 = vadd.f32 %v201, %v209
    %v273 = vadd.f32 %v202, %v209
    %v274 = vadd.f32 %v203, %v209
    %v275 = vld [vmem:[#allocation8] sm:$0xff]
    %v276 = vld [vmem:[#allocation8 + $0x8] sm:$0xff]
    %v277 = vld [vmem:[#allocation8 + $0x10] sm:$0xff]
    %v278 = vld [vmem:[#allocation8 + $0x18] sm:$0xff]
    %v279 = vld [vmem:[#allocation8 + $0x20] sm:$0xff]
    %v280 = vld [vmem:[#allocation8 + $0x28] sm:$0xff]
    %v281 = vld [vmem:[#allocation8 + $0x30] sm:$0xff]
    %v282 = vld [vmem:[#allocation8 + $0x38] sm:$0xff]
    %v283 = vld [vmem:[#allocation8 + $0x40] sm:$0xff]
    %v284 = vld [vmem:[#allocation8 + $0x48] sm:$0xff]
    %v285 = vld [vmem:[#allocation8 + $0x50] sm:$0xff]
    %v286 = vld [vmem:[#allocation8 + $0x58] sm:$0xff]
    %v287 = vld [vmem:[#allocation8 + $0x60] sm:$0xff]
    %v288 = vld [vmem:[#allocation8 + $0x68] sm:$0xff]
    %v289 = vld [vmem:[#allocation8 + $0x70] sm:$0xff]
    %v290 = vld [vmem:[#allocation8 + $0x78] sm:$0xff]
    %v291 = vld [vmem:[#allocation8 + $0x80] sm:$0xff]
    %v292 = vld [vmem:[#allocation8 + $0x88] sm:$0xff]
    %v293 = vld [vmem:[#allocation8 + $0x90] sm:$0xff]
    %v294 = vld [vmem:[#allocation8 + $0x98] sm:$0xff]
    %v295 = vld [vmem:[#allocation8 + $0xa0] sm:$0xff]
    %v296 = vld [vmem:[#allocation8 + $0xa8] sm:$0xff]
    %v297 = vld [vmem:[#allocation8 + $0xb0] sm:$0xff]
    %v298 = vld [vmem:[#allocation8 + $0xb8] sm:$0xff]
    %v299 = vld [vmem:[#allocation8 + $0xc0] sm:$0xff]
    %v300 = vld [vmem:[#allocation8 + $0xc8] sm:$0xff]
    %v301 = vld [vmem:[#allocation8 + $0xd0] sm:$0xff]
    %v302 = vld [vmem:[#allocation8 + $0xd8] sm:$0xff]
    %v303 = vld [vmem:[#allocation8 + $0xe0] sm:$0xff]
    %v304 = vld [vmem:[#allocation8 + $0xe8] sm:$0xff]
    %v305 = vld [vmem:[#allocation8 + $0xf0] sm:$0xff]
    %v306 = vld [vmem:[#allocation8 + $0xf8] sm:$0xff]
    %v307 = vld [vmem:[#allocation8 + $0x100] sm:$0xff]
    %v308 = vld [vmem:[#allocation8 + $0x108] sm:$0xff]
    %v309 = vld [vmem:[#allocation8 + $0x110] sm:$0xff]
    %v310 = vld [vmem:[#allocation8 + $0x118] sm:$0xff]
    %v311 = vld [vmem:[#allocation8 + $0x120] sm:$0xff]
    %v312 = vld [vmem:[#allocation8 + $0x128] sm:$0xff]
    %v313 = vld [vmem:[#allocation8 + $0x130] sm:$0xff]
    %v314 = vld [vmem:[#allocation8 + $0x138] sm:$0xff]
    %v315 = vld [vmem:[#allocation8 + $0x140] sm:$0xff]
    %v316 = vld [vmem:[#allocation8 + $0x148] sm:$0xff]
    %v317 = vld [vmem:[#allocation8 + $0x150] sm:$0xff]
    %v318 = vld [vmem:[#allocation8 + $0x158] sm:$0xff]
    %v319 = vld [vmem:[#allocation8 + $0x160] sm:$0xff]
    %v320 = vld [vmem:[#allocation8 + $0x168] sm:$0xff]
    %v321 = vld [vmem:[#allocation8 + $0x170] sm:$0xff]
    %v322 = vld [vmem:[#allocation8 + $0x178] sm:$0xff]
    %v323 = vld [vmem:[#allocation8 + $0x180] sm:$0xff]
    %v324 = vld [vmem:[#allocation8 + $0x188] sm:$0xff]
    %v325 = vld [vmem:[#allocation8 + $0x190] sm:$0xff]
    %v326 = vld [vmem:[#allocation8 + $0x198] sm:$0xff]
    %v327 = vld [vmem:[#allocation8 + $0x1a0] sm:$0xff]
    %v328 = vld [vmem:[#allocation8 + $0x1a8] sm:$0xff]
    %v329 = vld [vmem:[#allocation8 + $0x1b0] sm:$0xff]
    %v330 = vld [vmem:[#allocation8 + $0x1b8] sm:$0xff]
    %v331 = vld [vmem:[#allocation8 + $0x1c0] sm:$0xff]
    %v332 = vld [vmem:[#allocation8 + $0x1c8] sm:$0xff]
    %v333 = vld [vmem:[#allocation8 + $0x1d0] sm:$0xff]
    %v334 = vld [vmem:[#allocation8 + $0x1d8] sm:$0xff]
    %v335 = vld [vmem:[#allocation8 + $0x1e0] sm:$0xff]
    %v336 = vld [vmem:[#allocation8 + $0x1e8] sm:$0xff]
    %v337 = vld [vmem:[#allocation8 + $0x1f0] sm:$0xff]
    %v338 = vld [vmem:[#allocation8 + $0x1f8] sm:$0xff]
    %v339 = vadd.f32 %v211, %v275
    %v340 = vadd.f32 %v212, %v276
    %v341 = vadd.f32 %v213, %v277
    %v342 = vadd.f32 %v214, %v278
    %v343 = vadd.f32 %v215, %v279
    %v344 = vadd.f32 %v216, %v280
    %v345 = vadd.f32 %v217, %v281
    %v346 = vadd.f32 %v218, %v282
    %v347 = vadd.f32 %v219, %v283
    %v348 = vadd.f32 %v220, %v284
    %v349 = vadd.f32 %v221, %v285
    %v350 = vadd.f32 %v222, %v286
    %v351 = vadd.f32 %v223, %v287
    %v352 = vadd.f32 %v224, %v288
    %v353 = vadd.f32 %v225, %v289
    %v354 = vadd.f32 %v226, %v290
    %v355 = vadd.f32 %v227, %v291
    %v356 = vadd.f32 %v228, %v292
    %v357 = vadd.f32 %v229, %v293
    %v358 = vadd.f32 %v230, %v294
    %v359 = vadd.f32 %v231, %v295
    %v360 = vadd.f32 %v232, %v296
    %v361 = vadd.f32 %v233, %v297
    %v362 = vadd.f32 %v234, %v298
    %v363 = vadd.f32 %v235, %v299
    %v364 = vadd.f32 %v236, %v300
    %v365 = vadd.f32 %v237, %v301
    %v366 = vadd.f32 %v238, %v302
    %v367 = vadd.f32 %v239, %v303
    %v368 = vadd.f32 %v240, %v304
    %v369 = vadd.f32 %v241, %v305
    %v370 = vadd.f32 %v242, %v306
    %v371 = vadd.f32 %v243, %v307
    %v372 = vadd.f32 %v244, %v308
    %v373 = vadd.f32 %v245, %v309
    %v374 = vadd.f32 %v246, %v310
    %v375 = vadd.f32 %v247, %v311
    %v376 = vadd.f32 %v248, %v312
    %v377 = vadd.f32 %v249, %v313
    %v378 = vadd.f32 %v250, %v314
    %v379 = vadd.f32 %v251, %v315
    %v380 = vadd.f32 %v252, %v316
    %v381 = vadd.f32 %v253, %v317
    %v382 = vadd.f32 %v254, %v318
    %v383 = vadd.f32 %v255, %v319
    %v384 = vadd.f32 %v256, %v320
    %v385 = vadd.f32 %v257, %v321
    %v386 = vadd.f32 %v258, %v322
    %v387 = vadd.f32 %v259, %v323
    %v388 = vadd.f32 %v260, %v324
    %v389 = vadd.f32 %v261, %v325
    %v390 = vadd.f32 %v262, %v326
    %v391 = vadd.f32 %v263, %v327
    %v392 = vadd.f32 %v264, %v328
    %v393 = vadd.f32 %v265, %v329
    %v394 = vadd.f32 %v266, %v330
    %v395 = vadd.f32 %v267, %v331
    %v396 = vadd.f32 %v268, %v332
    %v397 = vadd.f32 %v269, %v333
    %v398 = vadd.f32 %v270, %v334
    %v399 = vadd.f32 %v271, %v335
    %v400 = vadd.f32 %v272, %v336
    %v401 = vadd.f32 %v273, %v337
    %v402 = vadd.f32 %v274, %v338
    %v403 = vmax.f32 %v339, 0.0
    %v404 = vmax.f32 %v340, 0.0
    %v405 = vmax.f32 %v341, 0.0
    %v406 = vmax.f32 %v342, 0.0
    %v407 = vmax.f32 %v343, 0.0
    %v408 = vmax.f32 %v344, 0.0
    %v409 = vmax.f32 %v345, 0.0
    %v410 = vmax.f32 %v346, 0.0
    %v411 = vmax.f32 %v347, 0.0
    %v412 = vmax.f32 %v348, 0.0
    %v413 = vmax.f32 %v349, 0.0
    %v414 = vmax.f32 %v350, 0.0
    %v415 = vmax.f32 %v351, 0.0
    %v416 = vmax.f32 %v352, 0.0
    %v417 = vmax.f32 %v353, 0.0
    %v418 = vmax.f32 %v354, 0.0
    %v419 = vmax.f32 %v355, 0.0
    %v420 = vmax.f32 %v356, 0.0
    %v421 = vmax.f32 %v357, 0.0
    %v422 = vmax.f32 %v358, 0.0
    %v423 = vmax.f32 %v359, 0.0
    %v424 = vmax.f32 %v360, 0.0
    %v425 = vmax.f32 %v361, 0.0
    %v426 = vmax.f32 %v362, 0.0
    %v427 = vmax.f32 %v363, 0.0
    %v428 = vmax.f32 %v364, 0.0
    %v429 = vmax.f32 %v365, 0.0
    %v430 = vmax.f32 %v366, 0.0
    %v431 = vmax.f32 %v367, 0.0
    %v432 = vmax.f32 %v368, 0.0
    %v433 = vmax.f32 %v369, 0.0
    %v434 = vmax.f32 %v370, 0.0
    %v435 = vmax.f32 %v371, 0.0
    %v436 = vmax.f32 %v372, 0.0
    %v437 = vmax.f32 %v373, 0.0
    %v438 = vmax.f32 %v374, 0.0
    %v439 = vmax.f32 %v375, 0.0
    %v440 = vmax.f32 %v376, 0.0
    %v441 = vmax.f32 %v377, 0.0
    %v442 = vmax.f32 %v378, 0.0
    %v443 = vmax.f32 %v379, 0.0
    %v444 = vmax.f32 %v380, 0.0
    %v445 = vmax.f32 %v381, 0.0
    %v446 = vmax.f32 %v382, 0.0
    %v447 = vmax.f32 %v383, 0.0
    %v448 = vmax.f32 %v384, 0.0
    %v449 = vmax.f32 %v385, 0.0
    %v450 = vmax.f32 %v386, 0.0
    %v451 = vmax.f32 %v387, 0.0
    %v452 = vmax.f32 %v388, 0.0
    %v453 = vmax.f32 %v389, 0.0
    %v454 = vmax.f32 %v390, 0.0
    %v455 = vmax.f32 %v391, 0.0
    %v456 = vmax.f32 %v392, 0.0
    %v457 = vmax.f32 %v393, 0.0
    %v458 = vmax.f32 %v394, 0.0
    %v459 = vmax.f32 %v395, 0.0
    %v460 = vmax.f32 %v396, 0.0
    %v461 = vmax.f32 %v397, 0.0
    %v462 = vmax.f32 %v398, 0.0
    %v463 = vmax.f32 %v399, 0.0
    %v464 = vmax.f32 %v400, 0.0
    %v465 = vmax.f32 %v401, 0.0
    %v466 = vmax.f32 %v402, 0.0
    %vm467 = vcmask 523264
    %468 = vst.msk [vmem:[#allocation10] sm:$0xff] %vm467, %v403
    %469 = vst.msk [vmem:[#allocation10 + $0x8] sm:$0xff] %vm467, %v404
    %470 = vst.msk [vmem:[#allocation10 + $0x10] sm:$0xff] %vm467, %v405
    %471 = vst.msk [vmem:[#allocation10 + $0x18] sm:$0xff] %vm467, %v406
    %472 = vst.msk [vmem:[#allocation10 + $0x20] sm:$0xff] %vm467, %v407
    %473 = vst.msk [vmem:[#allocation10 + $0x28] sm:$0xff] %vm467, %v408
    %474 = vst.msk [vmem:[#allocation10 + $0x30] sm:$0xff] %vm467, %v409
    %475 = vst.msk [vmem:[#allocation10 + $0x38] sm:$0xff] %vm467, %v410
    %476 = vst.msk [vmem:[#allocation10 + $0x40] sm:$0xff] %vm467, %v411
    %477 = vst.msk [vmem:[#allocation10 + $0x48] sm:$0xff] %vm467, %v412
    %478 = vst.msk [vmem:[#allocation10 + $0x50] sm:$0xff] %vm467, %v413
    %479 = vst.msk [vmem:[#allocation10 + $0x58] sm:$0xff] %vm467, %v414
    %480 = vst.msk [vmem:[#allocation10 + $0x60] sm:$0xff] %vm467, %v415
    %481 = vst.msk [vmem:[#allocation10 + $0x68] sm:$0xff] %vm467, %v416
    %482 = vst.msk [vmem:[#allocation10 + $0x70] sm:$0xff] %vm467, %v417
    %483 = vst.msk [vmem:[#allocation10 + $0x78] sm:$0xff] %vm467, %v418
    %484 = vst.msk [vmem:[#allocation10 + $0x80] sm:$0xff] %vm467, %v419
    %485 = vst.msk [vmem:[#allocation10 + $0x88] sm:$0xff] %vm467, %v420
    %486 = vst.msk [vmem:[#allocation10 + $0x90] sm:$0xff] %vm467, %v421
    %487 = vst.msk [vmem:[#allocation10 + $0x98] sm:$0xff] %vm467, %v422
    %488 = vst.msk [vmem:[#allocation10 + $0xa0] sm:$0xff] %vm467, %v423
    %489 = vst.msk [vmem:[#allocation10 + $0xa8] sm:$0xff] %vm467, %v424
    %490 = vst.msk [vmem:[#allocation10 + $0xb0] sm:$0xff] %vm467, %v425
    %491 = vst.msk [vmem:[#allocation10 + $0xb8] sm:$0xff] %vm467, %v426
    %492 = vst.msk [vmem:[#allocation10 + $0xc0] sm:$0xff] %vm467, %v427
    %493 = vst.msk [vmem:[#allocation10 + $0xc8] sm:$0xff] %vm467, %v428
    %494 = vst.msk [vmem:[#allocation10 + $0xd0] sm:$0xff] %vm467, %v429
    %495 = vst.msk [vmem:[#allocation10 + $0xd8] sm:$0xff] %vm467, %v430
    %496 = vst.msk [vmem:[#allocation10 + $0xe0] sm:$0xff] %vm467, %v431
    %497 = vst.msk [vmem:[#allocation10 + $0xe8] sm:$0xff] %vm467, %v432
    %498 = vst.msk [vmem:[#allocation10 + $0xf0] sm:$0xff] %vm467, %v433
    %499 = vst.msk [vmem:[#allocation10 + $0xf8] sm:$0xff] %vm467, %v434
    %500 = vst.msk [vmem:[#allocation10 + $0x100] sm:$0xff] %vm467, %v435
    %501 = vst.msk [vmem:[#allocation10 + $0x108] sm:$0xff] %vm467, %v436
    %502 = vst.msk [vmem:[#allocation10 + $0x110] sm:$0xff] %vm467, %v437
    %503 = vst.msk [vmem:[#allocation10 + $0x118] sm:$0xff] %vm467, %v438
    %504 = vst.msk [vmem:[#allocation10 + $0x120] sm:$0xff] %vm467, %v439
    %505 = vst.msk [vmem:[#allocation10 + $0x128] sm:$0xff] %vm467, %v440
    %506 = vst.msk [vmem:[#allocation10 + $0x130] sm:$0xff] %vm467, %v441
    %507 = vst.msk [vmem:[#allocation10 + $0x138] sm:$0xff] %vm467, %v442
    %508 = vst.msk [vmem:[#allocation10 + $0x140] sm:$0xff] %vm467, %v443
    %509 = vst.msk [vmem:[#allocation10 + $0x148] sm:$0xff] %vm467, %v444
    %510 = vst.msk [vmem:[#allocation10 + $0x150] sm:$0xff] %vm467, %v445
    %511 = vst.msk [vmem:[#allocation10 + $0x158] sm:$0xff] %vm467, %v446
    %512 = vst.msk [vmem:[#allocation10 + $0x160] sm:$0xff] %vm467, %v447
    %513 = vst.msk [vmem:[#allocation10 + $0x168] sm:$0xff] %vm467, %v448
    %514 = vst.msk [vmem:[#allocation10 + $0x170] sm:$0xff] %vm467, %v449
    %515 = vst.msk [vmem:[#allocation10 + $0x178] sm:$0xff] %vm467, %v450
    %516 = vst.msk [vmem:[#allocation10 + $0x180] sm:$0xff] %vm467, %v451
    %517 = vst.msk [vmem:[#allocation10 + $0x188] sm:$0xff] %vm467, %v452
    %518 = vst.msk [vmem:[#allocation10 + $0x190] sm:$0xff] %vm467, %v453
    %519 = vst.msk [vmem:[#allocation10 + $0x198] sm:$0xff] %vm467, %v454
    %520 = vst.msk [vmem:[#allocation10 + $0x1a0] sm:$0xff] %vm467, %v455
    %521 = vst.msk [vmem:[#allocation10 + $0x1a8] sm:$0xff] %vm467, %v456
    %522 = vst.msk [vmem:[#allocation10 + $0x1b0] sm:$0xff] %vm467, %v457
    %523 = vst.msk [vmem:[#allocation10 + $0x1b8] sm:$0xff] %vm467, %v458
    %524 = vst.msk [vmem:[#allocation10 + $0x1c0] sm:$0xff] %vm467, %v459
    %525 = vst.msk [vmem:[#allocation10 + $0x1c8] sm:$0xff] %vm467, %v460
    %526 = vst.msk [vmem:[#allocation10 + $0x1d0] sm:$0xff] %vm467, %v461
    %527 = vst.msk [vmem:[#allocation10 + $0x1d8] sm:$0xff] %vm467, %v462
    %528 = vst.msk [vmem:[#allocation10 + $0x1e0] sm:$0xff] %vm467, %v463
    %529 = vst.msk [vmem:[#allocation10 + $0x1e8] sm:$0xff] %vm467, %v464
    %530 = vst.msk [vmem:[#allocation10 + $0x1f0] sm:$0xff] %vm467, %v465
    %531 = vst.msk [vmem:[#allocation10 + $0x1f8] sm:$0xff] %vm467, %v466
    // Predicated region
    $region34: #{bottleneck_forward.7} parent=1 // pred_check
      _
    $region35: #{bottleneck_forward.7} parent=1 // pred_check_branch
      %533 = sbr.rel (0) target = $region37
    $region36: #{bottleneck_forward.7} parent=1 // pred_region
      %s535 = ssub.s32 8192, 8192
      %536 = vsyncadd [#allocation4], %s535
      %s537 = sshll.u32 [#allocation10], 4
      %s538 = int_to_ptr.vmem [resolvable:$true] %s537
      %543 = dma.vmem_to_hbm [thread:$0]  %s538, 8192, %s4, [#allocation4], 128, 128, 8
    $region37: #{bottleneck_forward.7} parent=1 // pred_fallthru
      _
    // Predicated region
    $region38: #{bottleneck_forward.7} parent=1 // pred_check
      _
    $region39: #{bottleneck_forward.7} parent=1 // pred_check_branch
      %545 = sbr.rel (0) target = $region41
    $region40: #{bottleneck_forward.7} parent=1 // pred_region
      %546 = dma.done [#allocation4], 8192
    $region41: #{bottleneck_forward.7} parent=1 // pred_fallthru
      _
    %547 = vsyncpa [#allocation3], 1
    %548 = vsyncpa [#allocation6], 1
    %549 = vsyncpa [#allocation9], 1
    %550 = vsyncpa [#allocation4], 1

// kernel: bottleneck_forward.5
$region0: #{bottleneck_forward.5}
  #allocation0 [shape = 'u32[]', space=smem, size = 0x4, offset = 0x4, fixed_abs, tag = 'smem constant byte address 0x4 - core index']
  #allocation1 [shape = 'u32[144,128]{1,0:T(1,128)}', space=vmem, size = 0x12000, scoped, tag = 'internal scratch']
  #allocation2 [shape = 'f32[18,18,16]{2,1,0:T(8,128)}', space=vmem, size = 0x36000, scoped, tag = 'scratch operand']
  %s0 = inlined_call_operand.hbm [shape: f32[2,16,16,16], index: 0, kind: input, shape index: {}]
  %s1 = inlined_call_operand.hbm [shape: f32[1,16], index: 1, kind: input, shape index: {}]
  %s2 = inlined_call_operand.hbm [shape: f32[1,16], index: 2, kind: input, shape index: {}]
  %s3 = inlined_call_operand.hbm [shape: bf16[9,16,16], index: 3, kind: input, shape index: {}]
  %s4 = inlined_call_operand.hbm [shape: f32[1,16], index: 4, kind: input, shape index: {}]
  %s5 = inlined_call_operand.hbm [shape: f32[2,16,16,16], index: 5, kind: output, shape index: {0}]
  %s6 = inlined_call_operand.hbm [shape: f32[2,2,16], index: 6, kind: output, shape index: {1}]
  %7 = xla_tuple %s5, %s6
  %s8 = sld [smem:[#allocation0]]
  $region85: #{bottleneck_forward.5} parent=0
    _
  %s10 = ssub.s32 1, %s8
  %s11 = scalar_select 0, %s10, %s8
  $region1: #{bottleneck_forward.5} parent=0
    #allocation3 [shape = 'u8[262144]{0}', space=vmem, size = 0x40000, scoped, tag = 'input window, operand 0']
    #allocation4 [shape = 's32[2]{0}', space=sflag, size = 0x8, scoped, tag = 'scoped memory for bottleneck_forward.5']
    #allocation5 [shape = 's32[2]{0}', space=sflag, size = 0x8, scoped, tag = 'scoped memory for bottleneck_forward.5']
    #allocation6 [shape = 'u8[512]{0}', space=vmem, size = 0x400, scoped, tag = 'input window, operand 1, single buffered']
    #allocation7 [shape = 's32[1]{0}', space=sflag, size = 0x4, scoped, tag = 'scoped memory for bottleneck_forward.5']
    #allocation8 [shape = 'u8[512]{0}', space=vmem, size = 0x400, scoped, tag = 'input window, operand 2, single buffered']
    #allocation9 [shape = 'u8[36864]{0}', space=vmem, size = 0x9000, scoped, tag = 'input window, operand 3, single buffered']
    #allocation10 [shape = 's32[1]{0}', space=sflag, size = 0x4, scoped, tag = 'scoped memory for bottleneck_forward.5']
    #allocation11 [shape = 'u8[512]{0}', space=vmem, size = 0x400, scoped, tag = 'input window, operand 4, single buffered']
    #allocation12 [shape = 'u8[262144]{0}', space=vmem, size = 0x40000, scoped, tag = 'output window, operand 0']
    #allocation13 [shape = 'u8[2048]{0}', space=vmem, size = 0x800, scoped, tag = 'output window, operand 1']
    #allocation14 [shape = 's32[2]{0}', space=sflag, size = 0x8, scoped, tag = 'scoped memory for bottleneck_forward.5']
    %12 = vsyncpa [#allocation4], 0
    %s13 = scalar_lea.sflag [#allocation4], 1
    %14 = vsyncpa %s13, 0
    %15 = vsyncpa [#allocation7], 0
    %16 = vsyncpa [#allocation10], 0
    %17 = vsyncpa [#allocation5], 0
    %s18 = scalar_lea.sflag [#allocation5], 1
    %19 = vsyncpa %s18, 0
    %20 = vsyncpa [#allocation14], 0
    %s21 = scalar_lea.sflag [#allocation14], 1
    %22 = vsyncpa %s21, 0
    loop: start=0, step=1, limit=4
    $region2: #{bottleneck_forward.5} parent=1 // loop_pre_header
      _
    $region3: #{bottleneck_forward.5} parent=1 // loop_header
      %s24 = sphi 0, %s28
      %p25 = scmp.ge.s32.totalorder %s24, 4
      %s31 = sphi 0, %s43
      %s32 = sphi 0, %s39
      %s33 = sphi 0, %s31
      %s34 = sphi 0, %s32
      %s35 = sphi 0, %s33
      %s36 = sphi 0, %s34
      %s46 = sphi 0, %s48
      %s49 = sphi 0, %s46
      %s50 = sphi 0, %s49
      %s66 = sphi 0, %s50
      %s70 = sphi 0, %s70
      %s72 = sphi 0, %s70
      %s73 = sphi 0, %s72
      %s87 = sphi 0, %s73
      %s91 = sphi 0, %s91
      %s93 = sphi 0, %s91
      %s94 = sphi 0, %s93
      %s108 = sphi 0, %s94
      %s114 = sphi 0, %s116
      %s117 = sphi 0, %s114
      %s118 = sphi 0, %s117
      %s134 = sphi 0, %s118
      %s140 = sphi 0, %s142
      %s143 = sphi 0, %s140
      %s144 = sphi 0, %s143
      %s160 = sphi 0, %s144
      %s168 = sphi 0, %s170
      %s171 = sphi 0, %s168
      %s172 = sphi 0, %s171
      %s188 = sphi 0, %s172
      %s196 = sphi 0, %s198
      %s199 = sphi 0, %s196
      %s200 = sphi 0, %s199
      %s216 = sphi 0, %s200
    $region4: #{bottleneck_forward.5} parent=1 // loop_header_branch
      %27 = sbr.rel (%p25) target = $region8
    $region5: #{bottleneck_forward.5} parent=1 // loop_body
      %s29 = ssub.s32 %s24, 1
      %s30 = ssub.s32 %s24, 2
      %s37 = sadd.s32 1, %s32
      %p38 = scmp.ge.s32.totalorder %s37, 1
      %s39 = scalar_select %p38, 0, %s37
      %s40 = sadd.s32 1, %s31
      %s41 = scalar_select %p38, %s40, %s31
      %p42 = scmp.ge.s32.totalorder %s41, 2
      %s43 = scalar_select %p42, 0, %s41
      %s44 = ssub.s32 %s31, %s43
      %p45 = scmp.eq.s32.totalorder %s44, 0
      %s47 = sadd.s32 %s46, 1
      %s48 = scalar_select %p45, %s46, %s47
      %p51 = pneg %p45
      %p52 = scmp.eq.s32.totalorder %s24, 1
      %p53 = por %p51, %p52
      %p54 = scmp.ne.s32.totalorder %s46, %s49
      %p55 = scmp.eq.s32.totalorder %s24, 0
      %p56 = por %p54, %p55
      %p57 = scmp.ne.s32.totalorder %s46, %s49
      %p58 = scmp.eq.s32.totalorder %s29, 1
      %p59 = por %p57, %p58
      %p60 = scmp.ne.s32.totalorder %s49, %s50
      %p61 = scmp.eq.s32.totalorder %s29, 0
      %p62 = por %p60, %p61
      %p63 = scmp.ne.s32.totalorder %s49, %s50
      %p64 = scmp.eq.s32.totalorder %s30, 1
      %p65 = por %p63, %p64
      %p67 = scmp.ne.s32.totalorder %s50, %s66
      %p68 = scmp.eq.s32.totalorder %s30, 0
      %p69 = por %p67, %p68
      %s71 = sadd.s32 %s70, 1
      %p74 = scmp.eq.s32.totalorder %s24, 1
      %p75 = scmp.ne.s32.totalorder %s70, %s72
      %p76 = scmp.eq.s32.totalorder %s24, 0
      %p77 = por %p75, %p76
      %p78 = scmp.ne.s32.totalorder %s70, %s72
      %p79 = scmp.eq.s32.totalorder %s29, 1
      %p80 = por %p78, %p79
      %p81 = scmp.ne.s32.totalorder %s72, %s73
      %p82 = scmp.eq.s32.totalorder %s29, 0
      %p83 = por %p81, %p82
      %p84 = scmp.ne.s32.totalorder %s72, %s73
      %p85 = scmp.eq.s32.totalorder %s30, 1
      %p86 = por %p84, %p85
      %p88 = scmp.ne.s32.totalorder %s73, %s87
      %p89 = scmp.eq.s32.totalorder %s30, 0
      %p90 = por %p88, %p89
      %s92 = sadd.s32 %s91, 1
      %p95 = scmp.eq.s32.totalorder %s24, 1
      %p96 = scmp.ne.s32.totalorder %s91, %s93
      %p97 = scmp.eq.s32.totalorder %s24, 0
      %p98 = por %p96, %p97
      %p99 = scmp.ne.s32.totalorder %s91, %s93
      %p100 = scmp.eq.s32.totalorder %s29, 1
      %p101 = por %p99, %p100
      %p102 = scmp.ne.s32.totalorder %s93, %s94
      %p103 = scmp.eq.s32.totalorder %s29, 0
      %p104 = por %p102, %p103
      %p105 = scmp.ne.s32.totalorder %s93, %s94
      %p106 = scmp.eq.s32.totalorder %s30, 1
      %p107 = por %p105, %p106
      %p109 = scmp.ne.s32.totalorder %s94, %s108
      %p110 = scmp.eq.s32.totalorder %s30, 0
      %p111 = por %p109, %p110
      %s112 = ssub.s32 %s32, %s39
      %p113 = scmp.eq.s32.totalorder %s112, 0
      %s115 = sadd.s32 %s114, 1
      %s116 = scalar_select %p113, %s114, %s115
      %p119 = pneg %p113
      %p120 = scmp.eq.s32.totalorder %s24, 1
      %p121 = por %p119, %p120
      %p122 = scmp.ne.s32.totalorder %s114, %s117
      %p123 = scmp.eq.s32.totalorder %s24, 0
      %p124 = por %p122, %p123
      %p125 = scmp.ne.s32.totalorder %s114, %s117
      %p126 = scmp.eq.s32.totalorder %s29, 1
      %p127 = por %p125, %p126
      %p128 = scmp.ne.s32.totalorder %s117, %s118
      %p129 = scmp.eq.s32.totalorder %s29, 0
      %p130 = por %p128, %p129
      %p131 = scmp.ne.s32.totalorder %s117, %s118
      %p132 = scmp.eq.s32.totalorder %s30, 1
      %p133 = por %p131, %p132
      %p135 = scmp.ne.s32.totalorder %s118, %s134
      %p136 = scmp.eq.s32.totalorder %s30, 0
      %p137 = por %p135, %p136
      %s138 = ssub.s32 %s32, %s39
      %p139 = scmp.eq.s32.totalorder %s138, 0
      %s141 = sadd.s32 %s140, 1
      %s142 = scalar_select %p139, %s140, %s141
      %p145 = pneg %p139
      %p146 = scmp.eq.s32.totalorder %s24, 1
      %p147 = por %p145, %p146
      %p148 = scmp.ne.s32.totalorder %s140, %s143
      %p149 = scmp.eq.s32.totalorder %s24, 0
      %p150 = por %p148, %p149
      %p151 = scmp.ne.s32.totalorder %s140, %s143
      %p152 = scmp.eq.s32.totalorder %s29, 1
      %p153 = por %p151, %p152
      %p154 = scmp.ne.s32.totalorder %s143, %s144
      %p155 = scmp.eq.s32.totalorder %s29, 0
      %p156 = por %p154, %p155
      %p157 = scmp.ne.s32.totalorder %s143, %s144
      %p158 = scmp.eq.s32.totalorder %s30, 1
      %p159 = por %p157, %p158
      %p161 = scmp.ne.s32.totalorder %s144, %s160
      %p162 = scmp.eq.s32.totalorder %s30, 0
      %p163 = por %p161, %p162
      %s164 = ssub.s32 %s31, %s43
      %s165 = ssub.s32 %s32, %s39
      %s166 = sor.u32 %s164, %s165
      %p167 = scmp.eq.s32.totalorder %s166, 0
      %s169 = sadd.s32 %s168, 1
      %s170 = scalar_select %p167, %s168, %s169
      %p173 = pneg %p167
      %p174 = scmp.eq.s32.totalorder %s24, 1
      %p175 = por %p173, %p174
      %p176 = scmp.ne.s32.totalorder %s168, %s171
      %p177 = scmp.eq.s32.totalorder %s24, 0
      %p178 = por %p176, %p177
      %p179 = scmp.ne.s32.totalorder %s168, %s171
      %p180 = scmp.eq.s32.totalorder %s29, 1
      %p181 = por %p179, %p180
      %p182 = scmp.ne.s32.totalorder %s171, %s172
      %p183 = scmp.eq.s32.totalorder %s29, 0
      %p184 = por %p182, %p183
      %p185 = scmp.ne.s32.totalorder %s171, %s172
      %p186 = scmp.eq.s32.totalorder %s30, 1
      %p187 = por %p185, %p186
      %p189 = scmp.ne.s32.totalorder %s172, %s188
      %p190 = scmp.eq.s32.totalorder %s30, 0
      %p191 = por %p189, %p190
      %s192 = ssub.s32 %s31, %s43
      %s193 = ssub.s32 %s32, %s39
      %s194 = sor.u32 %s192, %s193
      %p195 = scmp.eq.s32.totalorder %s194, 0
      %s197 = sadd.s32 %s196, 1
      %s198 = scalar_select %p195, %s196, %s197
      %p201 = pneg %p195
      %p202 = scmp.eq.s32.totalorder %s24, 1
      %p203 = por %p201, %p202
      %p204 = scmp.ne.s32.totalorder %s196, %s199
      %p205 = scmp.eq.s32.totalorder %s24, 0
      %p206 = por %p204, %p205
      %p207 = scmp.ne.s32.totalorder %s196, %s199
      %p208 = scmp.eq.s32.totalorder %s29, 1
      %p209 = por %p207, %p208
      %p210 = scmp.ne.s32.totalorder %s199, %s200
      %p211 = scmp.eq.s32.totalorder %s29, 0
      %p212 = por %p210, %p211
      %p213 = scmp.ne.s32.totalorder %s199, %s200
      %p214 = scmp.eq.s32.totalorder %s30, 1
      %p215 = por %p213, %p214
      %p217 = scmp.ne.s32.totalorder %s200, %s216
      %p218 = scmp.eq.s32.totalorder %s30, 0
      %p219 = por %p217, %p218
      %p220 = scmp.le.s32.totalorder 1, %s24
      %p221 = scmp.lt.s32.totalorder %s24, 3
      %p222 = pnand %p220, %p221
      %p223 = pneg %p222
      // Predicated region
      $region9: #{bottleneck_forward.5} parent=5 // pred_check
        _
      $region10: #{bottleneck_forward.5} parent=5 // pred_check_branch
        %225 = sbr.rel (%p222) target = $region12
      $region11: #{bottleneck_forward.5} parent=5 // pred_region
        %s226 = ssub.s32 %s24, 1
        // Predicated region
        $region13: #{bottleneck_forward.5} parent=11 // pred_check
          %p227 = pneg %p83
        $region14: #{bottleneck_forward.5} parent=11 // pred_check_branch
          %229 = sbr.rel (%p227) target = $region16
        $region15: #{bottleneck_forward.5} parent=11 // pred_region
          %s231 = ssub.s32 16, 16
          %232 = vsyncadd [#allocation7], %s231
          %s234 = sshll.u32 [#allocation6], 4
          %s235 = int_to_ptr.vmem [resolvable:$true] %s234
          %237 = dma.hbm_to_vmem [thread:$0]  %s1, 16, %s235, [#allocation7]
        $region16: #{bottleneck_forward.5} parent=11 // pred_fallthru
          _
        // Predicated region
        $region17: #{bottleneck_forward.5} parent=11 // pred_check
          %p238 = pneg %p104
        $region18: #{bottleneck_forward.5} parent=11 // pred_check_branch
          %240 = sbr.rel (%p238) target = $region20
        $region19: #{bottleneck_forward.5} parent=11 // pred_region
          %s242 = ssub.s32 16, 16
          %243 = vsyncadd [#allocation7], %s242
          %s245 = sshll.u32 [#allocation8], 4
          %s246 = int_to_ptr.vmem [resolvable:$true] %s245
          %248 = dma.hbm_to_vmem [thread:$0]  %s2, 16, %s246, [#allocation7]
        $region20: #{bottleneck_forward.5} parent=11 // pred_fallthru
          _
        // Predicated region
        $region21: #{bottleneck_forward.5} parent=11 // pred_check
          %p249 = pneg %p130
        $region22: #{bottleneck_forward.5} parent=11 // pred_check_branch
          %251 = sbr.rel (%p249) target = $region24
        $region23: #{bottleneck_forward.5} parent=11 // pred_region
          %s253 = ssub.s32 1152, 1152
          %254 = vsyncadd [#allocation10], %s253
          %s255 = smul.addr %s34, 64
          %s256 = scalar_lea.hbm %s3, %s255
          %s257 = sshll.u32 [#allocation9], 4
          %s258 = int_to_ptr.vmem [resolvable:$true] %s257
          %263 = dma.hbm_to_vmem [thread:$0]  %s256, 1152, %s258, [#allocation10], 64, 64, 4
        $region24: #{bottleneck_forward.5} parent=11 // pred_fallthru
          _
        // Predicated region
        $region25: #{bottleneck_forward.5} parent=11 // pred_check
          %p264 = pneg %p156
        $region26: #{bottleneck_forward.5} parent=11 // pred_check_branch
          %266 = sbr.rel (%p264) target = $region28
        $region27: #{bottleneck_forward.5} parent=11 // pred_region
          %s268 = ssub.s32 16, 16
          %269 = vsyncadd [#allocation10], %s268
          %s270 = smul.addr %s34, 16
          %s271 = scalar_lea.hbm %s4, %s270
          %s273 = sshll.u32 [#allocation11], 4
          %s274 = int_to_ptr.vmem [resolvable:$true] %s273
          %276 = dma.hbm_to_vmem [thread:$0]  %s271, 16, %s274, [#allocation10]
        $region28: #{bottleneck_forward.5} parent=11 // pred_fallthru
          _
      $region12: #{bottleneck_forward.5} parent=5 // pred_fallthru
        _
      %p277 = scmp.lt.s32.totalorder %s24, 2
      // Predicated region
      $region29: #{bottleneck_forward.5} parent=5 // pred_check
        %p278 = pneg %p277
      $region30: #{bottleneck_forward.5} parent=5 // pred_check_branch
        %280 = sbr.rel (%p278) target = $region32
      $region31: #{bottleneck_forward.5} parent=5 // pred_region
        // Predicated region
        $region33: #{bottleneck_forward.5} parent=31 // pred_check
          %p281 = pneg %p56
        $region34: #{bottleneck_forward.5} parent=31 // pred_check_branch
          %283 = sbr.rel (%p281) target = $region36
        $region35: #{bottleneck_forward.5} parent=31 // pred_region
          %s284 = sand.u32 %s46, 1
          %s285 = scalar_lea.sflag [#allocation4], %s284
          %s286 = sand.u32 %s46, 1
          %s287 = smul.addr %s286, 256
          %s288 = scalar_lea.vmem [#allocation3], %s287
          %s290 = ssub.s32 4096, 4096
          %291 = vsyncadd %s285, %s290
          %s292 = smul.addr %s31, 32
          %s293 = smul.addr %s292, 128
          %s294 = scalar_lea.hbm %s0, %s293
          %s295 = sshll.u32 %s288, 4
          %s296 = int_to_ptr.vmem [resolvable:$true] %s295
          %301 = dma.hbm_to_vmem [thread:$0]  %s294, 4096, %s296, %s285, 128, 128, 8
        $region36: #{bottleneck_forward.5} parent=31 // pred_fallthru
          _
      $region32: #{bottleneck_forward.5} parent=5 // pred_fallthru
        _
      %p302 = scmp.le.s32.totalorder 1, %s24
      %p303 = scmp.lt.s32.totalorder %s24, 3
      %p304 = pnand %p302, %p303
      %p305 = pneg %p304
      // Predicated region
      $region37: #{bottleneck_forward.5} parent=5 // pred_check
        _
      $region38: #{bottleneck_forward.5} parent=5 // pred_check_branch
        %307 = sbr.rel (%p304) target = $region40
      $region39: #{bottleneck_forward.5} parent=5 // pred_region
        %s308 = ssub.s32 %s24, 1
        %s309 = sand.u32 %s49, 1
        %s310 = scalar_lea.sflag [#allocation4], %s309
        %s311 = sand.u32 %s49, 1
        %s312 = smul.addr %s311, 256
        %s313 = scalar_lea.vmem [#allocation3], %s312
        // Predicated region
        $region41: #{bottleneck_forward.5} parent=39 // pred_check
          %p314 = pneg %p62
        $region42: #{bottleneck_forward.5} parent=39 // pred_check_branch
          %316 = sbr.rel (%p314) target = $region44
        $region43: #{bottleneck_forward.5} parent=39 // pred_region
          %317 = dma.done %s310, 4096
        $region44: #{bottleneck_forward.5} parent=39 // pred_fallthru
          _
        // Predicated region
        $region45: #{bottleneck_forward.5} parent=39 // pred_check
          %p318 = pneg %p83
        $region46: #{bottleneck_forward.5} parent=39 // pred_check_branch
          %320 = sbr.rel (%p318) target = $region48
        $region47: #{bottleneck_forward.5} parent=39 // pred_region
          %321 = dma.done [#allocation7], 16
        $region48: #{bottleneck_forward.5} parent=39 // pred_fallthru
          _
        // Predicated region
        $region49: #{bottleneck_forward.5} parent=39 // pred_check
          %p322 = pneg %p104
        $region50: #{bottleneck_forward.5} parent=39 // pred_check_branch
          %324 = sbr.rel (%p322) target = $region52
        $region51: #{bottleneck_forward.5} parent=39 // pred_region
          %325 = dma.done [#allocation7], 16
        $region52: #{bottleneck_forward.5} parent=39 // pred_fallthru
          _
        // Predicated region
        $region53: #{bottleneck_forward.5} parent=39 // pred_check
          %p326 = pneg %p130
        $region54: #{bottleneck_forward.5} parent=39 // pred_check_branch
          %328 = sbr.rel (%p326) target = $region56
        $region55: #{bottleneck_forward.5} parent=39 // pred_region
          %329 = dma.done [#allocation10], 1152
        $region56: #{bottleneck_forward.5} parent=39 // pred_fallthru
          _
        // Predicated region
        $region57: #{bottleneck_forward.5} parent=39 // pred_check
          %p330 = pneg %p156
        $region58: #{bottleneck_forward.5} parent=39 // pred_check_branch
          %332 = sbr.rel (%p330) target = $region60
        $region59: #{bottleneck_forward.5} parent=39 // pred_region
          %333 = dma.done [#allocation10], 16
        $region60: #{bottleneck_forward.5} parent=39 // pred_fallthru
          _
        %s334 = sand.u32 %s49, 1
        %s335 = scalar_lea.sflag [#allocation4], %s334
        %s336 = sand.u32 %s49, 1
        %s337 = smul.addr %s336, 256
        %s338 = scalar_lea.vmem [#allocation3], %s337
        %p339 = pneg %p62
        %p340 = pneg %p59
        %p341 = pneg %p83
        %p342 = pneg %p80
        %p343 = pneg %p104
        %p344 = pneg %p101
        %p345 = pneg %p130
        %p346 = pneg %p127
        %p347 = pneg %p156
        %p348 = pneg %p153
        %p349 = pneg %p184
        %p350 = pneg %p181
        %s351 = sand.u32 %s171, 1
        %s352 = scalar_lea.sflag [#allocation5], %s351
        %s353 = sand.u32 %s171, 1
        %s354 = smul.addr %s353, 256
        %s355 = scalar_lea.vmem [#allocation12], %s354
        %p356 = pneg %p212
        %p357 = pneg %p209
        %s358 = sand.u32 %s199, 1
        %s359 = scalar_lea.sflag [#allocation14], %s358
        %s360 = sand.u32 %s199, 1
        %s361 = smul.addr %s360, 2
        %s362 = scalar_lea.vmem [#allocation13], %s361
        %p364 = scmp.eq.s32.totalorder %s34, 0
        // Predicated region
        $region61: #{bottleneck_forward.5} parent=39 // pred_check
          %p365 = pneg %p364
        $region62: #{bottleneck_forward.5} parent=39 // pred_check_branch
          %367 = sbr.rel (%p365) target = $region64
        $region63: #{bottleneck_forward.5} parent=39 // pred_region
          %vm368 = vcmask 130048
          %369 = vst.msk [vmem:[#allocation2] sm:$0xff] %vm368, 0.0
          %370 = vst.msk [vmem:[#allocation2 + $0x8] sm:$0xff] %vm368, 0.0
          %vm371 = vcmask 123904
          %372 = vst.msk [vmem:[#allocation2 + $0x10] sm:$0x3] %vm371, 0.0
          %s373 = scalar_lea.vmem [#allocation2], 408
          %374 = vst.msk [vmem:[%s373] sm:$0xff] %vm368, 0.0
          %375 = vst.msk [vmem:[%s373 + $0x8] sm:$0xff] %vm368, 0.0
          %376 = vst.msk [vmem:[%s373 + $0x10] sm:$0x3] %vm371, 0.0
          %vm377 = vcmask 122880
          %378 = vst.msk [vmem:[#allocation2] sm:$0x1] %vm377, 0.0
          %379 = vst.msk [vmem:[#allocation2 + $0x18] sm:$0x1] %vm377, 0.0
          %380 = vst.msk [vmem:[#allocation2 + $0x30] sm:$0x1] %vm377, 0.0
          %381 = vst.msk [vmem:[#allocation2 + $0x48] sm:$0x1] %vm377, 0.0
          %382 = vst.msk [vmem:[#allocation2 + $0x60] sm:$0x1] %vm377, 0.0
          %383 = vst.msk [vmem:[#allocation2 + $0x78] sm:$0x1] %vm377, 0.0
          %384 = vst.msk [vmem:[#allocation2 + $0x90] sm:$0x1] %vm377, 0.0
          %385 = vst.msk [vmem:[#allocation2 + $0xa8] sm:$0x1] %vm377, 0.0
          %386 = vst.msk [vmem:[#allocation2 + $0xc0] sm:$0x1] %vm377, 0.0
          %387 = vst.msk [vmem:[#allocation2 + $0xd8] sm:$0x1] %vm377, 0.0
          %388 = vst.msk [vmem:[#allocation2 + $0xf0] sm:$0x1] %vm377, 0.0
          %389 = vst.msk [vmem:[#allocation2 + $0x108] sm:$0x1] %vm377, 0.0
          %390 = vst.msk [vmem:[#allocation2 + $0x120] sm:$0x1] %vm377, 0.0
          %391 = vst.msk [vmem:[#allocation2 + $0x138] sm:$0x1] %vm377, 0.0
          %392 = vst.msk [vmem:[#allocation2 + $0x150] sm:$0x1] %vm377, 0.0
          %393 = vst.msk [vmem:[#allocation2 + $0x168] sm:$0x1] %vm377, 0.0
          %394 = vst.msk [vmem:[#allocation2 + $0x180] sm:$0x1] %vm377, 0.0
          %395 = vst.msk [vmem:[#allocation2 + $0x198] sm:$0x1] %vm377, 0.0
          %396 = vst.msk [vmem:[#allocation2 + $0x11] sm:$0x1] %vm377, 0.0
          %397 = vst.msk [vmem:[#allocation2 + $0x29] sm:$0x1] %vm377, 0.0
          %398 = vst.msk [vmem:[#allocation2 + $0x41] sm:$0x1] %vm377, 0.0
          %399 = vst.msk [vmem:[#allocation2 + $0x59] sm:$0x1] %vm377, 0.0
          %400 = vst.msk [vmem:[#allocation2 + $0x71] sm:$0x1] %vm377, 0.0
          %401 = vst.msk [vmem:[#allocation2 + $0x89] sm:$0x1] %vm377, 0.0
          %402 = vst.msk [vmem:[#allocation2 + $0xa1] sm:$0x1] %vm377, 0.0
          %403 = vst.msk [vmem:[#allocation2 + $0xb9] sm:$0x1] %vm377, 0.0
          %404 = vst.msk [vmem:[#allocation2 + $0xd1] sm:$0x1] %vm377, 0.0
          %405 = vst.msk [vmem:[#allocation2 + $0xe9] sm:$0x1] %vm377, 0.0
          %406 = vst.msk [vmem:[#allocation2 + $0x101] sm:$0x1] %vm377, 0.0
          %407 = vst.msk [vmem:[#allocation2 + $0x119] sm:$0x1] %vm377, 0.0
          %408 = vst.msk [vmem:[#allocation2 + $0x131] sm:$0x1] %vm377, 0.0
          %409 = vst.msk [vmem:[#allocation2 + $0x149] sm:$0x1] %vm377, 0.0
          %410 = vst.msk [vmem:[#allocation2 + $0x161] sm:$0x1] %vm377, 0.0
          %411 = vst.msk [vmem:[#allocation2 + $0x179] sm:$0x1] %vm377, 0.0
          %412 = vst.msk [vmem:[#allocation2 + $0x191] sm:$0x1] %vm377, 0.0
          %413 = vst.msk [vmem:[#allocation2 + $0x1a9] sm:$0x1] %vm377, 0.0
          %v414 = vld [vmem:[%s313] sm:$0xff]
          %v415 = vld [vmem:[%s313 + $0x8] sm:$0xff]
          %v416 = vld [vmem:[%s313 + $0x10] sm:$0xff]
          %v417 = vld [vmem:[%s313 + $0x18] sm:$0xff]
          %v418 = vld [vmem:[%s313 + $0x20] sm:$0xff]
          %v419 = vld [vmem:[%s313 + $0x28] sm:$0xff]
          %v420 = vld [vmem:[%s313 + $0x30] sm:$0xff]
          %v421 = vld [vmem:[%s313 + $0x38] sm:$0xff]
          %v422 = vld [vmem:[%s313 + $0x40] sm:$0xff]
          %v423 = vld [vmem:[%s313 + $0x48] sm:$0xff]
          %v424 = vld [vmem:[%s313 + $0x50] sm:$0xff]
          %v425 = vld [vmem:[%s313 + $0x58] sm:$0xff]
          %v426 = vld [vmem:[%s313 + $0x60] sm:$0xff]
          %v427 = vld [vmem:[%s313 + $0x68] sm:$0xff]
          %v428 = vld [vmem:[%s313 + $0x70] sm:$0xff]
          %v429 = vld [vmem:[%s313 + $0x78] sm:$0xff]
          %v430 = vld [vmem:[%s313 + $0x80] sm:$0xff]
          %v431 = vld [vmem:[%s313 + $0x88] sm:$0xff]
          %v432 = vld [vmem:[%s313 + $0x90] sm:$0xff]
          %v433 = vld [vmem:[%s313 + $0x98] sm:$0xff]
          %v434 = vld [vmem:[%s313 + $0xa0] sm:$0xff]
          %v435 = vld [vmem:[%s313 + $0xa8] sm:$0xff]
          %v436 = vld [vmem:[%s313 + $0xb0] sm:$0xff]
          %v437 = vld [vmem:[%s313 + $0xb8] sm:$0xff]
          %v438 = vld [vmem:[%s313 + $0xc0] sm:$0xff]
          %v439 = vld [vmem:[%s313 + $0xc8] sm:$0xff]
          %v440 = vld [vmem:[%s313 + $0xd0] sm:$0xff]
          %v441 = vld [vmem:[%s313 + $0xd8] sm:$0xff]
          %v442 = vld [vmem:[%s313 + $0xe0] sm:$0xff]
          %v443 = vld [vmem:[%s313 + $0xe8] sm:$0xff]
          %v444 = vld [vmem:[%s313 + $0xf0] sm:$0xff]
          %v445 = vld [vmem:[%s313 + $0xf8] sm:$0xff]
          %v446 = vld [vmem:[#allocation6] sm:$0x1]
          %v448 = vlaneseq
          %v449 = vshrl.u32 %v448, 7
          %v450 = vsub.s32 0, %v449
          %v451 = vrot.slane %v446, %v450
          %v453 = vmul.f32 %v414, %v451
          %v454 = vmul.f32 %v415, %v451
          %v455 = vmul.f32 %v416, %v451
          %v456 = vmul.f32 %v417, %v451
          %v457 = vmul.f32 %v418, %v451
          %v458 = vmul.f32 %v419, %v451
          %v459 = vmul.f32 %v420, %v451
          %v460 = vmul.f32 %v421, %v451
          %v461 = vmul.f32 %v422, %v451
          %v462 = vmul.f32 %v423, %v451
          %v463 = vmul.f32 %v424, %v451
          %v464 = vmul.f32 %v425, %v451
          %v465 = vmul.f32 %v426, %v451
          %v466 = vmul.f32 %v427, %v451
          %v467 = vmul.f32 %v428, %v451
          %v468 = vmul.f32 %v429, %v451
          %v469 = vmul.f32 %v430, %v451
          %v470 = vmul.f32 %v431, %v451
          %v471 = vmul.f32 %v432, %v451
          %v472 = vmul.f32 %v433, %v451
          %v473 = vmul.f32 %v434, %v451
          %v474 = vmul.f32 %v435, %v451
          %v475 = vmul.f32 %v436, %v451
          %v476 = vmul.f32 %v437, %v451
          %v477 = vmul.f32 %v438, %v451
          %v478 = vmul.f32 %v439, %v451
          %v479 = vmul.f32 %v440, %v451
          %v480 = vmul.f32 %v441, %v451
          %v481 = vmul.f32 %v442, %v451
          %v482 = vmul.f32 %v443, %v451
          %v483 = vmul.f32 %v444, %v451
          %v484 = vmul.f32 %v445, %v451
          %v485 = vld [vmem:[#allocation8] sm:$0x1]
          %v487 = vlaneseq
          %v488 = vshrl.u32 %v487, 7
          %v489 = vsub.s32 0, %v488
          %v490 = vrot.slane %v485, %v489
          %v492 = vadd.f32 %v453, %v490
          %v493 = vadd.f32 %v454, %v490
          %v494 = vadd.f32 %v455, %v490
          %v495 = vadd.f32 %v456, %v490
          %v496 = vadd.f32 %v457, %v490
          %v497 = vadd.f32 %v458, %v490
          %v498 = vadd.f32 %v459, %v490
          %v499 = vadd.f32 %v460, %v490
          %v500 = vadd.f32 %v461, %v490
          %v501 = vadd.f32 %v462, %v490
          %v502 = vadd.f32 %v463, %v490
          %v503 = vadd.f32 %v464, %v490
          %v504 = vadd.f32 %v465, %v490
          %v505 = vadd.f32 %v466, %v490
          %v506 = vadd.f32 %v467, %v490
          %v507 = vadd.f32 %v468, %v490
          %v508 = vadd.f32 %v469, %v490
          %v509 = vadd.f32 %v470, %v490
          %v510 = vadd.f32 %v471, %v490
          %v511 = vadd.f32 %v472, %v490
          %v512 = vadd.f32 %v473, %v490
          %v513 = vadd.f32 %v474, %v490
          %v514 = vadd.f32 %v475, %v490
          %v515 = vadd.f32 %v476, %v490
          %v516 = vadd.f32 %v477, %v490
          %v517 = vadd.f32 %v478, %v490
          %v518 = vadd.f32 %v479, %v490
          %v519 = vadd.f32 %v480, %v490
          %v520 = vadd.f32 %v481, %v490
          %v521 = vadd.f32 %v482, %v490
          %v522 = vadd.f32 %v483, %v490
          %v523 = vadd.f32 %v484, %v490
          %v524 = vmax.f32 %v492, 0.0
          %v525 = vmax.f32 %v493, 0.0
          %v526 = vmax.f32 %v494, 0.0
          %v527 = vmax.f32 %v495, 0.0
          %v528 = vmax.f32 %v496, 0.0
          %v529 = vmax.f32 %v497, 0.0
          %v530 = vmax.f32 %v498, 0.0
          %v531 = vmax.f32 %v499, 0.0
          %v532 = vmax.f32 %v500, 0.0
          %v533 = vmax.f32 %v501, 0.0
          %v534 = vmax.f32 %v502, 0.0
          %v535 = vmax.f32 %v503, 0.0
          %v536 = vmax.f32 %v504, 0.0
          %v537 = vmax.f32 %v505, 0.0
          %v538 = vmax.f32 %v506, 0.0
          %v539 = vmax.f32 %v507, 0.0
          %v540 = vmax.f32 %v508, 0.0
          %v541 = vmax.f32 %v509, 0.0
          %v542 = vmax.f32 %v510, 0.0
          %v543 = vmax.f32 %v511, 0.0
          %v544 = vmax.f32 %v512, 0.0
          %v545 = vmax.f32 %v513, 0.0
          %v546 = vmax.f32 %v514, 0.0
          %v547 = vmax.f32 %v515, 0.0
          %v548 = vmax.f32 %v516, 0.0
          %v549 = vmax.f32 %v517, 0.0
          %v550 = vmax.f32 %v518, 0.0
          %v551 = vmax.f32 %v519, 0.0
          %v552 = vmax.f32 %v520, 0.0
          %v553 = vmax.f32 %v521, 0.0
          %v554 = vmax.f32 %v522, 0.0
          %v555 = vmax.f32 %v523, 0.0
          %s556 = scalar_lea.vmem [#allocation2], 24
          %557 = vst.msk [vmem:[%s556 + $0x1] sm:$0xff] %vm368, %v524
          %558 = vst.msk [vmem:[%s556 + $0x9] sm:$0xff] %vm368, %v525
          %559 = vst.msk [vmem:[%s556 + $0x19] sm:$0xff] %vm368, %v526
          %560 = vst.msk [vmem:[%s556 + $0x21] sm:$0xff] %vm368, %v527
          %561 = vst.msk [vmem:[%s556 + $0x31] sm:$0xff] %vm368, %v528
          %562 = vst.msk [vmem:[%s556 + $0x39] sm:$0xff] %vm368, %v529
          %563 = vst.msk [vmem:[%s556 + $0x49] sm:$0xff] %vm368, %v530
          %564 = vst.msk [vmem:[%s556 + $0x51] sm:$0xff] %vm368, %v531
          %565 = vst.msk [vmem:[%s556 + $0x61] sm:$0xff] %vm368, %v532
          %566 = vst.msk [vmem:[%s556 + $0x69] sm:$0xff] %vm368, %v533
          %567 = vst.msk [vmem:[%s556 + $0x79] sm:$0xff] %vm368, %v534
          %568 = vst.msk [vmem:[%s556 + $0x81] sm:$0xff] %vm368, %v535
          %569 = vst.msk [vmem:[%s556 + $0x91] sm:$0xff] %vm368, %v536
          %570 = vst.msk [vmem:[%s556 + $0x99] sm:$0xff] %vm368, %v537
          %571 = vst.msk [vmem:[%s556 + $0xa9] sm:$0xff] %vm368, %v538
          %572 = vst.msk [vmem:[%s556 + $0xb1] sm:$0xff] %vm368, %v539
          %573 = vst.msk [vmem:[%s556 + $0xc1] sm:$0xff] %vm368, %v540
          %574 = vst.msk [vmem:[%s556 + $0xc9] sm:$0xff] %vm368, %v541
          %575 = vst.msk [vmem:[%s556 + $0xd9] sm:$0xff] %vm368, %v542
          %576 = vst.msk [vmem:[%s556 + $0xe1] sm:$0xff] %vm368, %v543
          %577 = vst.msk [vmem:[%s556 + $0xf1] sm:$0xff] %vm368, %v544
          %578 = vst.msk [vmem:[%s556 + $0xf9] sm:$0xff] %vm368, %v545
          %579 = vst.msk [vmem:[%s556 + $0x109] sm:$0xff] %vm368, %v546
          %580 = vst.msk [vmem:[%s556 + $0x111] sm:$0xff] %vm368, %v547
          %581 = vst.msk [vmem:[%s556 + $0x121] sm:$0xff] %vm368, %v548
          %582 = vst.msk [vmem:[%s556 + $0x129] sm:$0xff] %vm368, %v549
          %583 = vst.msk [vmem:[%s556 + $0x139] sm:$0xff] %vm368, %v550
          %584 = vst.msk [vmem:[%s556 + $0x141] sm:$0xff] %vm368, %v551
          %585 = vst.msk [vmem:[%s556 + $0x151] sm:$0xff] %vm368, %v552
          %586 = vst.msk [vmem:[%s556 + $0x159] sm:$0xff] %vm368, %v553
          %587 = vst.msk [vmem:[%s556 + $0x169] sm:$0xff] %vm368, %v554
          %588 = vst.msk [vmem:[%s556 + $0x171] sm:$0xff] %vm368, %v555
        $region64: #{bottleneck_forward.5} parent=39 // pred_fallthru
          _
        %v589 = vld [vmem:[#allocation2] sm:$0xff]
        %v590 = vld [vmem:[#allocation2 + $0x8] sm:$0xff]
        %v591 = vld [vmem:[#allocation2 + $0x18] sm:$0xff]
        %v592 = vld [vmem:[#allocation2 + $0x20] sm:$0xff]
        %v593 = vld [vmem:[#allocation2 + $0x30] sm:$0xff]
        %v594 = vld [vmem:[#allocation2 + $0x38] sm:$0xff]
        %v595 = vld [vmem:[#allocation2 + $0x48] sm:$0xff]
        %v596 = vld [vmem:[#allocation2 + $0x50] sm:$0xff]
        %v597 = vld [vmem:[#allocation2 + $0x60] sm:$0xff]
        %v598 = vld [vmem:[#allocation2 + $0x68] sm:$0xff]
        %v599 = vld [vmem:[#allocation2 + $0x78] sm:$0xff]
        %v600 = vld [vmem:[#allocation2 + $0x80] sm:$0xff]
        %v601 = vld [vmem:[#allocation2 + $0x90] sm:$0xff]
        %v602 = vld [vmem:[#allocation2 + $0x98] sm:$0xff]
        %v603 = vld [vmem:[#allocation2 + $0xa8] sm:$0xff]
        %v604 = vld [vmem:[#allocation2 + $0xb0] sm:$0xff]
        %v605 = vld [vmem:[#allocation2 + $0xc0] sm:$0xff]
        %v606 = vld [vmem:[#allocation2 + $0xc8] sm:$0xff]
        %v607 = vld [vmem:[#allocation2 + $0xd8] sm:$0xff]
        %v608 = vld [vmem:[#allocation2 + $0xe0] sm:$0xff]
        %v609 = vld [vmem:[#allocation2 + $0xf0] sm:$0xff]
        %v610 = vld [vmem:[#allocation2 + $0xf8] sm:$0xff]
        %v611 = vld [vmem:[#allocation2 + $0x108] sm:$0xff]
        %v612 = vld [vmem:[#allocation2 + $0x110] sm:$0xff]
        %v613 = vld [vmem:[#allocation2 + $0x120] sm:$0xff]
        %v614 = vld [vmem:[#allocation2 + $0x128] sm:$0xff]
        %v615 = vld [vmem:[#allocation2 + $0x138] sm:$0xff]
        %v616 = vld [vmem:[#allocation2 + $0x140] sm:$0xff]
        %v617 = vld [vmem:[#allocation2 + $0x150] sm:$0xff]
        %v618 = vld [vmem:[#allocation2 + $0x158] sm:$0xff]
        %v619 = vld [vmem:[#allocation2 + $0x168] sm:$0xff]
        %v620 = vld [vmem:[#allocation2 + $0x170] sm:$0xff]
        %v621 = vpack.c.bf16 %v590, %v589
        %v622 = vpack.c.bf16 %v592, %v591
        %v623 = vpack.c.bf16 %v594, %v593
        %v624 = vpack.c.bf16 %v596, %v595
        %v625 = vpack.c.bf16 %v598, %v597
        %v626 = vpack.c.bf16 %v600, %v599
        %v627 = vpack.c.bf16 %v602, %v601
        %v628 = vpack.c.bf16 %v604, %v603
        %v629 = vpack.c.bf16 %v606, %v605
        %v630 = vpack.c.bf16 %v608, %v607
        %v631 = vpack.c.bf16 %v610, %v609
        %v632 = vpack.c.bf16 %v612, %v611
        %v633 = vpack.c.bf16 %v614, %v613
        %v634 = vpack.c.bf16 %v616, %v615
        %v635 = vpack.c.bf16 %v618, %v617
        %v636 = vpack.c.bf16 %v620, %v619
        %v637 = vld [vmem:[#allocation9] sm:$0xf]
        %v638 = vld [vmem:[#allocation9 + $0x4] sm:$0xf]
        %v639 = vld [vmem:[#allocation2 + $0x1] sm:$0xff]
        %v640 = vld [vmem:[#allocation2 + $0x9] sm:$0xff]
        %v641 = vld [vmem:[#allocation2 + $0x19] sm:$0xff]
        %v642 = vld [vmem:[#allocation2 + $0x21] sm:$0xff]
        %v643 = vld [vmem:[#allocation2 + $0x31] sm:$0xff]
        %v644 = vld [vmem:[#allocation2 + $0x39] sm:$0xff]
        %v645 = vld [vmem:[#allocation2 + $0x49] sm:$0xff]
        %v646 = vld [vmem:[#allocation2 + $0x51] sm:$0xff]
        %v647 = vld [vmem:[#allocation2 + $0x61] sm:$0xff]
        %v648 = vld [vmem:[#allocation2 + $0x69] sm:$0xff]
        %v649 = vld [vmem:[#allocation2 + $0x79] sm:$0xff]
        %v650 = vld [vmem:[#allocation2 + $0x81] sm:$0xff]
        %v651 = vld [vmem:[#allocation2 + $0x91] sm:$0xff]
        %v652 = vld [vmem:[#allocation2 + $0x99] sm:$0xff]
        %v653 = vld [vmem:[#allocation2 + $0xa9] sm:$0xff]
        %v654 = vld [vmem:[#allocation2 + $0xb1] sm:$0xff]
        %v655 = vld [vmem:[#allocation2 + $0xc1] sm:$0xff]
        %v656 = vld [vmem:[#allocation2 + $0xc9] sm:$0xff]
        %v657 = vld [vmem:[#allocation2 + $0xd9] sm:$0xff]
        %v658 = vld [vmem:[#allocation2 + $0xe1] sm:$0xff]
        %v659 = vld [vmem:[#allocation2 + $0xf1] sm:$0xff]
        %v660 = vld [vmem:[#allocation2 + $0xf9] sm:$0xff]
        %v661 = vld [vmem:[#allocation2 + $0x109] sm:$0xff]
        %v662 = vld [vmem:[#allocation2 + $0x111] sm:$0xff]
        %v663 = vld [vmem:[#allocation2 + $0x121] sm:$0xff]
        %v664 = vld [vmem:[#allocation2 + $0x129] sm:$0xff]
        %v665 = vld [vmem:[#allocation2 + $0x139] sm:$0xff]
        %v666 = vld [vmem:[#allocation2 + $0x141] sm:$0xff]
        %v667 = vld [vmem:[#allocation2 + $0x151] sm:$0xff]
        %v668 = vld [vmem:[#allocation2 + $0x159] sm:$0xff]
        %v669 = vld [vmem:[#allocation2 + $0x169] sm:$0xff]
        %v670 = vld [vmem:[#allocation2 + $0x171] sm:$0xff]
        %v671 = vpack.c.bf16 %v640, %v639
        %v672 = vpack.c.bf16 %v642, %v641
        %v673 = vpack.c.bf16 %v644, %v643
        %v674 = vpack.c.bf16 %v646, %v645
        %v675 = vpack.c.bf16 %v648, %v647
        %v676 = vpack.c.bf16 %v650, %v649
        %v677 = vpack.c.bf16 %v652, %v651
        %v678 = vpack.c.bf16 %v654, %v653
        %v679 = vpack.c.bf16 %v656, %v655
        %v680 = vpack.c.bf16 %v658, %v657
        %v681 = vpack.c.bf16 %v660, %v659
        %v682 = vpack.c.bf16 %v662, %v661
        %v683 = vpack.c.bf16 %v664, %v663
        %v684 = vpack.c.bf16 %v666, %v665
        %v685 = vpack.c.bf16 %v668, %v667
        %v686 = vpack.c.bf16 %v670, %v669
        %s687 = scalar_lea.vmem [#allocation9], 8
        %v688 = vld [vmem:[%s687] sm:$0xf]
        %v689 = vld [vmem:[%s687 + $0x4] sm:$0xf]
        %v692 = vunpack.c.l.b16 %v688
        %v693 = vunpack.c.l.b16 %v689
        %v694 = vpack.c.b16 %v693, %v692
        %vm696 = vcmask 130048
        %v698 = vsel %vm696, %v671, 0
        %v701 = vsel %vm696, %v672, 0
        %v704 = vsel %vm696, %v673, 0
        %v707 = vsel %vm696, %v674, 0
        %v710 = vsel %vm696, %v675, 0
        %v713 = vsel %vm696, %v676, 0
        %v716 = vsel %vm696, %v677, 0
        %v719 = vsel %vm696, %v678, 0
        %v722 = vsel %vm696, %v679, 0
        %v725 = vsel %vm696, %v680, 0
        %v728 = vsel %vm696, %v681, 0
        %v731 = vsel %vm696, %v682, 0
        %v734 = vsel %vm696, %v683, 0
        %v737 = vsel %vm696, %v684, 0
        %v740 = vsel %vm696, %v685, 0
        %v743 = vsel %vm696, %v686, 0
        %745 = vmatprep.subr.bf16.mxu0 0
        %746 = vmatpush1.bf16.msra.mxu0 %v694
        %747 = vmatprep.subr.bf16.mxu0 0
        %748 = vmatpush1.bf16.msra.mxu0 0
        %749 = vmatprep.subr.bf16.mxu0 0
        %750 = vmatpush1.bf16.msra.mxu0 0
        %751 = vmatprep.subr.bf16.mxu0 0
        %752 = vmatpush1.bf16.msra.mxu0 0
        %753 = vmatprep.subr.bf16.mxu0 0
        %754 = vmatpush1.bf16.msra.mxu0 0
        %755 = vmatprep.subr.bf16.mxu0 0
        %756 = vmatpush1.bf16.msra.mxu0 0
        %757 = vmatprep.subr.bf16.mxu0 0
        %758 = vmatpush1.bf16.msra.mxu0 0
        %759 = vmatprep.subr.bf16.mxu0 0
        %760 = vmatpush1.bf16.msra.mxu0 0
        %761 = vmatprep.subr.bf16.mxu0 0
        %762 = vmatpush1.bf16.msra.mxu0 0
        %763 = vmatprep.subr.bf16.mxu0 0
        %764 = vmatpush1.bf16.msra.mxu0 0
        %765 = vmatprep.subr.bf16.mxu0 0
        %766 = vmatpush1.bf16.msra.mxu0 0
        %767 = vmatprep.subr.bf16.mxu0 0
        %768 = vmatpush1.bf16.msra.mxu0 0
        %769 = vmatprep.subr.bf16.mxu0 0
        %770 = vmatpush1.bf16.msra.mxu0 0
        %771 = vmatprep.subr.bf16.mxu0 0
        %772 = vmatpush1.bf16.msra.mxu0 0
        %773 = vmatprep.subr.bf16.mxu0 0
        %774 = vmatpush1.bf16.msra.mxu0 0
        %775 = vmatprep.subr.bf16.mxu0 0
        %776 = vmatpush1.bf16.msra.mxu0 0
        %777 = vmatprep.mubr.bf16.mxu0 0
        %778 = vmatmul.mubr.bf16.gmra.mrb[0].mxu0 %v698
        %v779 = vpop.f32.mrb[0].mxu0
        %v780 = vadd.f32 0.0, %v779
        %v781 = vpop.f32.mrb[0].mxu0
        %v782 = vpop.f32.mrb[0].mxu0
        %v783 = vadd.f32 0.0, %v782
        %v784 = vpop.f32.mrb[0].mxu0
        %785 = vmatprep.mubr.bf16.mxu0 0
        %786 = vmatmul.mubr.bf16.gmra.mrb[0].mxu0 %v701
        %v787 = vpop.f32.mrb[0].mxu0
        %v788 = vadd.f32 0.0, %v787
        %v789 = vpop.f32.mrb[0].mxu0
        %v790 = vpop.f32.mrb[0].mxu0
        %v791 = vadd.f32 0.0, %v790
        %v792 = vpop.f32.mrb[0].mxu0
        %793 = vmatprep.mubr.bf16.mxu0 0
        %794 = vmatmul.mubr.bf16.gmra.mrb[0].mxu0 %v704
        %v795 = vpop.f32.mrb[0].mxu0
        %v796 = vadd.f32 0.0, %v795
        %v797 = vpop.f32.mrb[0].mxu0
        %v798 = vpop.f32.mrb[0].mxu0
        %v799 = vadd.f32 0.0, %v798
        %v800 = vpop.f32.mrb[0].mxu0
        %801 = vmatprep.mubr.bf16.mxu0 0
        %802 = vmatmul.mubr.bf16.gmra.mrb[0].mxu0 %v707
        %v803 = vpop.f32.mrb[0].mxu0
        %v804 = vadd.f32 0.0, %v803
        %v805 = vpop.f32.mrb[0].mxu0
        %v806 = vpop.f32.mrb[0].mxu0
        %v807 = vadd.f32 0.0, %v806
        %v808 = vpop.f32.mrb[0].mxu0
        %809 = vmatprep.mubr.bf16.mxu0 0
        %810 = vmatmul.mubr.bf16.gmra.mrb[0].mxu0 %v710
        %v811 = vpop.f32.mrb[0].mxu0
        %v812 = vadd.f32 0.0, %v811
        %v813 = vpop.f32.mrb[0].mxu0
        %v814 = vpop.f32.mrb[0].mxu0
        %v815 = vadd.f32 0.0, %v814
        %v816 = vpop.f32.mrb[0].mxu0
        %817 = vmatprep.mubr.bf16.mxu0 0
        %818 = vmatmul.mubr.bf16.gmra.mrb[0].mxu0 %v713
        %v819 = vpop.f32.mrb[0].mxu0
        %v820 = vadd.f32 0.0, %v819
        %v821 = vpop.f32.mrb[0].mxu0
        %v822 = vpop.f32.mrb[0].mxu0
        %v823 = vadd.f32 0.0, %v822
        %v824 = vpop.f32.mrb[0].mxu0
        %825 = vmatprep.mubr.bf16.mxu0 0
        %826 = vmatmul.mubr.bf16.gmra.mrb[0].mxu0 %v716
        %v827 = vpop.f32.mrb[0].mxu0
        %v828 = vadd.f32 0.0, %v827
        %v829 = vpop.f32.mrb[0].mxu0
        %v830 = vpop.f32.mrb[0].mxu0
        %v831 = vadd.f32 0.0, %v830
        %v832 = vpop.f32.mrb[0].mxu0
        %833 = vmatprep.mubr.bf16.mxu0 0
        %834 = vmatmul.mubr.bf16.gmra.mrb[0].mxu0 %v719
        %v835 = vpop.f32.mrb[0].mxu0
        %v836 = vadd.f32 0.0, %v835
        %v837 = vpop.f32.mrb[0].mxu0
        %v838 = vpop.f32.mrb[0].mxu0
        %v839 = vadd.f32 0.0, %v838
        %v840 = vpop.f32.mrb[0].mxu0
        %841 = vmatprep.mubr.bf16.mxu0 0
        %842 = vmatmul.mubr.bf16.gmra.mrb[0].mxu0 %v722
        %v843 = vpop.f32.mrb[0].mxu0
        %v844 = vadd.f32 0.0, %v843
        %v845 = vpop.f32.mrb[0].mxu0
        %v846 = vpop.f32.mrb[0].mxu0
        %v847 = vadd.f32 0.0, %v846
        %v848 = vpop.f32.mrb[0].mxu0
        %849 = vmatprep.mubr.bf16.mxu0 0
        %850 = vmatmul.mubr.bf16.gmra.mrb[0].mxu0 %v725
        %v851 = vpop.f32.mrb[0].mxu0
        %v852 = vadd.f32 0.0, %v851
        %v853 = vpop.f32.mrb[0].mxu0
        %v854 = vpop.f32.mrb[0].mxu0
        %v855 = vadd.f32 0.0, %v854
        %v856 = vpop.f32.mrb[0].mxu0
        %857 = vmatprep.mubr.bf16.mxu0 0
        %858 = vmatmul.mubr.bf16.gmra.mrb[0].mxu0 %v728
        %v859 = vpop.f32.mrb[0].mxu0
        %v860 = vadd.f32 0.0, %v859
        %v861 = vpop.f32.mrb[0].mxu0
        %v862 = vpop.f32.mrb[0].mxu0
        %v863 = vadd.f32 0.0, %v862
        %v864 = vpop.f32.mrb[0].mxu0
        %865 = vmatprep.mubr.bf16.mxu0 0
        %866 = vmatmul.mubr.bf16.gmra.mrb[0].mxu0 %v731
        %v867 = vpop.f32.mrb[0].mxu0
        %v868 = vadd.f32 0.0, %v867
        %v869 = vpop.f32.mrb[0].mxu0
        %v870 = vpop.f32.mrb[0].mxu0
        %v871 = vadd.f32 0.0, %v870
        %v872 = vpop.f32.mrb[0].mxu0
        %873 = vmatprep.mubr.bf16.mxu0 0
        %874 = vmatmul.mubr.bf16.gmra.mrb[0].mxu0 %v734
        %v875 = vpop.f32.mrb[0].mxu0
        %v876 = vadd.f32 0.0, %v875
        %v877 = vpop.f32.mrb[0].mxu0
        %v878 = vpop.f32.mrb[0].mxu0
        %v879 = vadd.f32 0.0, %v878
        %v880 = vpop.f32.mrb[0].mxu0
        %881 = vmatprep.mubr.bf16.mxu0 0
        %882 = vmatmul.mubr.bf16.gmra.mrb[0].mxu0 %v737
        %v883 = vpop.f32.mrb[0].mxu0
        %v884 = vadd.f32 0.0, %v883
        %v885 = vpop.f32.mrb[0].mxu0
        %v886 = vpop.f32.mrb[0].mxu0
        %v887 = vadd.f32 0.0, %v886
        %v888 = vpop.f32.mrb[0].mxu0
        %889 = vmatprep.mubr.bf16.mxu0 0
        %890 = vmatmul.mubr.bf16.gmra.mrb[0].mxu0 %v740
        %v891 = vpop.f32.mrb[0].mxu0
        %v892 = vadd.f32 0.0, %v891
        %v893 = vpop.f32.mrb[0].mxu0
        %v894 = vpop.f32.mrb[0].mxu0
        %v895 = vadd.f32 0.0, %v894
        %v896 = vpop.f32.mrb[0].mxu0
        %897 = vmatprep.mubr.bf16.mxu0 0
        %898 = vmatmul.mubr.bf16.gmra.mrb[0].mxu0 %v743
        %v899 = vpop.f32.mrb[0].mxu0
        %v900 = vadd.f32 0.0, %v899
        %v901 = vpop.f32.mrb[0].mxu0
        %v902 = vpop.f32.mrb[0].mxu0
        %v903 = vadd.f32 0.0, %v902
        %v904 = vpop.f32.mrb[0].mxu0
        %905 = vdwg.mxu0
        %v908 = vunpack.c.l.b16 %v637
        %v909 = vunpack.c.l.b16 %v638
        %v910 = vpack.c.b16 %v909, %v908
        %v913 = vsel %vm696, %v621, 0
        %v916 = vsel %vm696, %v622, 0
        %v919 = vsel %vm696, %v623, 0
        %v922 = vsel %vm696, %v624, 0
        %v925 = vsel %vm696, %v625, 0
        %v928 = vsel %vm696, %v626, 0
        %v931 = vsel %vm696, %v627, 0
        %v934 = vsel %vm696, %v628, 0
        %v937 = vsel %vm696, %v629, 0
        %v940 = vsel %vm696, %v630, 0
        %v943 = vsel %vm696, %v631, 0
        %v946 = vsel %vm696, %v632, 0
        %v949 = vsel %vm696, %v633, 0
        %v952 = vsel %vm696, %v634, 0
        %v955 = vsel %vm696, %v635, 0
        %v958 = vsel %vm696, %v636, 0
        %960 = vmatprep.subr.bf16.mxu0 0
        %961 = vmatpush1.bf16.msra.mxu0 %v910
        %962 = vmatprep.subr.bf16.mxu0 0
        %963 = vmatpush1.bf16.msra.mxu0 0
        %964 = vmatprep.subr.bf16.mxu0 0
        %965 = vmatpush1.bf16.msra.mxu0 0
        %966 = vmatprep.subr.bf16.mxu0 0
        %967 = vmatpush1.bf16.msra.mxu0 0
        %968 = vmatprep.subr.bf16.mxu0 0
        %969 = vmatpush1.bf16.msra.mxu0 0
        %970 = vmatprep.subr.bf16.mxu0 0
        %971 = vmatpush1.bf16.msra.mxu0 0
        %972 = vmatprep.subr.bf16.mxu0 0
        %973 = vmatpush1.bf16.msra.mxu0 0
        %974 = vmatprep.subr.bf16.mxu0 0
        %975 = vmatpush1.bf16.msra.mxu0 0
        %976 = vmatprep.subr.bf16.mxu0 0
        %977 = vmatpush1.bf16.msra.mxu0 0
        %978 = vmatprep.subr.bf16.mxu0 0
        %979 = vmatpush1.bf16.msra.mxu0 0
        %980 = vmatprep.subr.bf16.mxu0 0
        %981 = vmatpush1.bf16.msra.mxu0 0
        %982 = vmatprep.subr.bf16.mxu0 0
        %983 = vmatpush1.bf16.msra.mxu0 0
        %984 = vmatprep.subr.bf16.mxu0 0
        %985 = vmatpush1.bf16.msra.mxu0 0
        %986 = vmatprep.subr.bf16.mxu0 0
        %987 = vmatpush1.bf16.msra.mxu0 0
        %988 = vmatprep.subr.bf16.mxu0 0
        %989 = vmatpush1.bf16.msra.mxu0 0
        %990 = vmatprep.subr.bf16.mxu0 0
        %991 = vmatpush1.bf16.msra.mxu0 0
        %992 = vmatprep.mubr.bf16.mxu0 0
        %993 = vmatmul.mubr.bf16.gmra.mrb[0].mxu0 %v913
        %v994 = vpop.f32.mrb[0].mxu0
        %v995 = vadd.f32 %v780, %v994
        %v996 = vpop.f32.mrb[0].mxu0
        %v997 = vpop.f32.mrb[0].mxu0
        %v998 = vadd.f32 %v783, %v997
        %v999 = vpop.f32.mrb[0].mxu0
        %1000 = vmatprep.mubr.bf16.mxu0 0
        %1001 = vmatmul.mubr.bf16.gmra.mrb[0].mxu0 %v916
        %v1002 = vpop.f32.mrb[0].mxu0
        %v1003 = vadd.f32 %v788, %v1002
        %v1004 = vpop.f32.mrb[0].mxu0
        %v1005 = vpop.f32.mrb[0].mxu0
        %v1006 = vadd.f32 %v791, %v1005
        %v1007 = vpop.f32.mrb[0].mxu0
        %1008 = vmatprep.mubr.bf16.mxu0 0
        %1009 = vmatmul.mubr.bf16.gmra.mrb[0].mxu0 %v919
        %v1010 = vpop.f32.mrb[0].mxu0
        %v1011 = vadd.f32 %v796, %v1010
        %v1012 = vpop.f32.mrb[0].mxu0
        %v1013 = vpop.f32.mrb[0].mxu0
        %v1014 = vadd.f32 %v799, %v1013
        %v1015 = vpop.f32.mrb[0].mxu0
        %1016 = vmatprep.mubr.bf16.mxu0 0
        %1017 = vmatmul.mubr.bf16.gmra.mrb[0].mxu0 %v922
        %v1018 = vpop.f32.mrb[0].mxu0
        %v1019 = vadd.f32 %v804, %v1018
        %v1020 = vpop.f32.mrb[0].mxu0
        %v1021 = vpop.f32.mrb[0].mxu0
        %v1022 = vadd.f32 %v807, %v1021
        %v1023 = vpop.f32.mrb[0].mxu0
        %1024 = vmatprep.mubr.bf16.mxu0 0
        %1025 = vmatmul.mubr.bf16.gmra.mrb[0].mxu0 %v925
        %v1026 = vpop.f32.mrb[0].mxu0
        %v1027 = vadd.f32 %v812, %v1026
        %v1028 = vpop.f32.mrb[0].mxu0
        %v1029 = vpop.f32.mrb[0].mxu0
        %v1030 = vadd.f32 %v815, %v1029
        %v1031 = vpop.f32.mrb[0].mxu0
        %1032 = vmatprep.mubr.bf16.mxu0 0
        %1033 = vmatmul.mubr.bf16.gmra.mrb[0].mxu0 %v928
        %v1034 = vpop.f32.mrb[0].mxu0
        %v1035 = vadd.f32 %v820, %v1034
        %v1036 = vpop.f32.mrb[0].mxu0
        %v1037 = vpop.f32.mrb[0].mxu0
        %v1038 = vadd.f32 %v823, %v1037
        %v1039 = vpop.f32.mrb[0].mxu0
        %1040 = vmatprep.mubr.bf16.mxu0 0
        %1041 = vmatmul.mubr.bf16.gmra.mrb[0].mxu0 %v931
        %v1042 = vpop.f32.mrb[0].mxu0
        %v1043 = vadd.f32 %v828, %v1042
        %v1044 = vpop.f32.mrb[0].mxu0
        %v1045 = vpop.f32.mrb[0].mxu0
        %v1046 = vadd.f32 %v831, %v1045
        %v1047 = vpop.f32.mrb[0].mxu0
        %1048 = vmatprep.mubr.bf16.mxu0 0
        %1049 = vmatmul.mubr.bf16.gmra.mrb[0].mxu0 %v934
        %v1050 = vpop.f32.mrb[0].mxu0
        %v1051 = vadd.f32 %v836, %v1050
        %v1052 = vpop.f32.mrb[0].mxu0
        %v1053 = vpop.f32.mrb[0].mxu0
        %v1054 = vadd.f32 %v839, %v1053
        %v1055 = vpop.f32.mrb[0].mxu0
        %1056 = vmatprep.mubr.bf16.mxu0 0
        %1057 = vmatmul.mubr.bf16.gmra.mrb[0].mxu0 %v937
        %v1058 = vpop.f32.mrb[0].mxu0
        %v1059 = vadd.f32 %v844, %v1058
        %v1060 = vpop.f32.mrb[0].mxu0
        %v1061 = vpop.f32.mrb[0].mxu0
        %v1062 = vadd.f32 %v847, %v1061
        %v1063 = vpop.f32.mrb[0].mxu0
        %1064 = vmatprep.mubr.bf16.mxu0 0
        %1065 = vmatmul.mubr.bf16.gmra.mrb[0].mxu0 %v940
        %v1066 = vpop.f32.mrb[0].mxu0
        %v1067 = vadd.f32 %v852, %v1066
        %v1068 = vpop.f32.mrb[0].mxu0
        %v1069 = vpop.f32.mrb[0].mxu0
        %v1070 = vadd.f32 %v855, %v1069
        %v1071 = vpop.f32.mrb[0].mxu0
        %1072 = vmatprep.mubr.bf16.mxu0 0
        %1073 = vmatmul.mubr.bf16.gmra.mrb[0].mxu0 %v943
        %v1074 = vpop.f32.mrb[0].mxu0
        %v1075 = vadd.f32 %v860, %v1074
        %v1076 = vpop.f32.mrb[0].mxu0
        %v1077 = vpop.f32.mrb[0].mxu0
        %v1078 = vadd.f32 %v863, %v1077
        %v1079 = vpop.f32.mrb[0].mxu0
        %1080 = vmatprep.mubr.bf16.mxu0 0
        %1081 = vmatmul.mubr.bf16.gmra.mrb[0].mxu0 %v946
        %v1082 = vpop.f32.mrb[0].mxu0
        %v1083 = vadd.f32 %v868, %v1082
        %v1084 = vpop.f32.mrb[0].mxu0
        %v1085 = vpop.f32.mrb[0].mxu0
        %v1086 = vadd.f32 %v871, %v1085
        %v1087 = vpop.f32.mrb[0].mxu0
        %1088 = vmatprep.mubr.bf16.mxu0 0
        %1089 = vmatmul.mubr.bf16.gmra.mrb[0].mxu0 %v949
        %v1090 = vpop.f32.mrb[0].mxu0
        %v1091 = vadd.f32 %v876, %v1090
        %v1092 = vpop.f32.mrb[0].mxu0
        %v1093 = vpop.f32.mrb[0].mxu0
        %v1094 = vadd.f32 %v879, %v1093
        %v1095 = vpop.f32.mrb[0].mxu0
        %1096 = vmatprep.mubr.bf16.mxu0 0
        %1097 = vmatmul.mubr.bf16.gmra.mrb[0].mxu0 %v952
        %v1098 = vpop.f32.mrb[0].mxu0
        %v1099 = vadd.f32 %v884, %v1098
        %v1100 = vpop.f32.mrb[0].mxu0
        %v1101 = vpop.f32.mrb[0].mxu0
        %v1102 = vadd.f32 %v887, %v1101
        %v1103 = vpop.f32.mrb[0].mxu0
        %1104 = vmatprep.mubr.bf16.mxu0 0
        %1105 = vmatmul.mubr.bf16.gmra.mrb[0].mxu0 %v955
        %v1106 = vpop.f32.mrb[0].mxu0
        %v1107 = vadd.f32 %v892, %v1106
        %v1108 = vpop.f32.mrb[0].mxu0
        %v1109 = vpop.f32.mrb[0].mxu0
        %v1110 = vadd.f32 %v895, %v1109
        %v1111 = vpop.f32.mrb[0].mxu0
        %1112 = vmatprep.mubr.bf16.mxu0 0
        %1113 = vmatmul.mubr.bf16.gmra.mrb[0].mxu0 %v958
        %v1114 = vpop.f32.mrb[0].mxu0
        %v1115 = vadd.f32 %v900, %v1114
        %v1116 = vpop.f32.mrb[0].mxu0
        %v1117 = vpop.f32.mrb[0].mxu0
        %v1118 = vadd.f32 %v903, %v1117
        %v1119 = vpop.f32.mrb[0].mxu0
        %1120 = vdwg.mxu0
        %v1121 = vld [vmem:[#allocation2 + $0x2] sm:$0xff]
        %v1122 = vld [vmem:[#allocation2 + $0xa] sm:$0xff]
        %v1123 = vld [vmem:[#allocation2 + $0x1a] sm:$0xff]
        %v1124 = vld [vmem:[#allocation2 + $0x22] sm:$0xff]
        %v1125 = vld [vmem:[#allocation2 + $0x32] sm:$0xff]
        %v1126 = vld [vmem:[#allocation2 + $0x3a] sm:$0xff]
        %v1127 = vld [vmem:[#allocation2 + $0x4a] sm:$0xff]
        %v1128 = vld [vmem:[#allocation2 + $0x52] sm:$0xff]
        %v1129 = vld [vmem:[#allocation2 + $0x62] sm:$0xff]
        %v1130 = vld [vmem:[#allocation2 + $0x6a] sm:$0xff]
        %v1131 = vld [vmem:[#allocation2 + $0x7a] sm:$0xff]
        %v1132 = vld [vmem:[#allocation2 + $0x82] sm:$0xff]
        %v1133 = vld [vmem:[#allocation2 + $0x92] sm:$0xff]
        %v1134 = vld [vmem:[#allocation2 + $0x9a] sm:$0xff]
        %v1135 = vld [vmem:[#allocation2 + $0xaa] sm:$0xff]
        %v1136 = vld [vmem:[#allocation2 + $0xb2] sm:$0xff]
        %v1137 = vld [vmem:[#allocation2 + $0xc2] sm:$0xff]
        %v1138 = vld [vmem:[#allocation2 + $0xca] sm:$0xff]
        %v1139 = vld [vmem:[#allocation2 + $0xda] sm:$0xff]
        %v1140 = vld [vmem:[#allocation2 + $0xe2] sm:$0xff]
        %v1141 = vld [vmem:[#allocation2 + $0xf2] sm:$0xff]
        %v1142 = vld [vmem:[#allocation2 + $0xfa] sm:$0xff]
        %v1143 = vld [vmem:[#allocation2 + $0x10a] sm:$0xff]
        %v1144 = vld [vmem:[#allocation2 + $0x112] sm:$0xff]
        %v1145 = vld [vmem:[#allocation2 + $0x122] sm:$0xff]
        %v1146 = vld [vmem:[#allocation2 + $0x12a] sm:$0xff]
        %v1147 = vld [vmem:[#allocation2 + $0x13a] sm:$0xff]
        %v1148 = vld [vmem:[#allocation2 + $0x142] sm:$0xff]
        %v1149 = vld [vmem:[#allocation2 + $0x152] sm:$0xff]
        %v1150 = vld [vmem:[#allocation2 + $0x15a] sm:$0xff]
        %v1151 = vld [vmem:[#allocation2 + $0x16a] sm:$0xff]
        %v1152 = vld [vmem:[#allocation2 + $0x172] sm:$0xff]
        %v1153 = vpack.c.bf16 %v1122, %v1121
        %v1154 = vpack.c.bf16 %v1124, %v1123
        %v1155 = vpack.c.bf16 %v1126, %v1125
        %v1156 = vpack.c.bf16 %v1128, %v1127
        %v1157 = vpack.c.bf16 %v1130, %v1129
        %v1158 = vpack.c.bf16 %v1132, %v1131
        %v1159 = vpack.c.bf16 %v1134, %v1133
        %v1160 = vpack.c.bf16 %v1136, %v1135
        %v1161 = vpack.c.bf16 %v1138, %v1137
        %v1162 = vpack.c.bf16 %v1140, %v1139
        %v1163 = vpack.c.bf16 %v1142, %v1141
        %v1164 = vpack.c.bf16 %v1144, %v1143
        %v1165 = vpack.c.bf16 %v1146, %v1145
        %v1166 = vpack.c.bf16 %v1148, %v1147
        %v1167 = vpack.c.bf16 %v1150, %v1149
        %v1168 = vpack.c.bf16 %v1152, %v1151
        %s1169 = scalar_lea.vmem [#allocation9], 16
        %v1170 = vld [vmem:[%s1169] sm:$0xf]
        %v1171 = vld [vmem:[%s1169 + $0x4] sm:$0xf]
        %v1174 = vunpack.c.l.b16 %v1170
        %v1175 = vunpack.c.l.b16 %v1171
        %v1176 = vpack.c.b16 %v1175, %v1174
        %v1179 = vsel %vm696, %v1153, 0
        %v1182 = vsel %vm696, %v1154, 0
        %v1185 = vsel %vm696, %v1155, 0
        %v1188 = vsel %vm696, %v1156, 0
        %v1191 = vsel %vm696, %v1157, 0
        %v1194 = vsel %vm696, %v1158, 0
        %v1197 = vsel %vm696, %v1159, 0
        %v1200 = vsel %vm696, %v1160, 0
        %v1203 = vsel %vm696, %v1161, 0
        %v1206 = vsel %vm696, %v1162, 0
        %v1209 = vsel %vm696, %v1163, 0
        %v1212 = vsel %vm696, %v1164, 0
        %v1215 = vsel %vm696, %v1165, 0
        %v1218 = vsel %vm696, %v1166, 0
        %v1221 = vsel %vm696, %v1167, 0
        %v1224 = vsel %vm696, %v1168, 0
        %1226 = vmatprep.subr.bf16.mxu0 0
        %1227 = vmatpush1.bf16.msra.mxu0 %v1176
        %1228 = vmatprep.subr.bf16.mxu0 0
        %1229 = vmatpush1.bf16.msra.mxu0 0
        %1230 = vmatprep.subr.bf16.mxu0 0
        %1231 = vmatpush1.bf16.msra.mxu0 0
        %1232 = vmatprep.subr.bf16.mxu0 0
        %1233 = vmatpush1.bf16.msra.mxu0 0
        %1234 = vmatprep.subr.bf16.mxu0 0
        %1235 = vmatpush1.bf16.msra.mxu0 0
        %1236 = vmatprep.subr.bf16.mxu0 0
        %1237 = vmatpush1.bf16.msra.mxu0 0
        %1238 = vmatprep.subr.bf16.mxu0 0
        %1239 = vmatpush1.bf16.msra.mxu0 0
        %1240 = vmatprep.subr.bf16.mxu0 0
        %1241 = vmatpush1.bf16.msra.mxu0 0
        %1242 = vmatprep.subr.bf16.mxu0 0
        %1243 = vmatpush1.bf16.msra.mxu0 0
        %1244 = vmatprep.subr.bf16.mxu0 0
        %1245 = vmatpush1.bf16.msra.mxu0 0
        %1246 = vmatprep.subr.bf16.mxu0 0
        %1247 = vmatpush1.bf16.msra.mxu0 0
        %1248 = vmatprep.subr.bf16.mxu0 0
        %1249 = vmatpush1.bf16.msra.mxu0 0
        %1250 = vmatprep.subr.bf16.mxu0 0
        %1251 = vmatpush1.bf16.msra.mxu0 0
        %1252 = vmatprep.subr.bf16.mxu0 0
        %1253 = vmatpush1.bf16.msra.mxu0 0
        %1254 = vmatprep.subr.bf16.mxu0 0
        %1255 = vmatpush1.bf16.msra.mxu0 0
        %1256 = vmatprep.subr.bf16.mxu0 0
        %1257 = vmatpush1.bf16.msra.mxu0 0
        %1258 = vmatprep.mubr.bf16.mxu0 0
        %1259 = vmatmul.mubr.bf16.gmra.mrb[0].mxu0 %v1179
        %v1260 = vpop.f32.mrb[0].mxu0
        %v1261 = vadd.f32 0.0, %v1260
        %v1262 = vpop.f32.mrb[0].mxu0
        %v1263 = vpop.f32.mrb[0].mxu0
        %v1264 = vadd.f32 0.0, %v1263
        %v1265 = vpop.f32.mrb[0].mxu0
        %1266 = vmatprep.mubr.bf16.mxu0 0
        %1267 = vmatmul.mubr.bf16.gmra.mrb[0].mxu0 %v1182
        %v1268 = vpop.f32.mrb[0].mxu0
        %v1269 = vadd.f32 0.0, %v1268
        %v1270 = vpop.f32.mrb[0].mxu0
        %v1271 = vpop.f32.mrb[0].mxu0
        %v1272 = vadd.f32 0.0, %v1271
        %v1273 = vpop.f32.mrb[0].mxu0
        %1274 = vmatprep.mubr.bf16.mxu0 0
        %1275 = vmatmul.mubr.bf16.gmra.mrb[0].mxu0 %v1185
        %v1276 = vpop.f32.mrb[0].mxu0
        %v1277 = vadd.f32 0.0, %v1276
        %v1278 = vpop.f32.mrb[0].mxu0
        %v1279 = vpop.f32.mrb[0].mxu0
        %v1280 = vadd.f32 0.0, %v1279
        %v1281 = vpop.f32.mrb[0].mxu0
        %1282 = vmatprep.mubr.bf16.mxu0 0
        %1283 = vmatmul.mubr.bf16.gmra.mrb[0].mxu0 %v1188
        %v1284 = vpop.f32.mrb[0].mxu0
        %v1285 = vadd.f32 0.0, %v1284
        %v1286 = vpop.f32.mrb[0].mxu0
        %v1287 = vpop.f32.mrb[0].mxu0
        %v1288 = vadd.f32 0.0, %v1287
        %v1289 = vpop.f32.mrb[0].mxu0
        %1290 = vmatprep.mubr.bf16.mxu0 0
        %1291 = vmatmul.mubr.bf16.gmra.mrb[0].mxu0 %v1191
        %v1292 = vpop.f32.mrb[0].mxu0
        %v1293 = vadd.f32 0.0, %v1292
        %v1294 = vpop.f32.mrb[0].mxu0
        %v1295 = vpop.f32.mrb[0].mxu0
        %v1296 = vadd.f32 0.0, %v1295
        %v1297 = vpop.f32.mrb[0].mxu0
        %1298 = vmatprep.mubr.bf16.mxu0 0
        %1299 = vmatmul.mubr.bf16.gmra.mrb[0].mxu0 %v1194
        %v1300 = vpop.f32.mrb[0].mxu0
        %v1301 = vadd.f32 0.0, %v1300
        %v1302 = vpop.f32.mrb[0].mxu0
        %v1303 = vpop.f32.mrb[0].mxu0
        %v1304 = vadd.f32 0.0, %v1303
        %v1305 = vpop.f32.mrb[0].mxu0
        %1306 = vmatprep.mubr.bf16.mxu0 0
        %1307 = vmatmul.mubr.bf16.gmra.mrb[0].mxu0 %v1197
        %v1308 = vpop.f32.mrb[0].mxu0
        %v1309 = vadd.f32 0.0, %v1308
        %v1310 = vpop.f32.mrb[0].mxu0
        %v1311 = vpop.f32.mrb[0].mxu0
        %v1312 = vadd.f32 0.0, %v1311
        %v1313 = vpop.f32.mrb[0].mxu0
        %1314 = vmatprep.mubr.bf16.mxu0 0
        %1315 = vmatmul.mubr.bf16.gmra.mrb[0].mxu0 %v1200
        %v1316 = vpop.f32.mrb[0].mxu0
        %v1317 = vadd.f32 0.0, %v1316
        %v1318 = vpop.f32.mrb[0].mxu0
        %v1319 = vpop.f32.mrb[0].mxu0
        %v1320 = vadd.f32 0.0, %v1319
        %v1321 = vpop.f32.mrb[0].mxu0
        %1322 = vmatprep.mubr.bf16.mxu0 0
        %1323 = vmatmul.mubr.bf16.gmra.mrb[0].mxu0 %v1203
        %v1324 = vpop.f32.mrb[0].mxu0
        %v1325 = vadd.f32 0.0, %v1324
        %v1326 = vpop.f32.mrb[0].mxu0
        %v1327 = vpop.f32.mrb[0].mxu0
        %v1328 = vadd.f32 0.0, %v1327
        %v1329 = vpop.f32.mrb[0].mxu0
        %1330 = vmatprep.mubr.bf16.mxu0 0
        %1331 = vmatmul.mubr.bf16.gmra.mrb[0].mxu0 %v1206
        %v1332 = vpop.f32.mrb[0].mxu0
        %v1333 = vadd.f32 0.0, %v1332
        %v1334 = vpop.f32.mrb[0].mxu0
        %v1335 = vpop.f32.mrb[0].mxu0
        %v1336 = vadd.f32 0.0, %v1335
        %v1337 = vpop.f32.mrb[0].mxu0
        %1338 = vmatprep.mubr.bf16.mxu0 0
        %1339 = vmatmul.mubr.bf16.gmra.mrb[0].mxu0 %v1209
        %v1340 = vpop.f32.mrb[0].mxu0
        %v1341 = vadd.f32 0.0, %v1340
        %v1342 = vpop.f32.mrb[0].mxu0
        %v1343 = vpop.f32.mrb[0].mxu0
        %v1344 = vadd.f32 0.0, %v1343
        %v1345 = vpop.f32.mrb[0].mxu0
        %1346 = vmatprep.mubr.bf16.mxu0 0
        %1347 = vmatmul.mubr.bf16.gmra.mrb[0].mxu0 %v1212
        %v1348 = vpop.f32.mrb[0].mxu0
        %v1349 = vadd.f32 0.0, %v1348
        %v1350 = vpop.f32.mrb[0].mxu0
        %v1351 = vpop.f32.mrb[0].mxu0
        %v1352 = vadd.f32 0.0, %v1351
        %v1353 = vpop.f32.mrb[0].mxu0
        %1354 = vmatprep.mubr.bf16.mxu0 0
        %1355 = vmatmul.mubr.bf16.gmra.mrb[0].mxu0 %v1215
        %v1356 = vpop.f32.mrb[0].mxu0
        %v1357 = vadd.f32 0.0, %v1356
        %v1358 = vpop.f32.mrb[0].mxu0
        %v1359 = vpop.f32.mrb[0].mxu0
        %v1360 = vadd.f32 0.0, %v1359
        %v1361 = vpop.f32.mrb[0].mxu0
        %1362 = vmatprep.mubr.bf16.mxu0 0
        %1363 = vmatmul.mubr.bf16.gmra.mrb[0].mxu0 %v1218
        %v1364 = vpop.f32.mrb[0].mxu0
        %v1365 = vadd.f32 0.0, %v1364
        %v1366 = vpop.f32.mrb[0].mxu0
        %v1367 = vpop.f32.mrb[0].mxu0
        %v1368 = vadd.f32 0.0, %v1367
        %v1369 = vpop.f32.mrb[0].mxu0
        %1370 = vmatprep.mubr.bf16.mxu0 0
        %1371 = vmatmul.mubr.bf16.gmra.mrb[0].mxu0 %v1221
        %v1372 = vpop.f32.mrb[0].mxu0
        %v1373 = vadd.f32 0.0, %v1372
        %v1374 = vpop.f32.mrb[0].mxu0
        %v1375 = vpop.f32.mrb[0].mxu0
        %v1376 = vadd.f32 0.0, %v1375
        %v1377 = vpop.f32.mrb[0].mxu0
        %1378 = vmatprep.mubr.bf16.mxu0 0
        %1379 = vmatmul.mubr.bf16.gmra.mrb[0].mxu0 %v1224
        %v1380 = vpop.f32.mrb[0].mxu0
        %v1381 = vadd.f32 0.0, %v1380
        %v1382 = vpop.f32.mrb[0].mxu0
        %v1383 = vpop.f32.mrb[0].mxu0
        %v1384 = vadd.f32 0.0, %v1383
        %v1385 = vpop.f32.mrb[0].mxu0
        %1386 = vdwg.mxu0
        %v1387 = vadd.f32 %v995, %v1261
        %v1388 = vadd.f32 %v998, %v1264
        %v1389 = vadd.f32 %v1003, %v1269
        %v1390 = vadd.f32 %v1006, %v1272
        %v1391 = vadd.f32 %v1011, %v1277
        %v1392 = vadd.f32 %v1014, %v1280
        %v1393 = vadd.f32 %v1019, %v1285
        %v1394 = vadd.f32 %v1022, %v1288
        %v1395 = vadd.f32 %v1027, %v1293
        %v1396 = vadd.f32 %v1030, %v1296
        %v1397 = vadd.f32 %v1035, %v1301
        %v1398 = vadd.f32 %v1038, %v1304
        %v1399 = vadd.f32 %v1043, %v1309
        %v1400 = vadd.f32 %v1046, %v1312
        %v1401 = vadd.f32 %v1051, %v1317
        %v1402 = vadd.f32 %v1054, %v1320
        %v1403 = vadd.f32 %v1059, %v1325
        %v1404 = vadd.f32 %v1062, %v1328
        %v1405 = vadd.f32 %v1067, %v1333
        %v1406 = vadd.f32 %v1070, %v1336
        %v1407 = vadd.f32 %v1075, %v1341
        %v1408 = vadd.f32 %v1078, %v1344
        %v1409 = vadd.f32 %v1083, %v1349
        %v1410 = vadd.f32 %v1086, %v1352
        %v1411 = vadd.f32 %v1091, %v1357
        %v1412 = vadd.f32 %v1094, %v1360
        %v1413 = vadd.f32 %v1099, %v1365
        %v1414 = vadd.f32 %v1102, %v1368
        %v1415 = vadd.f32 %v1107, %v1373
        %v1416 = vadd.f32 %v1110, %v1376
        %v1417 = vadd.f32 %v1115, %v1381
        %v1418 = vadd.f32 %v1118, %v1384
        %s1419 = scalar_lea.vmem [#allocation2], 24
        %v1420 = vld [vmem:[%s1419] sm:$0xff]
        %v1421 = vld [vmem:[%s1419 + $0x8] sm:$0xff]
        %v1422 = vld [vmem:[%s1419 + $0x18] sm:$0xff]
        %v1423 = vld [vmem:[%s1419 + $0x20] sm:$0xff]
        %v1424 = vld [vmem:[%s1419 + $0x30] sm:$0xff]
        %v1425 = vld [vmem:[%s1419 + $0x38] sm:$0xff]
        %v1426 = vld [vmem:[%s1419 + $0x48] sm:$0xff]
        %v1427 = vld [vmem:[%s1419 + $0x50] sm:$0xff]
        %v1428 = vld [vmem:[%s1419 + $0x60] sm:$0xff]
        %v1429 = vld [vmem:[%s1419 + $0x68] sm:$0xff]
        %v1430 = vld [vmem:[%s1419 + $0x78] sm:$0xff]
        %v1431 = vld [vmem:[%s1419 + $0x80] sm:$0xff]
        %v1432 = vld [vmem:[%s1419 + $0x90] sm:$0xff]
        %v1433 = vld [vmem:[%s1419 + $0x98] sm:$0xff]
        %v1434 = vld [vmem:[%s1419 + $0xa8] sm:$0xff]
        %v1435 = vld [vmem:[%s1419 + $0xb0] sm:$0xff]
        %v1436 = vld [vmem:[%s1419 + $0xc0] sm:$0xff]
        %v1437 = vld [vmem:[%s1419 + $0xc8] sm:$0xff]
        %v1438 = vld [vmem:[%s1419 + $0xd8] sm:$0xff]
        %v1439 = vld [vmem:[%s1419 + $0xe0] sm:$0xff]
        %v1440 = vld [vmem:[%s1419 + $0xf0] sm:$0xff]
        %v1441 = vld [vmem:[%s1419 + $0xf8] sm:$0xff]
        %v1442 = vld [vmem:[%s1419 + $0x108] sm:$0xff]
        %v1443 = vld [vmem:[%s1419 + $0x110] sm:$0xff]
        %v1444 = vld [vmem:[%s1419 + $0x120] sm:$0xff]
        %v1445 = vld [vmem:[%s1419 + $0x128] sm:$0xff]
        %v1446 = vld [vmem:[%s1419 + $0x138] sm:$0xff]
        %v1447 = vld [vmem:[%s1419 + $0x140] sm:$0xff]
        %v1448 = vld [vmem:[%s1419 + $0x150] sm:$0xff]
        %v1449 = vld [vmem:[%s1419 + $0x158] sm:$0xff]
        %v1450 = vld [vmem:[%s1419 + $0x168] sm:$0xff]
        %v1451 = vld [vmem:[%s1419 + $0x170] sm:$0xff]
        %v1452 = vpack.c.bf16 %v1421, %v1420
        %v1453 = vpack.c.bf16 %v1423, %v1422
        %v1454 = vpack.c.bf16 %v1425, %v1424
        %v1455 = vpack.c.bf16 %v1427, %v1426
        %v1456 = vpack.c.bf16 %v1429, %v1428
        %v1457 = vpack.c.bf16 %v1431, %v1430
        %v1458 = vpack.c.bf16 %v1433, %v1432
        %v1459 = vpack.c.bf16 %v1435, %v1434
        %v1460 = vpack.c.bf16 %v1437, %v1436
        %v1461 = vpack.c.bf16 %v1439, %v1438
        %v1462 = vpack.c.bf16 %v1441, %v1440
        %v1463 = vpack.c.bf16 %v1443, %v1442
        %v1464 = vpack.c.bf16 %v1445, %v1444
        %v1465 = vpack.c.bf16 %v1447, %v1446
        %v1466 = vpack.c.bf16 %v1449, %v1448
        %v1467 = vpack.c.bf16 %v1451, %v1450
        %s1468 = scalar_lea.vmem [#allocation9], 24
        %v1469 = vld [vmem:[%s1468] sm:$0xf]
        %v1470 = vld [vmem:[%s1468 + $0x4] sm:$0xf]
        %v1473 = vunpack.c.l.b16 %v1469
        %v1474 = vunpack.c.l.b16 %v1470
        %v1475 = vpack.c.b16 %v1474, %v1473
        %v1478 = vsel %vm696, %v1452, 0
        %v1481 = vsel %vm696, %v1453, 0
        %v1484 = vsel %vm696, %v1454, 0
        %v1487 = vsel %vm696, %v1455, 0
        %v1490 = vsel %vm696, %v1456, 0
        %v1493 = vsel %vm696, %v1457, 0
        %v1496 = vsel %vm696, %v1458, 0
        %v1499 = vsel %vm696, %v1459, 0
        %v1502 = vsel %vm696, %v1460, 0
        %v1505 = vsel %vm696, %v1461, 0
        %v1508 = vsel %vm696, %v1462, 0
        %v1511 = vsel %vm696, %v1463, 0
        %v1514 = vsel %vm696, %v1464, 0
        %v1517 = vsel %vm696, %v1465, 0
        %v1520 = vsel %vm696, %v1466, 0
        %v1523 = vsel %vm696, %v1467, 0
        %1525 = vmatprep.subr.bf16.mxu0 0
        %1526 = vmatpush1.bf16.msra.mxu0 %v1475
        %1527 = vmatprep.subr.bf16.mxu0 0
        %1528 = vmatpush1.bf16.msra.mxu0 0
        %1529 = vmatprep.subr.bf16.mxu0 0
        %1530 = vmatpush1.bf16.msra.mxu0 0
        %1531 = vmatprep.subr.bf16.mxu0 0
        %1532 = vmatpush1.bf16.msra.mxu0 0
        %1533 = vmatprep.subr.bf16.mxu0 0
        %1534 = vmatpush1.bf16.msra.mxu0 0
        %1535 = vmatprep.subr.bf16.mxu0 0
        %1536 = vmatpush1.bf16.msra.mxu0 0
        %1537 = vmatprep.subr.bf16.mxu0 0
        %1538 = vmatpush1.bf16.msra.mxu0 0
        %1539 = vmatprep.subr.bf16.mxu0 0
        %1540 = vmatpush1.bf16.msra.mxu0 0
        %1541 = vmatprep.subr.bf16.mxu0 0
        %1542 = vmatpush1.bf16.msra.mxu0 0
        %1543 = vmatprep.subr.bf16.mxu0 0
        %1544 = vmatpush1.bf16.msra.mxu0 0
        %1545 = vmatprep.subr.bf16.mxu0 0
        %1546 = vmatpush1.bf16.msra.mxu0 0
        %1547 = vmatprep.subr.bf16.mxu0 0
        %1548 = vmatpush1.bf16.msra.mxu0 0
        %1549 = vmatprep.subr.bf16.mxu0 0
        %1550 = vmatpush1.bf16.msra.mxu0 0
        %1551 = vmatprep.subr.bf16.mxu0 0
        %1552 = vmatpush1.bf16.msra.mxu0 0
        %1553 = vmatprep.subr.bf16.mxu0 0
        %1554 = vmatpush1.bf16.msra.mxu0 0
        %1555 = vmatprep.subr.bf16.mxu0 0
        %1556 = vmatpush1.bf16.msra.mxu0 0
        %1557 = vmatprep.mubr.bf16.mxu0 0
        %1558 = vmatmul.mubr.bf16.gmra.mrb[0].mxu0 %v1478
        %v1559 = vpop.f32.mrb[0].mxu0
        %v1560 = vadd.f32 0.0, %v1559
        %v1561 = vpop.f32.mrb[0].mxu0
        %v1562 = vpop.f32.mrb[0].mxu0
        %v1563 = vadd.f32 0.0, %v1562
        %v1564 = vpop.f32.mrb[0].mxu0
        %1565 = vmatprep.mubr.bf16.mxu0 0
        %1566 = vmatmul.mubr.bf16.gmra.mrb[0].mxu0 %v1481
        %v1567 = vpop.f32.mrb[0].mxu0
        %v1568 = vadd.f32 0.0, %v1567
        %v1569 = vpop.f32.mrb[0].mxu0
        %v1570 = vpop.f32.mrb[0].mxu0
        %v1571 = vadd.f32 0.0, %v1570
        %v1572 = vpop.f32.mrb[0].mxu0
        %1573 = vmatprep.mubr.bf16.mxu0 0
        %1574 = vmatmul.mubr.bf16.gmra.mrb[0].mxu0 %v1484
        %v1575 = vpop.f32.mrb[0].mxu0
        %v1576 = vadd.f32 0.0, %v1575
        %v1577 = vpop.f32.mrb[0].mxu0
        %v1578 = vpop.f32.mrb[0].mxu0
        %v1579 = vadd.f32 0.0, %v1578
        %v1580 = vpop.f32.mrb[0].mxu0
        %1581 = vmatprep.mubr.bf16.mxu0 0
        %1582 = vmatmul.mubr.bf16.gmra.mrb[0].mxu0 %v1487
        %v1583 = vpop.f32.mrb[0].mxu0
        %v1584 = vadd.f32 0.0, %v1583
        %v1585 = vpop.f32.mrb[0].mxu0
        %v1586 = vpop.f32.mrb[0].mxu0
        %v1587 = vadd.f32 0.0, %v1586
        %v1588 = vpop.f32.mrb[0].mxu0
        %1589 = vmatprep.mubr.bf16.mxu0 0
        %1590 = vmatmul.mubr.bf16.gmra.mrb[0].mxu0 %v1490
        %v1591 = vpop.f32.mrb[0].mxu0
        %v1592 = vadd.f32 0.0, %v1591
        %v1593 = vpop.f32.mrb[0].mxu0
        %v1594 = vpop.f32.mrb[0].mxu0
        %v1595 = vadd.f32 0.0, %v1594
        %v1596 = vpop.f32.mrb[0].mxu0
        %1597 = vmatprep.mubr.bf16.mxu0 0
        %1598 = vmatmul.mubr.bf16.gmra.mrb[0].mxu0 %v1493
        %v1599 = vpop.f32.mrb[0].mxu0
        %v1600 = vadd.f32 0.0, %v1599
        %v1601 = vpop.f32.mrb[0].mxu0
        %v1602 = vpop.f32.mrb[0].mxu0
        %v1603 = vadd.f32 0.0, %v1602
        %v1604 = vpop.f32.mrb[0].mxu0
        %1605 = vmatprep.mubr.bf16.mxu0 0
        %1606 = vmatmul.mubr.bf16.gmra.mrb[0].mxu0 %v1496
        %v1607 = vpop.f32.mrb[0].mxu0
        %v1608 = vadd.f32 0.0, %v1607
        %v1609 = vpop.f32.mrb[0].mxu0
        %v1610 = vpop.f32.mrb[0].mxu0
        %v1611 = vadd.f32 0.0, %v1610
        %v1612 = vpop.f32.mrb[0].mxu0
        %1613 = vmatprep.mubr.bf16.mxu0 0
        %1614 = vmatmul.mubr.bf16.gmra.mrb[0].mxu0 %v1499
        %v1615 = vpop.f32.mrb[0].mxu0
        %v1616 = vadd.f32 0.0, %v1615
        %v1617 = vpop.f32.mrb[0].mxu0
        %v1618 = vpop.f32.mrb[0].mxu0
        %v1619 = vadd.f32 0.0, %v1618
        %v1620 = vpop.f32.mrb[0].mxu0
        %1621 = vmatprep.mubr.bf16.mxu0 0
        %1622 = vmatmul.mubr.bf16.gmra.mrb[0].mxu0 %v1502
        %v1623 = vpop.f32.mrb[0].mxu0
        %v1624 = vadd.f32 0.0, %v1623
        %v1625 = vpop.f32.mrb[0].mxu0
        %v1626 = vpop.f32.mrb[0].mxu0
        %v1627 = vadd.f32 0.0, %v1626
        %v1628 = vpop.f32.mrb[0].mxu0
        %1629 = vmatprep.mubr.bf16.mxu0 0
        %1630 = vmatmul.mubr.bf16.gmra.mrb[0].mxu0 %v1505
        %v1631 = vpop.f32.mrb[0].mxu0
        %v1632 = vadd.f32 0.0, %v1631
        %v1633 = vpop.f32.mrb[0].mxu0
        %v1634 = vpop.f32.mrb[0].mxu0
        %v1635 = vadd.f32 0.0, %v1634
        %v1636 = vpop.f32.mrb[0].mxu0
        %1637 = vmatprep.mubr.bf16.mxu0 0
        %1638 = vmatmul.mubr.bf16.gmra.mrb[0].mxu0 %v1508
        %v1639 = vpop.f32.mrb[0].mxu0
        %v1640 = vadd.f32 0.0, %v1639
        %v1641 = vpop.f32.mrb[0].mxu0
        %v1642 = vpop.f32.mrb[0].mxu0
        %v1643 = vadd.f32 0.0, %v1642
        %v1644 = vpop.f32.mrb[0].mxu0
        %1645 = vmatprep.mubr.bf16.mxu0 0
        %1646 = vmatmul.mubr.bf16.gmra.mrb[0].mxu0 %v1511
        %v1647 = vpop.f32.mrb[0].mxu0
        %v1648 = vadd.f32 0.0, %v1647
        %v1649 = vpop.f32.mrb[0].mxu0
        %v1650 = vpop.f32.mrb[0].mxu0
        %v1651 = vadd.f32 0.0, %v1650
        %v1652 = vpop.f32.mrb[0].mxu0
        %1653 = vmatprep.mubr.bf16.mxu0 0
        %1654 = vmatmul.mubr.bf16.gmra.mrb[0].mxu0 %v1514
        %v1655 = vpop.f32.mrb[0].mxu0
        %v1656 = vadd.f32 0.0, %v1655
        %v1657 = vpop.f32.mrb[0].mxu0
        %v1658 = vpop.f32.mrb[0].mxu0
        %v1659 = vadd.f32 0.0, %v1658
        %v1660 = vpop.f32.mrb[0].mxu0
        %1661 = vmatprep.mubr.bf16.mxu0 0
        %1662 = vmatmul.mubr.bf16.gmra.mrb[0].mxu0 %v1517
        %v1663 = vpop.f32.mrb[0].mxu0
        %v1664 = vadd.f32 0.0, %v1663
        %v1665 = vpop.f32.mrb[0].mxu0
        %v1666 = vpop.f32.mrb[0].mxu0
        %v1667 = vadd.f32 0.0, %v1666
        %v1668 = vpop.f32.mrb[0].mxu0
        %1669 = vmatprep.mubr.bf16.mxu0 0
        %1670 = vmatmul.mubr.bf16.gmra.mrb[0].mxu0 %v1520
        %v1671 = vpop.f32.mrb[0].mxu0
        %v1672 = vadd.f32 0.0, %v1671
        %v1673 = vpop.f32.mrb[0].mxu0
        %v1674 = vpop.f32.mrb[0].mxu0
        %v1675 = vadd.f32 0.0, %v1674
        %v1676 = vpop.f32.mrb[0].mxu0
        %1677 = vmatprep.mubr.bf16.mxu0 0
        %1678 = vmatmul.mubr.bf16.gmra.mrb[0].mxu0 %v1523
        %v1679 = vpop.f32.mrb[0].mxu0
        %v1680 = vadd.f32 0.0, %v1679
        %v1681 = vpop.f32.mrb[0].mxu0
        %v1682 = vpop.f32.mrb[0].mxu0
        %v1683 = vadd.f32 0.0, %v1682
        %v1684 = vpop.f32.mrb[0].mxu0
        %1685 = vdwg.mxu0
        %v1686 = vadd.f32 %v1387, %v1560
        %v1687 = vadd.f32 %v1388, %v1563
        %v1688 = vadd.f32 %v1389, %v1568
        %v1689 = vadd.f32 %v1390, %v1571
        %v1690 = vadd.f32 %v1391, %v1576
        %v1691 = vadd.f32 %v1392, %v1579
        %v1692 = vadd.f32 %v1393, %v1584
        %v1693 = vadd.f32 %v1394, %v1587
        %v1694 = vadd.f32 %v1395, %v1592
        %v1695 = vadd.f32 %v1396, %v1595
        %v1696 = vadd.f32 %v1397, %v1600
        %v1697 = vadd.f32 %v1398, %v1603
        %v1698 = vadd.f32 %v1399, %v1608
        %v1699 = vadd.f32 %v1400, %v1611
        %v1700 = vadd.f32 %v1401, %v1616
        %v1701 = vadd.f32 %v1402, %v1619
        %v1702 = vadd.f32 %v1403, %v1624
        %v1703 = vadd.f32 %v1404, %v1627
        %v1704 = vadd.f32 %v1405, %v1632
        %v1705 = vadd.f32 %v1406, %v1635
        %v1706 = vadd.f32 %v1407, %v1640
        %v1707 = vadd.f32 %v1408, %v1643
        %v1708 = vadd.f32 %v1409, %v1648
        %v1709 = vadd.f32 %v1410, %v1651
        %v1710 = vadd.f32 %v1411, %v1656
        %v1711 = vadd.f32 %v1412, %v1659
        %v1712 = vadd.f32 %v1413, %v1664
        %v1713 = vadd.f32 %v1414, %v1667
        %v1714 = vadd.f32 %v1415, %v1672
        %v1715 = vadd.f32 %v1416, %v1675
        %v1716 = vadd.f32 %v1417, %v1680
        %v1717 = vadd.f32 %v1418, %v1683
        %v1718 = vld [vmem:[%s1419 + $0x1] sm:$0xff]
        %v1719 = vld [vmem:[%s1419 + $0x9] sm:$0xff]
        %v1720 = vld [vmem:[%s1419 + $0x19] sm:$0xff]
        %v1721 = vld [vmem:[%s1419 + $0x21] sm:$0xff]
        %v1722 = vld [vmem:[%s1419 + $0x31] sm:$0xff]
        %v1723 = vld [vmem:[%s1419 + $0x39] sm:$0xff]
        %v1724 = vld [vmem:[%s1419 + $0x49] sm:$0xff]
        %v1725 = vld [vmem:[%s1419 + $0x51] sm:$0xff]
        %v1726 = vld [vmem:[%s1419 + $0x61] sm:$0xff]
        %v1727 = vld [vmem:[%s1419 + $0x69] sm:$0xff]
        %v1728 = vld [vmem:[%s1419 + $0x79] sm:$0xff]
        %v1729 = vld [vmem:[%s1419 + $0x81] sm:$0xff]
        %v1730 = vld [vmem:[%s1419 + $0x91] sm:$0xff]
        %v1731 = vld [vmem:[%s1419 + $0x99] sm:$0xff]
        %v1732 = vld [vmem:[%s1419 + $0xa9] sm:$0xff]
        %v1733 = vld [vmem:[%s1419 + $0xb1] sm:$0xff]
        %v1734 = vld [vmem:[%s1419 + $0xc1] sm:$0xff]
        %v1735 = vld [vmem:[%s1419 + $0xc9] sm:$0xff]
        %v1736 = vld [vmem:[%s1419 + $0xd9] sm:$0xff]
        %v1737 = vld [vmem:[%s1419 + $0xe1] sm:$0xff]
        %v1738 = vld [vmem:[%s1419 + $0xf1] sm:$0xff]
        %v1739 = vld [vmem:[%s1419 + $0xf9] sm:$0xff]
        %v1740 = vld [vmem:[%s1419 + $0x109] sm:$0xff]
        %v1741 = vld [vmem:[%s1419 + $0x111] sm:$0xff]
        %v1742 = vld [vmem:[%s1419 + $0x121] sm:$0xff]
        %v1743 = vld [vmem:[%s1419 + $0x129] sm:$0xff]
        %v1744 = vld [vmem:[%s1419 + $0x139] sm:$0xff]
        %v1745 = vld [vmem:[%s1419 + $0x141] sm:$0xff]
        %v1746 = vld [vmem:[%s1419 + $0x151] sm:$0xff]
        %v1747 = vld [vmem:[%s1419 + $0x159] sm:$0xff]
        %v1748 = vld [vmem:[%s1419 + $0x169] sm:$0xff]
        %v1749 = vld [vmem:[%s1419 + $0x171] sm:$0xff]
        %v1750 = vpack.c.bf16 %v1719, %v1718
        %v1751 = vpack.c.bf16 %v1721, %v1720
        %v1752 = vpack.c.bf16 %v1723, %v1722
        %v1753 = vpack.c.bf16 %v1725, %v1724
        %v1754 = vpack.c.bf16 %v1727, %v1726
        %v1755 = vpack.c.bf16 %v1729, %v1728
        %v1756 = vpack.c.bf16 %v1731, %v1730
        %v1757 = vpack.c.bf16 %v1733, %v1732
        %v1758 = vpack.c.bf16 %v1735, %v1734
        %v1759 = vpack.c.bf16 %v1737, %v1736
        %v1760 = vpack.c.bf16 %v1739, %v1738
        %v1761 = vpack.c.bf16 %v1741, %v1740
        %v1762 = vpack.c.bf16 %v1743, %v1742
        %v1763 = vpack.c.bf16 %v1745, %v1744
        %v1764 = vpack.c.bf16 %v1747, %v1746
        %v1765 = vpack.c.bf16 %v1749, %v1748
        %s1766 = scalar_lea.vmem [#allocation9], 32
        %v1767 = vld [vmem:[%s1766] sm:$0xf]
        %v1768 = vld [vmem:[%s1766 + $0x4] sm:$0xf]
        %v1771 = vunpack.c.l.b16 %v1767
        %v1772 = vunpack.c.l.b16 %v1768
        %v1773 = vpack.c.b16 %v1772, %v1771
        %v1776 = vsel %vm696, %v1750, 0
        %v1779 = vsel %vm696, %v1751, 0
        %v1782 = vsel %vm696, %v1752, 0
        %v1785 = vsel %vm696, %v1753, 0
        %v1788 = vsel %vm696, %v1754, 0
        %v1791 = vsel %vm696, %v1755, 0
        %v1794 = vsel %vm696, %v1756, 0
        %v1797 = vsel %vm696, %v1757, 0
        %v1800 = vsel %vm696, %v1758, 0
        %v1803 = vsel %vm696, %v1759, 0
        %v1806 = vsel %vm696, %v1760, 0
        %v1809 = vsel %vm696, %v1761, 0
        %v1812 = vsel %vm696, %v1762, 0
        %v1815 = vsel %vm696, %v1763, 0
        %v1818 = vsel %vm696, %v1764, 0
        %v1821 = vsel %vm696, %v1765, 0
        %1823 = vmatprep.subr.bf16.mxu0 0
        %1824 = vmatpush1.bf16.msra.mxu0 %v1773
        %1825 = vmatprep.subr.bf16.mxu0 0
        %1826 = vmatpush1.bf16.msra.mxu0 0
        %1827 = vmatprep.subr.bf16.mxu0 0
        %1828 = vmatpush1.bf16.msra.mxu0 0
        %1829 = vmatprep.subr.bf16.mxu0 0
        %1830 = vmatpush1.bf16.msra.mxu0 0
        %1831 = vmatprep.subr.bf16.mxu0 0
        %1832 = vmatpush1.bf16.msra.mxu0 0
        %1833 = vmatprep.subr.bf16.mxu0 0
        %1834 = vmatpush1.bf16.msra.mxu0 0
        %1835 = vmatprep.subr.bf16.mxu0 0
        %1836 = vmatpush1.bf16.msra.mxu0 0
        %1837 = vmatprep.subr.bf16.mxu0 0
        %1838 = vmatpush1.bf16.msra.mxu0 0
        %1839 = vmatprep.subr.bf16.mxu0 0
        %1840 = vmatpush1.bf16.msra.mxu0 0
        %1841 = vmatprep.subr.bf16.mxu0 0
        %1842 = vmatpush1.bf16.msra.mxu0 0
        %1843 = vmatprep.subr.bf16.mxu0 0
        %1844 = vmatpush1.bf16.msra.mxu0 0
        %1845 = vmatprep.subr.bf16.mxu0 0
        %1846 = vmatpush1.bf16.msra.mxu0 0
        %1847 = vmatprep.subr.bf16.mxu0 0
        %1848 = vmatpush1.bf16.msra.mxu0 0
        %1849 = vmatprep.subr.bf16.mxu0 0
        %1850 = vmatpush1.bf16.msra.mxu0 0
        %1851 = vmatprep.subr.bf16.mxu0 0
        %1852 = vmatpush1.bf16.msra.mxu0 0
        %1853 = vmatprep.subr.bf16.mxu0 0
        %1854 = vmatpush1.bf16.msra.mxu0 0
        %1855 = vmatprep.mubr.bf16.mxu0 0
        %1856 = vmatmul.mubr.bf16.gmra.mrb[0].mxu0 %v1776
        %v1857 = vpop.f32.mrb[0].mxu0
        %v1858 = vadd.f32 0.0, %v1857
        %v1859 = vpop.f32.mrb[0].mxu0
        %v1860 = vpop.f32.mrb[0].mxu0
        %v1861 = vadd.f32 0.0, %v1860
        %v1862 = vpop.f32.mrb[0].mxu0
        %1863 = vmatprep.mubr.bf16.mxu0 0
        %1864 = vmatmul.mubr.bf16.gmra.mrb[0].mxu0 %v1779
        %v1865 = vpop.f32.mrb[0].mxu0
        %v1866 = vadd.f32 0.0, %v1865
        %v1867 = vpop.f32.mrb[0].mxu0
        %v1868 = vpop.f32.mrb[0].mxu0
        %v1869 = vadd.f32 0.0, %v1868
        %v1870 = vpop.f32.mrb[0].mxu0
        %1871 = vmatprep.mubr.bf16.mxu0 0
        %1872 = vmatmul.mubr.bf16.gmra.mrb[0].mxu0 %v1782
        %v1873 = vpop.f32.mrb[0].mxu0
        %v1874 = vadd.f32 0.0, %v1873
        %v1875 = vpop.f32.mrb[0].mxu0
        %v1876 = vpop.f32.mrb[0].mxu0
        %v1877 = vadd.f32 0.0, %v1876
        %v1878 = vpop.f32.mrb[0].mxu0
        %1879 = vmatprep.mubr.bf16.mxu0 0
        %1880 = vmatmul.mubr.bf16.gmra.mrb[0].mxu0 %v1785
        %v1881 = vpop.f32.mrb[0].mxu0
        %v1882 = vadd.f32 0.0, %v1881
        %v1883 = vpop.f32.mrb[0].mxu0
        %v1884 = vpop.f32.mrb[0].mxu0
        %v1885 = vadd.f32 0.0, %v1884
        %v1886 = vpop.f32.mrb[0].mxu0
        %1887 = vmatprep.mubr.bf16.mxu0 0
        %1888 = vmatmul.mubr.bf16.gmra.mrb[0].mxu0 %v1788
        %v1889 = vpop.f32.mrb[0].mxu0
        %v1890 = vadd.f32 0.0, %v1889
        %v1891 = vpop.f32.mrb[0].mxu0
        %v1892 = vpop.f32.mrb[0].mxu0
        %v1893 = vadd.f32 0.0, %v1892
        %v1894 = vpop.f32.mrb[0].mxu0
        %1895 = vmatprep.mubr.bf16.mxu0 0
        %1896 = vmatmul.mubr.bf16.gmra.mrb[0].mxu0 %v1791
        %v1897 = vpop.f32.mrb[0].mxu0
        %v1898 = vadd.f32 0.0, %v1897
        %v1899 = vpop.f32.mrb[0].mxu0
        %v1900 = vpop.f32.mrb[0].mxu0
        %v1901 = vadd.f32 0.0, %v1900
        %v1902 = vpop.f32.mrb[0].mxu0
        %1903 = vmatprep.mubr.bf16.mxu0 0
        %1904 = vmatmul.mubr.bf16.gmra.mrb[0].mxu0 %v1794
        %v1905 = vpop.f32.mrb[0].mxu0
        %v1906 = vadd.f32 0.0, %v1905
        %v1907 = vpop.f32.mrb[0].mxu0
        %v1908 = vpop.f32.mrb[0].mxu0
        %v1909 = vadd.f32 0.0, %v1908
        %v1910 = vpop.f32.mrb[0].mxu0
        %1911 = vmatprep.mubr.bf16.mxu0 0
        %1912 = vmatmul.mubr.bf16.gmra.mrb[0].mxu0 %v1797
        %v1913 = vpop.f32.mrb[0].mxu0
        %v1914 = vadd.f32 0.0, %v1913
        %v1915 = vpop.f32.mrb[0].mxu0
        %v1916 = vpop.f32.mrb[0].mxu0
        %v1917 = vadd.f32 0.0, %v1916
        %v1918 = vpop.f32.mrb[0].mxu0
        %1919 = vmatprep.mubr.bf16.mxu0 0
        %1920 = vmatmul.mubr.bf16.gmra.mrb[0].mxu0 %v1800
        %v1921 = vpop.f32.mrb[0].mxu0
        %v1922 = vadd.f32 0.0, %v1921
        %v1923 = vpop.f32.mrb[0].mxu0
        %v1924 = vpop.f32.mrb[0].mxu0
        %v1925 = vadd.f32 0.0, %v1924
        %v1926 = vpop.f32.mrb[0].mxu0
        %1927 = vmatprep.mubr.bf16.mxu0 0
        %1928 = vmatmul.mubr.bf16.gmra.mrb[0].mxu0 %v1803
        %v1929 = vpop.f32.mrb[0].mxu0
        %v1930 = vadd.f32 0.0, %v1929
        %v1931 = vpop.f32.mrb[0].mxu0
        %v1932 = vpop.f32.mrb[0].mxu0
        %v1933 = vadd.f32 0.0, %v1932
        %v1934 = vpop.f32.mrb[0].mxu0
        %1935 = vmatprep.mubr.bf16.mxu0 0
        %1936 = vmatmul.mubr.bf16.gmra.mrb[0].mxu0 %v1806
        %v1937 = vpop.f32.mrb[0].mxu0
        %v1938 = vadd.f32 0.0, %v1937
        %v1939 = vpop.f32.mrb[0].mxu0
        %v1940 = vpop.f32.mrb[0].mxu0
        %v1941 = vadd.f32 0.0, %v1940
        %v1942 = vpop.f32.mrb[0].mxu0
        %1943 = vmatprep.mubr.bf16.mxu0 0
        %1944 = vmatmul.mubr.bf16.gmra.mrb[0].mxu0 %v1809
        %v1945 = vpop.f32.mrb[0].mxu0
        %v1946 = vadd.f32 0.0, %v1945
        %v1947 = vpop.f32.mrb[0].mxu0
        %v1948 = vpop.f32.mrb[0].mxu0
        %v1949 = vadd.f32 0.0, %v1948
        %v1950 = vpop.f32.mrb[0].mxu0
        %1951 = vmatprep.mubr.bf16.mxu0 0
        %1952 = vmatmul.mubr.bf16.gmra.mrb[0].mxu0 %v1812
        %v1953 = vpop.f32.mrb[0].mxu0
        %v1954 = vadd.f32 0.0, %v1953
        %v1955 = vpop.f32.mrb[0].mxu0
        %v1956 = vpop.f32.mrb[0].mxu0
        %v1957 = vadd.f32 0.0, %v1956
        %v1958 = vpop.f32.mrb[0].mxu0
        %1959 = vmatprep.mubr.bf16.mxu0 0
        %1960 = vmatmul.mubr.bf16.gmra.mrb[0].mxu0 %v1815
        %v1961 = vpop.f32.mrb[0].mxu0
        %v1962 = vadd.f32 0.0, %v1961
        %v1963 = vpop.f32.mrb[0].mxu0
        %v1964 = vpop.f32.mrb[0].mxu0
        %v1965 = vadd.f32 0.0, %v1964
        %v1966 = vpop.f32.mrb[0].mxu0
        %1967 = vmatprep.mubr.bf16.mxu0 0
        %1968 = vmatmul.mubr.bf16.gmra.mrb[0].mxu0 %v1818
        %v1969 = vpop.f32.mrb[0].mxu0
        %v1970 = vadd.f32 0.0, %v1969
        %v1971 = vpop.f32.mrb[0].mxu0
        %v1972 = vpop.f32.mrb[0].mxu0
        %v1973 = vadd.f32 0.0, %v1972
        %v1974 = vpop.f32.mrb[0].mxu0
        %1975 = vmatprep.mubr.bf16.mxu0 0
        %1976 = vmatmul.mubr.bf16.gmra.mrb[0].mxu0 %v1821
        %v1977 = vpop.f32.mrb[0].mxu0
        %v1978 = vadd.f32 0.0, %v1977
        %v1979 = vpop.f32.mrb[0].mxu0
        %v1980 = vpop.f32.mrb[0].mxu0
        %v1981 = vadd.f32 0.0, %v1980
        %v1982 = vpop.f32.mrb[0].mxu0
        %1983 = vdwg.mxu0
        %v1984 = vadd.f32 %v1686, %v1858
        %v1985 = vadd.f32 %v1687, %v1861
        %v1986 = vadd.f32 %v1688, %v1866
        %v1987 = vadd.f32 %v1689, %v1869
        %v1988 = vadd.f32 %v1690, %v1874
        %v1989 = vadd.f32 %v1691, %v1877
        %v1990 = vadd.f32 %v1692, %v1882
        %v1991 = vadd.f32 %v1693, %v1885
        %v1992 = vadd.f32 %v1694, %v1890
        %v1993 = vadd.f32 %v1695, %v1893
        %v1994 = vadd.f32 %v1696, %v1898
        %v1995 = vadd.f32 %v1697, %v1901
        %v1996 = vadd.f32 %v1698, %v1906
        %v1997 = vadd.f32 %v1699, %v1909
        %v1998 = vadd.f32 %v1700, %v1914
        %v1999 = vadd.f32 %v1701, %v1917
        %v2000 = vadd.f32 %v1702, %v1922
        %v2001 = vadd.f32 %v1703, %v1925
        %v2002 = vadd.f32 %v1704, %v1930
        %v2003 = vadd.f32 %v1705, %v1933
        %v2004 = vadd.f32 %v1706, %v1938
        %v2005 = vadd.f32 %v1707, %v1941
        %v2006 = vadd.f32 %v1708, %v1946
        %v2007 = vadd.f32 %v1709, %v1949
        %v2008 = vadd.f32 %v1710, %v1954
        %v2009 = vadd.f32 %v1711, %v1957
        %v2010 = vadd.f32 %v1712, %v1962
        %v2011 = vadd.f32 %v1713, %v1965
        %v2012 = vadd.f32 %v1714, %v1970
        %v2013 = vadd.f32 %v1715, %v1973
        %v2014 = vadd.f32 %v1716, %v1978
        %v2015 = vadd.f32 %v1717, %v1981
        %v2016 = vld [vmem:[%s1419 + $0x2] sm:$0xff]
        %v2017 = vld [vmem:[%s1419 + $0xa] sm:$0xff]
        %v2018 = vld [vmem:[%s1419 + $0x1a] sm:$0xff]
        %v2019 = vld [vmem:[%s1419 + $0x22] sm:$0xff]
        %v2020 = vld [vmem:[%s1419 + $0x32] sm:$0xff]
        %v2021 = vld [vmem:[%s1419 + $0x3a] sm:$0xff]
        %v2022 = vld [vmem:[%s1419 + $0x4a] sm:$0xff]
        %v2023 = vld [vmem:[%s1419 + $0x52] sm:$0xff]
        %v2024 = vld [vmem:[%s1419 + $0x62] sm:$0xff]
        %v2025 = vld [vmem:[%s1419 + $0x6a] sm:$0xff]
        %v2026 = vld [vmem:[%s1419 + $0x7a] sm:$0xff]
        %v2027 = vld [vmem:[%s1419 + $0x82] sm:$0xff]
        %v2028 = vld [vmem:[%s1419 + $0x92] sm:$0xff]
        %v2029 = vld [vmem:[%s1419 + $0x9a] sm:$0xff]
        %v2030 = vld [vmem:[%s1419 + $0xaa] sm:$0xff]
        %v2031 = vld [vmem:[%s1419 + $0xb2] sm:$0xff]
        %v2032 = vld [vmem:[%s1419 + $0xc2] sm:$0xff]
        %v2033 = vld [vmem:[%s1419 + $0xca] sm:$0xff]
        %v2034 = vld [vmem:[%s1419 + $0xda] sm:$0xff]
        %v2035 = vld [vmem:[%s1419 + $0xe2] sm:$0xff]
        %v2036 = vld [vmem:[%s1419 + $0xf2] sm:$0xff]
        %v2037 = vld [vmem:[%s1419 + $0xfa] sm:$0xff]
        %v2038 = vld [vmem:[%s1419 + $0x10a] sm:$0xff]
        %v2039 = vld [vmem:[%s1419 + $0x112] sm:$0xff]
        %v2040 = vld [vmem:[%s1419 + $0x122] sm:$0xff]
        %v2041 = vld [vmem:[%s1419 + $0x12a] sm:$0xff]
        %v2042 = vld [vmem:[%s1419 + $0x13a] sm:$0xff]
        %v2043 = vld [vmem:[%s1419 + $0x142] sm:$0xff]
        %v2044 = vld [vmem:[%s1419 + $0x152] sm:$0xff]
        %v2045 = vld [vmem:[%s1419 + $0x15a] sm:$0xff]
        %v2046 = vld [vmem:[%s1419 + $0x16a] sm:$0xff]
        %v2047 = vld [vmem:[%s1419 + $0x172] sm:$0xff]
        %v2048 = vpack.c.bf16 %v2017, %v2016
        %v2049 = vpack.c.bf16 %v2019, %v2018
        %v2050 = vpack.c.bf16 %v2021, %v2020
        %v2051 = vpack.c.bf16 %v2023, %v2022
        %v2052 = vpack.c.bf16 %v2025, %v2024
        %v2053 = vpack.c.bf16 %v2027, %v2026
        %v2054 = vpack.c.bf16 %v2029, %v2028
        %v2055 = vpack.c.bf16 %v2031, %v2030
        %v2056 = vpack.c.bf16 %v2033, %v2032
        %v2057 = vpack.c.bf16 %v2035, %v2034
        %v2058 = vpack.c.bf16 %v2037, %v2036
        %v2059 = vpack.c.bf16 %v2039, %v2038
        %v2060 = vpack.c.bf16 %v2041, %v2040
        %v2061 = vpack.c.bf16 %v2043, %v2042
        %v2062 = vpack.c.bf16 %v2045, %v2044
        %v2063 = vpack.c.bf16 %v2047, %v2046
        %s2064 = scalar_lea.vmem [#allocation9], 40
        %v2065 = vld [vmem:[%s2064] sm:$0xf]
        %v2066 = vld [vmem:[%s2064 + $0x4] sm:$0xf]
        %v2069 = vunpack.c.l.b16 %v2065
        %v2070 = vunpack.c.l.b16 %v2066
        %v2071 = vpack.c.b16 %v2070, %v2069
        %v2074 = vsel %vm696, %v2048, 0
        %v2077 = vsel %vm696, %v2049, 0
        %v2080 = vsel %vm696, %v2050, 0
        %v2083 = vsel %vm696, %v2051, 0
        %v2086 = vsel %vm696, %v2052, 0
        %v2089 = vsel %vm696, %v2053, 0
        %v2092 = vsel %vm696, %v2054, 0
        %v2095 = vsel %vm696, %v2055, 0
        %v2098 = vsel %vm696, %v2056, 0
        %v2101 = vsel %vm696, %v2057, 0
        %v2104 = vsel %vm696, %v2058, 0
        %v2107 = vsel %vm696, %v2059, 0
        %v2110 = vsel %vm696, %v2060, 0
        %v2113 = vsel %vm696, %v2061, 0
        %v2116 = vsel %vm696, %v2062, 0
        %v2119 = vsel %vm696, %v2063, 0
        %2121 = vmatprep.subr.bf16.mxu0 0
        %2122 = vmatpush1.bf16.msra.mxu0 %v2071
        %2123 = vmatprep.subr.bf16.mxu0 0
        %2124 = vmatpush1.bf16.msra.mxu0 0
        %2125 = vmatprep.subr.bf16.mxu0 0
        %2126 = vmatpush1.bf16.msra.mxu0 0
        %2127 = vmatprep.subr.bf16.mxu0 0
        %2128 = vmatpush1.bf16.msra.mxu0 0
        %2129 = vmatprep.subr.bf16.mxu0 0
        %2130 = vmatpush1.bf16.msra.mxu0 0
        %2131 = vmatprep.subr.bf16.mxu0 0
        %2132 = vmatpush1.bf16.msra.mxu0 0
        %2133 = vmatprep.subr.bf16.mxu0 0
        %2134 = vmatpush1.bf16.msra.mxu0 0
        %2135 = vmatprep.subr.bf16.mxu0 0
        %2136 = vmatpush1.bf16.msra.mxu0 0
        %2137 = vmatprep.subr.bf16.mxu0 0
        %2138 = vmatpush1.bf16.msra.mxu0 0
        %2139 = vmatprep.subr.bf16.mxu0 0
        %2140 = vmatpush1.bf16.msra.mxu0 0
        %2141 = vmatprep.subr.bf16.mxu0 0
        %2142 = vmatpush1.bf16.msra.mxu0 0
        %2143 = vmatprep.subr.bf16.mxu0 0
        %2144 = vmatpush1.bf16.msra.mxu0 0
        %2145 = vmatprep.subr.bf16.mxu0 0
        %2146 = vmatpush1.bf16.msra.mxu0 0
        %2147 = vmatprep.subr.bf16.mxu0 0
        %2148 = vmatpush1.bf16.msra.mxu0 0
        %2149 = vmatprep.subr.bf16.mxu0 0
        %2150 = vmatpush1.bf16.msra.mxu0 0
        %2151 = vmatprep.subr.bf16.mxu0 0
        %2152 = vmatpush1.bf16.msra.mxu0 0
        %2153 = vmatprep.mubr.bf16.mxu0 0
        %2154 = vmatmul.mubr.bf16.gmra.mrb[0].mxu0 %v2074
        %v2155 = vpop.f32.mrb[0].mxu0
        %v2156 = vadd.f32 0.0, %v2155
        %v2157 = vpop.f32.mrb[0].mxu0
        %v2158 = vpop.f32.mrb[0].mxu0
        %v2159 = vadd.f32 0.0, %v2158
        %v2160 = vpop.f32.mrb[0].mxu0
        %2161 = vmatprep.mubr.bf16.mxu0 0
        %2162 = vmatmul.mubr.bf16.gmra.mrb[0].mxu0 %v2077
        %v2163 = vpop.f32.mrb[0].mxu0
        %v2164 = vadd.f32 0.0, %v2163
        %v2165 = vpop.f32.mrb[0].mxu0
        %v2166 = vpop.f32.mrb[0].mxu0
        %v2167 = vadd.f32 0.0, %v2166
        %v2168 = vpop.f32.mrb[0].mxu0
        %2169 = vmatprep.mubr.bf16.mxu0 0
        %2170 = vmatmul.mubr.bf16.gmra.mrb[0].mxu0 %v2080
        %v2171 = vpop.f32.mrb[0].mxu0
        %v2172 = vadd.f32 0.0, %v2171
        %v2173 = vpop.f32.mrb[0].mxu0
        %v2174 = vpop.f32.mrb[0].mxu0
        %v2175 = vadd.f32 0.0, %v2174
        %v2176 = vpop.f32.mrb[0].mxu0
        %2177 = vmatprep.mubr.bf16.mxu0 0
        %2178 = vmatmul.mubr.bf16.gmra.mrb[0].mxu0 %v2083
        %v2179 = vpop.f32.mrb[0].mxu0
        %v2180 = vadd.f32 0.0, %v2179
        %v2181 = vpop.f32.mrb[0].mxu0
        %v2182 = vpop.f32.mrb[0].mxu0
        %v2183 = vadd.f32 0.0, %v2182
        %v2184 = vpop.f32.mrb[0].mxu0
        %2185 = vmatprep.mubr.bf16.mxu0 0
        %2186 = vmatmul.mubr.bf16.gmra.mrb[0].mxu0 %v2086
        %v2187 = vpop.f32.mrb[0].mxu0
        %v2188 = vadd.f32 0.0, %v2187
        %v2189 = vpop.f32.mrb[0].mxu0
        %v2190 = vpop.f32.mrb[0].mxu0
        %v2191 = vadd.f32 0.0, %v2190
        %v2192 = vpop.f32.mrb[0].mxu0
        %2193 = vmatprep.mubr.bf16.mxu0 0
        %2194 = vmatmul.mubr.bf16.gmra.mrb[0].mxu0 %v2089
        %v2195 = vpop.f32.mrb[0].mxu0
        %v2196 = vadd.f32 0.0, %v2195
        %v2197 = vpop.f32.mrb[0].mxu0
        %v2198 = vpop.f32.mrb[0].mxu0
        %v2199 = vadd.f32 0.0, %v2198
        %v2200 = vpop.f32.mrb[0].mxu0
        %2201 = vmatprep.mubr.bf16.mxu0 0
        %2202 = vmatmul.mubr.bf16.gmra.mrb[0].mxu0 %v2092
        %v2203 = vpop.f32.mrb[0].mxu0
        %v2204 = vadd.f32 0.0, %v2203
        %v2205 = vpop.f32.mrb[0].mxu0
        %v2206 = vpop.f32.mrb[0].mxu0
        %v2207 = vadd.f32 0.0, %v2206
        %v2208 = vpop.f32.mrb[0].mxu0
        %2209 = vmatprep.mubr.bf16.mxu0 0
        %2210 = vmatmul.mubr.bf16.gmra.mrb[0].mxu0 %v2095
        %v2211 = vpop.f32.mrb[0].mxu0
        %v2212 = vadd.f32 0.0, %v2211
        %v2213 = vpop.f32.mrb[0].mxu0
        %v2214 = vpop.f32.mrb[0].mxu0
        %v2215 = vadd.f32 0.0, %v2214
        %v2216 = vpop.f32.mrb[0].mxu0
        %2217 = vmatprep.mubr.bf16.mxu0 0
        %2218 = vmatmul.mubr.bf16.gmra.mrb[0].mxu0 %v2098
        %v2219 = vpop.f32.mrb[0].mxu0
        %v2220 = vadd.f32 0.0, %v2219
        %v2221 = vpop.f32.mrb[0].mxu0
        %v2222 = vpop.f32.mrb[0].mxu0
        %v2223 = vadd.f32 0.0, %v2222
        %v2224 = vpop.f32.mrb[0].mxu0
        %2225 = vmatprep.mubr.bf16.mxu0 0
        %2226 = vmatmul.mubr.bf16.gmra.mrb[0].mxu0 %v2101
        %v2227 = vpop.f32.mrb[0].mxu0
        %v2228 = vadd.f32 0.0, %v2227
        %v2229 = vpop.f32.mrb[0].mxu0
        %v2230 = vpop.f32.mrb[0].mxu0
        %v2231 = vadd.f32 0.0, %v2230
        %v2232 = vpop.f32.mrb[0].mxu0
        %2233 = vmatprep.mubr.bf16.mxu0 0
        %2234 = vmatmul.mubr.bf16.gmra.mrb[0].mxu0 %v2104
        %v2235 = vpop.f32.mrb[0].mxu0
        %v2236 = vadd.f32 0.0, %v2235
        %v2237 = vpop.f32.mrb[0].mxu0
        %v2238 = vpop.f32.mrb[0].mxu0
        %v2239 = vadd.f32 0.0, %v2238
        %v2240 = vpop.f32.mrb[0].mxu0
        %2241 = vmatprep.mubr.bf16.mxu0 0
        %2242 = vmatmul.mubr.bf16.gmra.mrb[0].mxu0 %v2107
        %v2243 = vpop.f32.mrb[0].mxu0
        %v2244 = vadd.f32 0.0, %v2243
        %v2245 = vpop.f32.mrb[0].mxu0
        %v2246 = vpop.f32.mrb[0].mxu0
        %v2247 = vadd.f32 0.0, %v2246
        %v2248 = vpop.f32.mrb[0].mxu0
        %2249 = vmatprep.mubr.bf16.mxu0 0
        %2250 = vmatmul.mubr.bf16.gmra.mrb[0].mxu0 %v2110
        %v2251 = vpop.f32.mrb[0].mxu0
        %v2252 = vadd.f32 0.0, %v2251
        %v2253 = vpop.f32.mrb[0].mxu0
        %v2254 = vpop.f32.mrb[0].mxu0
        %v2255 = vadd.f32 0.0, %v2254
        %v2256 = vpop.f32.mrb[0].mxu0
        %2257 = vmatprep.mubr.bf16.mxu0 0
        %2258 = vmatmul.mubr.bf16.gmra.mrb[0].mxu0 %v2113
        %v2259 = vpop.f32.mrb[0].mxu0
        %v2260 = vadd.f32 0.0, %v2259
        %v2261 = vpop.f32.mrb[0].mxu0
        %v2262 = vpop.f32.mrb[0].mxu0
        %v2263 = vadd.f32 0.0, %v2262
        %v2264 = vpop.f32.mrb[0].mxu0
        %2265 = vmatprep.mubr.bf16.mxu0 0
        %2266 = vmatmul.mubr.bf16.gmra.mrb[0].mxu0 %v2116
        %v2267 = vpop.f32.mrb[0].mxu0
        %v2268 = vadd.f32 0.0, %v2267
        %v2269 = vpop.f32.mrb[0].mxu0
        %v2270 = vpop.f32.mrb[0].mxu0
        %v2271 = vadd.f32 0.0, %v2270
        %v2272 = vpop.f32.mrb[0].mxu0
        %2273 = vmatprep.mubr.bf16.mxu0 0
        %2274 = vmatmul.mubr.bf16.gmra.mrb[0].mxu0 %v2119
        %v2275 = vpop.f32.mrb[0].mxu0
        %v2276 = vadd.f32 0.0, %v2275
        %v2277 = vpop.f32.mrb[0].mxu0
        %v2278 = vpop.f32.mrb[0].mxu0
        %v2279 = vadd.f32 0.0, %v2278
        %v2280 = vpop.f32.mrb[0].mxu0
        %2281 = vdwg.mxu0
        %v2282 = vadd.f32 %v1984, %v2156
        %v2283 = vadd.f32 %v1985, %v2159
        %v2284 = vadd.f32 %v1986, %v2164
        %v2285 = vadd.f32 %v1987, %v2167
        %v2286 = vadd.f32 %v1988, %v2172
        %v2287 = vadd.f32 %v1989, %v2175
        %v2288 = vadd.f32 %v1990, %v2180
        %v2289 = vadd.f32 %v1991, %v2183
        %v2290 = vadd.f32 %v1992, %v2188
        %v2291 = vadd.f32 %v1993, %v2191
        %v2292 = vadd.f32 %v1994, %v2196
        %v2293 = vadd.f32 %v1995, %v2199
        %v2294 = vadd.f32 %v1996, %v2204
        %v2295 = vadd.f32 %v1997, %v2207
        %v2296 = vadd.f32 %v1998, %v2212
        %v2297 = vadd.f32 %v1999, %v2215
        %v2298 = vadd.f32 %v2000, %v2220
        %v2299 = vadd.f32 %v2001, %v2223
        %v2300 = vadd.f32 %v2002, %v2228
        %v2301 = vadd.f32 %v2003, %v2231
        %v2302 = vadd.f32 %v2004, %v2236
        %v2303 = vadd.f32 %v2005, %v2239
        %v2304 = vadd.f32 %v2006, %v2244
        %v2305 = vadd.f32 %v2007, %v2247
        %v2306 = vadd.f32 %v2008, %v2252
        %v2307 = vadd.f32 %v2009, %v2255
        %v2308 = vadd.f32 %v2010, %v2260
        %v2309 = vadd.f32 %v2011, %v2263
        %v2310 = vadd.f32 %v2012, %v2268
        %v2311 = vadd.f32 %v2013, %v2271
        %v2312 = vadd.f32 %v2014, %v2276
        %v2313 = vadd.f32 %v2015, %v2279
        %s2314 = scalar_lea.vmem [#allocation2], 48
        %v2315 = vld [vmem:[%s2314] sm:$0xff]
        %v2316 = vld [vmem:[%s2314 + $0x8] sm:$0xff]
        %v2317 = vld [vmem:[%s2314 + $0x18] sm:$0xff]
        %v2318 = vld [vmem:[%s2314 + $0x20] sm:$0xff]
        %v2319 = vld [vmem:[%s2314 + $0x30] sm:$0xff]
        %v2320 = vld [vmem:[%s2314 + $0x38] sm:$0xff]
        %v2321 = vld [vmem:[%s2314 + $0x48] sm:$0xff]
        %v2322 = vld [vmem:[%s2314 + $0x50] sm:$0xff]
        %v2323 = vld [vmem:[%s2314 + $0x60] sm:$0xff]
        %v2324 = vld [vmem:[%s2314 + $0x68] sm:$0xff]
        %v2325 = vld [vmem:[%s2314 + $0x78] sm:$0xff]
        %v2326 = vld [vmem:[%s2314 + $0x80] sm:$0xff]
        %v2327 = vld [vmem:[%s2314 + $0x90] sm:$0xff]
        %v2328 = vld [vmem:[%s2314 + $0x98] sm:$0xff]
        %v2329 = vld [vmem:[%s2314 + $0xa8] sm:$0xff]
        %v2330 = vld [vmem:[%s2314 + $0xb0] sm:$0xff]
        %v2331 = vld [vmem:[%s2314 + $0xc0] sm:$0xff]
        %v2332 = vld [vmem:[%s2314 + $0xc8] sm:$0xff]
        %v2333 = vld [vmem:[%s2314 + $0xd8] sm:$0xff]
        %v2334 = vld [vmem:[%s2314 + $0xe0] sm:$0xff]
        %v2335 = vld [vmem:[%s2314 + $0xf0] sm:$0xff]
        %v2336 = vld [vmem:[%s2314 + $0xf8] sm:$0xff]
        %v2337 = vld [vmem:[%s2314 + $0x108] sm:$0xff]
        %v2338 = vld [vmem:[%s2314 + $0x110] sm:$0xff]
        %v2339 = vld [vmem:[%s2314 + $0x120] sm:$0xff]
        %v2340 = vld [vmem:[%s2314 + $0x128] sm:$0xff]
        %v2341 = vld [vmem:[%s2314 + $0x138] sm:$0xff]
        %v2342 = vld [vmem:[%s2314 + $0x140] sm:$0xff]
        %v2343 = vld [vmem:[%s2314 + $0x150] sm:$0xff]
        %v2344 = vld [vmem:[%s2314 + $0x158] sm:$0xff]
        %v2345 = vld [vmem:[%s2314 + $0x168] sm:$0xff]
        %v2346 = vld [vmem:[%s2314 + $0x170] sm:$0xff]
        %v2347 = vpack.c.bf16 %v2316, %v2315
        %v2348 = vpack.c.bf16 %v2318, %v2317
        %v2349 = vpack.c.bf16 %v2320, %v2319
        %v2350 = vpack.c.bf16 %v2322, %v2321
        %v2351 = vpack.c.bf16 %v2324, %v2323
        %v2352 = vpack.c.bf16 %v2326, %v2325
        %v2353 = vpack.c.bf16 %v2328, %v2327
        %v2354 = vpack.c.bf16 %v2330, %v2329
        %v2355 = vpack.c.bf16 %v2332, %v2331
        %v2356 = vpack.c.bf16 %v2334, %v2333
        %v2357 = vpack.c.bf16 %v2336, %v2335
        %v2358 = vpack.c.bf16 %v2338, %v2337
        %v2359 = vpack.c.bf16 %v2340, %v2339
        %v2360 = vpack.c.bf16 %v2342, %v2341
        %v2361 = vpack.c.bf16 %v2344, %v2343
        %v2362 = vpack.c.bf16 %v2346, %v2345
        %s2363 = scalar_lea.vmem [#allocation9], 48
        %v2364 = vld [vmem:[%s2363] sm:$0xf]
        %v2365 = vld [vmem:[%s2363 + $0x4] sm:$0xf]
        %v2368 = vunpack.c.l.b16 %v2364
        %v2369 = vunpack.c.l.b16 %v2365
        %v2370 = vpack.c.b16 %v2369, %v2368
        %v2373 = vsel %vm696, %v2347, 0
        %v2376 = vsel %vm696, %v2348, 0
        %v2379 = vsel %vm696, %v2349, 0
        %v2382 = vsel %vm696, %v2350, 0
        %v2385 = vsel %vm696, %v2351, 0
        %v2388 = vsel %vm696, %v2352, 0
        %v2391 = vsel %vm696, %v2353, 0
        %v2394 = vsel %vm696, %v2354, 0
        %v2397 = vsel %vm696, %v2355, 0
        %v2400 = vsel %vm696, %v2356, 0
        %v2403 = vsel %vm696, %v2357, 0
        %v2406 = vsel %vm696, %v2358, 0
        %v2409 = vsel %vm696, %v2359, 0
        %v2412 = vsel %vm696, %v2360, 0
        %v2415 = vsel %vm696, %v2361, 0
        %v2418 = vsel %vm696, %v2362, 0
        %2420 = vmatprep.subr.bf16.mxu0 0
        %2421 = vmatpush1.bf16.msra.mxu0 %v2370
        %2422 = vmatprep.subr.bf16.mxu0 0
        %2423 = vmatpush1.bf16.msra.mxu0 0
        %2424 = vmatprep.subr.bf16.mxu0 0
        %2425 = vmatpush1.bf16.msra.mxu0 0
        %2426 = vmatprep.subr.bf16.mxu0 0
        %2427 = vmatpush1.bf16.msra.mxu0 0
        %2428 = vmatprep.subr.bf16.mxu0 0
        %2429 = vmatpush1.bf16.msra.mxu0 0
        %2430 = vmatprep.subr.bf16.mxu0 0
        %2431 = vmatpush1.bf16.msra.mxu0 0
        %2432 = vmatprep.subr.bf16.mxu0 0
        %2433 = vmatpush1.bf16.msra.mxu0 0
        %2434 = vmatprep.subr.bf16.mxu0 0
        %2435 = vmatpush1.bf16.msra.mxu0 0
        %2436 = vmatprep.subr.bf16.mxu0 0
        %2437 = vmatpush1.bf16.msra.mxu0 0
        %2438 = vmatprep.subr.bf16.mxu0 0
        %2439 = vmatpush1.bf16.msra.mxu0 0
        %2440 = vmatprep.subr.bf16.mxu0 0
        %2441 = vmatpush1.bf16.msra.mxu0 0
        %2442 = vmatprep.subr.bf16.mxu0 0
        %2443 = vmatpush1.bf16.msra.mxu0 0
        %2444 = vmatprep.subr.bf16.mxu0 0
        %2445 = vmatpush1.bf16.msra.mxu0 0
        %2446 = vmatprep.subr.bf16.mxu0 0
        %2447 = vmatpush1.bf16.msra.mxu0 0
        %2448 = vmatprep.subr.bf16.mxu0 0
        %2449 = vmatpush1.bf16.msra.mxu0 0
        %2450 = vmatprep.subr.bf16.mxu0 0
        %2451 = vmatpush1.bf16.msra.mxu0 0
        %2452 = vmatprep.mubr.bf16.mxu0 0
        %2453 = vmatmul.mubr.bf16.gmra.mrb[0].mxu0 %v2373
        %v2454 = vpop.f32.mrb[0].mxu0
        %v2455 = vadd.f32 0.0, %v2454
        %v2456 = vpop.f32.mrb[0].mxu0
        %v2457 = vpop.f32.mrb[0].mxu0
        %v2458 = vadd.f32 0.0, %v2457
        %v2459 = vpop.f32.mrb[0].mxu0
        %2460 = vmatprep.mubr.bf16.mxu0 0
        %2461 = vmatmul.mubr.bf16.gmra.mrb[0].mxu0 %v2376
        %v2462 = vpop.f32.mrb[0].mxu0
        %v2463 = vadd.f32 0.0, %v2462
        %v2464 = vpop.f32.mrb[0].mxu0
        %v2465 = vpop.f32.mrb[0].mxu0
        %v2466 = vadd.f32 0.0, %v2465
        %v2467 = vpop.f32.mrb[0].mxu0
        %2468 = vmatprep.mubr.bf16.mxu0 0
        %2469 = vmatmul.mubr.bf16.gmra.mrb[0].mxu0 %v2379
        %v2470 = vpop.f32.mrb[0].mxu0
        %v2471 = vadd.f32 0.0, %v2470
        %v2472 = vpop.f32.mrb[0].mxu0
        %v2473 = vpop.f32.mrb[0].mxu0
        %v2474 = vadd.f32 0.0, %v2473
        %v2475 = vpop.f32.mrb[0].mxu0
        %2476 = vmatprep.mubr.bf16.mxu0 0
        %2477 = vmatmul.mubr.bf16.gmra.mrb[0].mxu0 %v2382
        %v2478 = vpop.f32.mrb[0].mxu0
        %v2479 = vadd.f32 0.0, %v2478
        %v2480 = vpop.f32.mrb[0].mxu0
        %v2481 = vpop.f32.mrb[0].mxu0
        %v2482 = vadd.f32 0.0, %v2481
        %v2483 = vpop.f32.mrb[0].mxu0
        %2484 = vmatprep.mubr.bf16.mxu0 0
        %2485 = vmatmul.mubr.bf16.gmra.mrb[0].mxu0 %v2385
        %v2486 = vpop.f32.mrb[0].mxu0
        %v2487 = vadd.f32 0.0, %v2486
        %v2488 = vpop.f32.mrb[0].mxu0
        %v2489 = vpop.f32.mrb[0].mxu0
        %v2490 = vadd.f32 0.0, %v2489
        %v2491 = vpop.f32.mrb[0].mxu0
        %2492 = vmatprep.mubr.bf16.mxu0 0
        %2493 = vmatmul.mubr.bf16.gmra.mrb[0].mxu0 %v2388
        %v2494 = vpop.f32.mrb[0].mxu0
        %v2495 = vadd.f32 0.0, %v2494
        %v2496 = vpop.f32.mrb[0].mxu0
        %v2497 = vpop.f32.mrb[0].mxu0
        %v2498 = vadd.f32 0.0, %v2497
        %v2499 = vpop.f32.mrb[0].mxu0
        %2500 = vmatprep.mubr.bf16.mxu0 0
        %2501 = vmatmul.mubr.bf16.gmra.mrb[0].mxu0 %v2391
        %v2502 = vpop.f32.mrb[0].mxu0
        %v2503 = vadd.f32 0.0, %v2502
        %v2504 = vpop.f32.mrb[0].mxu0
        %v2505 = vpop.f32.mrb[0].mxu0
        %v2506 = vadd.f32 0.0, %v2505
        %v2507 = vpop.f32.mrb[0].mxu0
        %2508 = vmatprep.mubr.bf16.mxu0 0
        %2509 = vmatmul.mubr.bf16.gmra.mrb[0].mxu0 %v2394
        %v2510 = vpop.f32.mrb[0].mxu0
        %v2511 = vadd.f32 0.0, %v2510
        %v2512 = vpop.f32.mrb[0].mxu0
        %v2513 = vpop.f32.mrb[0].mxu0
        %v2514 = vadd.f32 0.0, %v2513
        %v2515 = vpop.f32.mrb[0].mxu0
        %2516 = vmatprep.mubr.bf16.mxu0 0
        %2517 = vmatmul.mubr.bf16.gmra.mrb[0].mxu0 %v2397
        %v2518 = vpop.f32.mrb[0].mxu0
        %v2519 = vadd.f32 0.0, %v2518
        %v2520 = vpop.f32.mrb[0].mxu0
        %v2521 = vpop.f32.mrb[0].mxu0
        %v2522 = vadd.f32 0.0, %v2521
        %v2523 = vpop.f32.mrb[0].mxu0
        %2524 = vmatprep.mubr.bf16.mxu0 0
        %2525 = vmatmul.mubr.bf16.gmra.mrb[0].mxu0 %v2400
        %v2526 = vpop.f32.mrb[0].mxu0
        %v2527 = vadd.f32 0.0, %v2526
        %v2528 = vpop.f32.mrb[0].mxu0
        %v2529 = vpop.f32.mrb[0].mxu0
        %v2530 = vadd.f32 0.0, %v2529
        %v2531 = vpop.f32.mrb[0].mxu0
        %2532 = vmatprep.mubr.bf16.mxu0 0
        %2533 = vmatmul.mubr.bf16.gmra.mrb[0].mxu0 %v2403
        %v2534 = vpop.f32.mrb[0].mxu0
        %v2535 = vadd.f32 0.0, %v2534
        %v2536 = vpop.f32.mrb[0].mxu0
        %v2537 = vpop.f32.mrb[0].mxu0
        %v2538 = vadd.f32 0.0, %v2537
        %v2539 = vpop.f32.mrb[0].mxu0
        %2540 = vmatprep.mubr.bf16.mxu0 0
        %2541 = vmatmul.mubr.bf16.gmra.mrb[0].mxu0 %v2406
        %v2542 = vpop.f32.mrb[0].mxu0
        %v2543 = vadd.f32 0.0, %v2542
        %v2544 = vpop.f32.mrb[0].mxu0
        %v2545 = vpop.f32.mrb[0].mxu0
        %v2546 = vadd.f32 0.0, %v2545
        %v2547 = vpop.f32.mrb[0].mxu0
        %2548 = vmatprep.mubr.bf16.mxu0 0
        %2549 = vmatmul.mubr.bf16.gmra.mrb[0].mxu0 %v2409
        %v2550 = vpop.f32.mrb[0].mxu0
        %v2551 = vadd.f32 0.0, %v2550
        %v2552 = vpop.f32.mrb[0].mxu0
        %v2553 = vpop.f32.mrb[0].mxu0
        %v2554 = vadd.f32 0.0, %v2553
        %v2555 = vpop.f32.mrb[0].mxu0
        %2556 = vmatprep.mubr.bf16.mxu0 0
        %2557 = vmatmul.mubr.bf16.gmra.mrb[0].mxu0 %v2412
        %v2558 = vpop.f32.mrb[0].mxu0
        %v2559 = vadd.f32 0.0, %v2558
        %v2560 = vpop.f32.mrb[0].mxu0
        %v2561 = vpop.f32.mrb[0].mxu0
        %v2562 = vadd.f32 0.0, %v2561
        %v2563 = vpop.f32.mrb[0].mxu0
        %2564 = vmatprep.mubr.bf16.mxu0 0
        %2565 = vmatmul.mubr.bf16.gmra.mrb[0].mxu0 %v2415
        %v2566 = vpop.f32.mrb[0].mxu0
        %v2567 = vadd.f32 0.0, %v2566
        %v2568 = vpop.f32.mrb[0].mxu0
        %v2569 = vpop.f32.mrb[0].mxu0
        %v2570 = vadd.f32 0.0, %v2569
        %v2571 = vpop.f32.mrb[0].mxu0
        %2572 = vmatprep.mubr.bf16.mxu0 0
        %2573 = vmatmul.mubr.bf16.gmra.mrb[0].mxu0 %v2418
        %v2574 = vpop.f32.mrb[0].mxu0
        %v2575 = vadd.f32 0.0, %v2574
        %v2576 = vpop.f32.mrb[0].mxu0
        %v2577 = vpop.f32.mrb[0].mxu0
        %v2578 = vadd.f32 0.0, %v2577
        %v2579 = vpop.f32.mrb[0].mxu0
        %2580 = vdwg.mxu0
        %v2581 = vadd.f32 %v2282, %v2455
        %v2582 = vadd.f32 %v2283, %v2458
        %v2583 = vadd.f32 %v2284, %v2463
        %v2584 = vadd.f32 %v2285, %v2466
        %v2585 = vadd.f32 %v2286, %v2471
        %v2586 = vadd.f32 %v2287, %v2474
        %v2587 = vadd.f32 %v2288, %v2479
        %v2588 = vadd.f32 %v2289, %v2482
        %v2589 = vadd.f32 %v2290, %v2487
        %v2590 = vadd.f32 %v2291, %v2490
        %v2591 = vadd.f32 %v2292, %v2495
        %v2592 = vadd.f32 %v2293, %v2498
        %v2593 = vadd.f32 %v2294, %v2503
        %v2594 = vadd.f32 %v2295, %v2506
        %v2595 = vadd.f32 %v2296, %v2511
        %v2596 = vadd.f32 %v2297, %v2514
        %v2597 = vadd.f32 %v2298, %v2519
        %v2598 = vadd.f32 %v2299, %v2522
        %v2599 = vadd.f32 %v2300, %v2527
        %v2600 = vadd.f32 %v2301, %v2530
        %v2601 = vadd.f32 %v2302, %v2535
        %v2602 = vadd.f32 %v2303, %v2538
        %v2603 = vadd.f32 %v2304, %v2543
        %v2604 = vadd.f32 %v2305, %v2546
        %v2605 = vadd.f32 %v2306, %v2551
        %v2606 = vadd.f32 %v2307, %v2554
        %v2607 = vadd.f32 %v2308, %v2559
        %v2608 = vadd.f32 %v2309, %v2562
        %v2609 = vadd.f32 %v2310, %v2567
        %v2610 = vadd.f32 %v2311, %v2570
        %v2611 = vadd.f32 %v2312, %v2575
        %v2612 = vadd.f32 %v2313, %v2578
        %v2613 = vld [vmem:[%s2314 + $0x1] sm:$0xff]
        %v2614 = vld [vmem:[%s2314 + $0x9] sm:$0xff]
        %v2615 = vld [vmem:[%s2314 + $0x19] sm:$0xff]
        %v2616 = vld [vmem:[%s2314 + $0x21] sm:$0xff]
        %v2617 = vld [vmem:[%s2314 + $0x31] sm:$0xff]
        %v2618 = vld [vmem:[%s2314 + $0x39] sm:$0xff]
        %v2619 = vld [vmem:[%s2314 + $0x49] sm:$0xff]
        %v2620 = vld [vmem:[%s2314 + $0x51] sm:$0xff]
        %v2621 = vld [vmem:[%s2314 + $0x61] sm:$0xff]
        %v2622 = vld [vmem:[%s2314 + $0x69] sm:$0xff]
        %v2623 = vld [vmem:[%s2314 + $0x79] sm:$0xff]
        %v2624 = vld [vmem:[%s2314 + $0x81] sm:$0xff]
        %v2625 = vld [vmem:[%s2314 + $0x91] sm:$0xff]
        %v2626 = vld [vmem:[%s2314 + $0x99] sm:$0xff]
        %v2627 = vld [vmem:[%s2314 + $0xa9] sm:$0xff]
        %v2628 = vld [vmem:[%s2314 + $0xb1] sm:$0xff]
        %v2629 = vld [vmem:[%s2314 + $0xc1] sm:$0xff]
        %v2630 = vld [vmem:[%s2314 + $0xc9] sm:$0xff]
        %v2631 = vld [vmem:[%s2314 + $0xd9] sm:$0xff]
        %v2632 = vld [vmem:[%s2314 + $0xe1] sm:$0xff]
        %v2633 = vld [vmem:[%s2314 + $0xf1] sm:$0xff]
        %v2634 = vld [vmem:[%s2314 + $0xf9] sm:$0xff]
        %v2635 = vld [vmem:[%s2314 + $0x109] sm:$0xff]
        %v2636 = vld [vmem:[%s2314 + $0x111] sm:$0xff]
        %v2637 = vld [vmem:[%s2314 + $0x121] sm:$0xff]
        %v2638 = vld [vmem:[%s2314 + $0x129] sm:$0xff]
        %v2639 = vld [vmem:[%s2314 + $0x139] sm:$0xff]
        %v2640 = vld [vmem:[%s2314 + $0x141] sm:$0xff]
        %v2641 = vld [vmem:[%s2314 + $0x151] sm:$0xff]
        %v2642 = vld [vmem:[%s2314 + $0x159] sm:$0xff]
        %v2643 = vld [vmem:[%s2314 + $0x169] sm:$0xff]
        %v2644 = vld [vmem:[%s2314 + $0x171] sm:$0xff]
        %v2645 = vpack.c.bf16 %v2614, %v2613
        %v2646 = vpack.c.bf16 %v2616, %v2615
        %v2647 = vpack.c.bf16 %v2618, %v2617
        %v2648 = vpack.c.bf16 %v2620, %v2619
        %v2649 = vpack.c.bf16 %v2622, %v2621
        %v2650 = vpack.c.bf16 %v2624, %v2623
        %v2651 = vpack.c.bf16 %v2626, %v2625
        %v2652 = vpack.c.bf16 %v2628, %v2627
        %v2653 = vpack.c.bf16 %v2630, %v2629
        %v2654 = vpack.c.bf16 %v2632, %v2631
        %v2655 = vpack.c.bf16 %v2634, %v2633
        %v2656 = vpack.c.bf16 %v2636, %v2635
        %v2657 = vpack.c.bf16 %v2638, %v2637
        %v2658 = vpack.c.bf16 %v2640, %v2639
        %v2659 = vpack.c.bf16 %v2642, %v2641
        %v2660 = vpack.c.bf16 %v2644, %v2643
        %s2661 = scalar_lea.vmem [#allocation9], 56
        %v2662 = vld [vmem:[%s2661] sm:$0xf]
        %v2663 = vld [vmem:[%s2661 + $0x4] sm:$0xf]
        %v2666 = vunpack.c.l.b16 %v2662
        %v2667 = vunpack.c.l.b16 %v2663
        %v2668 = vpack.c.b16 %v2667, %v2666
        %v2671 = vsel %vm696, %v2645, 0
        %v2674 = vsel %vm696, %v2646, 0
        %v2677 = vsel %vm696, %v2647, 0
        %v2680 = vsel %vm696, %v2648, 0
        %v2683 = vsel %vm696, %v2649, 0
        %v2686 = vsel %vm696, %v2650, 0
        %v2689 = vsel %vm696, %v2651, 0
        %v2692 = vsel %vm696, %v2652, 0
        %v2695 = vsel %vm696, %v2653, 0
        %v2698 = vsel %vm696, %v2654, 0
        %v2701 = vsel %vm696, %v2655, 0
        %v2704 = vsel %vm696, %v2656, 0
        %v2707 = vsel %vm696, %v2657, 0
        %v2710 = vsel %vm696, %v2658, 0
        %v2713 = vsel %vm696, %v2659, 0
        %v2716 = vsel %vm696, %v2660, 0
        %2718 = vmatprep.subr.bf16.mxu0 0
        %2719 = vmatpush1.bf16.msra.mxu0 %v2668
        %2720 = vmatprep.subr.bf16.mxu0 0
        %2721 = vmatpush1.bf16.msra.mxu0 0
        %2722 = vmatprep.subr.bf16.mxu0 0
        %2723 = vmatpush1.bf16.msra.mxu0 0
        %2724 = vmatprep.subr.bf16.mxu0 0
        %2725 = vmatpush1.bf16.msra.mxu0 0
        %2726 = vmatprep.subr.bf16.mxu0 0
        %2727 = vmatpush1.bf16.msra.mxu0 0
        %2728 = vmatprep.subr.bf16.mxu0 0
        %2729 = vmatpush1.bf16.msra.mxu0 0
        %2730 = vmatprep.subr.bf16.mxu0 0
        %2731 = vmatpush1.bf16.msra.mxu0 0
        %2732 = vmatprep.subr.bf16.mxu0 0
        %2733 = vmatpush1.bf16.msra.mxu0 0
        %2734 = vmatprep.subr.bf16.mxu0 0
        %2735 = vmatpush1.bf16.msra.mxu0 0
        %2736 = vmatprep.subr.bf16.mxu0 0
        %2737 = vmatpush1.bf16.msra.mxu0 0
        %2738 = vmatprep.subr.bf16.mxu0 0
        %2739 = vmatpush1.bf16.msra.mxu0 0
        %2740 = vmatprep.subr.bf16.mxu0 0
        %2741 = vmatpush1.bf16.msra.mxu0 0
        %2742 = vmatprep.subr.bf16.mxu0 0
        %2743 = vmatpush1.bf16.msra.mxu0 0
        %2744 = vmatprep.subr.bf16.mxu0 0
        %2745 = vmatpush1.bf16.msra.mxu0 0
        %2746 = vmatprep.subr.bf16.mxu0 0
        %2747 = vmatpush1.bf16.msra.mxu0 0
        %2748 = vmatprep.subr.bf16.mxu0 0
        %2749 = vmatpush1.bf16.msra.mxu0 0
        %2750 = vmatprep.mubr.bf16.mxu0 0
        %2751 = vmatmul.mubr.bf16.gmra.mrb[0].mxu0 %v2671
        %v2752 = vpop.f32.mrb[0].mxu0
        %v2753 = vadd.f32 0.0, %v2752
        %v2754 = vpop.f32.mrb[0].mxu0
        %v2755 = vpop.f32.mrb[0].mxu0
        %v2756 = vadd.f32 0.0, %v2755
        %v2757 = vpop.f32.mrb[0].mxu0
        %2758 = vmatprep.mubr.bf16.mxu0 0
        %2759 = vmatmul.mubr.bf16.gmra.mrb[0].mxu0 %v2674
        %v2760 = vpop.f32.mrb[0].mxu0
        %v2761 = vadd.f32 0.0, %v2760
        %v2762 = vpop.f32.mrb[0].mxu0
        %v2763 = vpop.f32.mrb[0].mxu0
        %v2764 = vadd.f32 0.0, %v2763
        %v2765 = vpop.f32.mrb[0].mxu0
        %2766 = vmatprep.mubr.bf16.mxu0 0
        %2767 = vmatmul.mubr.bf16.gmra.mrb[0].mxu0 %v2677
        %v2768 = vpop.f32.mrb[0].mxu0
        %v2769 = vadd.f32 0.0, %v2768
        %v2770 = vpop.f32.mrb[0].mxu0
        %v2771 = vpop.f32.mrb[0].mxu0
        %v2772 = vadd.f32 0.0, %v2771
        %v2773 = vpop.f32.mrb[0].mxu0
        %2774 = vmatprep.mubr.bf16.mxu0 0
        %2775 = vmatmul.mubr.bf16.gmra.mrb[0].mxu0 %v2680
        %v2776 = vpop.f32.mrb[0].mxu0
        %v2777 = vadd.f32 0.0, %v2776
        %v2778 = vpop.f32.mrb[0].mxu0
        %v2779 = vpop.f32.mrb[0].mxu0
        %v2780 = vadd.f32 0.0, %v2779
        %v2781 = vpop.f32.mrb[0].mxu0
        %2782 = vmatprep.mubr.bf16.mxu0 0
        %2783 = vmatmul.mubr.bf16.gmra.mrb[0].mxu0 %v2683
        %v2784 = vpop.f32.mrb[0].mxu0
        %v2785 = vadd.f32 0.0, %v2784
        %v2786 = vpop.f32.mrb[0].mxu0
        %v2787 = vpop.f32.mrb[0].mxu0
        %v2788 = vadd.f32 0.0, %v2787
        %v2789 = vpop.f32.mrb[0].mxu0
        %2790 = vmatprep.mubr.bf16.mxu0 0
        %2791 = vmatmul.mubr.bf16.gmra.mrb[0].mxu0 %v2686
        %v2792 = vpop.f32.mrb[0].mxu0
        %v2793 = vadd.f32 0.0, %v2792
        %v2794 = vpop.f32.mrb[0].mxu0
        %v2795 = vpop.f32.mrb[0].mxu0
        %v2796 = vadd.f32 0.0, %v2795
        %v2797 = vpop.f32.mrb[0].mxu0
        %2798 = vmatprep.mubr.bf16.mxu0 0
        %2799 = vmatmul.mubr.bf16.gmra.mrb[0].mxu0 %v2689
        %v2800 = vpop.f32.mrb[0].mxu0
        %v2801 = vadd.f32 0.0, %v2800
        %v2802 = vpop.f32.mrb[0].mxu0
        %v2803 = vpop.f32.mrb[0].mxu0
        %v2804 = vadd.f32 0.0, %v2803
        %v2805 = vpop.f32.mrb[0].mxu0
        %2806 = vmatprep.mubr.bf16.mxu0 0
        %2807 = vmatmul.mubr.bf16.gmra.mrb[0].mxu0 %v2692
        %v2808 = vpop.f32.mrb[0].mxu0
        %v2809 = vadd.f32 0.0, %v2808
        %v2810 = vpop.f32.mrb[0].mxu0
        %v2811 = vpop.f32.mrb[0].mxu0
        %v2812 = vadd.f32 0.0, %v2811
        %v2813 = vpop.f32.mrb[0].mxu0
        %2814 = vmatprep.mubr.bf16.mxu0 0
        %2815 = vmatmul.mubr.bf16.gmra.mrb[0].mxu0 %v2695
        %v2816 = vpop.f32.mrb[0].mxu0
        %v2817 = vadd.f32 0.0, %v2816
        %v2818 = vpop.f32.mrb[0].mxu0
        %v2819 = vpop.f32.mrb[0].mxu0
        %v2820 = vadd.f32 0.0, %v2819
        %v2821 = vpop.f32.mrb[0].mxu0
        %2822 = vmatprep.mubr.bf16.mxu0 0
        %2823 = vmatmul.mubr.bf16.gmra.mrb[0].mxu0 %v2698
        %v2824 = vpop.f32.mrb[0].mxu0
        %v2825 = vadd.f32 0.0, %v2824
        %v2826 = vpop.f32.mrb[0].mxu0
        %v2827 = vpop.f32.mrb[0].mxu0
        %v2828 = vadd.f32 0.0, %v2827
        %v2829 = vpop.f32.mrb[0].mxu0
        %2830 = vmatprep.mubr.bf16.mxu0 0
        %2831 = vmatmul.mubr.bf16.gmra.mrb[0].mxu0 %v2701
        %v2832 = vpop.f32.mrb[0].mxu0
        %v2833 = vadd.f32 0.0, %v2832
        %v2834 = vpop.f32.mrb[0].mxu0
        %v2835 = vpop.f32.mrb[0].mxu0
        %v2836 = vadd.f32 0.0, %v2835
        %v2837 = vpop.f32.mrb[0].mxu0
        %2838 = vmatprep.mubr.bf16.mxu0 0
        %2839 = vmatmul.mubr.bf16.gmra.mrb[0].mxu0 %v2704
        %v2840 = vpop.f32.mrb[0].mxu0
        %v2841 = vadd.f32 0.0, %v2840
        %v2842 = vpop.f32.mrb[0].mxu0
        %v2843 = vpop.f32.mrb[0].mxu0
        %v2844 = vadd.f32 0.0, %v2843
        %v2845 = vpop.f32.mrb[0].mxu0
        %2846 = vmatprep.mubr.bf16.mxu0 0
        %2847 = vmatmul.mubr.bf16.gmra.mrb[0].mxu0 %v2707
        %v2848 = vpop.f32.mrb[0].mxu0
        %v2849 = vadd.f32 0.0, %v2848
        %v2850 = vpop.f32.mrb[0].mxu0
        %v2851 = vpop.f32.mrb[0].mxu0
        %v2852 = vadd.f32 0.0, %v2851
        %v2853 = vpop.f32.mrb[0].mxu0
        %2854 = vmatprep.mubr.bf16.mxu0 0
        %2855 = vmatmul.mubr.bf16.gmra.mrb[0].mxu0 %v2710
        %v2856 = vpop.f32.mrb[0].mxu0
        %v2857 = vadd.f32 0.0, %v2856
        %v2858 = vpop.f32.mrb[0].mxu0
        %v2859 = vpop.f32.mrb[0].mxu0
        %v2860 = vadd.f32 0.0, %v2859
        %v2861 = vpop.f32.mrb[0].mxu0
        %2862 = vmatprep.mubr.bf16.mxu0 0
        %2863 = vmatmul.mubr.bf16.gmra.mrb[0].mxu0 %v2713
        %v2864 = vpop.f32.mrb[0].mxu0
        %v2865 = vadd.f32 0.0, %v2864
        %v2866 = vpop.f32.mrb[0].mxu0
        %v2867 = vpop.f32.mrb[0].mxu0
        %v2868 = vadd.f32 0.0, %v2867
        %v2869 = vpop.f32.mrb[0].mxu0
        %2870 = vmatprep.mubr.bf16.mxu0 0
        %2871 = vmatmul.mubr.bf16.gmra.mrb[0].mxu0 %v2716
        %v2872 = vpop.f32.mrb[0].mxu0
        %v2873 = vadd.f32 0.0, %v2872
        %v2874 = vpop.f32.mrb[0].mxu0
        %v2875 = vpop.f32.mrb[0].mxu0
        %v2876 = vadd.f32 0.0, %v2875
        %v2877 = vpop.f32.mrb[0].mxu0
        %2878 = vdwg.mxu0
        %v2879 = vadd.f32 %v2581, %v2753
        %v2880 = vadd.f32 %v2582, %v2756
        %v2881 = vadd.f32 %v2583, %v2761
        %v2882 = vadd.f32 %v2584, %v2764
        %v2883 = vadd.f32 %v2585, %v2769
        %v2884 = vadd.f32 %v2586, %v2772
        %v2885 = vadd.f32 %v2587, %v2777
        %v2886 = vadd.f32 %v2588, %v2780
        %v2887 = vadd.f32 %v2589, %v2785
        %v2888 = vadd.f32 %v2590, %v2788
        %v2889 = vadd.f32 %v2591, %v2793
        %v2890 = vadd.f32 %v2592, %v2796
        %v2891 = vadd.f32 %v2593, %v2801
        %v2892 = vadd.f32 %v2594, %v2804
        %v2893 = vadd.f32 %v2595, %v2809
        %v2894 = vadd.f32 %v2596, %v2812
        %v2895 = vadd.f32 %v2597, %v2817
        %v2896 = vadd.f32 %v2598, %v2820
        %v2897 = vadd.f32 %v2599, %v2825
        %v2898 = vadd.f32 %v2600, %v2828
        %v2899 = vadd.f32 %v2601, %v2833
        %v2900 = vadd.f32 %v2602, %v2836
        %v2901 = vadd.f32 %v2603, %v2841
        %v2902 = vadd.f32 %v2604, %v2844
        %v2903 = vadd.f32 %v2605, %v2849
        %v2904 = vadd.f32 %v2606, %v2852
        %v2905 = vadd.f32 %v2607, %v2857
        %v2906 = vadd.f32 %v2608, %v2860
        %v2907 = vadd.f32 %v2609, %v2865
        %v2908 = vadd.f32 %v2610, %v2868
        %v2909 = vadd.f32 %v2611, %v2873
        %v2910 = vadd.f32 %v2612, %v2876
        %v2911 = vld [vmem:[%s2314 + $0x2] sm:$0xff]
        %v2912 = vld [vmem:[%s2314 + $0xa] sm:$0xff]
        %v2913 = vld [vmem:[%s2314 + $0x1a] sm:$0xff]
        %v2914 = vld [vmem:[%s2314 + $0x22] sm:$0xff]
        %v2915 = vld [vmem:[%s2314 + $0x32] sm:$0xff]
        %v2916 = vld [vmem:[%s2314 + $0x3a] sm:$0xff]
        %v2917 = vld [vmem:[%s2314 + $0x4a] sm:$0xff]
        %v2918 = vld [vmem:[%s2314 + $0x52] sm:$0xff]
        %v2919 = vld [vmem:[%s2314 + $0x62] sm:$0xff]
        %v2920 = vld [vmem:[%s2314 + $0x6a] sm:$0xff]
        %v2921 = vld [vmem:[%s2314 + $0x7a] sm:$0xff]
        %v2922 = vld [vmem:[%s2314 + $0x82] sm:$0xff]
        %v2923 = vld [vmem:[%s2314 + $0x92] sm:$0xff]
        %v2924 = vld [vmem:[%s2314 + $0x9a] sm:$0xff]
        %v2925 = vld [vmem:[%s2314 + $0xaa] sm:$0xff]
        %v2926 = vld [vmem:[%s2314 + $0xb2] sm:$0xff]
        %v2927 = vld [vmem:[%s2314 + $0xc2] sm:$0xff]
        %v2928 = vld [vmem:[%s2314 + $0xca] sm:$0xff]
        %v2929 = vld [vmem:[%s2314 + $0xda] sm:$0xff]
        %v2930 = vld [vmem:[%s2314 + $0xe2] sm:$0xff]
        %v2931 = vld [vmem:[%s2314 + $0xf2] sm:$0xff]
        %v2932 = vld [vmem:[%s2314 + $0xfa] sm:$0xff]
        %v2933 = vld [vmem:[%s2314 + $0x10a] sm:$0xff]
        %v2934 = vld [vmem:[%s2314 + $0x112] sm:$0xff]
        %v2935 = vld [vmem:[%s2314 + $0x122] sm:$0xff]
        %v2936 = vld [vmem:[%s2314 + $0x12a] sm:$0xff]
        %v2937 = vld [vmem:[%s2314 + $0x13a] sm:$0xff]
        %v2938 = vld [vmem:[%s2314 + $0x142] sm:$0xff]
        %v2939 = vld [vmem:[%s2314 + $0x152] sm:$0xff]
        %v2940 = vld [vmem:[%s2314 + $0x15a] sm:$0xff]
        %v2941 = vld [vmem:[%s2314 + $0x16a] sm:$0xff]
        %v2942 = vld [vmem:[%s2314 + $0x172] sm:$0xff]
        %v2943 = vpack.c.bf16 %v2912, %v2911
        %v2944 = vpack.c.bf16 %v2914, %v2913
        %v2945 = vpack.c.bf16 %v2916, %v2915
        %v2946 = vpack.c.bf16 %v2918, %v2917
        %v2947 = vpack.c.bf16 %v2920, %v2919
        %v2948 = vpack.c.bf16 %v2922, %v2921
        %v2949 = vpack.c.bf16 %v2924, %v2923
        %v2950 = vpack.c.bf16 %v2926, %v2925
        %v2951 = vpack.c.bf16 %v2928, %v2927
        %v2952 = vpack.c.bf16 %v2930, %v2929
        %v2953 = vpack.c.bf16 %v2932, %v2931
        %v2954 = vpack.c.bf16 %v2934, %v2933
        %v2955 = vpack.c.bf16 %v2936, %v2935
        %v2956 = vpack.c.bf16 %v2938, %v2937
        %v2957 = vpack.c.bf16 %v2940, %v2939
        %v2958 = vpack.c.bf16 %v2942, %v2941
        %s2959 = scalar_lea.vmem [#allocation9], 64
        %v2960 = vld [vmem:[%s2959] sm:$0xf]
        %v2961 = vld [vmem:[%s2959 + $0x4] sm:$0xf]
        %v2964 = vunpack.c.l.b16 %v2960
        %v2965 = vunpack.c.l.b16 %v2961
        %v2966 = vpack.c.b16 %v2965, %v2964
        %v2969 = vsel %vm696, %v2943, 0
        %v2972 = vsel %vm696, %v2944, 0
        %v2975 = vsel %vm696, %v2945, 0
        %v2978 = vsel %vm696, %v2946, 0
        %v2981 = vsel %vm696, %v2947, 0
        %v2984 = vsel %vm696, %v2948, 0
        %v2987 = vsel %vm696, %v2949, 0
        %v2990 = vsel %vm696, %v2950, 0
        %v2993 = vsel %vm696, %v2951, 0
        %v2996 = vsel %vm696, %v2952, 0
        %v2999 = vsel %vm696, %v2953, 0
        %v3002 = vsel %vm696, %v2954, 0
        %v3005 = vsel %vm696, %v2955, 0
        %v3008 = vsel %vm696, %v2956, 0
        %v3011 = vsel %vm696, %v2957, 0
        %v3014 = vsel %vm696, %v2958, 0
        %3016 = vmatprep.subr.bf16.mxu0 0
        %3017 = vmatpush1.bf16.msra.mxu0 %v2966
        %3018 = vmatprep.subr.bf16.mxu0 0
        %3019 = vmatpush1.bf16.msra.mxu0 0
        %3020 = vmatprep.subr.bf16.mxu0 0
        %3021 = vmatpush1.bf16.msra.mxu0 0
        %3022 = vmatprep.subr.bf16.mxu0 0
        %3023 = vmatpush1.bf16.msra.mxu0 0
        %3024 = vmatprep.subr.bf16.mxu0 0
        %3025 = vmatpush1.bf16.msra.mxu0 0
        %3026 = vmatprep.subr.bf16.mxu0 0
        %3027 = vmatpush1.bf16.msra.mxu0 0
        %3028 = vmatprep.subr.bf16.mxu0 0
        %3029 = vmatpush1.bf16.msra.mxu0 0
        %3030 = vmatprep.subr.bf16.mxu0 0
        %3031 = vmatpush1.bf16.msra.mxu0 0
        %3032 = vmatprep.subr.bf16.mxu0 0
        %3033 = vmatpush1.bf16.msra.mxu0 0
        %3034 = vmatprep.subr.bf16.mxu0 0
        %3035 = vmatpush1.bf16.msra.mxu0 0
        %3036 = vmatprep.subr.bf16.mxu0 0
        %3037 = vmatpush1.bf16.msra.mxu0 0
        %3038 = vmatprep.subr.bf16.mxu0 0
        %3039 = vmatpush1.bf16.msra.mxu0 0
        %3040 = vmatprep.subr.bf16.mxu0 0
        %3041 = vmatpush1.bf16.msra.mxu0 0
        %3042 = vmatprep.subr.bf16.mxu0 0
        %3043 = vmatpush1.bf16.msra.mxu0 0
        %3044 = vmatprep.subr.bf16.mxu0 0
        %3045 = vmatpush1.bf16.msra.mxu0 0
        %3046 = vmatprep.subr.bf16.mxu0 0
        %3047 = vmatpush1.bf16.msra.mxu0 0
        %3048 = vmatprep.mubr.bf16.mxu0 0
        %3049 = vmatmul.mubr.bf16.gmra.mrb[0].mxu0 %v2969
        %v3050 = vpop.f32.mrb[0].mxu0
        %v3051 = vadd.f32 0.0, %v3050
        %v3052 = vpop.f32.mrb[0].mxu0
        %v3053 = vpop.f32.mrb[0].mxu0
        %v3054 = vadd.f32 0.0, %v3053
        %v3055 = vpop.f32.mrb[0].mxu0
        %3056 = vmatprep.mubr.bf16.mxu0 0
        %3057 = vmatmul.mubr.bf16.gmra.mrb[0].mxu0 %v2972
        %v3058 = vpop.f32.mrb[0].mxu0
        %v3059 = vadd.f32 0.0, %v3058
        %v3060 = vpop.f32.mrb[0].mxu0
        %v3061 = vpop.f32.mrb[0].mxu0
        %v3062 = vadd.f32 0.0, %v3061
        %v3063 = vpop.f32.mrb[0].mxu0
        %3064 = vmatprep.mubr.bf16.mxu0 0
        %3065 = vmatmul.mubr.bf16.gmra.mrb[0].mxu0 %v2975
        %v3066 = vpop.f32.mrb[0].mxu0
        %v3067 = vadd.f32 0.0, %v3066
        %v3068 = vpop.f32.mrb[0].mxu0
        %v3069 = vpop.f32.mrb[0].mxu0
        %v3070 = vadd.f32 0.0, %v3069
        %v3071 = vpop.f32.mrb[0].mxu0
        %3072 = vmatprep.mubr.bf16.mxu0 0
        %3073 = vmatmul.mubr.bf16.gmra.mrb[0].mxu0 %v2978
        %v3074 = vpop.f32.mrb[0].mxu0
        %v3075 = vadd.f32 0.0, %v3074
        %v3076 = vpop.f32.mrb[0].mxu0
        %v3077 = vpop.f32.mrb[0].mxu0
        %v3078 = vadd.f32 0.0, %v3077
        %v3079 = vpop.f32.mrb[0].mxu0
        %3080 = vmatprep.mubr.bf16.mxu0 0
        %3081 = vmatmul.mubr.bf16.gmra.mrb[0].mxu0 %v2981
        %v3082 = vpop.f32.mrb[0].mxu0
        %v3083 = vadd.f32 0.0, %v3082
        %v3084 = vpop.f32.mrb[0].mxu0
        %v3085 = vpop.f32.mrb[0].mxu0
        %v3086 = vadd.f32 0.0, %v3085
        %v3087 = vpop.f32.mrb[0].mxu0
        %3088 = vmatprep.mubr.bf16.mxu0 0
        %3089 = vmatmul.mubr.bf16.gmra.mrb[0].mxu0 %v2984
        %v3090 = vpop.f32.mrb[0].mxu0
        %v3091 = vadd.f32 0.0, %v3090
        %v3092 = vpop.f32.mrb[0].mxu0
        %v3093 = vpop.f32.mrb[0].mxu0
        %v3094 = vadd.f32 0.0, %v3093
        %v3095 = vpop.f32.mrb[0].mxu0
        %3096 = vmatprep.mubr.bf16.mxu0 0
        %3097 = vmatmul.mubr.bf16.gmra.mrb[0].mxu0 %v2987
        %v3098 = vpop.f32.mrb[0].mxu0
        %v3099 = vadd.f32 0.0, %v3098
        %v3100 = vpop.f32.mrb[0].mxu0
        %v3101 = vpop.f32.mrb[0].mxu0
        %v3102 = vadd.f32 0.0, %v3101
        %v3103 = vpop.f32.mrb[0].mxu0
        %3104 = vmatprep.mubr.bf16.mxu0 0
        %3105 = vmatmul.mubr.bf16.gmra.mrb[0].mxu0 %v2990
        %v3106 = vpop.f32.mrb[0].mxu0
        %v3107 = vadd.f32 0.0, %v3106
        %v3108 = vpop.f32.mrb[0].mxu0
        %v3109 = vpop.f32.mrb[0].mxu0
        %v3110 = vadd.f32 0.0, %v3109
        %v3111 = vpop.f32.mrb[0].mxu0
        %3112 = vmatprep.mubr.bf16.mxu0 0
        %3113 = vmatmul.mubr.bf16.gmra.mrb[0].mxu0 %v2993
        %v3114 = vpop.f32.mrb[0].mxu0
        %v3115 = vadd.f32 0.0, %v3114
        %v3116 = vpop.f32.mrb[0].mxu0
        %v3117 = vpop.f32.mrb[0].mxu0
        %v3118 = vadd.f32 0.0, %v3117
        %v3119 = vpop.f32.mrb[0].mxu0
        %3120 = vmatprep.mubr.bf16.mxu0 0
        %3121 = vmatmul.mubr.bf16.gmra.mrb[0].mxu0 %v2996
        %v3122 = vpop.f32.mrb[0].mxu0
        %v3123 = vadd.f32 0.0, %v3122
        %v3124 = vpop.f32.mrb[0].mxu0
        %v3125 = vpop.f32.mrb[0].mxu0
        %v3126 = vadd.f32 0.0, %v3125
        %v3127 = vpop.f32.mrb[0].mxu0
        %3128 = vmatprep.mubr.bf16.mxu0 0
        %3129 = vmatmul.mubr.bf16.gmra.mrb[0].mxu0 %v2999
        %v3130 = vpop.f32.mrb[0].mxu0
        %v3131 = vadd.f32 0.0, %v3130
        %v3132 = vpop.f32.mrb[0].mxu0
        %v3133 = vpop.f32.mrb[0].mxu0
        %v3134 = vadd.f32 0.0, %v3133
        %v3135 = vpop.f32.mrb[0].mxu0
        %3136 = vmatprep.mubr.bf16.mxu0 0
        %3137 = vmatmul.mubr.bf16.gmra.mrb[0].mxu0 %v3002
        %v3138 = vpop.f32.mrb[0].mxu0
        %v3139 = vadd.f32 0.0, %v3138
        %v3140 = vpop.f32.mrb[0].mxu0
        %v3141 = vpop.f32.mrb[0].mxu0
        %v3142 = vadd.f32 0.0, %v3141
        %v3143 = vpop.f32.mrb[0].mxu0
        %3144 = vmatprep.mubr.bf16.mxu0 0
        %3145 = vmatmul.mubr.bf16.gmra.mrb[0].mxu0 %v3005
        %v3146 = vpop.f32.mrb[0].mxu0
        %v3147 = vadd.f32 0.0, %v3146
        %v3148 = vpop.f32.mrb[0].mxu0
        %v3149 = vpop.f32.mrb[0].mxu0
        %v3150 = vadd.f32 0.0, %v3149
        %v3151 = vpop.f32.mrb[0].mxu0
        %3152 = vmatprep.mubr.bf16.mxu0 0
        %3153 = vmatmul.mubr.bf16.gmra.mrb[0].mxu0 %v3008
        %v3154 = vpop.f32.mrb[0].mxu0
        %v3155 = vadd.f32 0.0, %v3154
        %v3156 = vpop.f32.mrb[0].mxu0
        %v3157 = vpop.f32.mrb[0].mxu0
        %v3158 = vadd.f32 0.0, %v3157
        %v3159 = vpop.f32.mrb[0].mxu0
        %3160 = vmatprep.mubr.bf16.mxu0 0
        %3161 = vmatmul.mubr.bf16.gmra.mrb[0].mxu0 %v3011
        %v3162 = vpop.f32.mrb[0].mxu0
        %v3163 = vadd.f32 0.0, %v3162
        %v3164 = vpop.f32.mrb[0].mxu0
        %v3165 = vpop.f32.mrb[0].mxu0
        %v3166 = vadd.f32 0.0, %v3165
        %v3167 = vpop.f32.mrb[0].mxu0
        %3168 = vmatprep.mubr.bf16.mxu0 0
        %3169 = vmatmul.mubr.bf16.gmra.mrb[0].mxu0 %v3014
        %v3170 = vpop.f32.mrb[0].mxu0
        %v3171 = vadd.f32 0.0, %v3170
        %v3172 = vpop.f32.mrb[0].mxu0
        %v3173 = vpop.f32.mrb[0].mxu0
        %v3174 = vadd.f32 0.0, %v3173
        %v3175 = vpop.f32.mrb[0].mxu0
        %3176 = vdwg.mxu0
        %v3177 = vadd.f32 %v2879, %v3051
        %v3178 = vadd.f32 %v2880, %v3054
        %v3179 = vadd.f32 %v2881, %v3059
        %v3180 = vadd.f32 %v2882, %v3062
        %v3181 = vadd.f32 %v2883, %v3067
        %v3182 = vadd.f32 %v2884, %v3070
        %v3183 = vadd.f32 %v2885, %v3075
        %v3184 = vadd.f32 %v2886, %v3078
        %v3185 = vadd.f32 %v2887, %v3083
        %v3186 = vadd.f32 %v2888, %v3086
        %v3187 = vadd.f32 %v2889, %v3091
        %v3188 = vadd.f32 %v2890, %v3094
        %v3189 = vadd.f32 %v2891, %v3099
        %v3190 = vadd.f32 %v2892, %v3102
        %v3191 = vadd.f32 %v2893, %v3107
        %v3192 = vadd.f32 %v2894, %v3110
        %v3193 = vadd.f32 %v2895, %v3115
        %v3194 = vadd.f32 %v2896, %v3118
        %v3195 = vadd.f32 %v2897, %v3123
        %v3196 = vadd.f32 %v2898, %v3126
        %v3197 = vadd.f32 %v2899, %v3131
        %v3198 = vadd.f32 %v2900, %v3134
        %v3199 = vadd.f32 %v2901, %v3139
        %v3200 = vadd.f32 %v2902, %v3142
        %v3201 = vadd.f32 %v2903, %v3147
        %v3202 = vadd.f32 %v2904, %v3150
        %v3203 = vadd.f32 %v2905, %v3155
        %v3204 = vadd.f32 %v2906, %v3158
        %v3205 = vadd.f32 %v2907, %v3163
        %v3206 = vadd.f32 %v2908, %v3166
        %v3207 = vadd.f32 %v2909, %v3171
        %v3208 = vadd.f32 %v2910, %v3174
        %v3209 = vld [vmem:[#allocation11] sm:$0x1]
        %v3211 = vlaneseq
        %v3212 = vshrl.u32 %v3211, 7
        %v3213 = vsub.s32 0, %v3212
        %v3214 = vrot.slane %v3209, %v3213
        %v3216 = vadd.f32 %v3177, %v3214
        %v3217 = vadd.f32 %v3178, %v3214
        %v3218 = vadd.f32 %v3179, %v3214
        %v3219 = vadd.f32 %v3180, %v3214
        %v3220 = vadd.f32 %v3181, %v3214
        %v3221 = vadd.f32 %v3182, %v3214
        %v3222 = vadd.f32 %v3183, %v3214
        %v3223 = vadd.f32 %v3184, %v3214
        %v3224 = vadd.f32 %v3185, %v3214
        %v3225 = vadd.f32 %v3186, %v3214
        %v3226 = vadd.f32 %v3187, %v3214
        %v3227 = vadd.f32 %v3188, %v3214
        %v3228 = vadd.f32 %v3189, %v3214
        %v3229 = vadd.f32 %v3190, %v3214
        %v3230 = vadd.f32 %v3191, %v3214
        %v3231 = vadd.f32 %v3192, %v3214
        %v3232 = vadd.f32 %v3193, %v3214
        %v3233 = vadd.f32 %v3194, %v3214
        %v3234 = vadd.f32 %v3195, %v3214
        %v3235 = vadd.f32 %v3196, %v3214
        %v3236 = vadd.f32 %v3197, %v3214
        %v3237 = vadd.f32 %v3198, %v3214
        %v3238 = vadd.f32 %v3199, %v3214
        %v3239 = vadd.f32 %v3200, %v3214
        %v3240 = vadd.f32 %v3201, %v3214
        %v3241 = vadd.f32 %v3202, %v3214
        %v3242 = vadd.f32 %v3203, %v3214
        %v3243 = vadd.f32 %v3204, %v3214
        %v3244 = vadd.f32 %v3205, %v3214
        %v3245 = vadd.f32 %v3206, %v3214
        %v3246 = vadd.f32 %v3207, %v3214
        %v3247 = vadd.f32 %v3208, %v3214
        %v3248 = vsel %vm696, %v3216, 0.0
        %v3249 = vsel %vm696, %v3217, 0.0
        %v3250 = vadd.f32 %v3248, %v3249
        %v3251 = vsel %vm696, %v3218, 0.0
        %v3252 = vadd.f32 %v3250, %v3251
        %v3253 = vsel %vm696, %v3219, 0.0
        %v3254 = vadd.f32 %v3252, %v3253
        %v3255 = vsel %vm696, %v3220, 0.0
        %v3256 = vadd.f32 %v3254, %v3255
        %v3257 = vsel %vm696, %v3221, 0.0
        %v3258 = vadd.f32 %v3256, %v3257
        %v3259 = vsel %vm696, %v3222, 0.0
        %v3260 = vadd.f32 %v3258, %v3259
        %v3261 = vsel %vm696, %v3223, 0.0
        %v3262 = vadd.f32 %v3260, %v3261
        %v3263 = vsel %vm696, %v3224, 0.0
        %v3264 = vadd.f32 %v3262, %v3263
        %v3265 = vsel %vm696, %v3225, 0.0
        %v3266 = vadd.f32 %v3264, %v3265
        %v3267 = vsel %vm696, %v3226, 0.0
        %v3268 = vadd.f32 %v3266, %v3267
        %v3269 = vsel %vm696, %v3227, 0.0
        %v3270 = vadd.f32 %v3268, %v3269
        %v3271 = vsel %vm696, %v3228, 0.0
        %v3272 = vadd.f32 %v3270, %v3271
        %v3273 = vsel %vm696, %v3229, 0.0
        %v3274 = vadd.f32 %v3272, %v3273
        %v3275 = vsel %vm696, %v3230, 0.0
        %v3276 = vadd.f32 %v3274, %v3275
        %v3277 = vsel %vm696, %v3231, 0.0
        %v3278 = vadd.f32 %v3276, %v3277
        %v3279 = vsel %vm696, %v3232, 0.0
        %v3280 = vadd.f32 %v3278, %v3279
        %v3281 = vsel %vm696, %v3233, 0.0
        %v3282 = vadd.f32 %v3280, %v3281
        %v3283 = vsel %vm696, %v3234, 0.0
        %v3284 = vadd.f32 %v3282, %v3283
        %v3285 = vsel %vm696, %v3235, 0.0
        %v3286 = vadd.f32 %v3284, %v3285
        %v3287 = vsel %vm696, %v3236, 0.0
        %v3288 = vadd.f32 %v3286, %v3287
        %v3289 = vsel %vm696, %v3237, 0.0
        %v3290 = vadd.f32 %v3288, %v3289
        %v3291 = vsel %vm696, %v3238, 0.0
        %v3292 = vadd.f32 %v3290, %v3291
        %v3293 = vsel %vm696, %v3239, 0.0
        %v3294 = vadd.f32 %v3292, %v3293
        %v3295 = vsel %vm696, %v3240, 0.0
        %v3296 = vadd.f32 %v3294, %v3295
        %v3297 = vsel %vm696, %v3241, 0.0
        %v3298 = vadd.f32 %v3296, %v3297
        %v3299 = vsel %vm696, %v3242, 0.0
        %v3300 = vadd.f32 %v3298, %v3299
        %v3301 = vsel %vm696, %v3243, 0.0
        %v3302 = vadd.f32 %v3300, %v3301
        %v3303 = vsel %vm696, %v3244, 0.0
        %v3304 = vadd.f32 %v3302, %v3303
        %v3305 = vsel %vm696, %v3245, 0.0
        %v3306 = vadd.f32 %v3304, %v3305
        %v3307 = vsel %vm696, %v3246, 0.0
        %v3308 = vadd.f32 %v3306, %v3307
        %v3309 = vsel %vm696, %v3247, 0.0
        %v3310 = vadd.f32 %v3308, %v3309
        %v3311 = vrot.slane %v3310, 4
        %v3312 = vadd.f32 %v3310, %v3311
        %v3313 = vrot.slane %v3312, 2
        %v3314 = vadd.f32 %v3312, %v3313
        %v3315 = vrot.slane %v3314, 1
        %v3316 = vadd.f32 %v3314, %v3315
        %vm3317 = vcmask 122880
        %3318 = vst.msk [vmem:[%s362] sm:$0x1] %vm3317, %v3316
        %v3319 = vmul.f32 %v3216, %v3216
        %v3320 = vmul.f32 %v3217, %v3217
        %v3321 = vmul.f32 %v3218, %v3218
        %v3322 = vmul.f32 %v3219, %v3219
        %v3323 = vmul.f32 %v3220, %v3220
        %v3324 = vmul.f32 %v3221, %v3221
        %v3325 = vmul.f32 %v3222, %v3222
        %v3326 = vmul.f32 %v3223, %v3223
        %v3327 = vmul.f32 %v3224, %v3224
        %v3328 = vmul.f32 %v3225, %v3225
        %v3329 = vmul.f32 %v3226, %v3226
        %v3330 = vmul.f32 %v3227, %v3227
        %v3331 = vmul.f32 %v3228, %v3228
        %v3332 = vmul.f32 %v3229, %v3229
        %v3333 = vmul.f32 %v3230, %v3230
        %v3334 = vmul.f32 %v3231, %v3231
        %v3335 = vmul.f32 %v3232, %v3232
        %v3336 = vmul.f32 %v3233, %v3233
        %v3337 = vmul.f32 %v3234, %v3234
        %v3338 = vmul.f32 %v3235, %v3235
        %v3339 = vmul.f32 %v3236, %v3236
        %v3340 = vmul.f32 %v3237, %v3237
        %v3341 = vmul.f32 %v3238, %v3238
        %v3342 = vmul.f32 %v3239, %v3239
        %v3343 = vmul.f32 %v3240, %v3240
        %v3344 = vmul.f32 %v3241, %v3241
        %v3345 = vmul.f32 %v3242, %v3242
        %v3346 = vmul.f32 %v3243, %v3243
        %v3347 = vmul.f32 %v3244, %v3244
        %v3348 = vmul.f32 %v3245, %v3245
        %v3349 = vmul.f32 %v3246, %v3246
        %v3350 = vmul.f32 %v3247, %v3247
        %v3351 = vsel %vm696, %v3319, 0.0
        %v3352 = vsel %vm696, %v3320, 0.0
        %v3353 = vadd.f32 %v3351, %v3352
        %v3354 = vsel %vm696, %v3321, 0.0
        %v3355 = vadd.f32 %v3353, %v3354
        %v3356 = vsel %vm696, %v3322, 0.0
        %v3357 = vadd.f32 %v3355, %v3356
        %v3358 = vsel %vm696, %v3323, 0.0
        %v3359 = vadd.f32 %v3357, %v3358
        %v3360 = vsel %vm696, %v3324, 0.0
        %v3361 = vadd.f32 %v3359, %v3360
        %v3362 = vsel %vm696, %v3325, 0.0
        %v3363 = vadd.f32 %v3361, %v3362
        %v3364 = vsel %vm696, %v3326, 0.0
        %v3365 = vadd.f32 %v3363, %v3364
        %v3366 = vsel %vm696, %v3327, 0.0
        %v3367 = vadd.f32 %v3365, %v3366
        %v3368 = vsel %vm696, %v3328, 0.0
        %v3369 = vadd.f32 %v3367, %v3368
        %v3370 = vsel %vm696, %v3329, 0.0
        %v3371 = vadd.f32 %v3369, %v3370
        %v3372 = vsel %vm696, %v3330, 0.0
        %v3373 = vadd.f32 %v3371, %v3372
        %v3374 = vsel %vm696, %v3331, 0.0
        %v3375 = vadd.f32 %v3373, %v3374
        %v3376 = vsel %vm696, %v3332, 0.0
        %v3377 = vadd.f32 %v3375, %v3376
        %v3378 = vsel %vm696, %v3333, 0.0
        %v3379 = vadd.f32 %v3377, %v3378
        %v3380 = vsel %vm696, %v3334, 0.0
        %v3381 = vadd.f32 %v3379, %v3380
        %v3382 = vsel %vm696, %v3335, 0.0
        %v3383 = vadd.f32 %v3381, %v3382
        %v3384 = vsel %vm696, %v3336, 0.0
        %v3385 = vadd.f32 %v3383, %v3384
        %v3386 = vsel %vm696, %v3337, 0.0
        %v3387 = vadd.f32 %v3385, %v3386
        %v3388 = vsel %vm696, %v3338, 0.0
        %v3389 = vadd.f32 %v3387, %v3388
        %v3390 = vsel %vm696, %v3339, 0.0
        %v3391 = vadd.f32 %v3389, %v3390
        %v3392 = vsel %vm696, %v3340, 0.0
        %v3393 = vadd.f32 %v3391, %v3392
        %v3394 = vsel %vm696, %v3341, 0.0
        %v3395 = vadd.f32 %v3393, %v3394
        %v3396 = vsel %vm696, %v3342, 0.0
        %v3397 = vadd.f32 %v3395, %v3396
        %v3398 = vsel %vm696, %v3343, 0.0
        %v3399 = vadd.f32 %v3397, %v3398
        %v3400 = vsel %vm696, %v3344, 0.0
        %v3401 = vadd.f32 %v3399, %v3400
        %v3402 = vsel %vm696, %v3345, 0.0
        %v3403 = vadd.f32 %v3401, %v3402
        %v3404 = vsel %vm696, %v3346, 0.0
        %v3405 = vadd.f32 %v3403, %v3404
        %v3406 = vsel %vm696, %v3347, 0.0
        %v3407 = vadd.f32 %v3405, %v3406
        %v3408 = vsel %vm696, %v3348, 0.0
        %v3409 = vadd.f32 %v3407, %v3408
        %v3410 = vsel %vm696, %v3349, 0.0
        %v3411 = vadd.f32 %v3409, %v3410
        %v3412 = vsel %vm696, %v3350, 0.0
        %v3413 = vadd.f32 %v3411, %v3412
        %v3414 = vrot.slane %v3413, 4
        %v3415 = vadd.f32 %v3413, %v3414
        %v3416 = vrot.slane %v3415, 2
        %v3417 = vadd.f32 %v3415, %v3416
        %v3418 = vrot.slane %v3417, 1
        %v3419 = vadd.f32 %v3417, %v3418
        %3420 = vst.msk [vmem:[%s362 + $0x1] sm:$0x1] %vm3317, %v3419
        %3421 = vst.msk [vmem:[%s355] sm:$0xff] %vm696, %v3216
        %3422 = vst.msk [vmem:[%s355 + $0x8] sm:$0xff] %vm696, %v3217
        %3423 = vst.msk [vmem:[%s355 + $0x10] sm:$0xff] %vm696, %v3218
        %3424 = vst.msk [vmem:[%s355 + $0x18] sm:$0xff] %vm696, %v3219
        %3425 = vst.msk [vmem:[%s355 + $0x20] sm:$0xff] %vm696, %v3220
        %3426 = vst.msk [vmem:[%s355 + $0x28] sm:$0xff] %vm696, %v3221
        %3427 = vst.msk [vmem:[%s355 + $0x30] sm:$0xff] %vm696, %v3222
        %3428 = vst.msk [vmem:[%s355 + $0x38] sm:$0xff] %vm696, %v3223
        %3429 = vst.msk [vmem:[%s355 + $0x40] sm:$0xff] %vm696, %v3224
        %3430 = vst.msk [vmem:[%s355 + $0x48] sm:$0xff] %vm696, %v3225
        %3431 = vst.msk [vmem:[%s355 + $0x50] sm:$0xff] %vm696, %v3226
        %3432 = vst.msk [vmem:[%s355 + $0x58] sm:$0xff] %vm696, %v3227
        %3433 = vst.msk [vmem:[%s355 + $0x60] sm:$0xff] %vm696, %v3228
        %3434 = vst.msk [vmem:[%s355 + $0x68] sm:$0xff] %vm696, %v3229
        %3435 = vst.msk [vmem:[%s355 + $0x70] sm:$0xff] %vm696, %v3230
        %3436 = vst.msk [vmem:[%s355 + $0x78] sm:$0xff] %vm696, %v3231
        %3437 = vst.msk [vmem:[%s355 + $0x80] sm:$0xff] %vm696, %v3232
        %3438 = vst.msk [vmem:[%s355 + $0x88] sm:$0xff] %vm696, %v3233
        %3439 = vst.msk [vmem:[%s355 + $0x90] sm:$0xff] %vm696, %v3234
        %3440 = vst.msk [vmem:[%s355 + $0x98] sm:$0xff] %vm696, %v3235
        %3441 = vst.msk [vmem:[%s355 + $0xa0] sm:$0xff] %vm696, %v3236
        %3442 = vst.msk [vmem:[%s355 + $0xa8] sm:$0xff] %vm696, %v3237
        %3443 = vst.msk [vmem:[%s355 + $0xb0] sm:$0xff] %vm696, %v3238
        %3444 = vst.msk [vmem:[%s355 + $0xb8] sm:$0xff] %vm696, %v3239
        %3445 = vst.msk [vmem:[%s355 + $0xc0] sm:$0xff] %vm696, %v3240
        %3446 = vst.msk [vmem:[%s355 + $0xc8] sm:$0xff] %vm696, %v3241
        %3447 = vst.msk [vmem:[%s355 + $0xd0] sm:$0xff] %vm696, %v3242
        %3448 = vst.msk [vmem:[%s355 + $0xd8] sm:$0xff] %vm696, %v3243
        %3449 = vst.msk [vmem:[%s355 + $0xe0] sm:$0xff] %vm696, %v3244
        %3450 = vst.msk [vmem:[%s355 + $0xe8] sm:$0xff] %vm696, %v3245
        %3451 = vst.msk [vmem:[%s355 + $0xf0] sm:$0xff] %vm696, %v3246
        %3452 = vst.msk [vmem:[%s355 + $0xf8] sm:$0xff] %vm696, %v3247
        %s3453 = sand.u32 %s171, 1
        %s3454 = scalar_lea.sflag [#allocation5], %s3453
        %s3455 = sand.u32 %s171, 1
        %s3456 = smul.addr %s3455, 256
        %s3457 = scalar_lea.vmem [#allocation12], %s3456
        %s3458 = sand.u32 %s199, 1
        %s3459 = scalar_lea.sflag [#allocation14], %s3458
        %s3460 = sand.u32 %s199, 1
        %s3461 = smul.addr %s3460, 2
        %s3462 = scalar_lea.vmem [#allocation13], %s3461
        // Predicated region
        $region65: #{bottleneck_forward.5} parent=39 // pred_check
          %p3463 = pneg %p181
        $region66: #{bottleneck_forward.5} parent=39 // pred_check_branch
          %3465 = sbr.rel (%p3463) target = $region68
        $region67: #{bottleneck_forward.5} parent=39 // pred_region
          %s3467 = ssub.s32 4096, 4096
          %3468 = vsyncadd %s3454, %s3467
          %s3469 = smul.addr %s33, 32
          %s3470 = sadd.s32 %s34, %s3469
          %s3471 = smul.addr %s3470, 128
          %s3472 = scalar_lea.hbm %s5, %s3471
          %s3473 = sshll.u32 %s3457, 4
          %s3474 = int_to_ptr.vmem [resolvable:$true] %s3473
          %3479 = dma.vmem_to_hbm [thread:$0]  %s3474, 4096, %s3472, %s3454, 128, 128, 8
        $region68: #{bottleneck_forward.5} parent=39 // pred_fallthru
          _
        // Predicated region
        $region69: #{bottleneck_forward.5} parent=39 // pred_check
          %p3480 = pneg %p209
        $region70: #{bottleneck_forward.5} parent=39 // pred_check_branch
          %3482 = sbr.rel (%p3480) target = $region72
        $region71: #{bottleneck_forward.5} parent=39 // pred_region
          %s3484 = ssub.s32 32, 32
          %3485 = vsyncadd %s3459, %s3484
          %s3486 = sadd.s32 %s34, %s33
          %s3487 = smul.addr %s3486, 32
          %s3488 = scalar_lea.hbm %s6, %s3487
          %s3490 = sshll.u32 %s3462, 4
          %s3491 = int_to_ptr.vmem [resolvable:$true] %s3490
          %3493 = dma.vmem_to_hbm [thread:$0]  %s3491, 32, %s3488, %s3459
        $region72: #{bottleneck_forward.5} parent=39 // pred_fallthru
          _
      $region40: #{bottleneck_forward.5} parent=5 // pred_fallthru
        _
      %p3494 = scmp.le.s32.totalorder 2, %s24
      // Predicated region
      $region73: #{bottleneck_forward.5} parent=5 // pred_check
        %p3495 = pneg %p3494
      $region74: #{bottleneck_forward.5} parent=5 // pred_check_branch
        %3497 = sbr.rel (%p3495) target = $region76
      $region75: #{bottleneck_forward.5} parent=5 // pred_region
        %s3498 = ssub.s32 %s24, 2
        // Predicated region
        $region77: #{bottleneck_forward.5} parent=75 // pred_check
          %p3499 = pneg %p187
        $region78: #{bottleneck_forward.5} parent=75 // pred_check_branch
          %3501 = sbr.rel (%p3499) target = $region80
        $region79: #{bottleneck_forward.5} parent=75 // pred_region
          %s3502 = sand.u32 %s172, 1
          %s3503 = scalar_lea.sflag [#allocation5], %s3502
          %s3504 = sand.u32 %s172, 1
          %s3505 = smul.addr %s3504, 256
          %s3506 = scalar_lea.vmem [#allocation12], %s3505
          %3507 = dma.done %s3503, 4096
        $region80: #{bottleneck_forward.5} parent=75 // pred_fallthru
          _
        // Predicated region
        $region81: #{bottleneck_forward.5} parent=75 // pred_check
          %p3508 = pneg %p215
        $region82: #{bottleneck_forward.5} parent=75 // pred_check_branch
          %3510 = sbr.rel (%p3508) target = $region84
        $region83: #{bottleneck_forward.5} parent=75 // pred_region
          %s3511 = sand.u32 %s200, 1
          %s3512 = scalar_lea.sflag [#allocation14], %s3511
          %s3513 = sand.u32 %s200, 1
          %s3514 = smul.addr %s3513, 2
          %s3515 = scalar_lea.vmem [#allocation13], %s3514
          %3516 = dma.done %s3512, 32
        $region84: #{bottleneck_forward.5} parent=75 // pred_fallthru
          _
      $region76: #{bottleneck_forward.5} parent=5 // pred_fallthru
        _
    $region6: #{bottleneck_forward.5} parent=1 // loop_footer
      %s28 = sadd.s32 1, %s24
    $region7: #{bottleneck_forward.5} parent=1 // loop_footer_branch
      %23 = sbr.rel target = $region3
    $region8: #{bottleneck_forward.5} parent=1 // loop_exit
      _
    %3517 = vsyncpa [#allocation4], 1
    %s3518 = scalar_lea.sflag [#allocation4], 1
    %3519 = vsyncpa %s3518, 1
    %3520 = vsyncpa [#allocation7], 1
    %3521 = vsyncpa [#allocation10], 1
    %3522 = vsyncpa [#allocation5], 1
    %s3523 = scalar_lea.sflag [#allocation5], 1
    %3524 = vsyncpa %s3523, 1
    %3525 = vsyncpa [#allocation14], 1
    %s3526 = scalar_lea.sflag [#allocation14], 1
    %3527 = vsyncpa %s3526, 1

</llo_original>
